<compile_context>
chip_gen: v7x
topology: tpu7x:2x2x1
jax: 0.10.0
libtpu: 0.0.40
codegen_flags: <defaults>
</compile_context>

<pallas_src>
import math
import functools

import jax
import jax.numpy as jnp
from jax.experimental import pallas as pl
from jax.experimental.pallas import tpu as pltpu

BN_EPS = 1e-5
COMPUTE_DTYPE = jnp.bfloat16           # inter-layer activations / MXU inputs
VMEM_LIMIT = 48 * 1024 * 1024          # below v7x 64 MiB physical, with headroom

_COMPILER_PARAMS = pltpu.CompilerParams(
    dimension_semantics=("parallel",),  # batch grid; shards across TensorCores
    vmem_limit_bytes=VMEM_LIMIT,
)


# ---------------------------------------------------------------------------
# Pallas kernels (one fused BasicBlock per pallas_call)
# ---------------------------------------------------------------------------
def _accum_3x3(get_tap, w_ref, acc):
    """acc += sum_{i,j} get_tap(i, j) @ w[3*i+j], f32 accumulation on the MXU."""
    for i in range(3):
        for j in range(3):
            acc = acc + jnp.dot(get_tap(i, j), w_ref[3 * i + j],
                                preferred_element_type=jnp.float32)
    return acc


def _basic_block_kernel(x_ref, mask_ref, w1_ref, b1_ref, w2_ref, b2_ref,
                        o_ref, hpad_ref, *, ho, wo, pool):
    """Stride-1 BasicBlock (identity residual), fully fused.

    x_ref: (1, (ho+3)*wf, Cin) zero-padded flat input plane (wf = wo+2).
    """
    wf = wo + 2
    mo = ho * wf
    p = w1_ref.shape[2]
    mask = mask_ref[...]                                  # (mo, 1) bf16, 0 on pad cols

    # conv1 (3x3, s=1, p=1) + bn1 + relu
    acc1 = jnp.broadcast_to(b1_ref[...], (mo, p))
    acc1 = _accum_3x3(lambda i, j: x_ref[0, pl.ds(i * wf + j, mo), :], w1_ref, acc1)
    h = jnp.maximum(acc1, 0.0).astype(COMPUTE_DTYPE) * mask

    # h -> zero-padded flat plane for conv2 (stays in VMEM)
    hpad_ref[...] = jnp.zeros(hpad_ref.shape, hpad_ref.dtype)
    hpad_ref[pl.ds(wf + 1, mo), :] = h

    # conv2 (3x3, s=1, p=1) + bn2 + identity residual + relu
    acc2 = jnp.broadcast_to(b2_ref[...], (mo, p))
    acc2 = acc2 + x_ref[0, pl.ds(wf + 1, mo), :].astype(jnp.float32)
    acc2 = _accum_3x3(lambda i, j: hpad_ref[pl.ds(i * wf + j, mo), :], w2_ref, acc2)
    out = jnp.maximum(acc2, 0.0)

    if pool:   # fused AdaptiveAvgPool2d(1) + flatten
        o_ref[0] = jnp.sum(out * mask.astype(jnp.float32), axis=0,
                           keepdims=True) * (1.0 / (ho * wo))
    else:
        o_ref[0] = out.astype(o_ref.dtype)


def _basic_block_down_kernel(xph_ref, mask_ref, w1_ref, b1_ref, wd_ref, bd_ref,
                             w2_ref, b2_ref, o_ref, hpad_ref, *, ho, wo, pool):
    """Stride-2 BasicBlock with Conv1x1(s=2)+BN downsample residual, fully fused.

    xph_ref: (1, 4, (ho+3)*wf, Cin) -- the 4 stride-2 parity phases of the
    padded input; every stride-2 tap is a contiguous window of one phase.
    """
    wf = wo + 2
    mo = ho * wf
    p = w1_ref.shape[2]
    mask = mask_ref[...]

    def x_tap(i, j):
        return xph_ref[0, 2 * (i % 2) + (j % 2),
                       pl.ds((i // 2) * wf + (j // 2), mo), :]

    # conv1 (3x3, s=2, p=1) + bn1 + relu
    acc1 = jnp.broadcast_to(b1_ref[...], (mo, p))
    acc1 = _accum_3x3(x_tap, w1_ref, acc1)
    h = jnp.maximum(acc1, 0.0).astype(COMPUTE_DTYPE) * mask

    # downsample residual: 1x1 stride-2 conv + bn (input == parity phase (1,1))
    res = jnp.dot(xph_ref[0, 3, pl.ds(0, mo), :], wd_ref[...],
                  preferred_element_type=jnp.float32) + bd_ref[...]

    hpad_ref[...] = jnp.zeros(hpad_ref.shape, hpad_ref.dtype)
    hpad_ref[pl.ds(wf + 1, mo), :] = h

    # conv2 (3x3, s=1, p=1) + bn2 + downsample residual + relu
    acc2 = jnp.broadcast_to(b2_ref[...], (mo, p)) + res
    acc2 = _accum_3x3(lambda i, j: hpad_ref[pl.ds(i * wf + j, mo), :], w2_ref, acc2)
    out = jnp.maximum(acc2, 0.0)

    if pool:
        o_ref[0] = jnp.sum(out * mask.astype(jnp.float32), axis=0,
                           keepdims=True) * (1.0 / (ho * wo))
    else:
        o_ref[0] = out.astype(o_ref.dtype)


# ---------------------------------------------------------------------------
# Glue: BN folding, column mask, padding helpers
# ---------------------------------------------------------------------------
def _fold_bn_taps(w_oihw, bn):
    """(Cout,Cin,KH,KW) weight + inference BN -> bf16 (KH*KW,Cin,Cout), f32 (1,Cout)."""
    gamma, beta, mean, var = bn
    cout, cin, kh, kw = w_oihw.shape
    scale = gamma / jnp.sqrt(var + BN_EPS)
    bias = beta - mean * scale
    w = jnp.transpose(w_oihw, (2, 3, 1, 0)).reshape(kh * kw, cin, cout)
    w = w * scale[None, None, :]
    return w.astype(COMPUTE_DTYPE), bias.reshape(1, cout).astype(jnp.float32)


def _col_mask(ho, wo):
    """(ho*(wo+2), 1) bf16 mask: 1 on valid output columns, 0 on the 2 pad cols."""
    m = (jnp.arange(wo + 2) < wo).astype(COMPUTE_DTYPE)
    return jnp.tile(m, ho).reshape(ho * (wo + 2), 1)


def _nbytes(x):
    return int(x.size) * x.dtype.itemsize


# ---------------------------------------------------------------------------
# Block wrappers
# ---------------------------------------------------------------------------
def basic_block_s1(x_nhwc, w1, bn1, w2, bn2, *, pool=False):
    """Stride-1 BasicBlock without downsample (one fused pallas_call)."""
    N, H, W, Cin = x_nhwc.shape
    P = w1.shape[0]
    assert w1.shape[2:] == (3, 3) and w2.shape[2:] == (3, 3)
    assert Cin == P, "identity residual requires inplanes == planes"

    Ho, Wo = H, W
    Wf, Mo = Wo + 2, Ho * (Wo + 2)
    Mf = (Ho + 3) * Wf                                   # +1 slack row for window reads

    # zero-pad once (1-px border + slack) and flatten rows: ~1.2x HBM copy
    # instead of the previous 9x im2col expansion.
    xflat = jnp.pad(x_nhwc.astype(COMPUTE_DTYPE),
                    ((0, 0), (1, 2), (1, 1), (0, 0))).reshape(N, Mf, Cin)
    mask = _col_mask(Ho, Wo)
    w1t, b1 = _fold_bn_taps(w1, bn1)
    w2t, b2 = _fold_bn_taps(w2, bn2)

    if pool:
        out_shape = jax.ShapeDtypeStruct((N, 1, P), jnp.float32)
        out_spec = pl.BlockSpec((1, 1, P), lambda n: (n, 0, 0))
        out_bytes = N * P * 4
    else:
        out_shape = jax.ShapeDtypeStruct((N, Mo, P), COMPUTE_DTYPE)
        out_spec = pl.BlockSpec((1, Mo, P), lambda n: (n, 0, 0))
        out_bytes = N * Mo * P * 2

    flops = 2 * N * Ho * Wo * (9 * Cin * P + 9 * P * P)
    bytes_accessed = (_nbytes(xflat) + _nbytes(w1t) + _nbytes(w2t)
                      + _nbytes(mask) + out_bytes)

    out = pl.pallas_call(
        functools.partial(_basic_block_kernel, ho=Ho, wo=Wo, pool=pool),
        out_shape=out_shape,
        grid=(N,),
        in_specs=[
            pl.BlockSpec((1, Mf, Cin), lambda n: (n, 0, 0)),
            pl.BlockSpec((Mo, 1), lambda n: (0, 0)),
            pl.BlockSpec((9, Cin, P), lambda n: (0, 0, 0)),
            pl.BlockSpec((1, P), lambda n: (0, 0)),
            pl.BlockSpec((9, P, P), lambda n: (0, 0, 0)),
            pl.BlockSpec((1, P), lambda n: (0, 0)),
        ],
        out_specs=out_spec,
        scratch_shapes=[pltpu.VMEM(((Ho + 3) * Wf, P), COMPUTE_DTYPE)],
        compiler_params=_COMPILER_PARAMS,
        cost_estimate=pl.CostEstimate(flops=flops, transcendentals=0,
                                      bytes_accessed=bytes_accessed),
    )(xflat, mask, w1t, b1, w2t, b2)

    if pool:
        return out.reshape(N, P)
    return out.reshape(N, Ho, Wf, P)[:, :, :Wo, :]


def basic_block_down(x_nhwc, w1, bn1, w2, bn2, wd, bnd, *, stride=2, pool=False):
    """Stride-2 BasicBlock with Conv1x1(s=2)+BN downsample (one fused pallas_call)."""
    assert stride == 2  # TODO(synk): other strides are not used by this ResNet config
    N, H, W, Cin = x_nhwc.shape
    P = w1.shape[0]
    assert w1.shape[2:] == (3, 3) and w2.shape[2:] == (3, 3) and wd.shape[2:] == (1, 1)

    Ho, Wo = (H - 1) // 2 + 1, (W - 1) // 2 + 1
    Wf, Mo = Wo + 2, Ho * (Wo + 2)
    Hf = Ho + 3                                          # phase-plane rows (+1 slack)
    Mp = Hf * Wf

    # zero-pad to exactly (2*Hf, 2*Wf) and split into the 4 stride-2 parity
    # phases: xph[n, 2p+q, a*Wf+b, :] == xpad[n, 2a+p, 2b+q, :].  Every
    # stride-2 3x3 / 1x1 tap then is a contiguous, lane-aligned window.
    xp = jnp.pad(x_nhwc.astype(COMPUTE_DTYPE),
                 ((0, 0), (1, 2 * Hf - H - 1), (1, 2 * Wf - W - 1), (0, 0)))
    xph = xp.reshape(N, Hf, 2, Wf, 2, Cin).transpose(0, 2, 4, 1, 3, 5)
    xph = xph.reshape(N, 4, Mp, Cin)

    mask = _col_mask(Ho, Wo)
    w1t, b1 = _fold_bn_taps(w1, bn1)
    w2t, b2 = _fold_bn_taps(w2, bn2)
    wdt, bd = _fold_bn_taps(wd, bnd)
    wdt = wdt.reshape(Cin, P)

    if pool:
        out_shape = jax.ShapeDtypeStruct((N, 1, P), jnp.float32)
        out_spec = pl.BlockSpec((1, 1, P), lambda n: (n, 0, 0))
        out_bytes = N * P * 4
    else:
        out_shape = jax.ShapeDtypeStruct((N, Mo, P), COMPUTE_DTYPE)
        out_spec = pl.BlockSpec((1, Mo, P), lambda n: (n, 0, 0))
        out_bytes = N * Mo * P * 2

    flops = 2 * N * Ho * Wo * (9 * Cin * P + 9 * P * P + Cin * P)
    bytes_accessed = (_nbytes(xph) + _nbytes(w1t) + _nbytes(w2t) + _nbytes(wdt)
                      + _nbytes(mask) + out_bytes)

    out = pl.pallas_call(
        functools.partial(_basic_block_down_kernel, ho=Ho, wo=Wo, pool=pool),
        out_shape=out_shape,
        grid=(N,),
        in_specs=[
            pl.BlockSpec((1, 4, Mp, Cin), lambda n: (n, 0, 0, 0)),
            pl.BlockSpec((Mo, 1), lambda n: (0, 0)),
            pl.BlockSpec((9, Cin, P), lambda n: (0, 0, 0)),
            pl.BlockSpec((1, P), lambda n: (0, 0)),
            pl.BlockSpec((Cin, P), lambda n: (0, 0)),
            pl.BlockSpec((1, P), lambda n: (0, 0)),
            pl.BlockSpec((9, P, P), lambda n: (0, 0, 0)),
            pl.BlockSpec((1, P), lambda n: (0, 0)),
        ],
        out_specs=out_spec,
        scratch_shapes=[pltpu.VMEM(((Ho + 3) * Wf, P), COMPUTE_DTYPE)],
        compiler_params=_COMPILER_PARAMS,
        cost_estimate=pl.CostEstimate(flops=flops, transcendentals=0,
                                      bytes_accessed=bytes_accessed),
    )(xph, mask, w1t, b1, wdt, bd, w2t, b2)

    if pool:
        return out.reshape(N, P)
    return out.reshape(N, Ho, Wf, P)[:, :, :Wo, :]


# ---------------------------------------------------------------------------
# Parameter init (mirrors the PyTorch module's __init__)
# ---------------------------------------------------------------------------
def _conv_weight(key, cout, cin, kh, kw):
    n = kh * kw * cout
    std = math.sqrt(2.0 / n)
    return jax.random.normal(key, (cout, cin, kh, kw), jnp.float32) * std


def _bn_params(c):
    # BatchNorm2d after module init: weight=1, bias=0, running stats 0/1
    return (jnp.ones((c,), jnp.float32), jnp.zeros((c,), jnp.float32),
            jnp.zeros((c,), jnp.float32), jnp.ones((c,), jnp.float32))


def _basic_block_params(key, inplanes, planes, stride):
    k1, k2, kd = jax.random.split(key, 3)
    p = {
        "w1": _conv_weight(k1, planes, inplanes, 3, 3),
        "bn1": _bn_params(planes),
        "w2": _conv_weight(k2, planes, planes, 3, 3),
        "bn2": _bn_params(planes),
        "stride": stride,
        "downsample": None,
    }
    if stride != 1 or inplanes != planes:
        # downsample_basic_block: Conv2d 1x1 stride s (bias=False) + BN
        p["downsample"] = {
            "w": _conv_weight(kd, planes, inplanes, 1, 1),
            "bn": _bn_params(planes),
        }
    return p


def init_resnet_params(key, layers=(1, 1, 1, 1)):
    inplanes = 64
    stages = []
    stage_cfg = [(64, layers[0], 1), (128, layers[1], 2),
                 (256, layers[2], 2), (512, layers[3], 2)]
    for planes, blocks, stride in stage_cfg:
        blocks_p = []
        for b in range(blocks):
            key, sub = jax.random.split(key)
            s = stride if b == 0 else 1
            blocks_p.append(_basic_block_params(sub, inplanes, planes, s))
            inplanes = planes
        stages.append(blocks_p)
    return stages


# ---------------------------------------------------------------------------
# Forward
# ---------------------------------------------------------------------------
def resnet_forward(x_nchw, params):
    # accept NCHW (PyTorch convention), compute in NHWC bf16, f32 accumulation
    x = jnp.transpose(x_nchw, (0, 2, 3, 1))
    blocks = [b for stage in params for b in stage]
    for idx, p in enumerate(blocks):
        last = idx == len(blocks) - 1        # fuse AdaptiveAvgPool2d+flatten here
        if p["downsample"] is not None:
            x = basic_block_down(x, p["w1"], p["bn1"], p["w2"], p["bn2"],
                                 p["downsample"]["w"], p["downsample"]["bn"],
                                 stride=p["stride"], pool=last)
        else:
            x = basic_block_s1(x, p["w1"], p["bn1"], p["w2"], p["bn2"], pool=last)
    return x                                  # (N, 512) f32


# TODO(synk): PReLU branch (relu_type='prelu'), gamma_zero init, the
# avg_pool_downsample=True downsample variant and training-mode BatchNorm
# batch statistics are not exercised by the default config and are not
# implemented; inference-mode BN with module-init stats is used.

if __name__ == "__main__":
    key = jax.random.PRNGKey(0)
    kx, kp = jax.random.split(key)
    N, C, H, W = 2, 64, 16, 16          # layer1 requires 64 input channels
    x = jax.random.normal(kx, (N, C, H, W), jnp.float32)
    params = init_resnet_params(kp, layers=(1, 1, 1, 1))
    out = resnet_forward(x, params)
    out = jax.block_until_ready(out)
    assert out.shape == (N, 512), out.shape
    assert bool(jnp.all(jnp.isfinite(out)))
    print("KERNEL_OK")
</pallas_src>

<mosaic_0001>
module attributes {stable_mosaic.version = 11 : i64} {
  func.func @_basic_block_kernel(%arg0: i32, %arg1: memref<1x342x64xbf16, #tpu.memory_space<vmem>>, %arg2: memref<288x1xbf16, #tpu.memory_space<vmem>>, %arg3: memref<9x64x64xbf16, #tpu.memory_space<vmem>>, %arg4: memref<1x64xf32, #tpu.memory_space<vmem>>, %arg5: memref<9x64x64xbf16, #tpu.memory_space<vmem>>, %arg6: memref<1x64xf32, #tpu.memory_space<vmem>>, %arg7: memref<1x288x64xbf16, #tpu.memory_space<vmem>>, %arg8: memref<342x64xbf16, #tpu.memory_space<vmem>>) attributes {dimension_semantics = [#tpu.dimension_semantics<parallel>], iteration_bounds = array<i64: 2>, scalar_prefetch = 0 : i64, scratch_operands = 1 : i64, tpu.core_type = #tpu.core_type<tc>, window_params = [{transform_indices = @transform_0, window_bounds = array<i64: 1, 342, 64>}, {pipeline_mode = #tpu.pipeline_mode<synchronous>, transform_indices = @transform_1, window_bounds = array<i64: 288, 1>}, {pipeline_mode = #tpu.pipeline_mode<synchronous>, transform_indices = @transform_2, window_bounds = array<i64: 9, 64, 64>}, {pipeline_mode = #tpu.pipeline_mode<synchronous>, transform_indices = @transform_3, window_bounds = array<i64: 1, 64>}, {pipeline_mode = #tpu.pipeline_mode<synchronous>, transform_indices = @transform_4, window_bounds = array<i64: 9, 64, 64>}, {pipeline_mode = #tpu.pipeline_mode<synchronous>, transform_indices = @transform_5, window_bounds = array<i64: 1, 64>}, {transform_indices = @transform_6, window_bounds = array<i64: 1, 288, 64>}]} {
    %c0 = arith.constant 0 : index
    %c0_0 = arith.constant 0 : index
    %0 = vector.load %arg2[%c0, %c0_0] : memref<288x1xbf16, #tpu.memory_space<vmem>>, vector<288x1xbf16>
    %c0_1 = arith.constant 0 : index
    %c0_2 = arith.constant 0 : index
    %1 = vector.load %arg4[%c0_1, %c0_2] : memref<1x64xf32, #tpu.memory_space<vmem>>, vector<1x64xf32>
    %2 = vector.shape_cast %1 : vector<1x64xf32> to vector<1x64xf32>
    %3 = vector.broadcast %2 : vector<1x64xf32> to vector<288x64xf32>
    %c0_3 = arith.constant 0 : index
    %c0_4 = arith.constant 0 : index
    %c0_5 = arith.constant 0 : index
    %4 = vector.load %arg1[%c0_3, %c0_4, %c0_5] : memref<1x342x64xbf16, #tpu.memory_space<vmem>>, vector<1x288x64xbf16>
    %5 = vector.shape_cast %4 : vector<1x288x64xbf16> to vector<288x64xbf16>
    %c0_6 = arith.constant 0 : index
    %c0_7 = arith.constant 0 : index
    %c0_8 = arith.constant 0 : index
    %6 = vector.load %arg3[%c0_6, %c0_7, %c0_8] : memref<9x64x64xbf16, #tpu.memory_space<vmem>>, vector<1x64x64xbf16>
    %7 = vector.shape_cast %6 : vector<1x64x64xbf16> to vector<64x64xbf16>
    %cst = arith.constant dense<0.000000e+00> : vector<288x64xf32>
    %8 = tpu.matmul %5, %7, %cst {dimension_numbers = #tpu.dot_dimension_numbers<[1], [0], [0], [1], [0, 0, 1, 1], [], []>} : vector<288x64xbf16>, vector<64x64xbf16>, vector<288x64xf32> -> vector<288x64xf32>
    %9 = arith.addf %3, %8 : vector<288x64xf32>
    %c0_9 = arith.constant 0 : index
    %c1 = arith.constant 1 : index
    %c0_10 = arith.constant 0 : index
    %10 = vector.load %arg1[%c0_9, %c1, %c0_10] : memref<1x342x64xbf16, #tpu.memory_space<vmem>>, vector<1x288x64xbf16>
    %11 = vector.shape_cast %10 : vector<1x288x64xbf16> to vector<288x64xbf16>
    %c1_11 = arith.constant 1 : index
    %c0_12 = arith.constant 0 : index
    %c0_13 = arith.constant 0 : index
    %12 = vector.load %arg3[%c1_11, %c0_12, %c0_13] : memref<9x64x64xbf16, #tpu.memory_space<vmem>>, vector<1x64x64xbf16>
    %13 = vector.shape_cast %12 : vector<1x64x64xbf16> to vector<64x64xbf16>
    %cst_14 = arith.constant dense<0.000000e+00> : vector<288x64xf32>
    %14 = tpu.matmul %11, %13, %cst_14 {dimension_numbers = #tpu.dot_dimension_numbers<[1], [0], [0], [1], [0, 0, 1, 1], [], []>} : vector<288x64xbf16>, vector<64x64xbf16>, vector<288x64xf32> -> vector<288x64xf32>
    %15 = arith.addf %9, %14 : vector<288x64xf32>
    %c0_15 = arith.constant 0 : index
    %c2 = arith.constant 2 : index
    %c0_16 = arith.constant 0 : index
    %16 = vector.load %arg1[%c0_15, %c2, %c0_16] : memref<1x342x64xbf16, #tpu.memory_space<vmem>>, vector<1x288x64xbf16>
    %17 = vector.shape_cast %16 : vector<1x288x64xbf16> to vector<288x64xbf16>
    %c2_17 = arith.constant 2 : index
    %c0_18 = arith.constant 0 : index
    %c0_19 = arith.constant 0 : index
    %18 = vector.load %arg3[%c2_17, %c0_18, %c0_19] : memref<9x64x64xbf16, #tpu.memory_space<vmem>>, vector<1x64x64xbf16>
    %19 = vector.shape_cast %18 : vector<1x64x64xbf16> to vector<64x64xbf16>
    %cst_20 = arith.constant dense<0.000000e+00> : vector<288x64xf32>
    %20 = tpu.matmul %17, %19, %cst_20 {dimension_numbers = #tpu.dot_dimension_numbers<[1], [0], [0], [1], [0, 0, 1, 1], [], []>} : vector<288x64xbf16>, vector<64x64xbf16>, vector<288x64xf32> -> vector<288x64xf32>
    %21 = arith.addf %15, %20 : vector<288x64xf32>
    %c0_21 = arith.constant 0 : index
    %c18 = arith.constant 18 : index
    %c0_22 = arith.constant 0 : index
    %22 = vector.load %arg1[%c0_21, %c18, %c0_22] : memref<1x342x64xbf16, #tpu.memory_space<vmem>>, vector<1x288x64xbf16>
    %23 = vector.shape_cast %22 : vector<1x288x64xbf16> to vector<288x64xbf16>
    %c3 = arith.constant 3 : index
    %c0_23 = arith.constant 0 : index
    %c0_24 = arith.constant 0 : index
    %24 = vector.load %arg3[%c3, %c0_23, %c0_24] : memref<9x64x64xbf16, #tpu.memory_space<vmem>>, vector<1x64x64xbf16>
    %25 = vector.shape_cast %24 : vector<1x64x64xbf16> to vector<64x64xbf16>
    %cst_25 = arith.constant dense<0.000000e+00> : vector<288x64xf32>
    %26 = tpu.matmul %23, %25, %cst_25 {dimension_numbers = #tpu.dot_dimension_numbers<[1], [0], [0], [1], [0, 0, 1, 1], [], []>} : vector<288x64xbf16>, vector<64x64xbf16>, vector<288x64xf32> -> vector<288x64xf32>
    %27 = arith.addf %21, %26 : vector<288x64xf32>
    %c0_26 = arith.constant 0 : index
    %c19 = arith.constant 19 : index
    %c0_27 = arith.constant 0 : index
    %28 = vector.load %arg1[%c0_26, %c19, %c0_27] : memref<1x342x64xbf16, #tpu.memory_space<vmem>>, vector<1x288x64xbf16>
    %29 = vector.shape_cast %28 : vector<1x288x64xbf16> to vector<288x64xbf16>
    %c4 = arith.constant 4 : index
    %c0_28 = arith.constant 0 : index
    %c0_29 = arith.constant 0 : index
    %30 = vector.load %arg3[%c4, %c0_28, %c0_29] : memref<9x64x64xbf16, #tpu.memory_space<vmem>>, vector<1x64x64xbf16>
    %31 = vector.shape_cast %30 : vector<1x64x64xbf16> to vector<64x64xbf16>
    %cst_30 = arith.constant dense<0.000000e+00> : vector<288x64xf32>
    %32 = tpu.matmul %29, %31, %cst_30 {dimension_numbers = #tpu.dot_dimension_numbers<[1], [0], [0], [1], [0, 0, 1, 1], [], []>} : vector<288x64xbf16>, vector<64x64xbf16>, vector<288x64xf32> -> vector<288x64xf32>
    %33 = arith.addf %27, %32 : vector<288x64xf32>
    %c0_31 = arith.constant 0 : index
    %c20 = arith.constant 20 : index
    %c0_32 = arith.constant 0 : index
    %34 = vector.load %arg1[%c0_31, %c20, %c0_32] : memref<1x342x64xbf16, #tpu.memory_space<vmem>>, vector<1x288x64xbf16>
    %35 = vector.shape_cast %34 : vector<1x288x64xbf16> to vector<288x64xbf16>
    %c5 = arith.constant 5 : index
    %c0_33 = arith.constant 0 : index
    %c0_34 = arith.constant 0 : index
    %36 = vector.load %arg3[%c5, %c0_33, %c0_34] : memref<9x64x64xbf16, #tpu.memory_space<vmem>>, vector<1x64x64xbf16>
    %37 = vector.shape_cast %36 : vector<1x64x64xbf16> to vector<64x64xbf16>
    %cst_35 = arith.constant dense<0.000000e+00> : vector<288x64xf32>
    %38 = tpu.matmul %35, %37, %cst_35 {dimension_numbers = #tpu.dot_dimension_numbers<[1], [0], [0], [1], [0, 0, 1, 1], [], []>} : vector<288x64xbf16>, vector<64x64xbf16>, vector<288x64xf32> -> vector<288x64xf32>
    %39 = arith.addf %33, %38 : vector<288x64xf32>
    %c0_36 = arith.constant 0 : index
    %c36 = arith.constant 36 : index
    %c0_37 = arith.constant 0 : index
    %40 = vector.load %arg1[%c0_36, %c36, %c0_37] : memref<1x342x64xbf16, #tpu.memory_space<vmem>>, vector<1x288x64xbf16>
    %41 = vector.shape_cast %40 : vector<1x288x64xbf16> to vector<288x64xbf16>
    %c6 = arith.constant 6 : index
    %c0_38 = arith.constant 0 : index
    %c0_39 = arith.constant 0 : index
    %42 = vector.load %arg3[%c6, %c0_38, %c0_39] : memref<9x64x64xbf16, #tpu.memory_space<vmem>>, vector<1x64x64xbf16>
    %43 = vector.shape_cast %42 : vector<1x64x64xbf16> to vector<64x64xbf16>
    %cst_40 = arith.constant dense<0.000000e+00> : vector<288x64xf32>
    %44 = tpu.matmul %41, %43, %cst_40 {dimension_numbers = #tpu.dot_dimension_numbers<[1], [0], [0], [1], [0, 0, 1, 1], [], []>} : vector<288x64xbf16>, vector<64x64xbf16>, vector<288x64xf32> -> vector<288x64xf32>
    %45 = arith.addf %39, %44 : vector<288x64xf32>
    %c0_41 = arith.constant 0 : index
    %c37 = arith.constant 37 : index
    %c0_42 = arith.constant 0 : index
    %46 = vector.load %arg1[%c0_41, %c37, %c0_42] : memref<1x342x64xbf16, #tpu.memory_space<vmem>>, vector<1x288x64xbf16>
    %47 = vector.shape_cast %46 : vector<1x288x64xbf16> to vector<288x64xbf16>
    %c7 = arith.constant 7 : index
    %c0_43 = arith.constant 0 : index
    %c0_44 = arith.constant 0 : index
    %48 = vector.load %arg3[%c7, %c0_43, %c0_44] : memref<9x64x64xbf16, #tpu.memory_space<vmem>>, vector<1x64x64xbf16>
    %49 = vector.shape_cast %48 : vector<1x64x64xbf16> to vector<64x64xbf16>
    %cst_45 = arith.constant dense<0.000000e+00> : vector<288x64xf32>
    %50 = tpu.matmul %47, %49, %cst_45 {dimension_numbers = #tpu.dot_dimension_numbers<[1], [0], [0], [1], [0, 0, 1, 1], [], []>} : vector<288x64xbf16>, vector<64x64xbf16>, vector<288x64xf32> -> vector<288x64xf32>
    %51 = arith.addf %45, %50 : vector<288x64xf32>
    %c0_46 = arith.constant 0 : index
    %c38 = arith.constant 38 : index
    %c0_47 = arith.constant 0 : index
    %52 = vector.load %arg1[%c0_46, %c38, %c0_47] : memref<1x342x64xbf16, #tpu.memory_space<vmem>>, vector<1x288x64xbf16>
    %53 = vector.shape_cast %52 : vector<1x288x64xbf16> to vector<288x64xbf16>
    %c8 = arith.constant 8 : index
    %c0_48 = arith.constant 0 : index
    %c0_49 = arith.constant 0 : index
    %54 = vector.load %arg3[%c8, %c0_48, %c0_49] : memref<9x64x64xbf16, #tpu.memory_space<vmem>>, vector<1x64x64xbf16>
    %55 = vector.shape_cast %54 : vector<1x64x64xbf16> to vector<64x64xbf16>
    %cst_50 = arith.constant dense<0.000000e+00> : vector<288x64xf32>
    %56 = tpu.matmul %53, %55, %cst_50 {dimension_numbers = #tpu.dot_dimension_numbers<[1], [0], [0], [1], [0, 0, 1, 1], [], []>} : vector<288x64xbf16>, vector<64x64xbf16>, vector<288x64xf32> -> vector<288x64xf32>
    %57 = arith.addf %51, %56 : vector<288x64xf32>
    %cst_51 = arith.constant 0.000000e+00 : f32
    %58 = vector.broadcast %cst_51 : f32 to vector<288x64xf32>
    %59 = arith.maximumf %57, %58 : vector<288x64xf32>
    %60 = arith.truncf %59 : vector<288x64xf32> to vector<288x64xbf16>
    %61 = vector.broadcast %0 : vector<288x1xbf16> to vector<288x64xbf16>
    %62 = arith.mulf %60, %61 : vector<288x64xbf16>
    %cst_52 = arith.constant 0.000000e+00 : bf16
    %63 = vector.broadcast %cst_52 : bf16 to vector<342x64xbf16>
    %c0_53 = arith.constant 0 : index
    %c0_54 = arith.constant 0 : index
    %64 = vector.load %arg8[%c0_53, %c0_54] : memref<342x64xbf16, #tpu.memory_space<vmem>>, vector<342x64xbf16>
    tpu.vector_store %arg8[%c0_53, %c0_54], %63 {strides = array<i32>} : memref<342x64xbf16, #tpu.memory_space<vmem>>, vector<342x64xbf16>,
    %c19_55 = arith.constant 19 : index
    %c0_56 = arith.constant 0 : index
    %65 = vector.load %arg8[%c19_55, %c0_56] : memref<342x64xbf16, #tpu.memory_space<vmem>>, vector<288x64xbf16>
    tpu.vector_store %arg8[%c19_55, %c0_56], %62 {strides = array<i32>} : memref<342x64xbf16, #tpu.memory_space<vmem>>, vector<288x64xbf16>,
    %c0_57 = arith.constant 0 : index
    %c0_58 = arith.constant 0 : index
    %66 = vector.load %arg6[%c0_57, %c0_58] : memref<1x64xf32, #tpu.memory_space<vmem>>, vector<1x64xf32>
    %67 = vector.shape_cast %66 : vector<1x64xf32> to vector<1x64xf32>
    %68 = vector.broadcast %67 : vector<1x64xf32> to vector<288x64xf32>
    %c0_59 = arith.constant 0 : index
    %c19_60 = arith.constant 19 : index
    %c0_61 = arith.constant 0 : index
    %69 = vector.load %arg1[%c0_59, %c19_60, %c0_61] : memref<1x342x64xbf16, #tpu.memory_space<vmem>>, vector<1x288x64xbf16>
    %70 = vector.shape_cast %69 : vector<1x288x64xbf16> to vector<288x64xbf16>
    %71 = arith.extf %70 : vector<288x64xbf16> to vector<288x64xf32>
    %72 = arith.addf %68, %71 : vector<288x64xf32>
    %c0_62 = arith.constant 0 : index
    %c0_63 = arith.constant 0 : index
    %73 = vector.load %arg8[%c0_62, %c0_63] : memref<342x64xbf16, #tpu.memory_space<vmem>>, vector<288x64xbf16>
    %c0_64 = arith.constant 0 : index
    %c0_65 = arith.constant 0 : index
    %c0_66 = arith.constant 0 : index
    %74 = vector.load %arg5[%c0_64, %c0_65, %c0_66] : memref<9x64x64xbf16, #tpu.memory_space<vmem>>, vector<1x64x64xbf16>
    %75 = vector.shape_cast %74 : vector<1x64x64xbf16> to vector<64x64xbf16>
    %cst_67 = arith.constant dense<0.000000e+00> : vector<288x64xf32>
    %76 = tpu.matmul %73, %75, %cst_67 {dimension_numbers = #tpu.dot_dimension_numbers<[1], [0], [0], [1], [0, 0, 1, 1], [], []>} : vector<288x64xbf16>, vector<64x64xbf16>, vector<288x64xf32> -> vector<288x64xf32>
    %77 = arith.addf %72, %76 : vector<288x64xf32>
    %c1_68 = arith.constant 1 : index
    %c0_69 = arith.constant 0 : index
    %78 = vector.load %arg8[%c1_68, %c0_69] : memref<342x64xbf16, #tpu.memory_space<vmem>>, vector<288x64xbf16>
    %c1_70 = arith.constant 1 : index
    %c0_71 = arith.constant 0 : index
    %c0_72 = arith.constant 0 : index
    %79 = vector.load %arg5[%c1_70, %c0_71, %c0_72] : memref<9x64x64xbf16, #tpu.memory_space<vmem>>, vector<1x64x64xbf16>
    %80 = vector.shape_cast %79 : vector<1x64x64xbf16> to vector<64x64xbf16>
    %cst_73 = arith.constant dense<0.000000e+00> : vector<288x64xf32>
    %81 = tpu.matmul %78, %80, %cst_73 {dimension_numbers = #tpu.dot_dimension_numbers<[1], [0], [0], [1], [0, 0, 1, 1], [], []>} : vector<288x64xbf16>, vector<64x64xbf16>, vector<288x64xf32> -> vector<288x64xf32>
    %82 = arith.addf %77, %81 : vector<288x64xf32>
    %c2_74 = arith.constant 2 : index
    %c0_75 = arith.constant 0 : index
    %83 = vector.load %arg8[%c2_74, %c0_75] : memref<342x64xbf16, #tpu.memory_space<vmem>>, vector<288x64xbf16>
    %c2_76 = arith.constant 2 : index
    %c0_77 = arith.constant 0 : index
    %c0_78 = arith.constant 0 : index
    %84 = vector.load %arg5[%c2_76, %c0_77, %c0_78] : memref<9x64x64xbf16, #tpu.memory_space<vmem>>, vector<1x64x64xbf16>
    %85 = vector.shape_cast %84 : vector<1x64x64xbf16> to vector<64x64xbf16>
    %cst_79 = arith.constant dense<0.000000e+00> : vector<288x64xf32>
    %86 = tpu.matmul %83, %85, %cst_79 {dimension_numbers = #tpu.dot_dimension_numbers<[1], [0], [0], [1], [0, 0, 1, 1], [], []>} : vector<288x64xbf16>, vector<64x64xbf16>, vector<288x64xf32> -> vector<288x64xf32>
    %87 = arith.addf %82, %86 : vector<288x64xf32>
    %c18_80 = arith.constant 18 : index
    %c0_81 = arith.constant 0 : index
    %88 = vector.load %arg8[%c18_80, %c0_81] : memref<342x64xbf16, #tpu.memory_space<vmem>>, vector<288x64xbf16>
    %c3_82 = arith.constant 3 : index
    %c0_83 = arith.constant 0 : index
    %c0_84 = arith.constant 0 : index
    %89 = vector.load %arg5[%c3_82, %c0_83, %c0_84] : memref<9x64x64xbf16, #tpu.memory_space<vmem>>, vector<1x64x64xbf16>
    %90 = vector.shape_cast %89 : vector<1x64x64xbf16> to vector<64x64xbf16>
    %cst_85 = arith.constant dense<0.000000e+00> : vector<288x64xf32>
    %91 = tpu.matmul %88, %90, %cst_85 {dimension_numbers = #tpu.dot_dimension_numbers<[1], [0], [0], [1], [0, 0, 1, 1], [], []>} : vector<288x64xbf16>, vector<64x64xbf16>, vector<288x64xf32> -> vector<288x64xf32>
    %92 = arith.addf %87, %91 : vector<288x64xf32>
    %c19_86 = arith.constant 19 : index
    %c0_87 = arith.constant 0 : index
    %93 = vector.load %arg8[%c19_86, %c0_87] : memref<342x64xbf16, #tpu.memory_space<vmem>>, vector<288x64xbf16>
    %c4_88 = arith.constant 4 : index
    %c0_89 = arith.constant 0 : index
    %c0_90 = arith.constant 0 : index
    %94 = vector.load %arg5[%c4_88, %c0_89, %c0_90] : memref<9x64x64xbf16, #tpu.memory_space<vmem>>, vector<1x64x64xbf16>
    %95 = vector.shape_cast %94 : vector<1x64x64xbf16> to vector<64x64xbf16>
    %cst_91 = arith.constant dense<0.000000e+00> : vector<288x64xf32>
    %96 = tpu.matmul %93, %95, %cst_91 {dimension_numbers = #tpu.dot_dimension_numbers<[1], [0], [0], [1], [0, 0, 1, 1], [], []>} : vector<288x64xbf16>, vector<64x64xbf16>, vector<288x64xf32> -> vector<288x64xf32>
    %97 = arith.addf %92, %96 : vector<288x64xf32>
    %c20_92 = arith.constant 20 : index
    %c0_93 = arith.constant 0 : index
    %98 = vector.load %arg8[%c20_92, %c0_93] : memref<342x64xbf16, #tpu.memory_space<vmem>>, vector<288x64xbf16>
    %c5_94 = arith.constant 5 : index
    %c0_95 = arith.constant 0 : index
    %c0_96 = arith.constant 0 : index
    %99 = vector.load %arg5[%c5_94, %c0_95, %c0_96] : memref<9x64x64xbf16, #tpu.memory_space<vmem>>, vector<1x64x64xbf16>
    %100 = vector.shape_cast %99 : vector<1x64x64xbf16> to vector<64x64xbf16>
    %cst_97 = arith.constant dense<0.000000e+00> : vector<288x64xf32>
    %101 = tpu.matmul %98, %100, %cst_97 {dimension_numbers = #tpu.dot_dimension_numbers<[1], [0], [0], [1], [0, 0, 1, 1], [], []>} : vector<288x64xbf16>, vector<64x64xbf16>, vector<288x64xf32> -> vector<288x64xf32>
    %102 = arith.addf %97, %101 : vector<288x64xf32>
    %c36_98 = arith.constant 36 : index
    %c0_99 = arith.constant 0 : index
    %103 = vector.load %arg8[%c36_98, %c0_99] : memref<342x64xbf16, #tpu.memory_space<vmem>>, vector<288x64xbf16>
    %c6_100 = arith.constant 6 : index
    %c0_101 = arith.constant 0 : index
    %c0_102 = arith.constant 0 : index
    %104 = vector.load %arg5[%c6_100, %c0_101, %c0_102] : memref<9x64x64xbf16, #tpu.memory_space<vmem>>, vector<1x64x64xbf16>
    %105 = vector.shape_cast %104 : vector<1x64x64xbf16> to vector<64x64xbf16>
    %cst_103 = arith.constant dense<0.000000e+00> : vector<288x64xf32>
    %106 = tpu.matmul %103, %105, %cst_103 {dimension_numbers = #tpu.dot_dimension_numbers<[1], [0], [0], [1], [0, 0, 1, 1], [], []>} : vector<288x64xbf16>, vector<64x64xbf16>, vector<288x64xf32> -> vector<288x64xf32>
    %107 = arith.addf %102, %106 : vector<288x64xf32>
    %c37_104 = arith.constant 37 : index
    %c0_105 = arith.constant 0 : index
    %108 = vector.load %arg8[%c37_104, %c0_105] : memref<342x64xbf16, #tpu.memory_space<vmem>>, vector<288x64xbf16>
    %c7_106 = arith.constant 7 : index
    %c0_107 = arith.constant 0 : index
    %c0_108 = arith.constant 0 : index
    %109 = vector.load %arg5[%c7_106, %c0_107, %c0_108] : memref<9x64x64xbf16, #tpu.memory_space<vmem>>, vector<1x64x64xbf16>
    %110 = vector.shape_cast %109 : vector<1x64x64xbf16> to vector<64x64xbf16>
    %cst_109 = arith.constant dense<0.000000e+00> : vector<288x64xf32>
    %111 = tpu.matmul %108, %110, %cst_109 {dimension_numbers = #tpu.dot_dimension_numbers<[1], [0], [0], [1], [0, 0, 1, 1], [], []>} : vector<288x64xbf16>, vector<64x64xbf16>, vector<288x64xf32> -> vector<288x64xf32>
    %112 = arith.addf %107, %111 : vector<288x64xf32>
    %c38_110 = arith.constant 38 : index
    %c0_111 = arith.constant 0 : index
    %113 = vector.load %arg8[%c38_110, %c0_111] : memref<342x64xbf16, #tpu.memory_space<vmem>>, vector<288x64xbf16>
    %c8_112 = arith.constant 8 : index
    %c0_113 = arith.constant 0 : index
    %c0_114 = arith.constant 0 : index
    %114 = vector.load %arg5[%c8_112, %c0_113, %c0_114] : memref<9x64x64xbf16, #tpu.memory_space<vmem>>, vector<1x64x64xbf16>
    %115 = vector.shape_cast %114 : vector<1x64x64xbf16> to vector<64x64xbf16>
    %cst_115 = arith.constant dense<0.000000e+00> : vector<288x64xf32>
    %116 = tpu.matmul %113, %115, %cst_115 {dimension_numbers = #tpu.dot_dimension_numbers<[1], [0], [0], [1], [0, 0, 1, 1], [], []>} : vector<288x64xbf16>, vector<64x64xbf16>, vector<288x64xf32> -> vector<288x64xf32>
    %117 = arith.addf %112, %116 : vector<288x64xf32>
    %cst_116 = arith.constant 0.000000e+00 : f32
    %118 = vector.broadcast %cst_116 : f32 to vector<288x64xf32>
    %119 = arith.maximumf %117, %118 : vector<288x64xf32>
    %120 = arith.truncf %119 : vector<288x64xf32> to vector<288x64xbf16>
    %c0_117 = arith.constant 0 : index
    %c0_118 = arith.constant 0 : index
    %c0_119 = arith.constant 0 : index
    %121 = vector.load %arg7[%c0_117, %c0_118, %c0_119] : memref<1x288x64xbf16, #tpu.memory_space<vmem>>, vector<1x288x64xbf16>
    %122 = vector.shape_cast %121 : vector<1x288x64xbf16> to vector<288x64xbf16>
    %123 = vector.shape_cast %120 : vector<288x64xbf16> to vector<1x288x64xbf16>
    tpu.vector_store %arg7[%c0_117, %c0_118, %c0_119], %123 {strides = array<i32>} : memref<1x288x64xbf16, #tpu.memory_space<vmem>>, vector<1x288x64xbf16>,
    return
  }
  func.func @transform_0(%arg0: i32) -> (i32, i32, i32) {
    %c0_i32 = arith.constant 0 : i32
    %c0_i32_0 = arith.constant 0 : i32
    %c0_i32_1 = arith.constant 0 : i32
    return %arg0, %c0_i32, %c0_i32_0 : i32, i32, i32
  }
  func.func @transform_1(%arg0: i32) -> (i32, i32) {
    %c0_i32 = arith.constant 0 : i32
    %c0_i32_0 = arith.constant 0 : i32
    %c0_i32_1 = arith.constant 0 : i32
    return %c0_i32, %c0_i32_0 : i32, i32
  }
  func.func @transform_2(%arg0: i32) -> (i32, i32, i32) {
    %c0_i32 = arith.constant 0 : i32
    %c0_i32_0 = arith.constant 0 : i32
    %c0_i32_1 = arith.constant 0 : i32
    %c0_i32_2 = arith.constant 0 : i32
    return %c0_i32, %c0_i32_0, %c0_i32_1 : i32, i32, i32
  }
  func.func @transform_3(%arg0: i32) -> (i32, i32) {
    %c0_i32 = arith.constant 0 : i32
    %c0_i32_0 = arith.constant 0 : i32
    %c0_i32_1 = arith.constant 0 : i32
    return %c0_i32, %c0_i32_0 : i32, i32
  }
  func.func @transform_4(%arg0: i32) -> (i32, i32, i32) {
    %c0_i32 = arith.constant 0 : i32
    %c0_i32_0 = arith.constant 0 : i32
    %c0_i32_1 = arith.constant 0 : i32
    %c0_i32_2 = arith.constant 0 : i32
    return %c0_i32, %c0_i32_0, %c0_i32_1 : i32, i32, i32
  }
  func.func @transform_5(%arg0: i32) -> (i32, i32) {
    %c0_i32 = arith.constant 0 : i32
    %c0_i32_0 = arith.constant 0 : i32
    %c0_i32_1 = arith.constant 0 : i32
    return %c0_i32, %c0_i32_0 : i32, i32
  }
  func.func @transform_6(%arg0: i32) -> (i32, i32, i32) {
    %c0_i32 = arith.constant 0 : i32
    %c0_i32_0 = arith.constant 0 : i32
    %c0_i32_1 = arith.constant 0 : i32
    return %arg0, %c0_i32, %c0_i32_0 : i32, i32, i32
  }
}

</mosaic_0001>

<llo_original>
// kernel: tpu_custom_call.1
$region0: #{tpu_custom_call.1}
  #allocation0 [shape = 'u32[]', space=smem, size = 0x4, offset = 0x4, fixed_abs, tag = 'smem constant byte address 0x4 - core index']
  #allocation1 [shape = 'u32[144,128]{1,0:T(1,128)}', space=vmem, size = 0x12000, scoped, tag = 'internal scratch']
  #allocation2 [shape = 'bf16[342,64]{1,0:T(8,128)(2,1)}', space=vmem, size = 0x15800, scoped, tag = 'scratch operand']
  %s0 = inlined_call_operand.vmem [shape: bf16[2,342,64], index: 0, kind: input, shape index: {}]
  %s1 = inlined_call_operand.vmem [shape: bf16[288,1], index: 1, kind: input, shape index: {}]
  %s2 = inlined_call_operand.vmem [shape: bf16[9,64,64], index: 2, kind: input, shape index: {}]
  %s3 = inlined_call_operand.vmem [shape: f32[1,64], index: 3, kind: input, shape index: {}]
  %s4 = inlined_call_operand.vmem [shape: bf16[9,64,64], index: 4, kind: input, shape index: {}]
  %s5 = inlined_call_operand.vmem [shape: f32[1,64], index: 5, kind: input, shape index: {}]
  %s6 = inlined_call_operand.vmem [shape: bf16[2,288,64], index: 6, kind: output, shape index: {}]
  %s7 = sld [smem:[#allocation0]]
  $region57: #{tpu_custom_call.1} parent=0
    _
  %s9 = ssub.s32 1, %s7
  %s10 = scalar_select 0, %s9, %s7
  loop: start=0, step=1, limit=4
  $region2: #{tpu_custom_call.1} parent=0 // loop_pre_header
    _
  $region3: #{tpu_custom_call.1} parent=0 // loop_header
    %s12 = sphi 0, %s16
    %p13 = scmp.ge.s32.totalorder %s12, 4
    %s22 = sphi 0, %s24
    %s25 = sphi 0, %s22
    %s26 = sphi 0, %s25
    %s42 = sphi 0, %s26
    %s46 = sphi 0, %s46
    %s48 = sphi 0, %s46
    %s49 = sphi 0, %s48
    %s63 = sphi 0, %s49
    %s67 = sphi 0, %s67
    %s69 = sphi 0, %s67
    %s70 = sphi 0, %s69
    %s84 = sphi 0, %s70
    %s88 = sphi 0, %s88
    %s90 = sphi 0, %s88
    %s91 = sphi 0, %s90
    %s105 = sphi 0, %s91
    %s109 = sphi 0, %s109
    %s111 = sphi 0, %s109
    %s112 = sphi 0, %s111
    %s126 = sphi 0, %s112
    %s130 = sphi 0, %s130
    %s132 = sphi 0, %s130
    %s133 = sphi 0, %s132
    %s147 = sphi 0, %s133
    %s153 = sphi 0, %s155
    %s156 = sphi 0, %s153
    %s157 = sphi 0, %s156
    %s173 = sphi 0, %s157
  $region4: #{tpu_custom_call.1} parent=0 // loop_header_branch
    %15 = sbr.rel (%p13) target = $region8
  $region5: #{tpu_custom_call.1} parent=0 // loop_body
    %s17 = ssub.s32 %s12, 1
    %s18 = ssub.s32 %s12, 2
    %s19 = sadd.s32 %s12, 1
    %s20 = ssub.s32 %s12, %s19
    %p21 = scmp.eq.s32.totalorder %s20, 0
    %s23 = sadd.s32 %s22, 1
    %s24 = scalar_select %p21, %s22, %s23
    %p27 = pneg %p21
    %p28 = scmp.eq.s32.totalorder %s12, 1
    %p29 = por %p27, %p28
    %p30 = scmp.ne.s32.totalorder %s22, %s25
    %p31 = scmp.eq.s32.totalorder %s12, 0
    %p32 = por %p30, %p31
    %p33 = scmp.ne.s32.totalorder %s22, %s25
    %p34 = scmp.eq.s32.totalorder %s17, 1
    %p35 = por %p33, %p34
    %p36 = scmp.ne.s32.totalorder %s25, %s26
    %p37 = scmp.eq.s32.totalorder %s17, 0
    %p38 = por %p36, %p37
    %p39 = scmp.ne.s32.totalorder %s25, %s26
    %p40 = scmp.eq.s32.totalorder %s18, 1
    %p41 = por %p39, %p40
    %p43 = scmp.ne.s32.totalorder %s26, %s42
    %p44 = scmp.eq.s32.totalorder %s18, 0
    %p45 = por %p43, %p44
    %s47 = sadd.s32 %s46, 1
    %p50 = scmp.eq.s32.totalorder %s12, 1
    %p51 = scmp.ne.s32.totalorder %s46, %s48
    %p52 = scmp.eq.s32.totalorder %s12, 0
    %p53 = por %p51, %p52
    %p54 = scmp.ne.s32.totalorder %s46, %s48
    %p55 = scmp.eq.s32.totalorder %s17, 1
    %p56 = por %p54, %p55
    %p57 = scmp.ne.s32.totalorder %s48, %s49
    %p58 = scmp.eq.s32.totalorder %s17, 0
    %p59 = por %p57, %p58
    %p60 = scmp.ne.s32.totalorder %s48, %s49
    %p61 = scmp.eq.s32.totalorder %s18, 1
    %p62 = por %p60, %p61
    %p64 = scmp.ne.s32.totalorder %s49, %s63
    %p65 = scmp.eq.s32.totalorder %s18, 0
    %p66 = por %p64, %p65
    %s68 = sadd.s32 %s67, 1
    %p71 = scmp.eq.s32.totalorder %s12, 1
    %p72 = scmp.ne.s32.totalorder %s67, %s69
    %p73 = scmp.eq.s32.totalorder %s12, 0
    %p74 = por %p72, %p73
    %p75 = scmp.ne.s32.totalorder %s67, %s69
    %p76 = scmp.eq.s32.totalorder %s17, 1
    %p77 = por %p75, %p76
    %p78 = scmp.ne.s32.totalorder %s69, %s70
    %p79 = scmp.eq.s32.totalorder %s17, 0
    %p80 = por %p78, %p79
    %p81 = scmp.ne.s32.totalorder %s69, %s70
    %p82 = scmp.eq.s32.totalorder %s18, 1
    %p83 = por %p81, %p82
    %p85 = scmp.ne.s32.totalorder %s70, %s84
    %p86 = scmp.eq.s32.totalorder %s18, 0
    %p87 = por %p85, %p86
    %s89 = sadd.s32 %s88, 1
    %p92 = scmp.eq.s32.totalorder %s12, 1
    %p93 = scmp.ne.s32.totalorder %s88, %s90
    %p94 = scmp.eq.s32.totalorder %s12, 0
    %p95 = por %p93, %p94
    %p96 = scmp.ne.s32.totalorder %s88, %s90
    %p97 = scmp.eq.s32.totalorder %s17, 1
    %p98 = por %p96, %p97
    %p99 = scmp.ne.s32.totalorder %s90, %s91
    %p100 = scmp.eq.s32.totalorder %s17, 0
    %p101 = por %p99, %p100
    %p102 = scmp.ne.s32.totalorder %s90, %s91
    %p103 = scmp.eq.s32.totalorder %s18, 1
    %p104 = por %p102, %p103
    %p106 = scmp.ne.s32.totalorder %s91, %s105
    %p107 = scmp.eq.s32.totalorder %s18, 0
    %p108 = por %p106, %p107
    %s110 = sadd.s32 %s109, 1
    %p113 = scmp.eq.s32.totalorder %s12, 1
    %p114 = scmp.ne.s32.totalorder %s109, %s111
    %p115 = scmp.eq.s32.totalorder %s12, 0
    %p116 = por %p114, %p115
    %p117 = scmp.ne.s32.totalorder %s109, %s111
    %p118 = scmp.eq.s32.totalorder %s17, 1
    %p119 = por %p117, %p118
    %p120 = scmp.ne.s32.totalorder %s111, %s112
    %p121 = scmp.eq.s32.totalorder %s17, 0
    %p122 = por %p120, %p121
    %p123 = scmp.ne.s32.totalorder %s111, %s112
    %p124 = scmp.eq.s32.totalorder %s18, 1
    %p125 = por %p123, %p124
    %p127 = scmp.ne.s32.totalorder %s112, %s126
    %p128 = scmp.eq.s32.totalorder %s18, 0
    %p129 = por %p127, %p128
    %s131 = sadd.s32 %s130, 1
    %p134 = scmp.eq.s32.totalorder %s12, 1
    %p135 = scmp.ne.s32.totalorder %s130, %s132
    %p136 = scmp.eq.s32.totalorder %s12, 0
    %p137 = por %p135, %p136
    %p138 = scmp.ne.s32.totalorder %s130, %s132
    %p139 = scmp.eq.s32.totalorder %s17, 1
    %p140 = por %p138, %p139
    %p141 = scmp.ne.s32.totalorder %s132, %s133
    %p142 = scmp.eq.s32.totalorder %s17, 0
    %p143 = por %p141, %p142
    %p144 = scmp.ne.s32.totalorder %s132, %s133
    %p145 = scmp.eq.s32.totalorder %s18, 1
    %p146 = por %p144, %p145
    %p148 = scmp.ne.s32.totalorder %s133, %s147
    %p149 = scmp.eq.s32.totalorder %s18, 0
    %p150 = por %p148, %p149
    %s151 = ssub.s32 %s12, %s19
    %p152 = scmp.eq.s32.totalorder %s151, 0
    %s154 = sadd.s32 %s153, 1
    %s155 = scalar_select %p152, %s153, %s154
    %p158 = pneg %p152
    %p159 = scmp.eq.s32.totalorder %s12, 1
    %p160 = por %p158, %p159
    %p161 = scmp.ne.s32.totalorder %s153, %s156
    %p162 = scmp.eq.s32.totalorder %s12, 0
    %p163 = por %p161, %p162
    %p164 = scmp.ne.s32.totalorder %s153, %s156
    %p165 = scmp.eq.s32.totalorder %s17, 1
    %p166 = por %p164, %p165
    %p167 = scmp.ne.s32.totalorder %s156, %s157
    %p168 = scmp.eq.s32.totalorder %s17, 0
    %p169 = por %p167, %p168
    %p170 = scmp.ne.s32.totalorder %s156, %s157
    %p171 = scmp.eq.s32.totalorder %s18, 1
    %p172 = por %p170, %p171
    %p174 = scmp.ne.s32.totalorder %s157, %s173
    %p175 = scmp.eq.s32.totalorder %s18, 0
    %p176 = por %p174, %p175
    %p177 = scmp.le.s32.totalorder 1, %s12
    %p178 = scmp.lt.s32.totalorder %s12, 3
    %p179 = pnand %p177, %p178
    %p180 = pneg %p179
    // Predicated region
    $region9: #{tpu_custom_call.1} parent=5 // pred_check
      _
    $region10: #{tpu_custom_call.1} parent=5 // pred_check_branch
      %182 = sbr.rel (%p179) target = $region12
    $region11: #{tpu_custom_call.1} parent=5 // pred_region
      %s183 = ssub.s32 %s12, 1
      // Predicated region
      $region13: #{tpu_custom_call.1} parent=11 // pred_check
        %p184 = pneg %p59
      $region14: #{tpu_custom_call.1} parent=11 // pred_check_branch
        %186 = sbr.rel (%p184) target = $region16
      $region15: #{tpu_custom_call.1} parent=11 // pred_region
        _
      $region16: #{tpu_custom_call.1} parent=11 // pred_fallthru
        _
      // Predicated region
      $region17: #{tpu_custom_call.1} parent=11 // pred_check
        %p187 = pneg %p80
      $region18: #{tpu_custom_call.1} parent=11 // pred_check_branch
        %189 = sbr.rel (%p187) target = $region20
      $region19: #{tpu_custom_call.1} parent=11 // pred_region
        _
      $region20: #{tpu_custom_call.1} parent=11 // pred_fallthru
        _
      // Predicated region
      $region21: #{tpu_custom_call.1} parent=11 // pred_check
        %p190 = pneg %p101
      $region22: #{tpu_custom_call.1} parent=11 // pred_check_branch
        %192 = sbr.rel (%p190) target = $region24
      $region23: #{tpu_custom_call.1} parent=11 // pred_region
        _
      $region24: #{tpu_custom_call.1} parent=11 // pred_fallthru
        _
      // Predicated region
      $region25: #{tpu_custom_call.1} parent=11 // pred_check
        %p193 = pneg %p122
      $region26: #{tpu_custom_call.1} parent=11 // pred_check_branch
        %195 = sbr.rel (%p193) target = $region28
      $region27: #{tpu_custom_call.1} parent=11 // pred_region
        _
      $region28: #{tpu_custom_call.1} parent=11 // pred_fallthru
        _
      // Predicated region
      $region29: #{tpu_custom_call.1} parent=11 // pred_check
        %p196 = pneg %p143
      $region30: #{tpu_custom_call.1} parent=11 // pred_check_branch
        %198 = sbr.rel (%p196) target = $region32
      $region31: #{tpu_custom_call.1} parent=11 // pred_region
        _
      $region32: #{tpu_custom_call.1} parent=11 // pred_fallthru
        _
    $region12: #{tpu_custom_call.1} parent=5 // pred_fallthru
      _
    %p199 = scmp.lt.s32.totalorder %s12, 2
    // Predicated region
    $region33: #{tpu_custom_call.1} parent=5 // pred_check
      %p200 = pneg %p199
    $region34: #{tpu_custom_call.1} parent=5 // pred_check_branch
      %202 = sbr.rel (%p200) target = $region36
    $region35: #{tpu_custom_call.1} parent=5 // pred_region
      // Predicated region
      $region37: #{tpu_custom_call.1} parent=35 // pred_check
        %p203 = pneg %p32
      $region38: #{tpu_custom_call.1} parent=35 // pred_check_branch
        %205 = sbr.rel (%p203) target = $region40
      $region39: #{tpu_custom_call.1} parent=35 // pred_region
        %p206 = scmp.lt.s32.totalorder %s12, 1
        %s207 = scalar_select %p206, %s12, 1
        %s208 = smul.addr %s207, 43
        %s209 = smul.addr %s208, 4
        %s210 = scalar_lea.vmem %s0, %s209
      $region40: #{tpu_custom_call.1} parent=35 // pred_fallthru
        _
    $region36: #{tpu_custom_call.1} parent=5 // pred_fallthru
      _
    %p211 = scmp.le.s32.totalorder 1, %s12
    %p212 = scmp.lt.s32.totalorder %s12, 3
    %p213 = pnand %p211, %p212
    %p214 = pneg %p213
    // Predicated region
    $region41: #{tpu_custom_call.1} parent=5 // pred_check
      _
    $region42: #{tpu_custom_call.1} parent=5 // pred_check_branch
      %216 = sbr.rel (%p213) target = $region44
    $region43: #{tpu_custom_call.1} parent=5 // pred_region
      %s217 = ssub.s32 %s12, 1
      %p218 = scmp.lt.s32.totalorder %s17, 1
      %s219 = scalar_select %p218, %s17, 1
      %s220 = smul.addr %s219, 43
      %s221 = smul.addr %s220, 4
      %s222 = scalar_lea.vmem %s0, %s221
      %p223 = pneg %p38
      %p224 = pneg %p35
      %p225 = pneg %p59
      %p226 = pneg %p56
      %p227 = pneg %p80
      %p228 = pneg %p77
      %p229 = pneg %p101
      %p230 = pneg %p98
      %p231 = pneg %p122
      %p232 = pneg %p119
      %p233 = pneg %p143
      %p234 = pneg %p140
      %p235 = pneg %p169
      %p236 = pneg %p166
      %p237 = scmp.lt.s32.totalorder %s17, 1
      %s238 = scalar_select %p237, %s17, 1
      %s239 = smul.addr %s238, 36
      %s240 = smul.addr %s239, 4
      %s241 = scalar_lea.vmem %s6, %s240
      %p242 = scmp.lt.s32.totalorder %s17, 1
      %s243 = scalar_select %p242, %s17, 1
      %s244 = smul.addr %s243, 43
      %s245 = smul.addr %s244, 4
      %s246 = scalar_lea.vmem %s0, %s245
      %p247 = scmp.lt.s32.totalorder %s17, 1
      %s248 = scalar_select %p247, %s17, 1
      %s249 = smul.addr %s248, 36
      %s250 = smul.addr %s249, 4
      %s251 = scalar_lea.vmem %s6, %s250
      %v253 = vld [vmem:[%s1] sm:$0xf]
      %v254 = vld [vmem:[%s1 + $0x4] sm:$0xf]
      %v255 = vld [vmem:[%s1 + $0x8] sm:$0xf]
      %v256 = vld [vmem:[%s1 + $0xc] sm:$0xf]
      %v257 = vld [vmem:[%s1 + $0x10] sm:$0xf]
      %v258 = vld [vmem:[%s1 + $0x14] sm:$0xf]
      %v259 = vld [vmem:[%s1 + $0x18] sm:$0xf]
      %v260 = vld [vmem:[%s1 + $0x1c] sm:$0xf]
      %v261 = vld [vmem:[%s1 + $0x20] sm:$0xf]
      %v262 = vld [vmem:[%s1 + $0x24] sm:$0xf]
      %v263 = vld [vmem:[%s1 + $0x28] sm:$0xf]
      %v264 = vld [vmem:[%s1 + $0x2c] sm:$0xf]
      %v265 = vld [vmem:[%s1 + $0x30] sm:$0xf]
      %v266 = vld [vmem:[%s1 + $0x34] sm:$0xf]
      %v267 = vld [vmem:[%s1 + $0x38] sm:$0xf]
      %v268 = vld [vmem:[%s1 + $0x3c] sm:$0xf]
      %v269 = vld [vmem:[%s1 + $0x40] sm:$0xf]
      %v270 = vld [vmem:[%s1 + $0x44] sm:$0xf]
      %v271 = vld [vmem:[%s1 + $0x48] sm:$0xf]
      %v272 = vld [vmem:[%s1 + $0x4c] sm:$0xf]
      %v273 = vld [vmem:[%s1 + $0x50] sm:$0xf]
      %v274 = vld [vmem:[%s1 + $0x54] sm:$0xf]
      %v275 = vld [vmem:[%s1 + $0x58] sm:$0xf]
      %v276 = vld [vmem:[%s1 + $0x5c] sm:$0xf]
      %v277 = vld [vmem:[%s1 + $0x60] sm:$0xf]
      %v278 = vld [vmem:[%s1 + $0x64] sm:$0xf]
      %v279 = vld [vmem:[%s1 + $0x68] sm:$0xf]
      %v280 = vld [vmem:[%s1 + $0x6c] sm:$0xf]
      %v281 = vld [vmem:[%s1 + $0x70] sm:$0xf]
      %v282 = vld [vmem:[%s1 + $0x74] sm:$0xf]
      %v283 = vld [vmem:[%s1 + $0x78] sm:$0xf]
      %v284 = vld [vmem:[%s1 + $0x7c] sm:$0xf]
      %v285 = vld [vmem:[%s1 + $0x80] sm:$0xf]
      %v286 = vld [vmem:[%s1 + $0x84] sm:$0xf]
      %v287 = vld [vmem:[%s1 + $0x88] sm:$0xf]
      %v288 = vld [vmem:[%s1 + $0x8c] sm:$0xf]
      %v289 = vld [vmem:[%s3] sm:$0x1]
      %v291 = vlaneseq
      %v292 = vshrl.u32 %v291, 7
      %v293 = vsub.s32 0, %v292
      %v294 = vrot.slane %v289, %v293
      %v296 = vld [vmem:[%s246] sm:$0xf]
      %v297 = vld [vmem:[%s246 + $0x4] sm:$0xf]
      %v298 = vld [vmem:[%s246 + $0x8] sm:$0xf]
      %v299 = vld [vmem:[%s246 + $0xc] sm:$0xf]
      %v300 = vld [vmem:[%s246 + $0x10] sm:$0xf]
      %v301 = vld [vmem:[%s246 + $0x14] sm:$0xf]
      %v302 = vld [vmem:[%s246 + $0x18] sm:$0xf]
      %v303 = vld [vmem:[%s246 + $0x1c] sm:$0xf]
      %v304 = vld [vmem:[%s246 + $0x20] sm:$0xf]
      %v305 = vld [vmem:[%s246 + $0x24] sm:$0xf]
      %v306 = vld [vmem:[%s246 + $0x28] sm:$0xf]
      %v307 = vld [vmem:[%s246 + $0x2c] sm:$0xf]
      %v308 = vld [vmem:[%s246 + $0x30] sm:$0xf]
      %v309 = vld [vmem:[%s246 + $0x34] sm:$0xf]
      %v310 = vld [vmem:[%s246 + $0x38] sm:$0xf]
      %v311 = vld [vmem:[%s246 + $0x3c] sm:$0xf]
      %v312 = vld [vmem:[%s246 + $0x40] sm:$0xf]
      %v313 = vld [vmem:[%s246 + $0x44] sm:$0xf]
      %v314 = vld [vmem:[%s246 + $0x48] sm:$0xf]
      %v315 = vld [vmem:[%s246 + $0x4c] sm:$0xf]
      %v316 = vld [vmem:[%s246 + $0x50] sm:$0xf]
      %v317 = vld [vmem:[%s246 + $0x54] sm:$0xf]
      %v318 = vld [vmem:[%s246 + $0x58] sm:$0xf]
      %v319 = vld [vmem:[%s246 + $0x5c] sm:$0xf]
      %v320 = vld [vmem:[%s246 + $0x60] sm:$0xf]
      %v321 = vld [vmem:[%s246 + $0x64] sm:$0xf]
      %v322 = vld [vmem:[%s246 + $0x68] sm:$0xf]
      %v323 = vld [vmem:[%s246 + $0x6c] sm:$0xf]
      %v324 = vld [vmem:[%s246 + $0x70] sm:$0xf]
      %v325 = vld [vmem:[%s246 + $0x74] sm:$0xf]
      %v326 = vld [vmem:[%s246 + $0x78] sm:$0xf]
      %v327 = vld [vmem:[%s246 + $0x7c] sm:$0xf]
      %v328 = vld [vmem:[%s246 + $0x80] sm:$0xf]
      %v329 = vld [vmem:[%s246 + $0x84] sm:$0xf]
      %v330 = vld [vmem:[%s246 + $0x88] sm:$0xf]
      %v331 = vld [vmem:[%s246 + $0x8c] sm:$0xf]
      %v332 = vld [vmem:[%s2] sm:$0xf]
      %v333 = vld [vmem:[%s2 + $0x4] sm:$0xf]
      %v334 = vld [vmem:[%s2 + $0x8] sm:$0xf]
      %v335 = vld [vmem:[%s2 + $0xc] sm:$0xf]
      %v336 = vld [vmem:[%s2 + $0x10] sm:$0xf]
      %v337 = vld [vmem:[%s2 + $0x14] sm:$0xf]
      %v338 = vld [vmem:[%s2 + $0x18] sm:$0xf]
      %v339 = vld [vmem:[%s2 + $0x1c] sm:$0xf]
      %v376 = vunpack.c.l.b16 %v296
      %v377 = vunpack.c.l.b16 %v297
      %v378 = vunpack.c.l.b16 %v298
      %v379 = vunpack.c.l.b16 %v299
      %v380 = vunpack.c.l.b16 %v300
      %v381 = vunpack.c.l.b16 %v301
      %v382 = vunpack.c.l.b16 %v302
      %v383 = vunpack.c.l.b16 %v303
      %v384 = vunpack.c.l.b16 %v304
      %v385 = vunpack.c.l.b16 %v305
      %v386 = vunpack.c.l.b16 %v306
      %v387 = vunpack.c.l.b16 %v307
      %v388 = vunpack.c.l.b16 %v308
      %v389 = vunpack.c.l.b16 %v309
      %v390 = vunpack.c.l.b16 %v310
      %v391 = vunpack.c.l.b16 %v311
      %v392 = vunpack.c.l.b16 %v312
      %v393 = vunpack.c.l.b16 %v313
      %v394 = vunpack.c.l.b16 %v314
      %v395 = vunpack.c.l.b16 %v315
      %v396 = vunpack.c.l.b16 %v316
      %v397 = vunpack.c.l.b16 %v317
      %v398 = vunpack.c.l.b16 %v318
      %v399 = vunpack.c.l.b16 %v319
      %v400 = vunpack.c.l.b16 %v320
      %v401 = vunpack.c.l.b16 %v321
      %v402 = vunpack.c.l.b16 %v322
      %v403 = vunpack.c.l.b16 %v323
      %v404 = vunpack.c.l.b16 %v324
      %v405 = vunpack.c.l.b16 %v325
      %v406 = vunpack.c.l.b16 %v326
      %v407 = vunpack.c.l.b16 %v327
      %v408 = vunpack.c.l.b16 %v328
      %v409 = vunpack.c.l.b16 %v329
      %v410 = vunpack.c.l.b16 %v330
      %v411 = vunpack.c.l.b16 %v331
      %v412 = vpack.c.b16 %v377, %v376
      %v413 = vpack.c.b16 %v379, %v378
      %v414 = vpack.c.b16 %v381, %v380
      %v415 = vpack.c.b16 %v383, %v382
      %v416 = vpack.c.b16 %v385, %v384
      %v417 = vpack.c.b16 %v387, %v386
      %v418 = vpack.c.b16 %v389, %v388
      %v419 = vpack.c.b16 %v391, %v390
      %v420 = vpack.c.b16 %v393, %v392
      %v421 = vpack.c.b16 %v395, %v394
      %v422 = vpack.c.b16 %v397, %v396
      %v423 = vpack.c.b16 %v399, %v398
      %v424 = vpack.c.b16 %v401, %v400
      %v425 = vpack.c.b16 %v403, %v402
      %v426 = vpack.c.b16 %v405, %v404
      %v427 = vpack.c.b16 %v407, %v406
      %v428 = vpack.c.b16 %v409, %v408
      %v429 = vpack.c.b16 %v411, %v410
      %v438 = vunpack.c.l.b16 %v332
      %v439 = vunpack.c.l.b16 %v333
      %v440 = vunpack.c.l.b16 %v334
      %v441 = vunpack.c.l.b16 %v335
      %v442 = vunpack.c.l.b16 %v336
      %v443 = vunpack.c.l.b16 %v337
      %v444 = vunpack.c.l.b16 %v338
      %v445 = vunpack.c.l.b16 %v339
      %v446 = vpack.c.b16 %v439, %v438
      %v447 = vpack.c.b16 %v441, %v440
      %v448 = vpack.c.b16 %v443, %v442
      %v449 = vpack.c.b16 %v445, %v444
      %vm454 = vcmask 523264
      %v456 = vsel %vm454, %v412, 0
      %v459 = vsel %vm454, %v413, 0
      %v462 = vsel %vm454, %v414, 0
      %v465 = vsel %vm454, %v415, 0
      %v468 = vsel %vm454, %v416, 0
      %v471 = vsel %vm454, %v417, 0
      %v474 = vsel %vm454, %v418, 0
      %v477 = vsel %vm454, %v419, 0
      %v480 = vsel %vm454, %v420, 0
      %v483 = vsel %vm454, %v421, 0
      %v486 = vsel %vm454, %v422, 0
      %v489 = vsel %vm454, %v423, 0
      %v492 = vsel %vm454, %v424, 0
      %v495 = vsel %vm454, %v425, 0
      %v498 = vsel %vm454, %v426, 0
      %v501 = vsel %vm454, %v427, 0
      %v504 = vsel %vm454, %v428, 0
      %v507 = vsel %vm454, %v429, 0
      %509 = vmatprep.subr.bf16.mxu0 0
      %510 = vmatpush1.bf16.msra.mxu0 %v446
      %511 = vmatprep.subr.bf16.mxu0 0
      %512 = vmatpush1.bf16.msra.mxu0 %v447
      %513 = vmatprep.subr.bf16.mxu0 0
      %514 = vmatpush1.bf16.msra.mxu0 %v448
      %515 = vmatprep.subr.bf16.mxu0 0
      %516 = vmatpush1.bf16.msra.mxu0 %v449
      %517 = vmatprep.subr.bf16.mxu0 0
      %518 = vmatpush1.bf16.msra.mxu0 0
      %519 = vmatprep.subr.bf16.mxu0 0
      %520 = vmatpush1.bf16.msra.mxu0 0
      %521 = vmatprep.subr.bf16.mxu0 0
      %522 = vmatpush1.bf16.msra.mxu0 0
      %523 = vmatprep.subr.bf16.mxu0 0
      %524 = vmatpush1.bf16.msra.mxu0 0
      %525 = vmatprep.subr.bf16.mxu0 0
      %526 = vmatpush1.bf16.msra.mxu0 0
      %527 = vmatprep.subr.bf16.mxu0 0
      %528 = vmatpush1.bf16.msra.mxu0 0
      %529 = vmatprep.subr.bf16.mxu0 0
      %530 = vmatpush1.bf16.msra.mxu0 0
      %531 = vmatprep.subr.bf16.mxu0 0
      %532 = vmatpush1.bf16.msra.mxu0 0
      %533 = vmatprep.subr.bf16.mxu0 0
      %534 = vmatpush1.bf16.msra.mxu0 0
      %535 = vmatprep.subr.bf16.mxu0 0
      %536 = vmatpush1.bf16.msra.mxu0 0
      %537 = vmatprep.subr.bf16.mxu0 0
      %538 = vmatpush1.bf16.msra.mxu0 0
      %539 = vmatprep.subr.bf16.mxu0 0
      %540 = vmatpush1.bf16.msra.mxu0 0
      %541 = vmatprep.mubr.bf16.mxu0 0
      %542 = vmatmul.mubr.bf16.gmra.mrb[0].mxu0 %v456
      %v543 = vpop.f32.mrb[0].mxu0
      %v544 = vadd.f32 0.0, %v543
      %v545 = vpop.f32.mrb[0].mxu0
      %v546 = vpop.f32.mrb[0].mxu0
      %v547 = vadd.f32 0.0, %v546
      %v548 = vpop.f32.mrb[0].mxu0
      %549 = vmatprep.mubr.bf16.mxu0 0
      %550 = vmatmul.mubr.bf16.gmra.mrb[0].mxu0 %v459
      %v551 = vpop.f32.mrb[0].mxu0
      %v552 = vadd.f32 0.0, %v551
      %v553 = vpop.f32.mrb[0].mxu0
      %v554 = vpop.f32.mrb[0].mxu0
      %v555 = vadd.f32 0.0, %v554
      %v556 = vpop.f32.mrb[0].mxu0
      %557 = vmatprep.mubr.bf16.mxu0 0
      %558 = vmatmul.mubr.bf16.gmra.mrb[0].mxu0 %v462
      %v559 = vpop.f32.mrb[0].mxu0
      %v560 = vadd.f32 0.0, %v559
      %v561 = vpop.f32.mrb[0].mxu0
      %v562 = vpop.f32.mrb[0].mxu0
      %v563 = vadd.f32 0.0, %v562
      %v564 = vpop.f32.mrb[0].mxu0
      %565 = vmatprep.mubr.bf16.mxu0 0
      %566 = vmatmul.mubr.bf16.gmra.mrb[0].mxu0 %v465
      %v567 = vpop.f32.mrb[0].mxu0
      %v568 = vadd.f32 0.0, %v567
      %v569 = vpop.f32.mrb[0].mxu0
      %v570 = vpop.f32.mrb[0].mxu0
      %v571 = vadd.f32 0.0, %v570
      %v572 = vpop.f32.mrb[0].mxu0
      %573 = vmatprep.mubr.bf16.mxu0 0
      %574 = vmatmul.mubr.bf16.gmra.mrb[0].mxu0 %v468
      %v575 = vpop.f32.mrb[0].mxu0
      %v576 = vadd.f32 0.0, %v575
      %v577 = vpop.f32.mrb[0].mxu0
      %v578 = vpop.f32.mrb[0].mxu0
      %v579 = vadd.f32 0.0, %v578
      %v580 = vpop.f32.mrb[0].mxu0
      %581 = vmatprep.mubr.bf16.mxu0 0
      %582 = vmatmul.mubr.bf16.gmra.mrb[0].mxu0 %v471
      %v583 = vpop.f32.mrb[0].mxu0
      %v584 = vadd.f32 0.0, %v583
      %v585 = vpop.f32.mrb[0].mxu0
      %v586 = vpop.f32.mrb[0].mxu0
      %v587 = vadd.f32 0.0, %v586
      %v588 = vpop.f32.mrb[0].mxu0
      %589 = vmatprep.mubr.bf16.mxu0 0
      %590 = vmatmul.mubr.bf16.gmra.mrb[0].mxu0 %v474
      %v591 = vpop.f32.mrb[0].mxu0
      %v592 = vadd.f32 0.0, %v591
      %v593 = vpop.f32.mrb[0].mxu0
      %v594 = vpop.f32.mrb[0].mxu0
      %v595 = vadd.f32 0.0, %v594
      %v596 = vpop.f32.mrb[0].mxu0
      %597 = vmatprep.mubr.bf16.mxu0 0
      %598 = vmatmul.mubr.bf16.gmra.mrb[0].mxu0 %v477
      %v599 = vpop.f32.mrb[0].mxu0
      %v600 = vadd.f32 0.0, %v599
      %v601 = vpop.f32.mrb[0].mxu0
      %v602 = vpop.f32.mrb[0].mxu0
      %v603 = vadd.f32 0.0, %v602
      %v604 = vpop.f32.mrb[0].mxu0
      %605 = vmatprep.mubr.bf16.mxu0 0
      %606 = vmatmul.mubr.bf16.gmra.mrb[0].mxu0 %v480
      %v607 = vpop.f32.mrb[0].mxu0
      %v608 = vadd.f32 0.0, %v607
      %v609 = vpop.f32.mrb[0].mxu0
      %v610 = vpop.f32.mrb[0].mxu0
      %v611 = vadd.f32 0.0, %v610
      %v612 = vpop.f32.mrb[0].mxu0
      %613 = vmatprep.mubr.bf16.mxu0 0
      %614 = vmatmul.mubr.bf16.gmra.mrb[0].mxu0 %v483
      %v615 = vpop.f32.mrb[0].mxu0
      %v616 = vadd.f32 0.0, %v615
      %v617 = vpop.f32.mrb[0].mxu0
      %v618 = vpop.f32.mrb[0].mxu0
      %v619 = vadd.f32 0.0, %v618
      %v620 = vpop.f32.mrb[0].mxu0
      %621 = vmatprep.mubr.bf16.mxu0 0
      %622 = vmatmul.mubr.bf16.gmra.mrb[0].mxu0 %v486
      %v623 = vpop.f32.mrb[0].mxu0
      %v624 = vadd.f32 0.0, %v623
      %v625 = vpop.f32.mrb[0].mxu0
      %v626 = vpop.f32.mrb[0].mxu0
      %v627 = vadd.f32 0.0, %v626
      %v628 = vpop.f32.mrb[0].mxu0
      %629 = vmatprep.mubr.bf16.mxu0 0
      %630 = vmatmul.mubr.bf16.gmra.mrb[0].mxu0 %v489
      %v631 = vpop.f32.mrb[0].mxu0
      %v632 = vadd.f32 0.0, %v631
      %v633 = vpop.f32.mrb[0].mxu0
      %v634 = vpop.f32.mrb[0].mxu0
      %v635 = vadd.f32 0.0, %v634
      %v636 = vpop.f32.mrb[0].mxu0
      %637 = vmatprep.mubr.bf16.mxu0 0
      %638 = vmatmul.mubr.bf16.gmra.mrb[0].mxu0 %v492
      %v639 = vpop.f32.mrb[0].mxu0
      %v640 = vadd.f32 0.0, %v639
      %v641 = vpop.f32.mrb[0].mxu0
      %v642 = vpop.f32.mrb[0].mxu0
      %v643 = vadd.f32 0.0, %v642
      %v644 = vpop.f32.mrb[0].mxu0
      %645 = vmatprep.mubr.bf16.mxu0 0
      %646 = vmatmul.mubr.bf16.gmra.mrb[0].mxu0 %v495
      %v647 = vpop.f32.mrb[0].mxu0
      %v648 = vadd.f32 0.0, %v647
      %v649 = vpop.f32.mrb[0].mxu0
      %v650 = vpop.f32.mrb[0].mxu0
      %v651 = vadd.f32 0.0, %v650
      %v652 = vpop.f32.mrb[0].mxu0
      %653 = vmatprep.mubr.bf16.mxu0 0
      %654 = vmatmul.mubr.bf16.gmra.mrb[0].mxu0 %v498
      %v655 = vpop.f32.mrb[0].mxu0
      %v656 = vadd.f32 0.0, %v655
      %v657 = vpop.f32.mrb[0].mxu0
      %v658 = vpop.f32.mrb[0].mxu0
      %v659 = vadd.f32 0.0, %v658
      %v660 = vpop.f32.mrb[0].mxu0
      %661 = vmatprep.mubr.bf16.mxu0 0
      %662 = vmatmul.mubr.bf16.gmra.mrb[0].mxu0 %v501
      %v663 = vpop.f32.mrb[0].mxu0
      %v664 = vadd.f32 0.0, %v663
      %v665 = vpop.f32.mrb[0].mxu0
      %v666 = vpop.f32.mrb[0].mxu0
      %v667 = vadd.f32 0.0, %v666
      %v668 = vpop.f32.mrb[0].mxu0
      %669 = vmatprep.mubr.bf16.mxu0 0
      %670 = vmatmul.mubr.bf16.gmra.mrb[0].mxu0 %v504
      %v671 = vpop.f32.mrb[0].mxu0
      %v672 = vadd.f32 0.0, %v671
      %v673 = vpop.f32.mrb[0].mxu0
      %v674 = vpop.f32.mrb[0].mxu0
      %v675 = vadd.f32 0.0, %v674
      %v676 = vpop.f32.mrb[0].mxu0
      %677 = vmatprep.mubr.bf16.mxu0 0
      %678 = vmatmul.mubr.bf16.gmra.mrb[0].mxu0 %v507
      %v679 = vpop.f32.mrb[0].mxu0
      %v680 = vadd.f32 0.0, %v679
      %v681 = vpop.f32.mrb[0].mxu0
      %v682 = vpop.f32.mrb[0].mxu0
      %v683 = vadd.f32 0.0, %v682
      %v684 = vpop.f32.mrb[0].mxu0
      %685 = vdwg.mxu0
      %v686 = vadd.f32 %v294, %v544
      %v687 = vadd.f32 %v294, %v547
      %v688 = vadd.f32 %v294, %v552
      %v689 = vadd.f32 %v294, %v555
      %v690 = vadd.f32 %v294, %v560
      %v691 = vadd.f32 %v294, %v563
      %v692 = vadd.f32 %v294, %v568
      %v693 = vadd.f32 %v294, %v571
      %v694 = vadd.f32 %v294, %v576
      %v695 = vadd.f32 %v294, %v579
      %v696 = vadd.f32 %v294, %v584
      %v697 = vadd.f32 %v294, %v587
      %v698 = vadd.f32 %v294, %v592
      %v699 = vadd.f32 %v294, %v595
      %v700 = vadd.f32 %v294, %v600
      %v701 = vadd.f32 %v294, %v603
      %v702 = vadd.f32 %v294, %v608
      %v703 = vadd.f32 %v294, %v611
      %v704 = vadd.f32 %v294, %v616
      %v705 = vadd.f32 %v294, %v619
      %v706 = vadd.f32 %v294, %v624
      %v707 = vadd.f32 %v294, %v627
      %v708 = vadd.f32 %v294, %v632
      %v709 = vadd.f32 %v294, %v635
      %v710 = vadd.f32 %v294, %v640
      %v711 = vadd.f32 %v294, %v643
      %v712 = vadd.f32 %v294, %v648
      %v713 = vadd.f32 %v294, %v651
      %v714 = vadd.f32 %v294, %v656
      %v715 = vadd.f32 %v294, %v659
      %v716 = vadd.f32 %v294, %v664
      %v717 = vadd.f32 %v294, %v667
      %v718 = vadd.f32 %v294, %v672
      %v719 = vadd.f32 %v294, %v675
      %v720 = vadd.f32 %v294, %v680
      %v721 = vadd.f32 %v294, %v683
      %v722 = vld [vmem:[%s246] sm:$0xf]
      %v723 = vld [vmem:[%s246 + $0x4] sm:$0xf]
      %v724 = vld [vmem:[%s246 + $0x8] sm:$0xf]
      %v725 = vld [vmem:[%s246 + $0xc] sm:$0xf]
      %v726 = vld [vmem:[%s246 + $0x10] sm:$0xf]
      %v727 = vld [vmem:[%s246 + $0x14] sm:$0xf]
      %v728 = vld [vmem:[%s246 + $0x18] sm:$0xf]
      %v729 = vld [vmem:[%s246 + $0x1c] sm:$0xf]
      %v730 = vld [vmem:[%s246 + $0x20] sm:$0xf]
      %v731 = vld [vmem:[%s246 + $0x24] sm:$0xf]
      %v732 = vld [vmem:[%s246 + $0x28] sm:$0xf]
      %v733 = vld [vmem:[%s246 + $0x2c] sm:$0xf]
      %v734 = vld [vmem:[%s246 + $0x30] sm:$0xf]
      %v735 = vld [vmem:[%s246 + $0x34] sm:$0xf]
      %v736 = vld [vmem:[%s246 + $0x38] sm:$0xf]
      %v737 = vld [vmem:[%s246 + $0x3c] sm:$0xf]
      %v738 = vld [vmem:[%s246 + $0x40] sm:$0xf]
      %v739 = vld [vmem:[%s246 + $0x44] sm:$0xf]
      %v740 = vld [vmem:[%s246 + $0x48] sm:$0xf]
      %v741 = vld [vmem:[%s246 + $0x4c] sm:$0xf]
      %v742 = vld [vmem:[%s246 + $0x50] sm:$0xf]
      %v743 = vld [vmem:[%s246 + $0x54] sm:$0xf]
      %v744 = vld [vmem:[%s246 + $0x58] sm:$0xf]
      %v745 = vld [vmem:[%s246 + $0x5c] sm:$0xf]
      %v746 = vld [vmem:[%s246 + $0x60] sm:$0xf]
      %v747 = vld [vmem:[%s246 + $0x64] sm:$0xf]
      %v748 = vld [vmem:[%s246 + $0x68] sm:$0xf]
      %v749 = vld [vmem:[%s246 + $0x6c] sm:$0xf]
      %v750 = vld [vmem:[%s246 + $0x70] sm:$0xf]
      %v751 = vld [vmem:[%s246 + $0x74] sm:$0xf]
      %v752 = vld [vmem:[%s246 + $0x78] sm:$0xf]
      %v753 = vld [vmem:[%s246 + $0x7c] sm:$0xf]
      %v754 = vld [vmem:[%s246 + $0x80] sm:$0xf]
      %v755 = vld [vmem:[%s246 + $0x84] sm:$0xf]
      %v756 = vld [vmem:[%s246 + $0x88] sm:$0xf]
      %v757 = vld [vmem:[%s246 + $0x8c] sm:$0xf]
      %v758 = vld [vmem:[%s246 + $0x90] sm:$0x1]
      %s759 = scalar_lea.vmem %s2, 32
      %v760 = vld [vmem:[%s759] sm:$0xf]
      %v761 = vld [vmem:[%s759 + $0x4] sm:$0xf]
      %v762 = vld [vmem:[%s759 + $0x8] sm:$0xf]
      %v763 = vld [vmem:[%s759 + $0xc] sm:$0xf]
      %v764 = vld [vmem:[%s759 + $0x10] sm:$0xf]
      %v765 = vld [vmem:[%s759 + $0x14] sm:$0xf]
      %v766 = vld [vmem:[%s759 + $0x18] sm:$0xf]
      %v767 = vld [vmem:[%s759 + $0x1c] sm:$0xf]
      %v805 = vunpack.c.l.b16 %v722
      %v806 = vunpack.c.l.b16 %v723
      %v807 = vunpack.c.l.b16 %v724
      %v808 = vunpack.c.l.b16 %v725
      %v809 = vunpack.c.l.b16 %v726
      %v810 = vunpack.c.l.b16 %v727
      %v811 = vunpack.c.l.b16 %v728
      %v812 = vunpack.c.l.b16 %v729
      %v813 = vunpack.c.l.b16 %v730
      %v814 = vunpack.c.l.b16 %v731
      %v815 = vunpack.c.l.b16 %v732
      %v816 = vunpack.c.l.b16 %v733
      %v817 = vunpack.c.l.b16 %v734
      %v818 = vunpack.c.l.b16 %v735
      %v819 = vunpack.c.l.b16 %v736
      %v820 = vunpack.c.l.b16 %v737
      %v821 = vunpack.c.l.b16 %v738
      %v822 = vunpack.c.l.b16 %v739
      %v823 = vunpack.c.l.b16 %v740
      %v824 = vunpack.c.l.b16 %v741
      %v825 = vunpack.c.l.b16 %v742
      %v826 = vunpack.c.l.b16 %v743
      %v827 = vunpack.c.l.b16 %v744
      %v828 = vunpack.c.l.b16 %v745
      %v829 = vunpack.c.l.b16 %v746
      %v830 = vunpack.c.l.b16 %v747
      %v831 = vunpack.c.l.b16 %v748
      %v832 = vunpack.c.l.b16 %v749
      %v833 = vunpack.c.l.b16 %v750
      %v834 = vunpack.c.l.b16 %v751
      %v835 = vunpack.c.l.b16 %v752
      %v836 = vunpack.c.l.b16 %v753
      %v837 = vunpack.c.l.b16 %v754
      %v838 = vunpack.c.l.b16 %v755
      %v839 = vunpack.c.l.b16 %v756
      %v840 = vunpack.c.l.b16 %v757
      %v841 = vunpack.c.l.b16 %v758
      %v842 = vpack.c.b16 %v806, %v805
      %v843 = vpack.c.b16 %v808, %v807
      %v844 = vpack.c.b16 %v810, %v809
      %v845 = vpack.c.b16 %v812, %v811
      %v846 = vpack.c.b16 %v814, %v813
      %v847 = vpack.c.b16 %v816, %v815
      %v848 = vpack.c.b16 %v818, %v817
      %v849 = vpack.c.b16 %v820, %v819
      %v850 = vpack.c.b16 %v822, %v821
      %v851 = vpack.c.b16 %v824, %v823
      %v852 = vpack.c.b16 %v826, %v825
      %v853 = vpack.c.b16 %v828, %v827
      %v854 = vpack.c.b16 %v830, %v829
      %v855 = vpack.c.b16 %v832, %v831
      %v856 = vpack.c.b16 %v834, %v833
      %v857 = vpack.c.b16 %v836, %v835
      %v858 = vpack.c.b16 %v838, %v837
      %v859 = vpack.c.b16 %v840, %v839
      %v860 = vpack.c.b16 %v841, %v841
      %vm861 = vsmask.f32 7424
      %v863 = vshrl.u32 %v842, 16
      %v865 = vshll.u32 %v842, 16
      %v867 = vrot.slane %v865, 1
      %v868 = vor.u32 %v863, %v867
      %v870 = vshll.u32 %v843, 16
      %v872 = vrot.slane %v870, 1
      %v873 = vsel %vm861, %v868, %v872
      %v874 = vshrl.u32 %v843, 16
      %v876 = vor.u32 %v874, %v872
      %v878 = vshll.u32 %v844, 16
      %v880 = vrot.slane %v878, 1
      %v881 = vsel %vm861, %v876, %v880
      %v882 = vshrl.u32 %v844, 16
      %v884 = vor.u32 %v882, %v880
      %v886 = vshll.u32 %v845, 16
      %v888 = vrot.slane %v886, 1
      %v889 = vsel %vm861, %v884, %v888
      %v890 = vshrl.u32 %v845, 16
      %v892 = vor.u32 %v890, %v888
      %v894 = vshll.u32 %v846, 16
      %v896 = vrot.slane %v894, 1
      %v897 = vsel %vm861, %v892, %v896
      %v898 = vshrl.u32 %v846, 16
      %v900 = vor.u32 %v898, %v896
      %v902 = vshll.u32 %v847, 16
      %v904 = vrot.slane %v902, 1
      %v905 = vsel %vm861, %v900, %v904
      %v906 = vshrl.u32 %v847, 16
      %v908 = vor.u32 %v906, %v904
      %v910 = vshll.u32 %v848, 16
      %v912 = vrot.slane %v910, 1
      %v913 = vsel %vm861, %v908, %v912
      %v914 = vshrl.u32 %v848, 16
      %v916 = vor.u32 %v914, %v912
      %v918 = vshll.u32 %v849, 16
      %v920 = vrot.slane %v918, 1
      %v921 = vsel %vm861, %v916, %v920
      %v922 = vshrl.u32 %v849, 16
      %v924 = vor.u32 %v922, %v920
      %v926 = vshll.u32 %v850, 16
      %v928 = vrot.slane %v926, 1
      %v929 = vsel %vm861, %v924, %v928
      %v930 = vshrl.u32 %v850, 16
      %v932 = vor.u32 %v930, %v928
      %v934 = vshll.u32 %v851, 16
      %v936 = vrot.slane %v934, 1
      %v937 = vsel %vm861, %v932, %v936
      %v938 = vshrl.u32 %v851, 16
      %v940 = vor.u32 %v938, %v936
      %v942 = vshll.u32 %v852, 16
      %v944 = vrot.slane %v942, 1
      %v945 = vsel %vm861, %v940, %v944
      %v946 = vshrl.u32 %v852, 16
      %v948 = vor.u32 %v946, %v944
      %v950 = vshll.u32 %v853, 16
      %v952 = vrot.slane %v950, 1
      %v953 = vsel %vm861, %v948, %v952
      %v954 = vshrl.u32 %v853, 16
      %v956 = vor.u32 %v954, %v952
      %v958 = vshll.u32 %v854, 16
      %v960 = vrot.slane %v958, 1
      %v961 = vsel %vm861, %v956, %v960
      %v962 = vshrl.u32 %v854, 16
      %v964 = vor.u32 %v962, %v960
      %v966 = vshll.u32 %v855, 16
      %v968 = vrot.slane %v966, 1
      %v969 = vsel %vm861, %v964, %v968
      %v970 = vshrl.u32 %v855, 16
      %v972 = vor.u32 %v970, %v968
      %v974 = vshll.u32 %v856, 16
      %v976 = vrot.slane %v974, 1
      %v977 = vsel %vm861, %v972, %v976
      %v978 = vshrl.u32 %v856, 16
      %v980 = vor.u32 %v978, %v976
      %v982 = vshll.u32 %v857, 16
      %v984 = vrot.slane %v982, 1
      %v985 = vsel %vm861, %v980, %v984
      %v986 = vshrl.u32 %v857, 16
      %v988 = vor.u32 %v986, %v984
      %v990 = vshll.u32 %v858, 16
      %v992 = vrot.slane %v990, 1
      %v993 = vsel %vm861, %v988, %v992
      %v994 = vshrl.u32 %v858, 16
      %v996 = vor.u32 %v994, %v992
      %v998 = vshll.u32 %v859, 16
      %v1000 = vrot.slane %v998, 1
      %v1001 = vsel %vm861, %v996, %v1000
      %v1002 = vshrl.u32 %v859, 16
      %v1004 = vor.u32 %v1002, %v1000
      %v1006 = vshll.u32 %v860, 16
      %v1008 = vrot.slane %v1006, 1
      %v1009 = vsel %vm861, %v1004, %v1008
      %v1018 = vunpack.c.l.b16 %v760
      %v1019 = vunpack.c.l.b16 %v761
      %v1020 = vunpack.c.l.b16 %v762
      %v1021 = vunpack.c.l.b16 %v763
      %v1022 = vunpack.c.l.b16 %v764
      %v1023 = vunpack.c.l.b16 %v765
      %v1024 = vunpack.c.l.b16 %v766
      %v1025 = vunpack.c.l.b16 %v767
      %v1026 = vpack.c.b16 %v1019, %v1018
      %v1027 = vpack.c.b16 %v1021, %v1020
      %v1028 = vpack.c.b16 %v1023, %v1022
      %v1029 = vpack.c.b16 %v1025, %v1024
      %v1035 = vsel %vm454, %v873, 0
      %v1038 = vsel %vm454, %v881, 0
      %v1041 = vsel %vm454, %v889, 0
      %v1044 = vsel %vm454, %v897, 0
      %v1047 = vsel %vm454, %v905, 0
      %v1050 = vsel %vm454, %v913, 0
      %v1053 = vsel %vm454, %v921, 0
      %v1056 = vsel %vm454, %v929, 0
      %v1059 = vsel %vm454, %v937, 0
      %v1062 = vsel %vm454, %v945, 0
      %v1065 = vsel %vm454, %v953, 0
      %v1068 = vsel %vm454, %v961, 0
      %v1071 = vsel %vm454, %v969, 0
      %v1074 = vsel %vm454, %v977, 0
      %v1077 = vsel %vm454, %v985, 0
      %v1080 = vsel %vm454, %v993, 0
      %v1083 = vsel %vm454, %v1001, 0
      %v1086 = vsel %vm454, %v1009, 0
      %1088 = vmatprep.subr.bf16.mxu0 0
      %1089 = vmatpush1.bf16.msra.mxu0 %v1026
      %1090 = vmatprep.subr.bf16.mxu0 0
      %1091 = vmatpush1.bf16.msra.mxu0 %v1027
      %1092 = vmatprep.subr.bf16.mxu0 0
      %1093 = vmatpush1.bf16.msra.mxu0 %v1028
      %1094 = vmatprep.subr.bf16.mxu0 0
      %1095 = vmatpush1.bf16.msra.mxu0 %v1029
      %1096 = vmatprep.subr.bf16.mxu0 0
      %1097 = vmatpush1.bf16.msra.mxu0 0
      %1098 = vmatprep.subr.bf16.mxu0 0
      %1099 = vmatpush1.bf16.msra.mxu0 0
      %1100 = vmatprep.subr.bf16.mxu0 0
      %1101 = vmatpush1.bf16.msra.mxu0 0
      %1102 = vmatprep.subr.bf16.mxu0 0
      %1103 = vmatpush1.bf16.msra.mxu0 0
      %1104 = vmatprep.subr.bf16.mxu0 0
      %1105 = vmatpush1.bf16.msra.mxu0 0
      %1106 = vmatprep.subr.bf16.mxu0 0
      %1107 = vmatpush1.bf16.msra.mxu0 0
      %1108 = vmatprep.subr.bf16.mxu0 0
      %1109 = vmatpush1.bf16.msra.mxu0 0
      %1110 = vmatprep.subr.bf16.mxu0 0
      %1111 = vmatpush1.bf16.msra.mxu0 0
      %1112 = vmatprep.subr.bf16.mxu0 0
      %1113 = vmatpush1.bf16.msra.mxu0 0
      %1114 = vmatprep.subr.bf16.mxu0 0
      %1115 = vmatpush1.bf16.msra.mxu0 0
      %1116 = vmatprep.subr.bf16.mxu0 0
      %1117 = vmatpush1.bf16.msra.mxu0 0
      %1118 = vmatprep.subr.bf16.mxu0 0
      %1119 = vmatpush1.bf16.msra.mxu0 0
      %1120 = vmatprep.mubr.bf16.mxu0 0
      %1121 = vmatmul.mubr.bf16.gmra.mrb[0].mxu0 %v1035
      %v1122 = vpop.f32.mrb[0].mxu0
      %v1123 = vadd.f32 0.0, %v1122
      %v1124 = vpop.f32.mrb[0].mxu0
      %v1125 = vpop.f32.mrb[0].mxu0
      %v1126 = vadd.f32 0.0, %v1125
      %v1127 = vpop.f32.mrb[0].mxu0
      %1128 = vmatprep.mubr.bf16.mxu0 0
      %1129 = vmatmul.mubr.bf16.gmra.mrb[0].mxu0 %v1038
      %v1130 = vpop.f32.mrb[0].mxu0
      %v1131 = vadd.f32 0.0, %v1130
      %v1132 = vpop.f32.mrb[0].mxu0
      %v1133 = vpop.f32.mrb[0].mxu0
      %v1134 = vadd.f32 0.0, %v1133
      %v1135 = vpop.f32.mrb[0].mxu0
      %1136 = vmatprep.mubr.bf16.mxu0 0
      %1137 = vmatmul.mubr.bf16.gmra.mrb[0].mxu0 %v1041
      %v1138 = vpop.f32.mrb[0].mxu0
      %v1139 = vadd.f32 0.0, %v1138
      %v1140 = vpop.f32.mrb[0].mxu0
      %v1141 = vpop.f32.mrb[0].mxu0
      %v1142 = vadd.f32 0.0, %v1141
      %v1143 = vpop.f32.mrb[0].mxu0
      %1144 = vmatprep.mubr.bf16.mxu0 0
      %1145 = vmatmul.mubr.bf16.gmra.mrb[0].mxu0 %v1044
      %v1146 = vpop.f32.mrb[0].mxu0
      %v1147 = vadd.f32 0.0, %v1146
      %v1148 = vpop.f32.mrb[0].mxu0
      %v1149 = vpop.f32.mrb[0].mxu0
      %v1150 = vadd.f32 0.0, %v1149
      %v1151 = vpop.f32.mrb[0].mxu0
      %1152 = vmatprep.mubr.bf16.mxu0 0
      %1153 = vmatmul.mubr.bf16.gmra.mrb[0].mxu0 %v1047
      %v1154 = vpop.f32.mrb[0].mxu0
      %v1155 = vadd.f32 0.0, %v1154
      %v1156 = vpop.f32.mrb[0].mxu0
      %v1157 = vpop.f32.mrb[0].mxu0
      %v1158 = vadd.f32 0.0, %v1157
      %v1159 = vpop.f32.mrb[0].mxu0
      %1160 = vmatprep.mubr.bf16.mxu0 0
      %1161 = vmatmul.mubr.bf16.gmra.mrb[0].mxu0 %v1050
      %v1162 = vpop.f32.mrb[0].mxu0
      %v1163 = vadd.f32 0.0, %v1162
      %v1164 = vpop.f32.mrb[0].mxu0
      %v1165 = vpop.f32.mrb[0].mxu0
      %v1166 = vadd.f32 0.0, %v1165
      %v1167 = vpop.f32.mrb[0].mxu0
      %1168 = vmatprep.mubr.bf16.mxu0 0
      %1169 = vmatmul.mubr.bf16.gmra.mrb[0].mxu0 %v1053
      %v1170 = vpop.f32.mrb[0].mxu0
      %v1171 = vadd.f32 0.0, %v1170
      %v1172 = vpop.f32.mrb[0].mxu0
      %v1173 = vpop.f32.mrb[0].mxu0
      %v1174 = vadd.f32 0.0, %v1173
      %v1175 = vpop.f32.mrb[0].mxu0
      %1176 = vmatprep.mubr.bf16.mxu0 0
      %1177 = vmatmul.mubr.bf16.gmra.mrb[0].mxu0 %v1056
      %v1178 = vpop.f32.mrb[0].mxu0
      %v1179 = vadd.f32 0.0, %v1178
      %v1180 = vpop.f32.mrb[0].mxu0
      %v1181 = vpop.f32.mrb[0].mxu0
      %v1182 = vadd.f32 0.0, %v1181
      %v1183 = vpop.f32.mrb[0].mxu0
      %1184 = vmatprep.mubr.bf16.mxu0 0
      %1185 = vmatmul.mubr.bf16.gmra.mrb[0].mxu0 %v1059
      %v1186 = vpop.f32.mrb[0].mxu0
      %v1187 = vadd.f32 0.0, %v1186
      %v1188 = vpop.f32.mrb[0].mxu0
      %v1189 = vpop.f32.mrb[0].mxu0
      %v1190 = vadd.f32 0.0, %v1189
      %v1191 = vpop.f32.mrb[0].mxu0
      %1192 = vmatprep.mubr.bf16.mxu0 0
      %1193 = vmatmul.mubr.bf16.gmra.mrb[0].mxu0 %v1062
      %v1194 = vpop.f32.mrb[0].mxu0
      %v1195 = vadd.f32 0.0, %v1194
      %v1196 = vpop.f32.mrb[0].mxu0
      %v1197 = vpop.f32.mrb[0].mxu0
      %v1198 = vadd.f32 0.0, %v1197
      %v1199 = vpop.f32.mrb[0].mxu0
      %1200 = vmatprep.mubr.bf16.mxu0 0
      %1201 = vmatmul.mubr.bf16.gmra.mrb[0].mxu0 %v1065
      %v1202 = vpop.f32.mrb[0].mxu0
      %v1203 = vadd.f32 0.0, %v1202
      %v1204 = vpop.f32.mrb[0].mxu0
      %v1205 = vpop.f32.mrb[0].mxu0
      %v1206 = vadd.f32 0.0, %v1205
      %v1207 = vpop.f32.mrb[0].mxu0
      %1208 = vmatprep.mubr.bf16.mxu0 0
      %1209 = vmatmul.mubr.bf16.gmra.mrb[0].mxu0 %v1068
      %v1210 = vpop.f32.mrb[0].mxu0
      %v1211 = vadd.f32 0.0, %v1210
      %v1212 = vpop.f32.mrb[0].mxu0
      %v1213 = vpop.f32.mrb[0].mxu0
      %v1214 = vadd.f32 0.0, %v1213
      %v1215 = vpop.f32.mrb[0].mxu0
      %1216 = vmatprep.mubr.bf16.mxu0 0
      %1217 = vmatmul.mubr.bf16.gmra.mrb[0].mxu0 %v1071
      %v1218 = vpop.f32.mrb[0].mxu0
      %v1219 = vadd.f32 0.0, %v1218
      %v1220 = vpop.f32.mrb[0].mxu0
      %v1221 = vpop.f32.mrb[0].mxu0
      %v1222 = vadd.f32 0.0, %v1221
      %v1223 = vpop.f32.mrb[0].mxu0
      %1224 = vmatprep.mubr.bf16.mxu0 0
      %1225 = vmatmul.mubr.bf16.gmra.mrb[0].mxu0 %v1074
      %v1226 = vpop.f32.mrb[0].mxu0
      %v1227 = vadd.f32 0.0, %v1226
      %v1228 = vpop.f32.mrb[0].mxu0
      %v1229 = vpop.f32.mrb[0].mxu0
      %v1230 = vadd.f32 0.0, %v1229
      %v1231 = vpop.f32.mrb[0].mxu0
      %1232 = vmatprep.mubr.bf16.mxu0 0
      %1233 = vmatmul.mubr.bf16.gmra.mrb[0].mxu0 %v1077
      %v1234 = vpop.f32.mrb[0].mxu0
      %v1235 = vadd.f32 0.0, %v1234
      %v1236 = vpop.f32.mrb[0].mxu0
      %v1237 = vpop.f32.mrb[0].mxu0
      %v1238 = vadd.f32 0.0, %v1237
      %v1239 = vpop.f32.mrb[0].mxu0
      %1240 = vmatprep.mubr.bf16.mxu0 0
      %1241 = vmatmul.mubr.bf16.gmra.mrb[0].mxu0 %v1080
      %v1242 = vpop.f32.mrb[0].mxu0
      %v1243 = vadd.f32 0.0, %v1242
      %v1244 = vpop.f32.mrb[0].mxu0
      %v1245 = vpop.f32.mrb[0].mxu0
      %v1246 = vadd.f32 0.0, %v1245
      %v1247 = vpop.f32.mrb[0].mxu0
      %1248 = vmatprep.mubr.bf16.mxu0 0
      %1249 = vmatmul.mubr.bf16.gmra.mrb[0].mxu0 %v1083
      %v1250 = vpop.f32.mrb[0].mxu0
      %v1251 = vadd.f32 0.0, %v1250
      %v1252 = vpop.f32.mrb[0].mxu0
      %v1253 = vpop.f32.mrb[0].mxu0
      %v1254 = vadd.f32 0.0, %v1253
      %v1255 = vpop.f32.mrb[0].mxu0
      %1256 = vmatprep.mubr.bf16.mxu0 0
      %1257 = vmatmul.mubr.bf16.gmra.mrb[0].mxu0 %v1086
      %v1258 = vpop.f32.mrb[0].mxu0
      %v1259 = vadd.f32 0.0, %v1258
      %v1260 = vpop.f32.mrb[0].mxu0
      %v1261 = vpop.f32.mrb[0].mxu0
      %v1262 = vadd.f32 0.0, %v1261
      %v1263 = vpop.f32.mrb[0].mxu0
      %1264 = vdwg.mxu0
      %v1265 = vadd.f32 %v686, %v1123
      %v1266 = vadd.f32 %v687, %v1126
      %v1267 = vadd.f32 %v688, %v1131
      %v1268 = vadd.f32 %v689, %v1134
      %v1269 = vadd.f32 %v690, %v1139
      %v1270 = vadd.f32 %v691, %v1142
      %v1271 = vadd.f32 %v692, %v1147
      %v1272 = vadd.f32 %v693, %v1150
      %v1273 = vadd.f32 %v694, %v1155
      %v1274 = vadd.f32 %v695, %v1158
      %v1275 = vadd.f32 %v696, %v1163
      %v1276 = vadd.f32 %v697, %v1166
      %v1277 = vadd.f32 %v698, %v1171
      %v1278 = vadd.f32 %v699, %v1174
      %v1279 = vadd.f32 %v700, %v1179
      %v1280 = vadd.f32 %v701, %v1182
      %v1281 = vadd.f32 %v702, %v1187
      %v1282 = vadd.f32 %v703, %v1190
      %v1283 = vadd.f32 %v704, %v1195
      %v1284 = vadd.f32 %v705, %v1198
      %v1285 = vadd.f32 %v706, %v1203
      %v1286 = vadd.f32 %v707, %v1206
      %v1287 = vadd.f32 %v708, %v1211
      %v1288 = vadd.f32 %v709, %v1214
      %v1289 = vadd.f32 %v710, %v1219
      %v1290 = vadd.f32 %v711, %v1222
      %v1291 = vadd.f32 %v712, %v1227
      %v1292 = vadd.f32 %v713, %v1230
      %v1293 = vadd.f32 %v714, %v1235
      %v1294 = vadd.f32 %v715, %v1238
      %v1295 = vadd.f32 %v716, %v1243
      %v1296 = vadd.f32 %v717, %v1246
      %v1297 = vadd.f32 %v718, %v1251
      %v1298 = vadd.f32 %v719, %v1254
      %v1299 = vadd.f32 %v720, %v1259
      %v1300 = vadd.f32 %v721, %v1262
      %v1301 = vld [vmem:[%s246] sm:$0xe]
      %s1302 = scalar_lea.vmem %s2, 64
      %v1303 = vld [vmem:[%s1302] sm:$0xf]
      %v1304 = vld [vmem:[%s1302 + $0x4] sm:$0xf]
      %v1305 = vld [vmem:[%s1302 + $0x8] sm:$0xf]
      %v1306 = vld [vmem:[%s1302 + $0xc] sm:$0xf]
      %v1307 = vld [vmem:[%s1302 + $0x10] sm:$0xf]
      %v1308 = vld [vmem:[%s1302 + $0x14] sm:$0xf]
      %v1309 = vld [vmem:[%s1302 + $0x18] sm:$0xf]
      %v1310 = vld [vmem:[%s1302 + $0x1c] sm:$0xf]
      %v1312 = vunpack.c.l.b16 %v1301
      %v1313 = vpack.c.b16 %v806, %v1312
      %vm1314 = vcmask 1046528
      %v1315 = vrot.slane %v1313, 1
      %v1316 = vrot.slane %v843, 1
      %v1317 = vsel %vm1314, %v1315, %v1316
      %v1318 = vrot.slane %v844, 1
      %v1319 = vsel %vm1314, %v1316, %v1318
      %v1320 = vrot.slane %v845, 1
      %v1321 = vsel %vm1314, %v1318, %v1320
      %v1322 = vrot.slane %v846, 1
      %v1323 = vsel %vm1314, %v1320, %v1322
      %v1324 = vrot.slane %v847, 1
      %v1325 = vsel %vm1314, %v1322, %v1324
      %v1326 = vrot.slane %v848, 1
      %v1327 = vsel %vm1314, %v1324, %v1326
      %v1328 = vrot.slane %v849, 1
      %v1329 = vsel %vm1314, %v1326, %v1328
      %v1330 = vrot.slane %v850, 1
      %v1331 = vsel %vm1314, %v1328, %v1330
      %v1332 = vrot.slane %v851, 1
      %v1333 = vsel %vm1314, %v1330, %v1332
      %v1334 = vrot.slane %v852, 1
      %v1335 = vsel %vm1314, %v1332, %v1334
      %v1336 = vrot.slane %v853, 1
      %v1337 = vsel %vm1314, %v1334, %v1336
      %v1338 = vrot.slane %v854, 1
      %v1339 = vsel %vm1314, %v1336, %v1338
      %v1340 = vrot.slane %v855, 1
      %v1341 = vsel %vm1314, %v1338, %v1340
      %v1342 = vrot.slane %v856, 1
      %v1343 = vsel %vm1314, %v1340, %v1342
      %v1344 = vrot.slane %v857, 1
      %v1345 = vsel %vm1314, %v1342, %v1344
      %v1346 = vrot.slane %v858, 1
      %v1347 = vsel %vm1314, %v1344, %v1346
      %v1348 = vrot.slane %v859, 1
      %v1349 = vsel %vm1314, %v1346, %v1348
      %v1350 = vrot.slane %v860, 1
      %v1351 = vsel %vm1314, %v1348, %v1350
      %v1360 = vunpack.c.l.b16 %v1303
      %v1361 = vunpack.c.l.b16 %v1304
      %v1362 = vunpack.c.l.b16 %v1305
      %v1363 = vunpack.c.l.b16 %v1306
      %v1364 = vunpack.c.l.b16 %v1307
      %v1365 = vunpack.c.l.b16 %v1308
      %v1366 = vunpack.c.l.b16 %v1309
      %v1367 = vunpack.c.l.b16 %v1310
      %v1368 = vpack.c.b16 %v1361, %v1360
      %v1369 = vpack.c.b16 %v1363, %v1362
      %v1370 = vpack.c.b16 %v1365, %v1364
      %v1371 = vpack.c.b16 %v1367, %v1366
      %v1377 = vsel %vm454, %v1317, 0
      %v1380 = vsel %vm454, %v1319, 0
      %v1383 = vsel %vm454, %v1321, 0
      %v1386 = vsel %vm454, %v1323, 0
      %v1389 = vsel %vm454, %v1325, 0
      %v1392 = vsel %vm454, %v1327, 0
      %v1395 = vsel %vm454, %v1329, 0
      %v1398 = vsel %vm454, %v1331, 0
      %v1401 = vsel %vm454, %v1333, 0
      %v1404 = vsel %vm454, %v1335, 0
      %v1407 = vsel %vm454, %v1337, 0
      %v1410 = vsel %vm454, %v1339, 0
      %v1413 = vsel %vm454, %v1341, 0
      %v1416 = vsel %vm454, %v1343, 0
      %v1419 = vsel %vm454, %v1345, 0
      %v1422 = vsel %vm454, %v1347, 0
      %v1425 = vsel %vm454, %v1349, 0
      %v1428 = vsel %vm454, %v1351, 0
      %1430 = vmatprep.subr.bf16.mxu0 0
      %1431 = vmatpush1.bf16.msra.mxu0 %v1368
      %1432 = vmatprep.subr.bf16.mxu0 0
      %1433 = vmatpush1.bf16.msra.mxu0 %v1369
      %1434 = vmatprep.subr.bf16.mxu0 0
      %1435 = vmatpush1.bf16.msra.mxu0 %v1370
      %1436 = vmatprep.subr.bf16.mxu0 0
      %1437 = vmatpush1.bf16.msra.mxu0 %v1371
      %1438 = vmatprep.subr.bf16.mxu0 0
      %1439 = vmatpush1.bf16.msra.mxu0 0
      %1440 = vmatprep.subr.bf16.mxu0 0
      %1441 = vmatpush1.bf16.msra.mxu0 0
      %1442 = vmatprep.subr.bf16.mxu0 0
      %1443 = vmatpush1.bf16.msra.mxu0 0
      %1444 = vmatprep.subr.bf16.mxu0 0
      %1445 = vmatpush1.bf16.msra.mxu0 0
      %1446 = vmatprep.subr.bf16.mxu0 0
      %1447 = vmatpush1.bf16.msra.mxu0 0
      %1448 = vmatprep.subr.bf16.mxu0 0
      %1449 = vmatpush1.bf16.msra.mxu0 0
      %1450 = vmatprep.subr.bf16.mxu0 0
      %1451 = vmatpush1.bf16.msra.mxu0 0
      %1452 = vmatprep.subr.bf16.mxu0 0
      %1453 = vmatpush1.bf16.msra.mxu0 0
      %1454 = vmatprep.subr.bf16.mxu0 0
      %1455 = vmatpush1.bf16.msra.mxu0 0
      %1456 = vmatprep.subr.bf16.mxu0 0
      %1457 = vmatpush1.bf16.msra.mxu0 0
      %1458 = vmatprep.subr.bf16.mxu0 0
      %1459 = vmatpush1.bf16.msra.mxu0 0
      %1460 = vmatprep.subr.bf16.mxu0 0
      %1461 = vmatpush1.bf16.msra.mxu0 0
      %1462 = vmatprep.mubr.bf16.mxu0 0
      %1463 = vmatmul.mubr.bf16.gmra.mrb[0].mxu0 %v1377
      %v1464 = vpop.f32.mrb[0].mxu0
      %v1465 = vadd.f32 0.0, %v1464
      %v1466 = vpop.f32.mrb[0].mxu0
      %v1467 = vpop.f32.mrb[0].mxu0
      %v1468 = vadd.f32 0.0, %v1467
      %v1469 = vpop.f32.mrb[0].mxu0
      %1470 = vmatprep.mubr.bf16.mxu0 0
      %1471 = vmatmul.mubr.bf16.gmra.mrb[0].mxu0 %v1380
      %v1472 = vpop.f32.mrb[0].mxu0
      %v1473 = vadd.f32 0.0, %v1472
      %v1474 = vpop.f32.mrb[0].mxu0
      %v1475 = vpop.f32.mrb[0].mxu0
      %v1476 = vadd.f32 0.0, %v1475
      %v1477 = vpop.f32.mrb[0].mxu0
      %1478 = vmatprep.mubr.bf16.mxu0 0
      %1479 = vmatmul.mubr.bf16.gmra.mrb[0].mxu0 %v1383
      %v1480 = vpop.f32.mrb[0].mxu0
      %v1481 = vadd.f32 0.0, %v1480
      %v1482 = vpop.f32.mrb[0].mxu0
      %v1483 = vpop.f32.mrb[0].mxu0
      %v1484 = vadd.f32 0.0, %v1483
      %v1485 = vpop.f32.mrb[0].mxu0
      %1486 = vmatprep.mubr.bf16.mxu0 0
      %1487 = vmatmul.mubr.bf16.gmra.mrb[0].mxu0 %v1386
      %v1488 = vpop.f32.mrb[0].mxu0
      %v1489 = vadd.f32 0.0, %v1488
      %v1490 = vpop.f32.mrb[0].mxu0
      %v1491 = vpop.f32.mrb[0].mxu0
      %v1492 = vadd.f32 0.0, %v1491
      %v1493 = vpop.f32.mrb[0].mxu0
      %1494 = vmatprep.mubr.bf16.mxu0 0
      %1495 = vmatmul.mubr.bf16.gmra.mrb[0].mxu0 %v1389
      %v1496 = vpop.f32.mrb[0].mxu0
      %v1497 = vadd.f32 0.0, %v1496
      %v1498 = vpop.f32.mrb[0].mxu0
      %v1499 = vpop.f32.mrb[0].mxu0
      %v1500 = vadd.f32 0.0, %v1499
      %v1501 = vpop.f32.mrb[0].mxu0
      %1502 = vmatprep.mubr.bf16.mxu0 0
      %1503 = vmatmul.mubr.bf16.gmra.mrb[0].mxu0 %v1392
      %v1504 = vpop.f32.mrb[0].mxu0
      %v1505 = vadd.f32 0.0, %v1504
      %v1506 = vpop.f32.mrb[0].mxu0
      %v1507 = vpop.f32.mrb[0].mxu0
      %v1508 = vadd.f32 0.0, %v1507
      %v1509 = vpop.f32.mrb[0].mxu0
      %1510 = vmatprep.mubr.bf16.mxu0 0
      %1511 = vmatmul.mubr.bf16.gmra.mrb[0].mxu0 %v1395
      %v1512 = vpop.f32.mrb[0].mxu0
      %v1513 = vadd.f32 0.0, %v1512
      %v1514 = vpop.f32.mrb[0].mxu0
      %v1515 = vpop.f32.mrb[0].mxu0
      %v1516 = vadd.f32 0.0, %v1515
      %v1517 = vpop.f32.mrb[0].mxu0
      %1518 = vmatprep.mubr.bf16.mxu0 0
      %1519 = vmatmul.mubr.bf16.gmra.mrb[0].mxu0 %v1398
      %v1520 = vpop.f32.mrb[0].mxu0
      %v1521 = vadd.f32 0.0, %v1520
      %v1522 = vpop.f32.mrb[0].mxu0
      %v1523 = vpop.f32.mrb[0].mxu0
      %v1524 = vadd.f32 0.0, %v1523
      %v1525 = vpop.f32.mrb[0].mxu0
      %1526 = vmatprep.mubr.bf16.mxu0 0
      %1527 = vmatmul.mubr.bf16.gmra.mrb[0].mxu0 %v1401
      %v1528 = vpop.f32.mrb[0].mxu0
      %v1529 = vadd.f32 0.0, %v1528
      %v1530 = vpop.f32.mrb[0].mxu0
      %v1531 = vpop.f32.mrb[0].mxu0
      %v1532 = vadd.f32 0.0, %v1531
      %v1533 = vpop.f32.mrb[0].mxu0
      %1534 = vmatprep.mubr.bf16.mxu0 0
      %1535 = vmatmul.mubr.bf16.gmra.mrb[0].mxu0 %v1404
      %v1536 = vpop.f32.mrb[0].mxu0
      %v1537 = vadd.f32 0.0, %v1536
      %v1538 = vpop.f32.mrb[0].mxu0
      %v1539 = vpop.f32.mrb[0].mxu0
      %v1540 = vadd.f32 0.0, %v1539
      %v1541 = vpop.f32.mrb[0].mxu0
      %1542 = vmatprep.mubr.bf16.mxu0 0
      %1543 = vmatmul.mubr.bf16.gmra.mrb[0].mxu0 %v1407
      %v1544 = vpop.f32.mrb[0].mxu0
      %v1545 = vadd.f32 0.0, %v1544
      %v1546 = vpop.f32.mrb[0].mxu0
      %v1547 = vpop.f32.mrb[0].mxu0
      %v1548 = vadd.f32 0.0, %v1547
      %v1549 = vpop.f32.mrb[0].mxu0
      %1550 = vmatprep.mubr.bf16.mxu0 0
      %1551 = vmatmul.mubr.bf16.gmra.mrb[0].mxu0 %v1410
      %v1552 = vpop.f32.mrb[0].mxu0
      %v1553 = vadd.f32 0.0, %v1552
      %v1554 = vpop.f32.mrb[0].mxu0
      %v1555 = vpop.f32.mrb[0].mxu0
      %v1556 = vadd.f32 0.0, %v1555
      %v1557 = vpop.f32.mrb[0].mxu0
      %1558 = vmatprep.mubr.bf16.mxu0 0
      %1559 = vmatmul.mubr.bf16.gmra.mrb[0].mxu0 %v1413
      %v1560 = vpop.f32.mrb[0].mxu0
      %v1561 = vadd.f32 0.0, %v1560
      %v1562 = vpop.f32.mrb[0].mxu0
      %v1563 = vpop.f32.mrb[0].mxu0
      %v1564 = vadd.f32 0.0, %v1563
      %v1565 = vpop.f32.mrb[0].mxu0
      %1566 = vmatprep.mubr.bf16.mxu0 0
      %1567 = vmatmul.mubr.bf16.gmra.mrb[0].mxu0 %v1416
      %v1568 = vpop.f32.mrb[0].mxu0
      %v1569 = vadd.f32 0.0, %v1568
      %v1570 = vpop.f32.mrb[0].mxu0
      %v1571 = vpop.f32.mrb[0].mxu0
      %v1572 = vadd.f32 0.0, %v1571
      %v1573 = vpop.f32.mrb[0].mxu0
      %1574 = vmatprep.mubr.bf16.mxu0 0
      %1575 = vmatmul.mubr.bf16.gmra.mrb[0].mxu0 %v1419
      %v1576 = vpop.f32.mrb[0].mxu0
      %v1577 = vadd.f32 0.0, %v1576
      %v1578 = vpop.f32.mrb[0].mxu0
      %v1579 = vpop.f32.mrb[0].mxu0
      %v1580 = vadd.f32 0.0, %v1579
      %v1581 = vpop.f32.mrb[0].mxu0
      %1582 = vmatprep.mubr.bf16.mxu0 0
      %1583 = vmatmul.mubr.bf16.gmra.mrb[0].mxu0 %v1422
      %v1584 = vpop.f32.mrb[0].mxu0
      %v1585 = vadd.f32 0.0, %v1584
      %v1586 = vpop.f32.mrb[0].mxu0
      %v1587 = vpop.f32.mrb[0].mxu0
      %v1588 = vadd.f32 0.0, %v1587
      %v1589 = vpop.f32.mrb[0].mxu0
      %1590 = vmatprep.mubr.bf16.mxu0 0
      %1591 = vmatmul.mubr.bf16.gmra.mrb[0].mxu0 %v1425
      %v1592 = vpop.f32.mrb[0].mxu0
      %v1593 = vadd.f32 0.0, %v1592
      %v1594 = vpop.f32.mrb[0].mxu0
      %v1595 = vpop.f32.mrb[0].mxu0
      %v1596 = vadd.f32 0.0, %v1595
      %v1597 = vpop.f32.mrb[0].mxu0
      %1598 = vmatprep.mubr.bf16.mxu0 0
      %1599 = vmatmul.mubr.bf16.gmra.mrb[0].mxu0 %v1428
      %v1600 = vpop.f32.mrb[0].mxu0
      %v1601 = vadd.f32 0.0, %v1600
      %v1602 = vpop.f32.mrb[0].mxu0
      %v1603 = vpop.f32.mrb[0].mxu0
      %v1604 = vadd.f32 0.0, %v1603
      %v1605 = vpop.f32.mrb[0].mxu0
      %1606 = vdwg.mxu0
      %v1607 = vadd.f32 %v1265, %v1465
      %v1608 = vadd.f32 %v1266, %v1468
      %v1609 = vadd.f32 %v1267, %v1473
      %v1610 = vadd.f32 %v1268, %v1476
      %v1611 = vadd.f32 %v1269, %v1481
      %v1612 = vadd.f32 %v1270, %v1484
      %v1613 = vadd.f32 %v1271, %v1489
      %v1614 = vadd.f32 %v1272, %v1492
      %v1615 = vadd.f32 %v1273, %v1497
      %v1616 = vadd.f32 %v1274, %v1500
      %v1617 = vadd.f32 %v1275, %v1505
      %v1618 = vadd.f32 %v1276, %v1508
      %v1619 = vadd.f32 %v1277, %v1513
      %v1620 = vadd.f32 %v1278, %v1516
      %v1621 = vadd.f32 %v1279, %v1521
      %v1622 = vadd.f32 %v1280, %v1524
      %v1623 = vadd.f32 %v1281, %v1529
      %v1624 = vadd.f32 %v1282, %v1532
      %v1625 = vadd.f32 %v1283, %v1537
      %v1626 = vadd.f32 %v1284, %v1540
      %v1627 = vadd.f32 %v1285, %v1545
      %v1628 = vadd.f32 %v1286, %v1548
      %v1629 = vadd.f32 %v1287, %v1553
      %v1630 = vadd.f32 %v1288, %v1556
      %v1631 = vadd.f32 %v1289, %v1561
      %v1632 = vadd.f32 %v1290, %v1564
      %v1633 = vadd.f32 %v1291, %v1569
      %v1634 = vadd.f32 %v1292, %v1572
      %v1635 = vadd.f32 %v1293, %v1577
      %v1636 = vadd.f32 %v1294, %v1580
      %v1637 = vadd.f32 %v1295, %v1585
      %v1638 = vadd.f32 %v1296, %v1588
      %v1639 = vadd.f32 %v1297, %v1593
      %v1640 = vadd.f32 %v1298, %v1596
      %v1641 = vadd.f32 %v1299, %v1601
      %v1642 = vadd.f32 %v1300, %v1604
      %v1643 = vld [vmem:[%s246 + $0x8] sm:$0xe]
      %v1644 = vld [vmem:[%s246 + $0xc] sm:$0xf]
      %v1645 = vld [vmem:[%s246 + $0x10] sm:$0xf]
      %v1646 = vld [vmem:[%s246 + $0x14] sm:$0xf]
      %v1647 = vld [vmem:[%s246 + $0x18] sm:$0xf]
      %v1648 = vld [vmem:[%s246 + $0x1c] sm:$0xf]
      %v1649 = vld [vmem:[%s246 + $0x20] sm:$0xf]
      %v1650 = vld [vmem:[%s246 + $0x24] sm:$0xf]
      %v1651 = vld [vmem:[%s246 + $0x28] sm:$0xf]
      %v1652 = vld [vmem:[%s246 + $0x2c] sm:$0xf]
      %v1653 = vld [vmem:[%s246 + $0x30] sm:$0xf]
      %v1654 = vld [vmem:[%s246 + $0x34] sm:$0xf]
      %v1655 = vld [vmem:[%s246 + $0x38] sm:$0xf]
      %v1656 = vld [vmem:[%s246 + $0x3c] sm:$0xf]
      %v1657 = vld [vmem:[%s246 + $0x40] sm:$0xf]
      %v1658 = vld [vmem:[%s246 + $0x44] sm:$0xf]
      %v1659 = vld [vmem:[%s246 + $0x48] sm:$0xf]
      %v1660 = vld [vmem:[%s246 + $0x4c] sm:$0xf]
      %v1661 = vld [vmem:[%s246 + $0x50] sm:$0xf]
      %v1662 = vld [vmem:[%s246 + $0x54] sm:$0xf]
      %v1663 = vld [vmem:[%s246 + $0x58] sm:$0xf]
      %v1664 = vld [vmem:[%s246 + $0x5c] sm:$0xf]
      %v1665 = vld [vmem:[%s246 + $0x60] sm:$0xf]
      %v1666 = vld [vmem:[%s246 + $0x64] sm:$0xf]
      %v1667 = vld [vmem:[%s246 + $0x68] sm:$0xf]
      %v1668 = vld [vmem:[%s246 + $0x6c] sm:$0xf]
      %v1669 = vld [vmem:[%s246 + $0x70] sm:$0xf]
      %v1670 = vld [vmem:[%s246 + $0x74] sm:$0xf]
      %v1671 = vld [vmem:[%s246 + $0x78] sm:$0xf]
      %v1672 = vld [vmem:[%s246 + $0x7c] sm:$0xf]
      %v1673 = vld [vmem:[%s246 + $0x80] sm:$0xf]
      %v1674 = vld [vmem:[%s246 + $0x84] sm:$0xf]
      %v1675 = vld [vmem:[%s246 + $0x88] sm:$0xf]
      %v1676 = vld [vmem:[%s246 + $0x8c] sm:$0xf]
      %v1677 = vld [vmem:[%s246 + $0x90] sm:$0xf]
      %v1678 = vld [vmem:[%s246 + $0x94] sm:$0xf]
      %v1679 = vld [vmem:[%s246 + $0x98] sm:$0x1]
      %s1680 = scalar_lea.vmem %s2, 96
      %v1681 = vld [vmem:[%s1680] sm:$0xf]
      %v1682 = vld [vmem:[%s1680 + $0x4] sm:$0xf]
      %v1683 = vld [vmem:[%s1680 + $0x8] sm:$0xf]
      %v1684 = vld [vmem:[%s1680 + $0xc] sm:$0xf]
      %v1685 = vld [vmem:[%s1680 + $0x10] sm:$0xf]
      %v1686 = vld [vmem:[%s1680 + $0x14] sm:$0xf]
      %v1687 = vld [vmem:[%s1680 + $0x18] sm:$0xf]
      %v1688 = vld [vmem:[%s1680 + $0x1c] sm:$0xf]
      %v1726 = vunpack.c.l.b16 %v1643
      %v1727 = vunpack.c.l.b16 %v1644
      %v1728 = vunpack.c.l.b16 %v1645
      %v1729 = vunpack.c.l.b16 %v1646
      %v1730 = vunpack.c.l.b16 %v1647
      %v1731 = vunpack.c.l.b16 %v1648
      %v1732 = vunpack.c.l.b16 %v1649
      %v1733 = vunpack.c.l.b16 %v1650
      %v1734 = vunpack.c.l.b16 %v1651
      %v1735 = vunpack.c.l.b16 %v1652
      %v1736 = vunpack.c.l.b16 %v1653
      %v1737 = vunpack.c.l.b16 %v1654
      %v1738 = vunpack.c.l.b16 %v1655
      %v1739 = vunpack.c.l.b16 %v1656
      %v1740 = vunpack.c.l.b16 %v1657
      %v1741 = vunpack.c.l.b16 %v1658
      %v1742 = vunpack.c.l.b16 %v1659
      %v1743 = vunpack.c.l.b16 %v1660
      %v1744 = vunpack.c.l.b16 %v1661
      %v1745 = vunpack.c.l.b16 %v1662
      %v1746 = vunpack.c.l.b16 %v1663
      %v1747 = vunpack.c.l.b16 %v1664
      %v1748 = vunpack.c.l.b16 %v1665
      %v1749 = vunpack.c.l.b16 %v1666
      %v1750 = vunpack.c.l.b16 %v1667
      %v1751 = vunpack.c.l.b16 %v1668
      %v1752 = vunpack.c.l.b16 %v1669
      %v1753 = vunpack.c.l.b16 %v1670
      %v1754 = vunpack.c.l.b16 %v1671
      %v1755 = vunpack.c.l.b16 %v1672
      %v1756 = vunpack.c.l.b16 %v1673
      %v1757 = vunpack.c.l.b16 %v1674
      %v1758 = vunpack.c.l.b16 %v1675
      %v1759 = vunpack.c.l.b16 %v1676
      %v1760 = vunpack.c.l.b16 %v1677
      %v1761 = vunpack.c.l.b16 %v1678
      %v1762 = vunpack.c.l.b16 %v1679
      %v1763 = vpack.c.b16 %v1727, %v1726
      %v1764 = vpack.c.b16 %v1729, %v1728
      %v1765 = vpack.c.b16 %v1731, %v1730
      %v1766 = vpack.c.b16 %v1733, %v1732
      %v1767 = vpack.c.b16 %v1735, %v1734
      %v1768 = vpack.c.b16 %v1737, %v1736
      %v1769 = vpack.c.b16 %v1739, %v1738
      %v1770 = vpack.c.b16 %v1741, %v1740
      %v1771 = vpack.c.b16 %v1743, %v1742
      %v1772 = vpack.c.b16 %v1745, %v1744
      %v1773 = vpack.c.b16 %v1747, %v1746
      %v1774 = vpack.c.b16 %v1749, %v1748
      %v1775 = vpack.c.b16 %v1751, %v1750
      %v1776 = vpack.c.b16 %v1753, %v1752
      %v1777 = vpack.c.b16 %v1755, %v1754
      %v1778 = vpack.c.b16 %v1757, %v1756
      %v1779 = vpack.c.b16 %v1759, %v1758
      %v1780 = vpack.c.b16 %v1761, %v1760
      %v1781 = vpack.c.b16 %v1762, %v1762
      %v1782 = vrot.slane %v1763, 1
      %v1783 = vrot.slane %v1764, 1
      %v1784 = vsel %vm1314, %v1782, %v1783
      %v1785 = vrot.slane %v1765, 1
      %v1786 = vsel %vm1314, %v1783, %v1785
      %v1787 = vrot.slane %v1766, 1
      %v1788 = vsel %vm1314, %v1785, %v1787
      %v1789 = vrot.slane %v1767, 1
      %v1790 = vsel %vm1314, %v1787, %v1789
      %v1791 = vrot.slane %v1768, 1
      %v1792 = vsel %vm1314, %v1789, %v1791
      %v1793 = vrot.slane %v1769, 1
      %v1794 = vsel %vm1314, %v1791, %v1793
      %v1795 = vrot.slane %v1770, 1
      %v1796 = vsel %vm1314, %v1793, %v1795
      %v1797 = vrot.slane %v1771, 1
      %v1798 = vsel %vm1314, %v1795, %v1797
      %v1799 = vrot.slane %v1772, 1
      %v1800 = vsel %vm1314, %v1797, %v1799
      %v1801 = vrot.slane %v1773, 1
      %v1802 = vsel %vm1314, %v1799, %v1801
      %v1803 = vrot.slane %v1774, 1
      %v1804 = vsel %vm1314, %v1801, %v1803
      %v1805 = vrot.slane %v1775, 1
      %v1806 = vsel %vm1314, %v1803, %v1805
      %v1807 = vrot.slane %v1776, 1
      %v1808 = vsel %vm1314, %v1805, %v1807
      %v1809 = vrot.slane %v1777, 1
      %v1810 = vsel %vm1314, %v1807, %v1809
      %v1811 = vrot.slane %v1778, 1
      %v1812 = vsel %vm1314, %v1809, %v1811
      %v1813 = vrot.slane %v1779, 1
      %v1814 = vsel %vm1314, %v1811, %v1813
      %v1815 = vrot.slane %v1780, 1
      %v1816 = vsel %vm1314, %v1813, %v1815
      %v1817 = vrot.slane %v1781, 1
      %v1818 = vsel %vm1314, %v1815, %v1817
      %v1827 = vunpack.c.l.b16 %v1681
      %v1828 = vunpack.c.l.b16 %v1682
      %v1829 = vunpack.c.l.b16 %v1683
      %v1830 = vunpack.c.l.b16 %v1684
      %v1831 = vunpack.c.l.b16 %v1685
      %v1832 = vunpack.c.l.b16 %v1686
      %v1833 = vunpack.c.l.b16 %v1687
      %v1834 = vunpack.c.l.b16 %v1688
      %v1835 = vpack.c.b16 %v1828, %v1827
      %v1836 = vpack.c.b16 %v1830, %v1829
      %v1837 = vpack.c.b16 %v1832, %v1831
      %v1838 = vpack.c.b16 %v1834, %v1833
      %v1844 = vsel %vm454, %v1784, 0
      %v1847 = vsel %vm454, %v1786, 0
      %v1850 = vsel %vm454, %v1788, 0
      %v1853 = vsel %vm454, %v1790, 0
      %v1856 = vsel %vm454, %v1792, 0
      %v1859 = vsel %vm454, %v1794, 0
      %v1862 = vsel %vm454, %v1796, 0
      %v1865 = vsel %vm454, %v1798, 0
      %v1868 = vsel %vm454, %v1800, 0
      %v1871 = vsel %vm454, %v1802, 0
      %v1874 = vsel %vm454, %v1804, 0
      %v1877 = vsel %vm454, %v1806, 0
      %v1880 = vsel %vm454, %v1808, 0
      %v1883 = vsel %vm454, %v1810, 0
      %v1886 = vsel %vm454, %v1812, 0
      %v1889 = vsel %vm454, %v1814, 0
      %v1892 = vsel %vm454, %v1816, 0
      %v1895 = vsel %vm454, %v1818, 0
      %1897 = vmatprep.subr.bf16.mxu0 0
      %1898 = vmatpush1.bf16.msra.mxu0 %v1835
      %1899 = vmatprep.subr.bf16.mxu0 0
      %1900 = vmatpush1.bf16.msra.mxu0 %v1836
      %1901 = vmatprep.subr.bf16.mxu0 0
      %1902 = vmatpush1.bf16.msra.mxu0 %v1837
      %1903 = vmatprep.subr.bf16.mxu0 0
      %1904 = vmatpush1.bf16.msra.mxu0 %v1838
      %1905 = vmatprep.subr.bf16.mxu0 0
      %1906 = vmatpush1.bf16.msra.mxu0 0
      %1907 = vmatprep.subr.bf16.mxu0 0
      %1908 = vmatpush1.bf16.msra.mxu0 0
      %1909 = vmatprep.subr.bf16.mxu0 0
      %1910 = vmatpush1.bf16.msra.mxu0 0
      %1911 = vmatprep.subr.bf16.mxu0 0
      %1912 = vmatpush1.bf16.msra.mxu0 0
      %1913 = vmatprep.subr.bf16.mxu0 0
      %1914 = vmatpush1.bf16.msra.mxu0 0
      %1915 = vmatprep.subr.bf16.mxu0 0
      %1916 = vmatpush1.bf16.msra.mxu0 0
      %1917 = vmatprep.subr.bf16.mxu0 0
      %1918 = vmatpush1.bf16.msra.mxu0 0
      %1919 = vmatprep.subr.bf16.mxu0 0
      %1920 = vmatpush1.bf16.msra.mxu0 0
      %1921 = vmatprep.subr.bf16.mxu0 0
      %1922 = vmatpush1.bf16.msra.mxu0 0
      %1923 = vmatprep.subr.bf16.mxu0 0
      %1924 = vmatpush1.bf16.msra.mxu0 0
      %1925 = vmatprep.subr.bf16.mxu0 0
      %1926 = vmatpush1.bf16.msra.mxu0 0
      %1927 = vmatprep.subr.bf16.mxu0 0
      %1928 = vmatpush1.bf16.msra.mxu0 0
      %1929 = vmatprep.mubr.bf16.mxu0 0
      %1930 = vmatmul.mubr.bf16.gmra.mrb[0].mxu0 %v1844
      %v1931 = vpop.f32.mrb[0].mxu0
      %v1932 = vadd.f32 0.0, %v1931
      %v1933 = vpop.f32.mrb[0].mxu0
      %v1934 = vpop.f32.mrb[0].mxu0
      %v1935 = vadd.f32 0.0, %v1934
      %v1936 = vpop.f32.mrb[0].mxu0
      %1937 = vmatprep.mubr.bf16.mxu0 0
      %1938 = vmatmul.mubr.bf16.gmra.mrb[0].mxu0 %v1847
      %v1939 = vpop.f32.mrb[0].mxu0
      %v1940 = vadd.f32 0.0, %v1939
      %v1941 = vpop.f32.mrb[0].mxu0
      %v1942 = vpop.f32.mrb[0].mxu0
      %v1943 = vadd.f32 0.0, %v1942
      %v1944 = vpop.f32.mrb[0].mxu0
      %1945 = vmatprep.mubr.bf16.mxu0 0
      %1946 = vmatmul.mubr.bf16.gmra.mrb[0].mxu0 %v1850
      %v1947 = vpop.f32.mrb[0].mxu0
      %v1948 = vadd.f32 0.0, %v1947
      %v1949 = vpop.f32.mrb[0].mxu0
      %v1950 = vpop.f32.mrb[0].mxu0
      %v1951 = vadd.f32 0.0, %v1950
      %v1952 = vpop.f32.mrb[0].mxu0
      %1953 = vmatprep.mubr.bf16.mxu0 0
      %1954 = vmatmul.mubr.bf16.gmra.mrb[0].mxu0 %v1853
      %v1955 = vpop.f32.mrb[0].mxu0
      %v1956 = vadd.f32 0.0, %v1955
      %v1957 = vpop.f32.mrb[0].mxu0
      %v1958 = vpop.f32.mrb[0].mxu0
      %v1959 = vadd.f32 0.0, %v1958
      %v1960 = vpop.f32.mrb[0].mxu0
      %1961 = vmatprep.mubr.bf16.mxu0 0
      %1962 = vmatmul.mubr.bf16.gmra.mrb[0].mxu0 %v1856
      %v1963 = vpop.f32.mrb[0].mxu0
      %v1964 = vadd.f32 0.0, %v1963
      %v1965 = vpop.f32.mrb[0].mxu0
      %v1966 = vpop.f32.mrb[0].mxu0
      %v1967 = vadd.f32 0.0, %v1966
      %v1968 = vpop.f32.mrb[0].mxu0
      %1969 = vmatprep.mubr.bf16.mxu0 0
      %1970 = vmatmul.mubr.bf16.gmra.mrb[0].mxu0 %v1859
      %v1971 = vpop.f32.mrb[0].mxu0
      %v1972 = vadd.f32 0.0, %v1971
      %v1973 = vpop.f32.mrb[0].mxu0
      %v1974 = vpop.f32.mrb[0].mxu0
      %v1975 = vadd.f32 0.0, %v1974
      %v1976 = vpop.f32.mrb[0].mxu0
      %1977 = vmatprep.mubr.bf16.mxu0 0
      %1978 = vmatmul.mubr.bf16.gmra.mrb[0].mxu0 %v1862
      %v1979 = vpop.f32.mrb[0].mxu0
      %v1980 = vadd.f32 0.0, %v1979
      %v1981 = vpop.f32.mrb[0].mxu0
      %v1982 = vpop.f32.mrb[0].mxu0
      %v1983 = vadd.f32 0.0, %v1982
      %v1984 = vpop.f32.mrb[0].mxu0
      %1985 = vmatprep.mubr.bf16.mxu0 0
      %1986 = vmatmul.mubr.bf16.gmra.mrb[0].mxu0 %v1865
      %v1987 = vpop.f32.mrb[0].mxu0
      %v1988 = vadd.f32 0.0, %v1987
      %v1989 = vpop.f32.mrb[0].mxu0
      %v1990 = vpop.f32.mrb[0].mxu0
      %v1991 = vadd.f32 0.0, %v1990
      %v1992 = vpop.f32.mrb[0].mxu0
      %1993 = vmatprep.mubr.bf16.mxu0 0
      %1994 = vmatmul.mubr.bf16.gmra.mrb[0].mxu0 %v1868
      %v1995 = vpop.f32.mrb[0].mxu0
      %v1996 = vadd.f32 0.0, %v1995
      %v1997 = vpop.f32.mrb[0].mxu0
      %v1998 = vpop.f32.mrb[0].mxu0
      %v1999 = vadd.f32 0.0, %v1998
      %v2000 = vpop.f32.mrb[0].mxu0
      %2001 = vmatprep.mubr.bf16.mxu0 0
      %2002 = vmatmul.mubr.bf16.gmra.mrb[0].mxu0 %v1871
      %v2003 = vpop.f32.mrb[0].mxu0
      %v2004 = vadd.f32 0.0, %v2003
      %v2005 = vpop.f32.mrb[0].mxu0
      %v2006 = vpop.f32.mrb[0].mxu0
      %v2007 = vadd.f32 0.0, %v2006
      %v2008 = vpop.f32.mrb[0].mxu0
      %2009 = vmatprep.mubr.bf16.mxu0 0
      %2010 = vmatmul.mubr.bf16.gmra.mrb[0].mxu0 %v1874
      %v2011 = vpop.f32.mrb[0].mxu0
      %v2012 = vadd.f32 0.0, %v2011
      %v2013 = vpop.f32.mrb[0].mxu0
      %v2014 = vpop.f32.mrb[0].mxu0
      %v2015 = vadd.f32 0.0, %v2014
      %v2016 = vpop.f32.mrb[0].mxu0
      %2017 = vmatprep.mubr.bf16.mxu0 0
      %2018 = vmatmul.mubr.bf16.gmra.mrb[0].mxu0 %v1877
      %v2019 = vpop.f32.mrb[0].mxu0
      %v2020 = vadd.f32 0.0, %v2019
      %v2021 = vpop.f32.mrb[0].mxu0
      %v2022 = vpop.f32.mrb[0].mxu0
      %v2023 = vadd.f32 0.0, %v2022
      %v2024 = vpop.f32.mrb[0].mxu0
      %2025 = vmatprep.mubr.bf16.mxu0 0
      %2026 = vmatmul.mubr.bf16.gmra.mrb[0].mxu0 %v1880
      %v2027 = vpop.f32.mrb[0].mxu0
      %v2028 = vadd.f32 0.0, %v2027
      %v2029 = vpop.f32.mrb[0].mxu0
      %v2030 = vpop.f32.mrb[0].mxu0
      %v2031 = vadd.f32 0.0, %v2030
      %v2032 = vpop.f32.mrb[0].mxu0
      %2033 = vmatprep.mubr.bf16.mxu0 0
      %2034 = vmatmul.mubr.bf16.gmra.mrb[0].mxu0 %v1883
      %v2035 = vpop.f32.mrb[0].mxu0
      %v2036 = vadd.f32 0.0, %v2035
      %v2037 = vpop.f32.mrb[0].mxu0
      %v2038 = vpop.f32.mrb[0].mxu0
      %v2039 = vadd.f32 0.0, %v2038
      %v2040 = vpop.f32.mrb[0].mxu0
      %2041 = vmatprep.mubr.bf16.mxu0 0
      %2042 = vmatmul.mubr.bf16.gmra.mrb[0].mxu0 %v1886
      %v2043 = vpop.f32.mrb[0].mxu0
      %v2044 = vadd.f32 0.0, %v2043
      %v2045 = vpop.f32.mrb[0].mxu0
      %v2046 = vpop.f32.mrb[0].mxu0
      %v2047 = vadd.f32 0.0, %v2046
      %v2048 = vpop.f32.mrb[0].mxu0
      %2049 = vmatprep.mubr.bf16.mxu0 0
      %2050 = vmatmul.mubr.bf16.gmra.mrb[0].mxu0 %v1889
      %v2051 = vpop.f32.mrb[0].mxu0
      %v2052 = vadd.f32 0.0, %v2051
      %v2053 = vpop.f32.mrb[0].mxu0
      %v2054 = vpop.f32.mrb[0].mxu0
      %v2055 = vadd.f32 0.0, %v2054
      %v2056 = vpop.f32.mrb[0].mxu0
      %2057 = vmatprep.mubr.bf16.mxu0 0
      %2058 = vmatmul.mubr.bf16.gmra.mrb[0].mxu0 %v1892
      %v2059 = vpop.f32.mrb[0].mxu0
      %v2060 = vadd.f32 0.0, %v2059
      %v2061 = vpop.f32.mrb[0].mxu0
      %v2062 = vpop.f32.mrb[0].mxu0
      %v2063 = vadd.f32 0.0, %v2062
      %v2064 = vpop.f32.mrb[0].mxu0
      %2065 = vmatprep.mubr.bf16.mxu0 0
      %2066 = vmatmul.mubr.bf16.gmra.mrb[0].mxu0 %v1895
      %v2067 = vpop.f32.mrb[0].mxu0
      %v2068 = vadd.f32 0.0, %v2067
      %v2069 = vpop.f32.mrb[0].mxu0
      %v2070 = vpop.f32.mrb[0].mxu0
      %v2071 = vadd.f32 0.0, %v2070
      %v2072 = vpop.f32.mrb[0].mxu0
      %2073 = vdwg.mxu0
      %v2074 = vadd.f32 %v1607, %v1932
      %v2075 = vadd.f32 %v1608, %v1935
      %v2076 = vadd.f32 %v1609, %v1940
      %v2077 = vadd.f32 %v1610, %v1943
      %v2078 = vadd.f32 %v1611, %v1948
      %v2079 = vadd.f32 %v1612, %v1951
      %v2080 = vadd.f32 %v1613, %v1956
      %v2081 = vadd.f32 %v1614, %v1959
      %v2082 = vadd.f32 %v1615, %v1964
      %v2083 = vadd.f32 %v1616, %v1967
      %v2084 = vadd.f32 %v1617, %v1972
      %v2085 = vadd.f32 %v1618, %v1975
      %v2086 = vadd.f32 %v1619, %v1980
      %v2087 = vadd.f32 %v1620, %v1983
      %v2088 = vadd.f32 %v1621, %v1988
      %v2089 = vadd.f32 %v1622, %v1991
      %v2090 = vadd.f32 %v1623, %v1996
      %v2091 = vadd.f32 %v1624, %v1999
      %v2092 = vadd.f32 %v1625, %v2004
      %v2093 = vadd.f32 %v1626, %v2007
      %v2094 = vadd.f32 %v1627, %v2012
      %v2095 = vadd.f32 %v1628, %v2015
      %v2096 = vadd.f32 %v1629, %v2020
      %v2097 = vadd.f32 %v1630, %v2023
      %v2098 = vadd.f32 %v1631, %v2028
      %v2099 = vadd.f32 %v1632, %v2031
      %v2100 = vadd.f32 %v1633, %v2036
      %v2101 = vadd.f32 %v1634, %v2039
      %v2102 = vadd.f32 %v1635, %v2044
      %v2103 = vadd.f32 %v1636, %v2047
      %v2104 = vadd.f32 %v1637, %v2052
      %v2105 = vadd.f32 %v1638, %v2055
      %v2106 = vadd.f32 %v1639, %v2060
      %v2107 = vadd.f32 %v1640, %v2063
      %v2108 = vadd.f32 %v1641, %v2068
      %v2109 = vadd.f32 %v1642, %v2071
      %v2110 = vld [vmem:[%s246 + $0x98] sm:$0x3]
      %s2111 = scalar_lea.vmem %s2, 128
      %v2112 = vld [vmem:[%s2111] sm:$0xf]
      %v2113 = vld [vmem:[%s2111 + $0x4] sm:$0xf]
      %v2114 = vld [vmem:[%s2111 + $0x8] sm:$0xf]
      %v2115 = vld [vmem:[%s2111 + $0xc] sm:$0xf]
      %v2116 = vld [vmem:[%s2111 + $0x10] sm:$0xf]
      %v2117 = vld [vmem:[%s2111 + $0x14] sm:$0xf]
      %v2118 = vld [vmem:[%s2111 + $0x18] sm:$0xf]
      %v2119 = vld [vmem:[%s2111 + $0x1c] sm:$0xf]
      %v2121 = vunpack.c.l.b16 %v2110
      %v2122 = vpack.c.b16 %v2121, %v2121
      %vm2123 = vsmask.f32 6400
      %v2125 = vshrl.u32 %v1763, 16
      %v2127 = vrot.slane %v2125, 1
      %v2128 = vshll.u32 %v1763, 16
      %v2130 = vrot.slane %v2128, 2
      %v2131 = vor.u32 %v2127, %v2130
      %v2133 = vshrl.u32 %v1764, 16
      %v2135 = vrot.slane %v2133, 1
      %v2136 = vshll.u32 %v1764, 16
      %v2138 = vrot.slane %v2136, 2
      %v2139 = vor.u32 %v2135, %v2138
      %v2140 = vsel %vm2123, %v2131, %v2139
      %v2142 = vshrl.u32 %v1765, 16
      %v2144 = vrot.slane %v2142, 1
      %v2145 = vshll.u32 %v1765, 16
      %v2147 = vrot.slane %v2145, 2
      %v2148 = vor.u32 %v2144, %v2147
      %v2149 = vsel %vm2123, %v2139, %v2148
      %v2151 = vshrl.u32 %v1766, 16
      %v2153 = vrot.slane %v2151, 1
      %v2154 = vshll.u32 %v1766, 16
      %v2156 = vrot.slane %v2154, 2
      %v2157 = vor.u32 %v2153, %v2156
      %v2158 = vsel %vm2123, %v2148, %v2157
      %v2160 = vshrl.u32 %v1767, 16
      %v2162 = vrot.slane %v2160, 1
      %v2163 = vshll.u32 %v1767, 16
      %v2165 = vrot.slane %v2163, 2
      %v2166 = vor.u32 %v2162, %v2165
      %v2167 = vsel %vm2123, %v2157, %v2166
      %v2169 = vshrl.u32 %v1768, 16
      %v2171 = vrot.slane %v2169, 1
      %v2172 = vshll.u32 %v1768, 16
      %v2174 = vrot.slane %v2172, 2
      %v2175 = vor.u32 %v2171, %v2174
      %v2176 = vsel %vm2123, %v2166, %v2175
      %v2178 = vshrl.u32 %v1769, 16
      %v2180 = vrot.slane %v2178, 1
      %v2181 = vshll.u32 %v1769, 16
      %v2183 = vrot.slane %v2181, 2
      %v2184 = vor.u32 %v2180, %v2183
      %v2185 = vsel %vm2123, %v2175, %v2184
      %v2187 = vshrl.u32 %v1770, 16
      %v2189 = vrot.slane %v2187, 1
      %v2190 = vshll.u32 %v1770, 16
      %v2192 = vrot.slane %v2190, 2
      %v2193 = vor.u32 %v2189, %v2192
      %v2194 = vsel %vm2123, %v2184, %v2193
      %v2196 = vshrl.u32 %v1771, 16
      %v2198 = vrot.slane %v2196, 1
      %v2199 = vshll.u32 %v1771, 16
      %v2201 = vrot.slane %v2199, 2
      %v2202 = vor.u32 %v2198, %v2201
      %v2203 = vsel %vm2123, %v2193, %v2202
      %v2205 = vshrl.u32 %v1772, 16
      %v2207 = vrot.slane %v2205, 1
      %v2208 = vshll.u32 %v1772, 16
      %v2210 = vrot.slane %v2208, 2
      %v2211 = vor.u32 %v2207, %v2210
      %v2212 = vsel %vm2123, %v2202, %v2211
      %v2214 = vshrl.u32 %v1773, 16
      %v2216 = vrot.slane %v2214, 1
      %v2217 = vshll.u32 %v1773, 16
      %v2219 = vrot.slane %v2217, 2
      %v2220 = vor.u32 %v2216, %v2219
      %v2221 = vsel %vm2123, %v2211, %v2220
      %v2223 = vshrl.u32 %v1774, 16
      %v2225 = vrot.slane %v2223, 1
      %v2226 = vshll.u32 %v1774, 16
      %v2228 = vrot.slane %v2226, 2
      %v2229 = vor.u32 %v2225, %v2228
      %v2230 = vsel %vm2123, %v2220, %v2229
      %v2232 = vshrl.u32 %v1775, 16
      %v2234 = vrot.slane %v2232, 1
      %v2235 = vshll.u32 %v1775, 16
      %v2237 = vrot.slane %v2235, 2
      %v2238 = vor.u32 %v2234, %v2237
      %v2239 = vsel %vm2123, %v2229, %v2238
      %v2241 = vshrl.u32 %v1776, 16
      %v2243 = vrot.slane %v2241, 1
      %v2244 = vshll.u32 %v1776, 16
      %v2246 = vrot.slane %v2244, 2
      %v2247 = vor.u32 %v2243, %v2246
      %v2248 = vsel %vm2123, %v2238, %v2247
      %v2250 = vshrl.u32 %v1777, 16
      %v2252 = vrot.slane %v2250, 1
      %v2253 = vshll.u32 %v1777, 16
      %v2255 = vrot.slane %v2253, 2
      %v2256 = vor.u32 %v2252, %v2255
      %v2257 = vsel %vm2123, %v2247, %v2256
      %v2259 = vshrl.u32 %v1778, 16
      %v2261 = vrot.slane %v2259, 1
      %v2262 = vshll.u32 %v1778, 16
      %v2264 = vrot.slane %v2262, 2
      %v2265 = vor.u32 %v2261, %v2264
      %v2266 = vsel %vm2123, %v2256, %v2265
      %v2268 = vshrl.u32 %v1779, 16
      %v2270 = vrot.slane %v2268, 1
      %v2271 = vshll.u32 %v1779, 16
      %v2273 = vrot.slane %v2271, 2
      %v2274 = vor.u32 %v2270, %v2273
      %v2275 = vsel %vm2123, %v2265, %v2274
      %v2277 = vshrl.u32 %v1780, 16
      %v2279 = vrot.slane %v2277, 1
      %v2280 = vshll.u32 %v1780, 16
      %v2282 = vrot.slane %v2280, 2
      %v2283 = vor.u32 %v2279, %v2282
      %v2284 = vsel %vm2123, %v2274, %v2283
      %v2286 = vshrl.u32 %v2122, 16
      %v2288 = vrot.slane %v2286, 1
      %v2289 = vshll.u32 %v2122, 16
      %v2291 = vrot.slane %v2289, 2
      %v2292 = vor.u32 %v2288, %v2291
      %v2293 = vsel %vm2123, %v2283, %v2292
      %v2302 = vunpack.c.l.b16 %v2112
      %v2303 = vunpack.c.l.b16 %v2113
      %v2304 = vunpack.c.l.b16 %v2114
      %v2305 = vunpack.c.l.b16 %v2115
      %v2306 = vunpack.c.l.b16 %v2116
      %v2307 = vunpack.c.l.b16 %v2117
      %v2308 = vunpack.c.l.b16 %v2118
      %v2309 = vunpack.c.l.b16 %v2119
      %v2310 = vpack.c.b16 %v2303, %v2302
      %v2311 = vpack.c.b16 %v2305, %v2304
      %v2312 = vpack.c.b16 %v2307, %v2306
      %v2313 = vpack.c.b16 %v2309, %v2308
      %v2319 = vsel %vm454, %v2140, 0
      %v2322 = vsel %vm454, %v2149, 0
      %v2325 = vsel %vm454, %v2158, 0
      %v2328 = vsel %vm454, %v2167, 0
      %v2331 = vsel %vm454, %v2176, 0
      %v2334 = vsel %vm454, %v2185, 0
      %v2337 = vsel %vm454, %v2194, 0
      %v2340 = vsel %vm454, %v2203, 0
      %v2343 = vsel %vm454, %v2212, 0
      %v2346 = vsel %vm454, %v2221, 0
      %v2349 = vsel %vm454, %v2230, 0
      %v2352 = vsel %vm454, %v2239, 0
      %v2355 = vsel %vm454, %v2248, 0
      %v2358 = vsel %vm454, %v2257, 0
      %v2361 = vsel %vm454, %v2266, 0
      %v2364 = vsel %vm454, %v2275, 0
      %v2367 = vsel %vm454, %v2284, 0
      %v2370 = vsel %vm454, %v2293, 0
      %2372 = vmatprep.subr.bf16.mxu0 0
      %2373 = vmatpush1.bf16.msra.mxu0 %v2310
      %2374 = vmatprep.subr.bf16.mxu0 0
      %2375 = vmatpush1.bf16.msra.mxu0 %v2311
      %2376 = vmatprep.subr.bf16.mxu0 0
      %2377 = vmatpush1.bf16.msra.mxu0 %v2312
      %2378 = vmatprep.subr.bf16.mxu0 0
      %2379 = vmatpush1.bf16.msra.mxu0 %v2313
      %2380 = vmatprep.subr.bf16.mxu0 0
      %2381 = vmatpush1.bf16.msra.mxu0 0
      %2382 = vmatprep.subr.bf16.mxu0 0
      %2383 = vmatpush1.bf16.msra.mxu0 0
      %2384 = vmatprep.subr.bf16.mxu0 0
      %2385 = vmatpush1.bf16.msra.mxu0 0
      %2386 = vmatprep.subr.bf16.mxu0 0
      %2387 = vmatpush1.bf16.msra.mxu0 0
      %2388 = vmatprep.subr.bf16.mxu0 0
      %2389 = vmatpush1.bf16.msra.mxu0 0
      %2390 = vmatprep.subr.bf16.mxu0 0
      %2391 = vmatpush1.bf16.msra.mxu0 0
      %2392 = vmatprep.subr.bf16.mxu0 0
      %2393 = vmatpush1.bf16.msra.mxu0 0
      %2394 = vmatprep.subr.bf16.mxu0 0
      %2395 = vmatpush1.bf16.msra.mxu0 0
      %2396 = vmatprep.subr.bf16.mxu0 0
      %2397 = vmatpush1.bf16.msra.mxu0 0
      %2398 = vmatprep.subr.bf16.mxu0 0
      %2399 = vmatpush1.bf16.msra.mxu0 0
      %2400 = vmatprep.subr.bf16.mxu0 0
      %2401 = vmatpush1.bf16.msra.mxu0 0
      %2402 = vmatprep.subr.bf16.mxu0 0
      %2403 = vmatpush1.bf16.msra.mxu0 0
      %2404 = vmatprep.mubr.bf16.mxu0 0
      %2405 = vmatmul.mubr.bf16.gmra.mrb[0].mxu0 %v2319
      %v2406 = vpop.f32.mrb[0].mxu0
      %v2407 = vadd.f32 0.0, %v2406
      %v2408 = vpop.f32.mrb[0].mxu0
      %v2409 = vpop.f32.mrb[0].mxu0
      %v2410 = vadd.f32 0.0, %v2409
      %v2411 = vpop.f32.mrb[0].mxu0
      %2412 = vmatprep.mubr.bf16.mxu0 0
      %2413 = vmatmul.mubr.bf16.gmra.mrb[0].mxu0 %v2322
      %v2414 = vpop.f32.mrb[0].mxu0
      %v2415 = vadd.f32 0.0, %v2414
      %v2416 = vpop.f32.mrb[0].mxu0
      %v2417 = vpop.f32.mrb[0].mxu0
      %v2418 = vadd.f32 0.0, %v2417
      %v2419 = vpop.f32.mrb[0].mxu0
      %2420 = vmatprep.mubr.bf16.mxu0 0
      %2421 = vmatmul.mubr.bf16.gmra.mrb[0].mxu0 %v2325
      %v2422 = vpop.f32.mrb[0].mxu0
      %v2423 = vadd.f32 0.0, %v2422
      %v2424 = vpop.f32.mrb[0].mxu0
      %v2425 = vpop.f32.mrb[0].mxu0
      %v2426 = vadd.f32 0.0, %v2425
      %v2427 = vpop.f32.mrb[0].mxu0
      %2428 = vmatprep.mubr.bf16.mxu0 0
      %2429 = vmatmul.mubr.bf16.gmra.mrb[0].mxu0 %v2328
      %v2430 = vpop.f32.mrb[0].mxu0
      %v2431 = vadd.f32 0.0, %v2430
      %v2432 = vpop.f32.mrb[0].mxu0
      %v2433 = vpop.f32.mrb[0].mxu0
      %v2434 = vadd.f32 0.0, %v2433
      %v2435 = vpop.f32.mrb[0].mxu0
      %2436 = vmatprep.mubr.bf16.mxu0 0
      %2437 = vmatmul.mubr.bf16.gmra.mrb[0].mxu0 %v2331
      %v2438 = vpop.f32.mrb[0].mxu0
      %v2439 = vadd.f32 0.0, %v2438
      %v2440 = vpop.f32.mrb[0].mxu0
      %v2441 = vpop.f32.mrb[0].mxu0
      %v2442 = vadd.f32 0.0, %v2441
      %v2443 = vpop.f32.mrb[0].mxu0
      %2444 = vmatprep.mubr.bf16.mxu0 0
      %2445 = vmatmul.mubr.bf16.gmra.mrb[0].mxu0 %v2334
      %v2446 = vpop.f32.mrb[0].mxu0
      %v2447 = vadd.f32 0.0, %v2446
      %v2448 = vpop.f32.mrb[0].mxu0
      %v2449 = vpop.f32.mrb[0].mxu0
      %v2450 = vadd.f32 0.0, %v2449
      %v2451 = vpop.f32.mrb[0].mxu0
      %2452 = vmatprep.mubr.bf16.mxu0 0
      %2453 = vmatmul.mubr.bf16.gmra.mrb[0].mxu0 %v2337
      %v2454 = vpop.f32.mrb[0].mxu0
      %v2455 = vadd.f32 0.0, %v2454
      %v2456 = vpop.f32.mrb[0].mxu0
      %v2457 = vpop.f32.mrb[0].mxu0
      %v2458 = vadd.f32 0.0, %v2457
      %v2459 = vpop.f32.mrb[0].mxu0
      %2460 = vmatprep.mubr.bf16.mxu0 0
      %2461 = vmatmul.mubr.bf16.gmra.mrb[0].mxu0 %v2340
      %v2462 = vpop.f32.mrb[0].mxu0
      %v2463 = vadd.f32 0.0, %v2462
      %v2464 = vpop.f32.mrb[0].mxu0
      %v2465 = vpop.f32.mrb[0].mxu0
      %v2466 = vadd.f32 0.0, %v2465
      %v2467 = vpop.f32.mrb[0].mxu0
      %2468 = vmatprep.mubr.bf16.mxu0 0
      %2469 = vmatmul.mubr.bf16.gmra.mrb[0].mxu0 %v2343
      %v2470 = vpop.f32.mrb[0].mxu0
      %v2471 = vadd.f32 0.0, %v2470
      %v2472 = vpop.f32.mrb[0].mxu0
      %v2473 = vpop.f32.mrb[0].mxu0
      %v2474 = vadd.f32 0.0, %v2473
      %v2475 = vpop.f32.mrb[0].mxu0
      %2476 = vmatprep.mubr.bf16.mxu0 0
      %2477 = vmatmul.mubr.bf16.gmra.mrb[0].mxu0 %v2346
      %v2478 = vpop.f32.mrb[0].mxu0
      %v2479 = vadd.f32 0.0, %v2478
      %v2480 = vpop.f32.mrb[0].mxu0
      %v2481 = vpop.f32.mrb[0].mxu0
      %v2482 = vadd.f32 0.0, %v2481
      %v2483 = vpop.f32.mrb[0].mxu0
      %2484 = vmatprep.mubr.bf16.mxu0 0
      %2485 = vmatmul.mubr.bf16.gmra.mrb[0].mxu0 %v2349
      %v2486 = vpop.f32.mrb[0].mxu0
      %v2487 = vadd.f32 0.0, %v2486
      %v2488 = vpop.f32.mrb[0].mxu0
      %v2489 = vpop.f32.mrb[0].mxu0
      %v2490 = vadd.f32 0.0, %v2489
      %v2491 = vpop.f32.mrb[0].mxu0
      %2492 = vmatprep.mubr.bf16.mxu0 0
      %2493 = vmatmul.mubr.bf16.gmra.mrb[0].mxu0 %v2352
      %v2494 = vpop.f32.mrb[0].mxu0
      %v2495 = vadd.f32 0.0, %v2494
      %v2496 = vpop.f32.mrb[0].mxu0
      %v2497 = vpop.f32.mrb[0].mxu0
      %v2498 = vadd.f32 0.0, %v2497
      %v2499 = vpop.f32.mrb[0].mxu0
      %2500 = vmatprep.mubr.bf16.mxu0 0
      %2501 = vmatmul.mubr.bf16.gmra.mrb[0].mxu0 %v2355
      %v2502 = vpop.f32.mrb[0].mxu0
      %v2503 = vadd.f32 0.0, %v2502
      %v2504 = vpop.f32.mrb[0].mxu0
      %v2505 = vpop.f32.mrb[0].mxu0
      %v2506 = vadd.f32 0.0, %v2505
      %v2507 = vpop.f32.mrb[0].mxu0
      %2508 = vmatprep.mubr.bf16.mxu0 0
      %2509 = vmatmul.mubr.bf16.gmra.mrb[0].mxu0 %v2358
      %v2510 = vpop.f32.mrb[0].mxu0
      %v2511 = vadd.f32 0.0, %v2510
      %v2512 = vpop.f32.mrb[0].mxu0
      %v2513 = vpop.f32.mrb[0].mxu0
      %v2514 = vadd.f32 0.0, %v2513
      %v2515 = vpop.f32.mrb[0].mxu0
      %2516 = vmatprep.mubr.bf16.mxu0 0
      %2517 = vmatmul.mubr.bf16.gmra.mrb[0].mxu0 %v2361
      %v2518 = vpop.f32.mrb[0].mxu0
      %v2519 = vadd.f32 0.0, %v2518
      %v2520 = vpop.f32.mrb[0].mxu0
      %v2521 = vpop.f32.mrb[0].mxu0
      %v2522 = vadd.f32 0.0, %v2521
      %v2523 = vpop.f32.mrb[0].mxu0
      %2524 = vmatprep.mubr.bf16.mxu0 0
      %2525 = vmatmul.mubr.bf16.gmra.mrb[0].mxu0 %v2364
      %v2526 = vpop.f32.mrb[0].mxu0
      %v2527 = vadd.f32 0.0, %v2526
      %v2528 = vpop.f32.mrb[0].mxu0
      %v2529 = vpop.f32.mrb[0].mxu0
      %v2530 = vadd.f32 0.0, %v2529
      %v2531 = vpop.f32.mrb[0].mxu0
      %2532 = vmatprep.mubr.bf16.mxu0 0
      %2533 = vmatmul.mubr.bf16.gmra.mrb[0].mxu0 %v2367
      %v2534 = vpop.f32.mrb[0].mxu0
      %v2535 = vadd.f32 0.0, %v2534
      %v2536 = vpop.f32.mrb[0].mxu0
      %v2537 = vpop.f32.mrb[0].mxu0
      %v2538 = vadd.f32 0.0, %v2537
      %v2539 = vpop.f32.mrb[0].mxu0
      %2540 = vmatprep.mubr.bf16.mxu0 0
      %2541 = vmatmul.mubr.bf16.gmra.mrb[0].mxu0 %v2370
      %v2542 = vpop.f32.mrb[0].mxu0
      %v2543 = vadd.f32 0.0, %v2542
      %v2544 = vpop.f32.mrb[0].mxu0
      %v2545 = vpop.f32.mrb[0].mxu0
      %v2546 = vadd.f32 0.0, %v2545
      %v2547 = vpop.f32.mrb[0].mxu0
      %2548 = vdwg.mxu0
      %v2549 = vadd.f32 %v2074, %v2407
      %v2550 = vadd.f32 %v2075, %v2410
      %v2551 = vadd.f32 %v2076, %v2415
      %v2552 = vadd.f32 %v2077, %v2418
      %v2553 = vadd.f32 %v2078, %v2423
      %v2554 = vadd.f32 %v2079, %v2426
      %v2555 = vadd.f32 %v2080, %v2431
      %v2556 = vadd.f32 %v2081, %v2434
      %v2557 = vadd.f32 %v2082, %v2439
      %v2558 = vadd.f32 %v2083, %v2442
      %v2559 = vadd.f32 %v2084, %v2447
      %v2560 = vadd.f32 %v2085, %v2450
      %v2561 = vadd.f32 %v2086, %v2455
      %v2562 = vadd.f32 %v2087, %v2458
      %v2563 = vadd.f32 %v2088, %v2463
      %v2564 = vadd.f32 %v2089, %v2466
      %v2565 = vadd.f32 %v2090, %v2471
      %v2566 = vadd.f32 %v2091, %v2474
      %v2567 = vadd.f32 %v2092, %v2479
      %v2568 = vadd.f32 %v2093, %v2482
      %v2569 = vadd.f32 %v2094, %v2487
      %v2570 = vadd.f32 %v2095, %v2490
      %v2571 = vadd.f32 %v2096, %v2495
      %v2572 = vadd.f32 %v2097, %v2498
      %v2573 = vadd.f32 %v2098, %v2503
      %v2574 = vadd.f32 %v2099, %v2506
      %v2575 = vadd.f32 %v2100, %v2511
      %v2576 = vadd.f32 %v2101, %v2514
      %v2577 = vadd.f32 %v2102, %v2519
      %v2578 = vadd.f32 %v2103, %v2522
      %v2579 = vadd.f32 %v2104, %v2527
      %v2580 = vadd.f32 %v2105, %v2530
      %v2581 = vadd.f32 %v2106, %v2535
      %v2582 = vadd.f32 %v2107, %v2538
      %v2583 = vadd.f32 %v2108, %v2543
      %v2584 = vadd.f32 %v2109, %v2546
      %v2585 = vld [vmem:[%s246 + $0x8] sm:$0xc]
      %s2586 = scalar_lea.vmem %s2, 160
      %v2587 = vld [vmem:[%s2586] sm:$0xf]
      %v2588 = vld [vmem:[%s2586 + $0x4] sm:$0xf]
      %v2589 = vld [vmem:[%s2586 + $0x8] sm:$0xf]
      %v2590 = vld [vmem:[%s2586 + $0xc] sm:$0xf]
      %v2591 = vld [vmem:[%s2586 + $0x10] sm:$0xf]
      %v2592 = vld [vmem:[%s2586 + $0x14] sm:$0xf]
      %v2593 = vld [vmem:[%s2586 + $0x18] sm:$0xf]
      %v2594 = vld [vmem:[%s2586 + $0x1c] sm:$0xf]
      %v2596 = vunpack.c.l.b16 %v2585
      %v2597 = vpack.c.b16 %v1727, %v2596
      %vm2598 = vcmask 1045504
      %v2599 = vrot.slane %v2597, 2
      %v2600 = vrot.slane %v1764, 2
      %v2601 = vsel %vm2598, %v2599, %v2600
      %v2602 = vrot.slane %v1765, 2
      %v2603 = vsel %vm2598, %v2600, %v2602
      %v2604 = vrot.slane %v1766, 2
      %v2605 = vsel %vm2598, %v2602, %v2604
      %v2606 = vrot.slane %v1767, 2
      %v2607 = vsel %vm2598, %v2604, %v2606
      %v2608 = vrot.slane %v1768, 2
      %v2609 = vsel %vm2598, %v2606, %v2608
      %v2610 = vrot.slane %v1769, 2
      %v2611 = vsel %vm2598, %v2608, %v2610
      %v2612 = vrot.slane %v1770, 2
      %v2613 = vsel %vm2598, %v2610, %v2612
      %v2614 = vrot.slane %v1771, 2
      %v2615 = vsel %vm2598, %v2612, %v2614
      %v2616 = vrot.slane %v1772, 2
      %v2617 = vsel %vm2598, %v2614, %v2616
      %v2618 = vrot.slane %v1773, 2
      %v2619 = vsel %vm2598, %v2616, %v2618
      %v2620 = vrot.slane %v1774, 2
      %v2621 = vsel %vm2598, %v2618, %v2620
      %v2622 = vrot.slane %v1775, 2
      %v2623 = vsel %vm2598, %v2620, %v2622
      %v2624 = vrot.slane %v1776, 2
      %v2625 = vsel %vm2598, %v2622, %v2624
      %v2626 = vrot.slane %v1777, 2
      %v2627 = vsel %vm2598, %v2624, %v2626
      %v2628 = vrot.slane %v1778, 2
      %v2629 = vsel %vm2598, %v2626, %v2628
      %v2630 = vrot.slane %v1779, 2
      %v2631 = vsel %vm2598, %v2628, %v2630
      %v2632 = vrot.slane %v1780, 2
      %v2633 = vsel %vm2598, %v2630, %v2632
      %v2634 = vrot.slane %v2122, 2
      %v2635 = vsel %vm2598, %v2632, %v2634
      %v2644 = vunpack.c.l.b16 %v2587
      %v2645 = vunpack.c.l.b16 %v2588
      %v2646 = vunpack.c.l.b16 %v2589
      %v2647 = vunpack.c.l.b16 %v2590
      %v2648 = vunpack.c.l.b16 %v2591
      %v2649 = vunpack.c.l.b16 %v2592
      %v2650 = vunpack.c.l.b16 %v2593
      %v2651 = vunpack.c.l.b16 %v2594
      %v2652 = vpack.c.b16 %v2645, %v2644
      %v2653 = vpack.c.b16 %v2647, %v2646
      %v2654 = vpack.c.b16 %v2649, %v2648
      %v2655 = vpack.c.b16 %v2651, %v2650
      %v2661 = vsel %vm454, %v2601, 0
      %v2664 = vsel %vm454, %v2603, 0
      %v2667 = vsel %vm454, %v2605, 0
      %v2670 = vsel %vm454, %v2607, 0
      %v2673 = vsel %vm454, %v2609, 0
      %v2676 = vsel %vm454, %v2611, 0
      %v2679 = vsel %vm454, %v2613, 0
      %v2682 = vsel %vm454, %v2615, 0
      %v2685 = vsel %vm454, %v2617, 0
      %v2688 = vsel %vm454, %v2619, 0
      %v2691 = vsel %vm454, %v2621, 0
      %v2694 = vsel %vm454, %v2623, 0
      %v2697 = vsel %vm454, %v2625, 0
      %v2700 = vsel %vm454, %v2627, 0
      %v2703 = vsel %vm454, %v2629, 0
      %v2706 = vsel %vm454, %v2631, 0
      %v2709 = vsel %vm454, %v2633, 0
      %v2712 = vsel %vm454, %v2635, 0
      %2714 = vmatprep.subr.bf16.mxu0 0
      %2715 = vmatpush1.bf16.msra.mxu0 %v2652
      %2716 = vmatprep.subr.bf16.mxu0 0
      %2717 = vmatpush1.bf16.msra.mxu0 %v2653
      %2718 = vmatprep.subr.bf16.mxu0 0
      %2719 = vmatpush1.bf16.msra.mxu0 %v2654
      %2720 = vmatprep.subr.bf16.mxu0 0
      %2721 = vmatpush1.bf16.msra.mxu0 %v2655
      %2722 = vmatprep.subr.bf16.mxu0 0
      %2723 = vmatpush1.bf16.msra.mxu0 0
      %2724 = vmatprep.subr.bf16.mxu0 0
      %2725 = vmatpush1.bf16.msra.mxu0 0
      %2726 = vmatprep.subr.bf16.mxu0 0
      %2727 = vmatpush1.bf16.msra.mxu0 0
      %2728 = vmatprep.subr.bf16.mxu0 0
      %2729 = vmatpush1.bf16.msra.mxu0 0
      %2730 = vmatprep.subr.bf16.mxu0 0
      %2731 = vmatpush1.bf16.msra.mxu0 0
      %2732 = vmatprep.subr.bf16.mxu0 0
      %2733 = vmatpush1.bf16.msra.mxu0 0
      %2734 = vmatprep.subr.bf16.mxu0 0
      %2735 = vmatpush1.bf16.msra.mxu0 0
      %2736 = vmatprep.subr.bf16.mxu0 0
      %2737 = vmatpush1.bf16.msra.mxu0 0
      %2738 = vmatprep.subr.bf16.mxu0 0
      %2739 = vmatpush1.bf16.msra.mxu0 0
      %2740 = vmatprep.subr.bf16.mxu0 0
      %2741 = vmatpush1.bf16.msra.mxu0 0
      %2742 = vmatprep.subr.bf16.mxu0 0
      %2743 = vmatpush1.bf16.msra.mxu0 0
      %2744 = vmatprep.subr.bf16.mxu0 0
      %2745 = vmatpush1.bf16.msra.mxu0 0
      %2746 = vmatprep.mubr.bf16.mxu0 0
      %2747 = vmatmul.mubr.bf16.gmra.mrb[0].mxu0 %v2661
      %v2748 = vpop.f32.mrb[0].mxu0
      %v2749 = vadd.f32 0.0, %v2748
      %v2750 = vpop.f32.mrb[0].mxu0
      %v2751 = vpop.f32.mrb[0].mxu0
      %v2752 = vadd.f32 0.0, %v2751
      %v2753 = vpop.f32.mrb[0].mxu0
      %2754 = vmatprep.mubr.bf16.mxu0 0
      %2755 = vmatmul.mubr.bf16.gmra.mrb[0].mxu0 %v2664
      %v2756 = vpop.f32.mrb[0].mxu0
      %v2757 = vadd.f32 0.0, %v2756
      %v2758 = vpop.f32.mrb[0].mxu0
      %v2759 = vpop.f32.mrb[0].mxu0
      %v2760 = vadd.f32 0.0, %v2759
      %v2761 = vpop.f32.mrb[0].mxu0
      %2762 = vmatprep.mubr.bf16.mxu0 0
      %2763 = vmatmul.mubr.bf16.gmra.mrb[0].mxu0 %v2667
      %v2764 = vpop.f32.mrb[0].mxu0
      %v2765 = vadd.f32 0.0, %v2764
      %v2766 = vpop.f32.mrb[0].mxu0
      %v2767 = vpop.f32.mrb[0].mxu0
      %v2768 = vadd.f32 0.0, %v2767
      %v2769 = vpop.f32.mrb[0].mxu0
      %2770 = vmatprep.mubr.bf16.mxu0 0
      %2771 = vmatmul.mubr.bf16.gmra.mrb[0].mxu0 %v2670
      %v2772 = vpop.f32.mrb[0].mxu0
      %v2773 = vadd.f32 0.0, %v2772
      %v2774 = vpop.f32.mrb[0].mxu0
      %v2775 = vpop.f32.mrb[0].mxu0
      %v2776 = vadd.f32 0.0, %v2775
      %v2777 = vpop.f32.mrb[0].mxu0
      %2778 = vmatprep.mubr.bf16.mxu0 0
      %2779 = vmatmul.mubr.bf16.gmra.mrb[0].mxu0 %v2673
      %v2780 = vpop.f32.mrb[0].mxu0
      %v2781 = vadd.f32 0.0, %v2780
      %v2782 = vpop.f32.mrb[0].mxu0
      %v2783 = vpop.f32.mrb[0].mxu0
      %v2784 = vadd.f32 0.0, %v2783
      %v2785 = vpop.f32.mrb[0].mxu0
      %2786 = vmatprep.mubr.bf16.mxu0 0
      %2787 = vmatmul.mubr.bf16.gmra.mrb[0].mxu0 %v2676
      %v2788 = vpop.f32.mrb[0].mxu0
      %v2789 = vadd.f32 0.0, %v2788
      %v2790 = vpop.f32.mrb[0].mxu0
      %v2791 = vpop.f32.mrb[0].mxu0
      %v2792 = vadd.f32 0.0, %v2791
      %v2793 = vpop.f32.mrb[0].mxu0
      %2794 = vmatprep.mubr.bf16.mxu0 0
      %2795 = vmatmul.mubr.bf16.gmra.mrb[0].mxu0 %v2679
      %v2796 = vpop.f32.mrb[0].mxu0
      %v2797 = vadd.f32 0.0, %v2796
      %v2798 = vpop.f32.mrb[0].mxu0
      %v2799 = vpop.f32.mrb[0].mxu0
      %v2800 = vadd.f32 0.0, %v2799
      %v2801 = vpop.f32.mrb[0].mxu0
      %2802 = vmatprep.mubr.bf16.mxu0 0
      %2803 = vmatmul.mubr.bf16.gmra.mrb[0].mxu0 %v2682
      %v2804 = vpop.f32.mrb[0].mxu0
      %v2805 = vadd.f32 0.0, %v2804
      %v2806 = vpop.f32.mrb[0].mxu0
      %v2807 = vpop.f32.mrb[0].mxu0
      %v2808 = vadd.f32 0.0, %v2807
      %v2809 = vpop.f32.mrb[0].mxu0
      %2810 = vmatprep.mubr.bf16.mxu0 0
      %2811 = vmatmul.mubr.bf16.gmra.mrb[0].mxu0 %v2685
      %v2812 = vpop.f32.mrb[0].mxu0
      %v2813 = vadd.f32 0.0, %v2812
      %v2814 = vpop.f32.mrb[0].mxu0
      %v2815 = vpop.f32.mrb[0].mxu0
      %v2816 = vadd.f32 0.0, %v2815
      %v2817 = vpop.f32.mrb[0].mxu0
      %2818 = vmatprep.mubr.bf16.mxu0 0
      %2819 = vmatmul.mubr.bf16.gmra.mrb[0].mxu0 %v2688
      %v2820 = vpop.f32.mrb[0].mxu0
      %v2821 = vadd.f32 0.0, %v2820
      %v2822 = vpop.f32.mrb[0].mxu0
      %v2823 = vpop.f32.mrb[0].mxu0
      %v2824 = vadd.f32 0.0, %v2823
      %v2825 = vpop.f32.mrb[0].mxu0
      %2826 = vmatprep.mubr.bf16.mxu0 0
      %2827 = vmatmul.mubr.bf16.gmra.mrb[0].mxu0 %v2691
      %v2828 = vpop.f32.mrb[0].mxu0
      %v2829 = vadd.f32 0.0, %v2828
      %v2830 = vpop.f32.mrb[0].mxu0
      %v2831 = vpop.f32.mrb[0].mxu0
      %v2832 = vadd.f32 0.0, %v2831
      %v2833 = vpop.f32.mrb[0].mxu0
      %2834 = vmatprep.mubr.bf16.mxu0 0
      %2835 = vmatmul.mubr.bf16.gmra.mrb[0].mxu0 %v2694
      %v2836 = vpop.f32.mrb[0].mxu0
      %v2837 = vadd.f32 0.0, %v2836
      %v2838 = vpop.f32.mrb[0].mxu0
      %v2839 = vpop.f32.mrb[0].mxu0
      %v2840 = vadd.f32 0.0, %v2839
      %v2841 = vpop.f32.mrb[0].mxu0
      %2842 = vmatprep.mubr.bf16.mxu0 0
      %2843 = vmatmul.mubr.bf16.gmra.mrb[0].mxu0 %v2697
      %v2844 = vpop.f32.mrb[0].mxu0
      %v2845 = vadd.f32 0.0, %v2844
      %v2846 = vpop.f32.mrb[0].mxu0
      %v2847 = vpop.f32.mrb[0].mxu0
      %v2848 = vadd.f32 0.0, %v2847
      %v2849 = vpop.f32.mrb[0].mxu0
      %2850 = vmatprep.mubr.bf16.mxu0 0
      %2851 = vmatmul.mubr.bf16.gmra.mrb[0].mxu0 %v2700
      %v2852 = vpop.f32.mrb[0].mxu0
      %v2853 = vadd.f32 0.0, %v2852
      %v2854 = vpop.f32.mrb[0].mxu0
      %v2855 = vpop.f32.mrb[0].mxu0
      %v2856 = vadd.f32 0.0, %v2855
      %v2857 = vpop.f32.mrb[0].mxu0
      %2858 = vmatprep.mubr.bf16.mxu0 0
      %2859 = vmatmul.mubr.bf16.gmra.mrb[0].mxu0 %v2703
      %v2860 = vpop.f32.mrb[0].mxu0
      %v2861 = vadd.f32 0.0, %v2860
      %v2862 = vpop.f32.mrb[0].mxu0
      %v2863 = vpop.f32.mrb[0].mxu0
      %v2864 = vadd.f32 0.0, %v2863
      %v2865 = vpop.f32.mrb[0].mxu0
      %2866 = vmatprep.mubr.bf16.mxu0 0
      %2867 = vmatmul.mubr.bf16.gmra.mrb[0].mxu0 %v2706
      %v2868 = vpop.f32.mrb[0].mxu0
      %v2869 = vadd.f32 0.0, %v2868
      %v2870 = vpop.f32.mrb[0].mxu0
      %v2871 = vpop.f32.mrb[0].mxu0
      %v2872 = vadd.f32 0.0, %v2871
      %v2873 = vpop.f32.mrb[0].mxu0
      %2874 = vmatprep.mubr.bf16.mxu0 0
      %2875 = vmatmul.mubr.bf16.gmra.mrb[0].mxu0 %v2709
      %v2876 = vpop.f32.mrb[0].mxu0
      %v2877 = vadd.f32 0.0, %v2876
      %v2878 = vpop.f32.mrb[0].mxu0
      %v2879 = vpop.f32.mrb[0].mxu0
      %v2880 = vadd.f32 0.0, %v2879
      %v2881 = vpop.f32.mrb[0].mxu0
      %2882 = vmatprep.mubr.bf16.mxu0 0
      %2883 = vmatmul.mubr.bf16.gmra.mrb[0].mxu0 %v2712
      %v2884 = vpop.f32.mrb[0].mxu0
      %v2885 = vadd.f32 0.0, %v2884
      %v2886 = vpop.f32.mrb[0].mxu0
      %v2887 = vpop.f32.mrb[0].mxu0
      %v2888 = vadd.f32 0.0, %v2887
      %v2889 = vpop.f32.mrb[0].mxu0
      %2890 = vdwg.mxu0
      %v2891 = vadd.f32 %v2549, %v2749
      %v2892 = vadd.f32 %v2550, %v2752
      %v2893 = vadd.f32 %v2551, %v2757
      %v2894 = vadd.f32 %v2552, %v2760
      %v2895 = vadd.f32 %v2553, %v2765
      %v2896 = vadd.f32 %v2554, %v2768
      %v2897 = vadd.f32 %v2555, %v2773
      %v2898 = vadd.f32 %v2556, %v2776
      %v2899 = vadd.f32 %v2557, %v2781
      %v2900 = vadd.f32 %v2558, %v2784
      %v2901 = vadd.f32 %v2559, %v2789
      %v2902 = vadd.f32 %v2560, %v2792
      %v2903 = vadd.f32 %v2561, %v2797
      %v2904 = vadd.f32 %v2562, %v2800
      %v2905 = vadd.f32 %v2563, %v2805
      %v2906 = vadd.f32 %v2564, %v2808
      %v2907 = vadd.f32 %v2565, %v2813
      %v2908 = vadd.f32 %v2566, %v2816
      %v2909 = vadd.f32 %v2567, %v2821
      %v2910 = vadd.f32 %v2568, %v2824
      %v2911 = vadd.f32 %v2569, %v2829
      %v2912 = vadd.f32 %v2570, %v2832
      %v2913 = vadd.f32 %v2571, %v2837
      %v2914 = vadd.f32 %v2572, %v2840
      %v2915 = vadd.f32 %v2573, %v2845
      %v2916 = vadd.f32 %v2574, %v2848
      %v2917 = vadd.f32 %v2575, %v2853
      %v2918 = vadd.f32 %v2576, %v2856
      %v2919 = vadd.f32 %v2577, %v2861
      %v2920 = vadd.f32 %v2578, %v2864
      %v2921 = vadd.f32 %v2579, %v2869
      %v2922 = vadd.f32 %v2580, %v2872
      %v2923 = vadd.f32 %v2581, %v2877
      %v2924 = vadd.f32 %v2582, %v2880
      %v2925 = vadd.f32 %v2583, %v2885
      %v2926 = vadd.f32 %v2584, %v2888
      %v2927 = vld [vmem:[%s246 + $0x10] sm:$0xc]
      %v2928 = vld [vmem:[%s246 + $0x14] sm:$0xf]
      %v2929 = vld [vmem:[%s246 + $0x18] sm:$0xf]
      %v2930 = vld [vmem:[%s246 + $0x1c] sm:$0xf]
      %v2931 = vld [vmem:[%s246 + $0x20] sm:$0xf]
      %v2932 = vld [vmem:[%s246 + $0x24] sm:$0xf]
      %v2933 = vld [vmem:[%s246 + $0x28] sm:$0xf]
      %v2934 = vld [vmem:[%s246 + $0x2c] sm:$0xf]
      %v2935 = vld [vmem:[%s246 + $0x30] sm:$0xf]
      %v2936 = vld [vmem:[%s246 + $0x34] sm:$0xf]
      %v2937 = vld [vmem:[%s246 + $0x38] sm:$0xf]
      %v2938 = vld [vmem:[%s246 + $0x3c] sm:$0xf]
      %v2939 = vld [vmem:[%s246 + $0x40] sm:$0xf]
      %v2940 = vld [vmem:[%s246 + $0x44] sm:$0xf]
      %v2941 = vld [vmem:[%s246 + $0x48] sm:$0xf]
      %v2942 = vld [vmem:[%s246 + $0x4c] sm:$0xf]
      %v2943 = vld [vmem:[%s246 + $0x50] sm:$0xf]
      %v2944 = vld [vmem:[%s246 + $0x54] sm:$0xf]
      %v2945 = vld [vmem:[%s246 + $0x58] sm:$0xf]
      %v2946 = vld [vmem:[%s246 + $0x5c] sm:$0xf]
      %v2947 = vld [vmem:[%s246 + $0x60] sm:$0xf]
      %v2948 = vld [vmem:[%s246 + $0x64] sm:$0xf]
      %v2949 = vld [vmem:[%s246 + $0x68] sm:$0xf]
      %v2950 = vld [vmem:[%s246 + $0x6c] sm:$0xf]
      %v2951 = vld [vmem:[%s246 + $0x70] sm:$0xf]
      %v2952 = vld [vmem:[%s246 + $0x74] sm:$0xf]
      %v2953 = vld [vmem:[%s246 + $0x78] sm:$0xf]
      %v2954 = vld [vmem:[%s246 + $0x7c] sm:$0xf]
      %v2955 = vld [vmem:[%s246 + $0x80] sm:$0xf]
      %v2956 = vld [vmem:[%s246 + $0x84] sm:$0xf]
      %v2957 = vld [vmem:[%s246 + $0x88] sm:$0xf]
      %v2958 = vld [vmem:[%s246 + $0x8c] sm:$0xf]
      %v2959 = vld [vmem:[%s246 + $0x90] sm:$0xf]
      %v2960 = vld [vmem:[%s246 + $0x94] sm:$0xf]
      %v2961 = vld [vmem:[%s246 + $0x98] sm:$0xf]
      %v2962 = vld [vmem:[%s246 + $0x9c] sm:$0xf]
      %v2963 = vld [vmem:[%s246 + $0xa0] sm:$0x3]
      %s2964 = scalar_lea.vmem %s2, 192
      %v2965 = vld [vmem:[%s2964] sm:$0xf]
      %v2966 = vld [vmem:[%s2964 + $0x4] sm:$0xf]
      %v2967 = vld [vmem:[%s2964 + $0x8] sm:$0xf]
      %v2968 = vld [vmem:[%s2964 + $0xc] sm:$0xf]
      %v2969 = vld [vmem:[%s2964 + $0x10] sm:$0xf]
      %v2970 = vld [vmem:[%s2964 + $0x14] sm:$0xf]
      %v2971 = vld [vmem:[%s2964 + $0x18] sm:$0xf]
      %v2972 = vld [vmem:[%s2964 + $0x1c] sm:$0xf]
      %v3010 = vunpack.c.l.b16 %v2927
      %v3011 = vunpack.c.l.b16 %v2928
      %v3012 = vunpack.c.l.b16 %v2929
      %v3013 = vunpack.c.l.b16 %v2930
      %v3014 = vunpack.c.l.b16 %v2931
      %v3015 = vunpack.c.l.b16 %v2932
      %v3016 = vunpack.c.l.b16 %v2933
      %v3017 = vunpack.c.l.b16 %v2934
      %v3018 = vunpack.c.l.b16 %v2935
      %v3019 = vunpack.c.l.b16 %v2936
      %v3020 = vunpack.c.l.b16 %v2937
      %v3021 = vunpack.c.l.b16 %v2938
      %v3022 = vunpack.c.l.b16 %v2939
      %v3023 = vunpack.c.l.b16 %v2940
      %v3024 = vunpack.c.l.b16 %v2941
      %v3025 = vunpack.c.l.b16 %v2942
      %v3026 = vunpack.c.l.b16 %v2943
      %v3027 = vunpack.c.l.b16 %v2944
      %v3028 = vunpack.c.l.b16 %v2945
      %v3029 = vunpack.c.l.b16 %v2946
      %v3030 = vunpack.c.l.b16 %v2947
      %v3031 = vunpack.c.l.b16 %v2948
      %v3032 = vunpack.c.l.b16 %v2949
      %v3033 = vunpack.c.l.b16 %v2950
      %v3034 = vunpack.c.l.b16 %v2951
      %v3035 = vunpack.c.l.b16 %v2952
      %v3036 = vunpack.c.l.b16 %v2953
      %v3037 = vunpack.c.l.b16 %v2954
      %v3038 = vunpack.c.l.b16 %v2955
      %v3039 = vunpack.c.l.b16 %v2956
      %v3040 = vunpack.c.l.b16 %v2957
      %v3041 = vunpack.c.l.b16 %v2958
      %v3042 = vunpack.c.l.b16 %v2959
      %v3043 = vunpack.c.l.b16 %v2960
      %v3044 = vunpack.c.l.b16 %v2961
      %v3045 = vunpack.c.l.b16 %v2962
      %v3046 = vunpack.c.l.b16 %v2963
      %v3047 = vpack.c.b16 %v3011, %v3010
      %v3048 = vpack.c.b16 %v3013, %v3012
      %v3049 = vpack.c.b16 %v3015, %v3014
      %v3050 = vpack.c.b16 %v3017, %v3016
      %v3051 = vpack.c.b16 %v3019, %v3018
      %v3052 = vpack.c.b16 %v3021, %v3020
      %v3053 = vpack.c.b16 %v3023, %v3022
      %v3054 = vpack.c.b16 %v3025, %v3024
      %v3055 = vpack.c.b16 %v3027, %v3026
      %v3056 = vpack.c.b16 %v3029, %v3028
      %v3057 = vpack.c.b16 %v3031, %v3030
      %v3058 = vpack.c.b16 %v3033, %v3032
      %v3059 = vpack.c.b16 %v3035, %v3034
      %v3060 = vpack.c.b16 %v3037, %v3036
      %v3061 = vpack.c.b16 %v3039, %v3038
      %v3062 = vpack.c.b16 %v3041, %v3040
      %v3063 = vpack.c.b16 %v3043, %v3042
      %v3064 = vpack.c.b16 %v3045, %v3044
      %v3065 = vpack.c.b16 %v3046, %v3046
      %v3066 = vrot.slane %v3047, 2
      %v3067 = vrot.slane %v3048, 2
      %v3068 = vsel %vm2598, %v3066, %v3067
      %v3069 = vrot.slane %v3049, 2
      %v3070 = vsel %vm2598, %v3067, %v3069
      %v3071 = vrot.slane %v3050, 2
      %v3072 = vsel %vm2598, %v3069, %v3071
      %v3073 = vrot.slane %v3051, 2
      %v3074 = vsel %vm2598, %v3071, %v3073
      %v3075 = vrot.slane %v3052, 2
      %v3076 = vsel %vm2598, %v3073, %v3075
      %v3077 = vrot.slane %v3053, 2
      %v3078 = vsel %vm2598, %v3075, %v3077
      %v3079 = vrot.slane %v3054, 2
      %v3080 = vsel %vm2598, %v3077, %v3079
      %v3081 = vrot.slane %v3055, 2
      %v3082 = vsel %vm2598, %v3079, %v3081
      %v3083 = vrot.slane %v3056, 2
      %v3084 = vsel %vm2598, %v3081, %v3083
      %v3085 = vrot.slane %v3057, 2
      %v3086 = vsel %vm2598, %v3083, %v3085
      %v3087 = vrot.slane %v3058, 2
      %v3088 = vsel %vm2598, %v3085, %v3087
      %v3089 = vrot.slane %v3059, 2
      %v3090 = vsel %vm2598, %v3087, %v3089
      %v3091 = vrot.slane %v3060, 2
      %v3092 = vsel %vm2598, %v3089, %v3091
      %v3093 = vrot.slane %v3061, 2
      %v3094 = vsel %vm2598, %v3091, %v3093
      %v3095 = vrot.slane %v3062, 2
      %v3096 = vsel %vm2598, %v3093, %v3095
      %v3097 = vrot.slane %v3063, 2
      %v3098 = vsel %vm2598, %v3095, %v3097
      %v3099 = vrot.slane %v3064, 2
      %v3100 = vsel %vm2598, %v3097, %v3099
      %v3101 = vrot.slane %v3065, 2
      %v3102 = vsel %vm2598, %v3099, %v3101
      %v3111 = vunpack.c.l.b16 %v2965
      %v3112 = vunpack.c.l.b16 %v2966
      %v3113 = vunpack.c.l.b16 %v2967
      %v3114 = vunpack.c.l.b16 %v2968
      %v3115 = vunpack.c.l.b16 %v2969
      %v3116 = vunpack.c.l.b16 %v2970
      %v3117 = vunpack.c.l.b16 %v2971
      %v3118 = vunpack.c.l.b16 %v2972
      %v3119 = vpack.c.b16 %v3112, %v3111
      %v3120 = vpack.c.b16 %v3114, %v3113
      %v3121 = vpack.c.b16 %v3116, %v3115
      %v3122 = vpack.c.b16 %v3118, %v3117
      %v3128 = vsel %vm454, %v3068, 0
      %v3131 = vsel %vm454, %v3070, 0
      %v3134 = vsel %vm454, %v3072, 0
      %v3137 = vsel %vm454, %v3074, 0
      %v3140 = vsel %vm454, %v3076, 0
      %v3143 = vsel %vm454, %v3078, 0
      %v3146 = vsel %vm454, %v3080, 0
      %v3149 = vsel %vm454, %v3082, 0
      %v3152 = vsel %vm454, %v3084, 0
      %v3155 = vsel %vm454, %v3086, 0
      %v3158 = vsel %vm454, %v3088, 0
      %v3161 = vsel %vm454, %v3090, 0
      %v3164 = vsel %vm454, %v3092, 0
      %v3167 = vsel %vm454, %v3094, 0
      %v3170 = vsel %vm454, %v3096, 0
      %v3173 = vsel %vm454, %v3098, 0
      %v3176 = vsel %vm454, %v3100, 0
      %v3179 = vsel %vm454, %v3102, 0
      %3181 = vmatprep.subr.bf16.mxu0 0
      %3182 = vmatpush1.bf16.msra.mxu0 %v3119
      %3183 = vmatprep.subr.bf16.mxu0 0
      %3184 = vmatpush1.bf16.msra.mxu0 %v3120
      %3185 = vmatprep.subr.bf16.mxu0 0
      %3186 = vmatpush1.bf16.msra.mxu0 %v3121
      %3187 = vmatprep.subr.bf16.mxu0 0
      %3188 = vmatpush1.bf16.msra.mxu0 %v3122
      %3189 = vmatprep.subr.bf16.mxu0 0
      %3190 = vmatpush1.bf16.msra.mxu0 0
      %3191 = vmatprep.subr.bf16.mxu0 0
      %3192 = vmatpush1.bf16.msra.mxu0 0
      %3193 = vmatprep.subr.bf16.mxu0 0
      %3194 = vmatpush1.bf16.msra.mxu0 0
      %3195 = vmatprep.subr.bf16.mxu0 0
      %3196 = vmatpush1.bf16.msra.mxu0 0
      %3197 = vmatprep.subr.bf16.mxu0 0
      %3198 = vmatpush1.bf16.msra.mxu0 0
      %3199 = vmatprep.subr.bf16.mxu0 0
      %3200 = vmatpush1.bf16.msra.mxu0 0
      %3201 = vmatprep.subr.bf16.mxu0 0
      %3202 = vmatpush1.bf16.msra.mxu0 0
      %3203 = vmatprep.subr.bf16.mxu0 0
      %3204 = vmatpush1.bf16.msra.mxu0 0
      %3205 = vmatprep.subr.bf16.mxu0 0
      %3206 = vmatpush1.bf16.msra.mxu0 0
      %3207 = vmatprep.subr.bf16.mxu0 0
      %3208 = vmatpush1.bf16.msra.mxu0 0
      %3209 = vmatprep.subr.bf16.mxu0 0
      %3210 = vmatpush1.bf16.msra.mxu0 0
      %3211 = vmatprep.subr.bf16.mxu0 0
      %3212 = vmatpush1.bf16.msra.mxu0 0
      %3213 = vmatprep.mubr.bf16.mxu0 0
      %3214 = vmatmul.mubr.bf16.gmra.mrb[0].mxu0 %v3128
      %v3215 = vpop.f32.mrb[0].mxu0
      %v3216 = vadd.f32 0.0, %v3215
      %v3217 = vpop.f32.mrb[0].mxu0
      %v3218 = vpop.f32.mrb[0].mxu0
      %v3219 = vadd.f32 0.0, %v3218
      %v3220 = vpop.f32.mrb[0].mxu0
      %3221 = vmatprep.mubr.bf16.mxu0 0
      %3222 = vmatmul.mubr.bf16.gmra.mrb[0].mxu0 %v3131
      %v3223 = vpop.f32.mrb[0].mxu0
      %v3224 = vadd.f32 0.0, %v3223
      %v3225 = vpop.f32.mrb[0].mxu0
      %v3226 = vpop.f32.mrb[0].mxu0
      %v3227 = vadd.f32 0.0, %v3226
      %v3228 = vpop.f32.mrb[0].mxu0
      %3229 = vmatprep.mubr.bf16.mxu0 0
      %3230 = vmatmul.mubr.bf16.gmra.mrb[0].mxu0 %v3134
      %v3231 = vpop.f32.mrb[0].mxu0
      %v3232 = vadd.f32 0.0, %v3231
      %v3233 = vpop.f32.mrb[0].mxu0
      %v3234 = vpop.f32.mrb[0].mxu0
      %v3235 = vadd.f32 0.0, %v3234
      %v3236 = vpop.f32.mrb[0].mxu0
      %3237 = vmatprep.mubr.bf16.mxu0 0
      %3238 = vmatmul.mubr.bf16.gmra.mrb[0].mxu0 %v3137
      %v3239 = vpop.f32.mrb[0].mxu0
      %v3240 = vadd.f32 0.0, %v3239
      %v3241 = vpop.f32.mrb[0].mxu0
      %v3242 = vpop.f32.mrb[0].mxu0
      %v3243 = vadd.f32 0.0, %v3242
      %v3244 = vpop.f32.mrb[0].mxu0
      %3245 = vmatprep.mubr.bf16.mxu0 0
      %3246 = vmatmul.mubr.bf16.gmra.mrb[0].mxu0 %v3140
      %v3247 = vpop.f32.mrb[0].mxu0
      %v3248 = vadd.f32 0.0, %v3247
      %v3249 = vpop.f32.mrb[0].mxu0
      %v3250 = vpop.f32.mrb[0].mxu0
      %v3251 = vadd.f32 0.0, %v3250
      %v3252 = vpop.f32.mrb[0].mxu0
      %3253 = vmatprep.mubr.bf16.mxu0 0
      %3254 = vmatmul.mubr.bf16.gmra.mrb[0].mxu0 %v3143
      %v3255 = vpop.f32.mrb[0].mxu0
      %v3256 = vadd.f32 0.0, %v3255
      %v3257 = vpop.f32.mrb[0].mxu0
      %v3258 = vpop.f32.mrb[0].mxu0
      %v3259 = vadd.f32 0.0, %v3258
      %v3260 = vpop.f32.mrb[0].mxu0
      %3261 = vmatprep.mubr.bf16.mxu0 0
      %3262 = vmatmul.mubr.bf16.gmra.mrb[0].mxu0 %v3146
      %v3263 = vpop.f32.mrb[0].mxu0
      %v3264 = vadd.f32 0.0, %v3263
      %v3265 = vpop.f32.mrb[0].mxu0
      %v3266 = vpop.f32.mrb[0].mxu0
      %v3267 = vadd.f32 0.0, %v3266
      %v3268 = vpop.f32.mrb[0].mxu0
      %3269 = vmatprep.mubr.bf16.mxu0 0
      %3270 = vmatmul.mubr.bf16.gmra.mrb[0].mxu0 %v3149
      %v3271 = vpop.f32.mrb[0].mxu0
      %v3272 = vadd.f32 0.0, %v3271
      %v3273 = vpop.f32.mrb[0].mxu0
      %v3274 = vpop.f32.mrb[0].mxu0
      %v3275 = vadd.f32 0.0, %v3274
      %v3276 = vpop.f32.mrb[0].mxu0
      %3277 = vmatprep.mubr.bf16.mxu0 0
      %3278 = vmatmul.mubr.bf16.gmra.mrb[0].mxu0 %v3152
      %v3279 = vpop.f32.mrb[0].mxu0
      %v3280 = vadd.f32 0.0, %v3279
      %v3281 = vpop.f32.mrb[0].mxu0
      %v3282 = vpop.f32.mrb[0].mxu0
      %v3283 = vadd.f32 0.0, %v3282
      %v3284 = vpop.f32.mrb[0].mxu0
      %3285 = vmatprep.mubr.bf16.mxu0 0
      %3286 = vmatmul.mubr.bf16.gmra.mrb[0].mxu0 %v3155
      %v3287 = vpop.f32.mrb[0].mxu0
      %v3288 = vadd.f32 0.0, %v3287
      %v3289 = vpop.f32.mrb[0].mxu0
      %v3290 = vpop.f32.mrb[0].mxu0
      %v3291 = vadd.f32 0.0, %v3290
      %v3292 = vpop.f32.mrb[0].mxu0
      %3293 = vmatprep.mubr.bf16.mxu0 0
      %3294 = vmatmul.mubr.bf16.gmra.mrb[0].mxu0 %v3158
      %v3295 = vpop.f32.mrb[0].mxu0
      %v3296 = vadd.f32 0.0, %v3295
      %v3297 = vpop.f32.mrb[0].mxu0
      %v3298 = vpop.f32.mrb[0].mxu0
      %v3299 = vadd.f32 0.0, %v3298
      %v3300 = vpop.f32.mrb[0].mxu0
      %3301 = vmatprep.mubr.bf16.mxu0 0
      %3302 = vmatmul.mubr.bf16.gmra.mrb[0].mxu0 %v3161
      %v3303 = vpop.f32.mrb[0].mxu0
      %v3304 = vadd.f32 0.0, %v3303
      %v3305 = vpop.f32.mrb[0].mxu0
      %v3306 = vpop.f32.mrb[0].mxu0
      %v3307 = vadd.f32 0.0, %v3306
      %v3308 = vpop.f32.mrb[0].mxu0
      %3309 = vmatprep.mubr.bf16.mxu0 0
      %3310 = vmatmul.mubr.bf16.gmra.mrb[0].mxu0 %v3164
      %v3311 = vpop.f32.mrb[0].mxu0
      %v3312 = vadd.f32 0.0, %v3311
      %v3313 = vpop.f32.mrb[0].mxu0
      %v3314 = vpop.f32.mrb[0].mxu0
      %v3315 = vadd.f32 0.0, %v3314
      %v3316 = vpop.f32.mrb[0].mxu0
      %3317 = vmatprep.mubr.bf16.mxu0 0
      %3318 = vmatmul.mubr.bf16.gmra.mrb[0].mxu0 %v3167
      %v3319 = vpop.f32.mrb[0].mxu0
      %v3320 = vadd.f32 0.0, %v3319
      %v3321 = vpop.f32.mrb[0].mxu0
      %v3322 = vpop.f32.mrb[0].mxu0
      %v3323 = vadd.f32 0.0, %v3322
      %v3324 = vpop.f32.mrb[0].mxu0
      %3325 = vmatprep.mubr.bf16.mxu0 0
      %3326 = vmatmul.mubr.bf16.gmra.mrb[0].mxu0 %v3170
      %v3327 = vpop.f32.mrb[0].mxu0
      %v3328 = vadd.f32 0.0, %v3327
      %v3329 = vpop.f32.mrb[0].mxu0
      %v3330 = vpop.f32.mrb[0].mxu0
      %v3331 = vadd.f32 0.0, %v3330
      %v3332 = vpop.f32.mrb[0].mxu0
      %3333 = vmatprep.mubr.bf16.mxu0 0
      %3334 = vmatmul.mubr.bf16.gmra.mrb[0].mxu0 %v3173
      %v3335 = vpop.f32.mrb[0].mxu0
      %v3336 = vadd.f32 0.0, %v3335
      %v3337 = vpop.f32.mrb[0].mxu0
      %v3338 = vpop.f32.mrb[0].mxu0
      %v3339 = vadd.f32 0.0, %v3338
      %v3340 = vpop.f32.mrb[0].mxu0
      %3341 = vmatprep.mubr.bf16.mxu0 0
      %3342 = vmatmul.mubr.bf16.gmra.mrb[0].mxu0 %v3176
      %v3343 = vpop.f32.mrb[0].mxu0
      %v3344 = vadd.f32 0.0, %v3343
      %v3345 = vpop.f32.mrb[0].mxu0
      %v3346 = vpop.f32.mrb[0].mxu0
      %v3347 = vadd.f32 0.0, %v3346
      %v3348 = vpop.f32.mrb[0].mxu0
      %3349 = vmatprep.mubr.bf16.mxu0 0
      %3350 = vmatmul.mubr.bf16.gmra.mrb[0].mxu0 %v3179
      %v3351 = vpop.f32.mrb[0].mxu0
      %v3352 = vadd.f32 0.0, %v3351
      %v3353 = vpop.f32.mrb[0].mxu0
      %v3354 = vpop.f32.mrb[0].mxu0
      %v3355 = vadd.f32 0.0, %v3354
      %v3356 = vpop.f32.mrb[0].mxu0
      %3357 = vdwg.mxu0
      %v3358 = vadd.f32 %v2891, %v3216
      %v3359 = vadd.f32 %v2892, %v3219
      %v3360 = vadd.f32 %v2893, %v3224
      %v3361 = vadd.f32 %v2894, %v3227
      %v3362 = vadd.f32 %v2895, %v3232
      %v3363 = vadd.f32 %v2896, %v3235
      %v3364 = vadd.f32 %v2897, %v3240
      %v3365 = vadd.f32 %v2898, %v3243
      %v3366 = vadd.f32 %v2899, %v3248
      %v3367 = vadd.f32 %v2900, %v3251
      %v3368 = vadd.f32 %v2901, %v3256
      %v3369 = vadd.f32 %v2902, %v3259
      %v3370 = vadd.f32 %v2903, %v3264
      %v3371 = vadd.f32 %v2904, %v3267
      %v3372 = vadd.f32 %v2905, %v3272
      %v3373 = vadd.f32 %v2906, %v3275
      %v3374 = vadd.f32 %v2907, %v3280
      %v3375 = vadd.f32 %v2908, %v3283
      %v3376 = vadd.f32 %v2909, %v3288
      %v3377 = vadd.f32 %v2910, %v3291
      %v3378 = vadd.f32 %v2911, %v3296
      %v3379 = vadd.f32 %v2912, %v3299
      %v3380 = vadd.f32 %v2913, %v3304
      %v3381 = vadd.f32 %v2914, %v3307
      %v3382 = vadd.f32 %v2915, %v3312
      %v3383 = vadd.f32 %v2916, %v3315
      %v3384 = vadd.f32 %v2917, %v3320
      %v3385 = vadd.f32 %v2918, %v3323
      %v3386 = vadd.f32 %v2919, %v3328
      %v3387 = vadd.f32 %v2920, %v3331
      %v3388 = vadd.f32 %v2921, %v3336
      %v3389 = vadd.f32 %v2922, %v3339
      %v3390 = vadd.f32 %v2923, %v3344
      %v3391 = vadd.f32 %v2924, %v3347
      %v3392 = vadd.f32 %v2925, %v3352
      %v3393 = vadd.f32 %v2926, %v3355
      %v3394 = vld [vmem:[%s246 + $0xa0] sm:$0x7]
      %s3395 = scalar_lea.vmem %s2, 224
      %v3396 = vld [vmem:[%s3395] sm:$0xf]
      %v3397 = vld [vmem:[%s3395 + $0x4] sm:$0xf]
      %v3398 = vld [vmem:[%s3395 + $0x8] sm:$0xf]
      %v3399 = vld [vmem:[%s3395 + $0xc] sm:$0xf]
      %v3400 = vld [vmem:[%s3395 + $0x10] sm:$0xf]
      %v3401 = vld [vmem:[%s3395 + $0x14] sm:$0xf]
      %v3402 = vld [vmem:[%s3395 + $0x18] sm:$0xf]
      %v3403 = vld [vmem:[%s3395 + $0x1c] sm:$0xf]
      %v3405 = vunpack.c.l.b16 %v3394
      %v3406 = vpack.c.b16 %v3405, %v3405
      %vm3407 = vsmask.f32 5376
      %v3409 = vshrl.u32 %v3047, 16
      %v3411 = vrot.slane %v3409, 2
      %v3412 = vshll.u32 %v3047, 16
      %v3414 = vrot.slane %v3412, 3
      %v3415 = vor.u32 %v3411, %v3414
      %v3417 = vshrl.u32 %v3048, 16
      %v3419 = vrot.slane %v3417, 2
      %v3420 = vshll.u32 %v3048, 16
      %v3422 = vrot.slane %v3420, 3
      %v3423 = vor.u32 %v3419, %v3422
      %v3424 = vsel %vm3407, %v3415, %v3423
      %v3426 = vshrl.u32 %v3049, 16
      %v3428 = vrot.slane %v3426, 2
      %v3429 = vshll.u32 %v3049, 16
      %v3431 = vrot.slane %v3429, 3
      %v3432 = vor.u32 %v3428, %v3431
      %v3433 = vsel %vm3407, %v3423, %v3432
      %v3435 = vshrl.u32 %v3050, 16
      %v3437 = vrot.slane %v3435, 2
      %v3438 = vshll.u32 %v3050, 16
      %v3440 = vrot.slane %v3438, 3
      %v3441 = vor.u32 %v3437, %v3440
      %v3442 = vsel %vm3407, %v3432, %v3441
      %v3444 = vshrl.u32 %v3051, 16
      %v3446 = vrot.slane %v3444, 2
      %v3447 = vshll.u32 %v3051, 16
      %v3449 = vrot.slane %v3447, 3
      %v3450 = vor.u32 %v3446, %v3449
      %v3451 = vsel %vm3407, %v3441, %v3450
      %v3453 = vshrl.u32 %v3052, 16
      %v3455 = vrot.slane %v3453, 2
      %v3456 = vshll.u32 %v3052, 16
      %v3458 = vrot.slane %v3456, 3
      %v3459 = vor.u32 %v3455, %v3458
      %v3460 = vsel %vm3407, %v3450, %v3459
      %v3462 = vshrl.u32 %v3053, 16
      %v3464 = vrot.slane %v3462, 2
      %v3465 = vshll.u32 %v3053, 16
      %v3467 = vrot.slane %v3465, 3
      %v3468 = vor.u32 %v3464, %v3467
      %v3469 = vsel %vm3407, %v3459, %v3468
      %v3471 = vshrl.u32 %v3054, 16
      %v3473 = vrot.slane %v3471, 2
      %v3474 = vshll.u32 %v3054, 16
      %v3476 = vrot.slane %v3474, 3
      %v3477 = vor.u32 %v3473, %v3476
      %v3478 = vsel %vm3407, %v3468, %v3477
      %v3480 = vshrl.u32 %v3055, 16
      %v3482 = vrot.slane %v3480, 2
      %v3483 = vshll.u32 %v3055, 16
      %v3485 = vrot.slane %v3483, 3
      %v3486 = vor.u32 %v3482, %v3485
      %v3487 = vsel %vm3407, %v3477, %v3486
      %v3489 = vshrl.u32 %v3056, 16
      %v3491 = vrot.slane %v3489, 2
      %v3492 = vshll.u32 %v3056, 16
      %v3494 = vrot.slane %v3492, 3
      %v3495 = vor.u32 %v3491, %v3494
      %v3496 = vsel %vm3407, %v3486, %v3495
      %v3498 = vshrl.u32 %v3057, 16
      %v3500 = vrot.slane %v3498, 2
      %v3501 = vshll.u32 %v3057, 16
      %v3503 = vrot.slane %v3501, 3
      %v3504 = vor.u32 %v3500, %v3503
      %v3505 = vsel %vm3407, %v3495, %v3504
      %v3507 = vshrl.u32 %v3058, 16
      %v3509 = vrot.slane %v3507, 2
      %v3510 = vshll.u32 %v3058, 16
      %v3512 = vrot.slane %v3510, 3
      %v3513 = vor.u32 %v3509, %v3512
      %v3514 = vsel %vm3407, %v3504, %v3513
      %v3516 = vshrl.u32 %v3059, 16
      %v3518 = vrot.slane %v3516, 2
      %v3519 = vshll.u32 %v3059, 16
      %v3521 = vrot.slane %v3519, 3
      %v3522 = vor.u32 %v3518, %v3521
      %v3523 = vsel %vm3407, %v3513, %v3522
      %v3525 = vshrl.u32 %v3060, 16
      %v3527 = vrot.slane %v3525, 2
      %v3528 = vshll.u32 %v3060, 16
      %v3530 = vrot.slane %v3528, 3
      %v3531 = vor.u32 %v3527, %v3530
      %v3532 = vsel %vm3407, %v3522, %v3531
      %v3534 = vshrl.u32 %v3061, 16
      %v3536 = vrot.slane %v3534, 2
      %v3537 = vshll.u32 %v3061, 16
      %v3539 = vrot.slane %v3537, 3
      %v3540 = vor.u32 %v3536, %v3539
      %v3541 = vsel %vm3407, %v3531, %v3540
      %v3543 = vshrl.u32 %v3062, 16
      %v3545 = vrot.slane %v3543, 2
      %v3546 = vshll.u32 %v3062, 16
      %v3548 = vrot.slane %v3546, 3
      %v3549 = vor.u32 %v3545, %v3548
      %v3550 = vsel %vm3407, %v3540, %v3549
      %v3552 = vshrl.u32 %v3063, 16
      %v3554 = vrot.slane %v3552, 2
      %v3555 = vshll.u32 %v3063, 16
      %v3557 = vrot.slane %v3555, 3
      %v3558 = vor.u32 %v3554, %v3557
      %v3559 = vsel %vm3407, %v3549, %v3558
      %v3561 = vshrl.u32 %v3064, 16
      %v3563 = vrot.slane %v3561, 2
      %v3564 = vshll.u32 %v3064, 16
      %v3566 = vrot.slane %v3564, 3
      %v3567 = vor.u32 %v3563, %v3566
      %v3568 = vsel %vm3407, %v3558, %v3567
      %v3570 = vshrl.u32 %v3406, 16
      %v3572 = vrot.slane %v3570, 2
      %v3573 = vshll.u32 %v3406, 16
      %v3575 = vrot.slane %v3573, 3
      %v3576 = vor.u32 %v3572, %v3575
      %v3577 = vsel %vm3407, %v3567, %v3576
      %v3586 = vunpack.c.l.b16 %v3396
      %v3587 = vunpack.c.l.b16 %v3397
      %v3588 = vunpack.c.l.b16 %v3398
      %v3589 = vunpack.c.l.b16 %v3399
      %v3590 = vunpack.c.l.b16 %v3400
      %v3591 = vunpack.c.l.b16 %v3401
      %v3592 = vunpack.c.l.b16 %v3402
      %v3593 = vunpack.c.l.b16 %v3403
      %v3594 = vpack.c.b16 %v3587, %v3586
      %v3595 = vpack.c.b16 %v3589, %v3588
      %v3596 = vpack.c.b16 %v3591, %v3590
      %v3597 = vpack.c.b16 %v3593, %v3592
      %v3603 = vsel %vm454, %v3424, 0
      %v3606 = vsel %vm454, %v3433, 0
      %v3609 = vsel %vm454, %v3442, 0
      %v3612 = vsel %vm454, %v3451, 0
      %v3615 = vsel %vm454, %v3460, 0
      %v3618 = vsel %vm454, %v3469, 0
      %v3621 = vsel %vm454, %v3478, 0
      %v3624 = vsel %vm454, %v3487, 0
      %v3627 = vsel %vm454, %v3496, 0
      %v3630 = vsel %vm454, %v3505, 0
      %v3633 = vsel %vm454, %v3514, 0
      %v3636 = vsel %vm454, %v3523, 0
      %v3639 = vsel %vm454, %v3532, 0
      %v3642 = vsel %vm454, %v3541, 0
      %v3645 = vsel %vm454, %v3550, 0
      %v3648 = vsel %vm454, %v3559, 0
      %v3651 = vsel %vm454, %v3568, 0
      %v3654 = vsel %vm454, %v3577, 0
      %3656 = vmatprep.subr.bf16.mxu0 0
      %3657 = vmatpush1.bf16.msra.mxu0 %v3594
      %3658 = vmatprep.subr.bf16.mxu0 0
      %3659 = vmatpush1.bf16.msra.mxu0 %v3595
      %3660 = vmatprep.subr.bf16.mxu0 0
      %3661 = vmatpush1.bf16.msra.mxu0 %v3596
      %3662 = vmatprep.subr.bf16.mxu0 0
      %3663 = vmatpush1.bf16.msra.mxu0 %v3597
      %3664 = vmatprep.subr.bf16.mxu0 0
      %3665 = vmatpush1.bf16.msra.mxu0 0
      %3666 = vmatprep.subr.bf16.mxu0 0
      %3667 = vmatpush1.bf16.msra.mxu0 0
      %3668 = vmatprep.subr.bf16.mxu0 0
      %3669 = vmatpush1.bf16.msra.mxu0 0
      %3670 = vmatprep.subr.bf16.mxu0 0
      %3671 = vmatpush1.bf16.msra.mxu0 0
      %3672 = vmatprep.subr.bf16.mxu0 0
      %3673 = vmatpush1.bf16.msra.mxu0 0
      %3674 = vmatprep.subr.bf16.mxu0 0
      %3675 = vmatpush1.bf16.msra.mxu0 0
      %3676 = vmatprep.subr.bf16.mxu0 0
      %3677 = vmatpush1.bf16.msra.mxu0 0
      %3678 = vmatprep.subr.bf16.mxu0 0
      %3679 = vmatpush1.bf16.msra.mxu0 0
      %3680 = vmatprep.subr.bf16.mxu0 0
      %3681 = vmatpush1.bf16.msra.mxu0 0
      %3682 = vmatprep.subr.bf16.mxu0 0
      %3683 = vmatpush1.bf16.msra.mxu0 0
      %3684 = vmatprep.subr.bf16.mxu0 0
      %3685 = vmatpush1.bf16.msra.mxu0 0
      %3686 = vmatprep.subr.bf16.mxu0 0
      %3687 = vmatpush1.bf16.msra.mxu0 0
      %3688 = vmatprep.mubr.bf16.mxu0 0
      %3689 = vmatmul.mubr.bf16.gmra.mrb[0].mxu0 %v3603
      %v3690 = vpop.f32.mrb[0].mxu0
      %v3691 = vadd.f32 0.0, %v3690
      %v3692 = vpop.f32.mrb[0].mxu0
      %v3693 = vpop.f32.mrb[0].mxu0
      %v3694 = vadd.f32 0.0, %v3693
      %v3695 = vpop.f32.mrb[0].mxu0
      %3696 = vmatprep.mubr.bf16.mxu0 0
      %3697 = vmatmul.mubr.bf16.gmra.mrb[0].mxu0 %v3606
      %v3698 = vpop.f32.mrb[0].mxu0
      %v3699 = vadd.f32 0.0, %v3698
      %v3700 = vpop.f32.mrb[0].mxu0
      %v3701 = vpop.f32.mrb[0].mxu0
      %v3702 = vadd.f32 0.0, %v3701
      %v3703 = vpop.f32.mrb[0].mxu0
      %3704 = vmatprep.mubr.bf16.mxu0 0
      %3705 = vmatmul.mubr.bf16.gmra.mrb[0].mxu0 %v3609
      %v3706 = vpop.f32.mrb[0].mxu0
      %v3707 = vadd.f32 0.0, %v3706
      %v3708 = vpop.f32.mrb[0].mxu0
      %v3709 = vpop.f32.mrb[0].mxu0
      %v3710 = vadd.f32 0.0, %v3709
      %v3711 = vpop.f32.mrb[0].mxu0
      %3712 = vmatprep.mubr.bf16.mxu0 0
      %3713 = vmatmul.mubr.bf16.gmra.mrb[0].mxu0 %v3612
      %v3714 = vpop.f32.mrb[0].mxu0
      %v3715 = vadd.f32 0.0, %v3714
      %v3716 = vpop.f32.mrb[0].mxu0
      %v3717 = vpop.f32.mrb[0].mxu0
      %v3718 = vadd.f32 0.0, %v3717
      %v3719 = vpop.f32.mrb[0].mxu0
      %3720 = vmatprep.mubr.bf16.mxu0 0
      %3721 = vmatmul.mubr.bf16.gmra.mrb[0].mxu0 %v3615
      %v3722 = vpop.f32.mrb[0].mxu0
      %v3723 = vadd.f32 0.0, %v3722
      %v3724 = vpop.f32.mrb[0].mxu0
      %v3725 = vpop.f32.mrb[0].mxu0
      %v3726 = vadd.f32 0.0, %v3725
      %v3727 = vpop.f32.mrb[0].mxu0
      %3728 = vmatprep.mubr.bf16.mxu0 0
      %3729 = vmatmul.mubr.bf16.gmra.mrb[0].mxu0 %v3618
      %v3730 = vpop.f32.mrb[0].mxu0
      %v3731 = vadd.f32 0.0, %v3730
      %v3732 = vpop.f32.mrb[0].mxu0
      %v3733 = vpop.f32.mrb[0].mxu0
      %v3734 = vadd.f32 0.0, %v3733
      %v3735 = vpop.f32.mrb[0].mxu0
      %3736 = vmatprep.mubr.bf16.mxu0 0
      %3737 = vmatmul.mubr.bf16.gmra.mrb[0].mxu0 %v3621
      %v3738 = vpop.f32.mrb[0].mxu0
      %v3739 = vadd.f32 0.0, %v3738
      %v3740 = vpop.f32.mrb[0].mxu0
      %v3741 = vpop.f32.mrb[0].mxu0
      %v3742 = vadd.f32 0.0, %v3741
      %v3743 = vpop.f32.mrb[0].mxu0
      %3744 = vmatprep.mubr.bf16.mxu0 0
      %3745 = vmatmul.mubr.bf16.gmra.mrb[0].mxu0 %v3624
      %v3746 = vpop.f32.mrb[0].mxu0
      %v3747 = vadd.f32 0.0, %v3746
      %v3748 = vpop.f32.mrb[0].mxu0
      %v3749 = vpop.f32.mrb[0].mxu0
      %v3750 = vadd.f32 0.0, %v3749
      %v3751 = vpop.f32.mrb[0].mxu0
      %3752 = vmatprep.mubr.bf16.mxu0 0
      %3753 = vmatmul.mubr.bf16.gmra.mrb[0].mxu0 %v3627
      %v3754 = vpop.f32.mrb[0].mxu0
      %v3755 = vadd.f32 0.0, %v3754
      %v3756 = vpop.f32.mrb[0].mxu0
      %v3757 = vpop.f32.mrb[0].mxu0
      %v3758 = vadd.f32 0.0, %v3757
      %v3759 = vpop.f32.mrb[0].mxu0
      %3760 = vmatprep.mubr.bf16.mxu0 0
      %3761 = vmatmul.mubr.bf16.gmra.mrb[0].mxu0 %v3630
      %v3762 = vpop.f32.mrb[0].mxu0
      %v3763 = vadd.f32 0.0, %v3762
      %v3764 = vpop.f32.mrb[0].mxu0
      %v3765 = vpop.f32.mrb[0].mxu0
      %v3766 = vadd.f32 0.0, %v3765
      %v3767 = vpop.f32.mrb[0].mxu0
      %3768 = vmatprep.mubr.bf16.mxu0 0
      %3769 = vmatmul.mubr.bf16.gmra.mrb[0].mxu0 %v3633
      %v3770 = vpop.f32.mrb[0].mxu0
      %v3771 = vadd.f32 0.0, %v3770
      %v3772 = vpop.f32.mrb[0].mxu0
      %v3773 = vpop.f32.mrb[0].mxu0
      %v3774 = vadd.f32 0.0, %v3773
      %v3775 = vpop.f32.mrb[0].mxu0
      %3776 = vmatprep.mubr.bf16.mxu0 0
      %3777 = vmatmul.mubr.bf16.gmra.mrb[0].mxu0 %v3636
      %v3778 = vpop.f32.mrb[0].mxu0
      %v3779 = vadd.f32 0.0, %v3778
      %v3780 = vpop.f32.mrb[0].mxu0
      %v3781 = vpop.f32.mrb[0].mxu0
      %v3782 = vadd.f32 0.0, %v3781
      %v3783 = vpop.f32.mrb[0].mxu0
      %3784 = vmatprep.mubr.bf16.mxu0 0
      %3785 = vmatmul.mubr.bf16.gmra.mrb[0].mxu0 %v3639
      %v3786 = vpop.f32.mrb[0].mxu0
      %v3787 = vadd.f32 0.0, %v3786
      %v3788 = vpop.f32.mrb[0].mxu0
      %v3789 = vpop.f32.mrb[0].mxu0
      %v3790 = vadd.f32 0.0, %v3789
      %v3791 = vpop.f32.mrb[0].mxu0
      %3792 = vmatprep.mubr.bf16.mxu0 0
      %3793 = vmatmul.mubr.bf16.gmra.mrb[0].mxu0 %v3642
      %v3794 = vpop.f32.mrb[0].mxu0
      %v3795 = vadd.f32 0.0, %v3794
      %v3796 = vpop.f32.mrb[0].mxu0
      %v3797 = vpop.f32.mrb[0].mxu0
      %v3798 = vadd.f32 0.0, %v3797
      %v3799 = vpop.f32.mrb[0].mxu0
      %3800 = vmatprep.mubr.bf16.mxu0 0
      %3801 = vmatmul.mubr.bf16.gmra.mrb[0].mxu0 %v3645
      %v3802 = vpop.f32.mrb[0].mxu0
      %v3803 = vadd.f32 0.0, %v3802
      %v3804 = vpop.f32.mrb[0].mxu0
      %v3805 = vpop.f32.mrb[0].mxu0
      %v3806 = vadd.f32 0.0, %v3805
      %v3807 = vpop.f32.mrb[0].mxu0
      %3808 = vmatprep.mubr.bf16.mxu0 0
      %3809 = vmatmul.mubr.bf16.gmra.mrb[0].mxu0 %v3648
      %v3810 = vpop.f32.mrb[0].mxu0
      %v3811 = vadd.f32 0.0, %v3810
      %v3812 = vpop.f32.mrb[0].mxu0
      %v3813 = vpop.f32.mrb[0].mxu0
      %v3814 = vadd.f32 0.0, %v3813
      %v3815 = vpop.f32.mrb[0].mxu0
      %3816 = vmatprep.mubr.bf16.mxu0 0
      %3817 = vmatmul.mubr.bf16.gmra.mrb[0].mxu0 %v3651
      %v3818 = vpop.f32.mrb[0].mxu0
      %v3819 = vadd.f32 0.0, %v3818
      %v3820 = vpop.f32.mrb[0].mxu0
      %v3821 = vpop.f32.mrb[0].mxu0
      %v3822 = vadd.f32 0.0, %v3821
      %v3823 = vpop.f32.mrb[0].mxu0
      %3824 = vmatprep.mubr.bf16.mxu0 0
      %3825 = vmatmul.mubr.bf16.gmra.mrb[0].mxu0 %v3654
      %v3826 = vpop.f32.mrb[0].mxu0
      %v3827 = vadd.f32 0.0, %v3826
      %v3828 = vpop.f32.mrb[0].mxu0
      %v3829 = vpop.f32.mrb[0].mxu0
      %v3830 = vadd.f32 0.0, %v3829
      %v3831 = vpop.f32.mrb[0].mxu0
      %3832 = vdwg.mxu0
      %v3833 = vadd.f32 %v3358, %v3691
      %v3834 = vadd.f32 %v3359, %v3694
      %v3835 = vadd.f32 %v3360, %v3699
      %v3836 = vadd.f32 %v3361, %v3702
      %v3837 = vadd.f32 %v3362, %v3707
      %v3838 = vadd.f32 %v3363, %v3710
      %v3839 = vadd.f32 %v3364, %v3715
      %v3840 = vadd.f32 %v3365, %v3718
      %v3841 = vadd.f32 %v3366, %v3723
      %v3842 = vadd.f32 %v3367, %v3726
      %v3843 = vadd.f32 %v3368, %v3731
      %v3844 = vadd.f32 %v3369, %v3734
      %v3845 = vadd.f32 %v3370, %v3739
      %v3846 = vadd.f32 %v3371, %v3742
      %v3847 = vadd.f32 %v3372, %v3747
      %v3848 = vadd.f32 %v3373, %v3750
      %v3849 = vadd.f32 %v3374, %v3755
      %v3850 = vadd.f32 %v3375, %v3758
      %v3851 = vadd.f32 %v3376, %v3763
      %v3852 = vadd.f32 %v3377, %v3766
      %v3853 = vadd.f32 %v3378, %v3771
      %v3854 = vadd.f32 %v3379, %v3774
      %v3855 = vadd.f32 %v3380, %v3779
      %v3856 = vadd.f32 %v3381, %v3782
      %v3857 = vadd.f32 %v3382, %v3787
      %v3858 = vadd.f32 %v3383, %v3790
      %v3859 = vadd.f32 %v3384, %v3795
      %v3860 = vadd.f32 %v3385, %v3798
      %v3861 = vadd.f32 %v3386, %v3803
      %v3862 = vadd.f32 %v3387, %v3806
      %v3863 = vadd.f32 %v3388, %v3811
      %v3864 = vadd.f32 %v3389, %v3814
      %v3865 = vadd.f32 %v3390, %v3819
      %v3866 = vadd.f32 %v3391, %v3822
      %v3867 = vadd.f32 %v3392, %v3827
      %v3868 = vadd.f32 %v3393, %v3830
      %v3869 = vld [vmem:[%s246 + $0x10] sm:$0x8]
      %s3870 = scalar_lea.vmem %s2, 256
      %v3871 = vld [vmem:[%s3870] sm:$0xf]
      %v3872 = vld [vmem:[%s3870 + $0x4] sm:$0xf]
      %v3873 = vld [vmem:[%s3870 + $0x8] sm:$0xf]
      %v3874 = vld [vmem:[%s3870 + $0xc] sm:$0xf]
      %v3875 = vld [vmem:[%s3870 + $0x10] sm:$0xf]
      %v3876 = vld [vmem:[%s3870 + $0x14] sm:$0xf]
      %v3877 = vld [vmem:[%s3870 + $0x18] sm:$0xf]
      %v3878 = vld [vmem:[%s3870 + $0x1c] sm:$0xf]
      %v3880 = vunpack.c.l.b16 %v3869
      %v3881 = vpack.c.b16 %v3011, %v3880
      %vm3882 = vcmask 1044480
      %v3883 = vrot.slane %v3881, 3
      %v3884 = vrot.slane %v3048, 3
      %v3885 = vsel %vm3882, %v3883, %v3884
      %v3886 = vrot.slane %v3049, 3
      %v3887 = vsel %vm3882, %v3884, %v3886
      %v3888 = vrot.slane %v3050, 3
      %v3889 = vsel %vm3882, %v3886, %v3888
      %v3890 = vrot.slane %v3051, 3
      %v3891 = vsel %vm3882, %v3888, %v3890
      %v3892 = vrot.slane %v3052, 3
      %v3893 = vsel %vm3882, %v3890, %v3892
      %v3894 = vrot.slane %v3053, 3
      %v3895 = vsel %vm3882, %v3892, %v3894
      %v3896 = vrot.slane %v3054, 3
      %v3897 = vsel %vm3882, %v3894, %v3896
      %v3898 = vrot.slane %v3055, 3
      %v3899 = vsel %vm3882, %v3896, %v3898
      %v3900 = vrot.slane %v3056, 3
      %v3901 = vsel %vm3882, %v3898, %v3900
      %v3902 = vrot.slane %v3057, 3
      %v3903 = vsel %vm3882, %v3900, %v3902
      %v3904 = vrot.slane %v3058, 3
      %v3905 = vsel %vm3882, %v3902, %v3904
      %v3906 = vrot.slane %v3059, 3
      %v3907 = vsel %vm3882, %v3904, %v3906
      %v3908 = vrot.slane %v3060, 3
      %v3909 = vsel %vm3882, %v3906, %v3908
      %v3910 = vrot.slane %v3061, 3
      %v3911 = vsel %vm3882, %v3908, %v3910
      %v3912 = vrot.slane %v3062, 3
      %v3913 = vsel %vm3882, %v3910, %v3912
      %v3914 = vrot.slane %v3063, 3
      %v3915 = vsel %vm3882, %v3912, %v3914
      %v3916 = vrot.slane %v3064, 3
      %v3917 = vsel %vm3882, %v3914, %v3916
      %v3918 = vrot.slane %v3406, 3
      %v3919 = vsel %vm3882, %v3916, %v3918
      %v3928 = vunpack.c.l.b16 %v3871
      %v3929 = vunpack.c.l.b16 %v3872
      %v3930 = vunpack.c.l.b16 %v3873
      %v3931 = vunpack.c.l.b16 %v3874
      %v3932 = vunpack.c.l.b16 %v3875
      %v3933 = vunpack.c.l.b16 %v3876
      %v3934 = vunpack.c.l.b16 %v3877
      %v3935 = vunpack.c.l.b16 %v3878
      %v3936 = vpack.c.b16 %v3929, %v3928
      %v3937 = vpack.c.b16 %v3931, %v3930
      %v3938 = vpack.c.b16 %v3933, %v3932
      %v3939 = vpack.c.b16 %v3935, %v3934
      %v3945 = vsel %vm454, %v3885, 0
      %v3948 = vsel %vm454, %v3887, 0
      %v3951 = vsel %vm454, %v3889, 0
      %v3954 = vsel %vm454, %v3891, 0
      %v3957 = vsel %vm454, %v3893, 0
      %v3960 = vsel %vm454, %v3895, 0
      %v3963 = vsel %vm454, %v3897, 0
      %v3966 = vsel %vm454, %v3899, 0
      %v3969 = vsel %vm454, %v3901, 0
      %v3972 = vsel %vm454, %v3903, 0
      %v3975 = vsel %vm454, %v3905, 0
      %v3978 = vsel %vm454, %v3907, 0
      %v3981 = vsel %vm454, %v3909, 0
      %v3984 = vsel %vm454, %v3911, 0
      %v3987 = vsel %vm454, %v3913, 0
      %v3990 = vsel %vm454, %v3915, 0
      %v3993 = vsel %vm454, %v3917, 0
      %v3996 = vsel %vm454, %v3919, 0
      %3998 = vmatprep.subr.bf16.mxu0 0
      %3999 = vmatpush1.bf16.msra.mxu0 %v3936
      %4000 = vmatprep.subr.bf16.mxu0 0
      %4001 = vmatpush1.bf16.msra.mxu0 %v3937
      %4002 = vmatprep.subr.bf16.mxu0 0
      %4003 = vmatpush1.bf16.msra.mxu0 %v3938
      %4004 = vmatprep.subr.bf16.mxu0 0
      %4005 = vmatpush1.bf16.msra.mxu0 %v3939
      %4006 = vmatprep.subr.bf16.mxu0 0
      %4007 = vmatpush1.bf16.msra.mxu0 0
      %4008 = vmatprep.subr.bf16.mxu0 0
      %4009 = vmatpush1.bf16.msra.mxu0 0
      %4010 = vmatprep.subr.bf16.mxu0 0
      %4011 = vmatpush1.bf16.msra.mxu0 0
      %4012 = vmatprep.subr.bf16.mxu0 0
      %4013 = vmatpush1.bf16.msra.mxu0 0
      %4014 = vmatprep.subr.bf16.mxu0 0
      %4015 = vmatpush1.bf16.msra.mxu0 0
      %4016 = vmatprep.subr.bf16.mxu0 0
      %4017 = vmatpush1.bf16.msra.mxu0 0
      %4018 = vmatprep.subr.bf16.mxu0 0
      %4019 = vmatpush1.bf16.msra.mxu0 0
      %4020 = vmatprep.subr.bf16.mxu0 0
      %4021 = vmatpush1.bf16.msra.mxu0 0
      %4022 = vmatprep.subr.bf16.mxu0 0
      %4023 = vmatpush1.bf16.msra.mxu0 0
      %4024 = vmatprep.subr.bf16.mxu0 0
      %4025 = vmatpush1.bf16.msra.mxu0 0
      %4026 = vmatprep.subr.bf16.mxu0 0
      %4027 = vmatpush1.bf16.msra.mxu0 0
      %4028 = vmatprep.subr.bf16.mxu0 0
      %4029 = vmatpush1.bf16.msra.mxu0 0
      %4030 = vmatprep.mubr.bf16.mxu0 0
      %4031 = vmatmul.mubr.bf16.gmra.mrb[0].mxu0 %v3945
      %v4032 = vpop.f32.mrb[0].mxu0
      %v4033 = vadd.f32 0.0, %v4032
      %v4034 = vpop.f32.mrb[0].mxu0
      %v4035 = vpop.f32.mrb[0].mxu0
      %v4036 = vadd.f32 0.0, %v4035
      %v4037 = vpop.f32.mrb[0].mxu0
      %4038 = vmatprep.mubr.bf16.mxu0 0
      %4039 = vmatmul.mubr.bf16.gmra.mrb[0].mxu0 %v3948
      %v4040 = vpop.f32.mrb[0].mxu0
      %v4041 = vadd.f32 0.0, %v4040
      %v4042 = vpop.f32.mrb[0].mxu0
      %v4043 = vpop.f32.mrb[0].mxu0
      %v4044 = vadd.f32 0.0, %v4043
      %v4045 = vpop.f32.mrb[0].mxu0
      %4046 = vmatprep.mubr.bf16.mxu0 0
      %4047 = vmatmul.mubr.bf16.gmra.mrb[0].mxu0 %v3951
      %v4048 = vpop.f32.mrb[0].mxu0
      %v4049 = vadd.f32 0.0, %v4048
      %v4050 = vpop.f32.mrb[0].mxu0
      %v4051 = vpop.f32.mrb[0].mxu0
      %v4052 = vadd.f32 0.0, %v4051
      %v4053 = vpop.f32.mrb[0].mxu0
      %4054 = vmatprep.mubr.bf16.mxu0 0
      %4055 = vmatmul.mubr.bf16.gmra.mrb[0].mxu0 %v3954
      %v4056 = vpop.f32.mrb[0].mxu0
      %v4057 = vadd.f32 0.0, %v4056
      %v4058 = vpop.f32.mrb[0].mxu0
      %v4059 = vpop.f32.mrb[0].mxu0
      %v4060 = vadd.f32 0.0, %v4059
      %v4061 = vpop.f32.mrb[0].mxu0
      %4062 = vmatprep.mubr.bf16.mxu0 0
      %4063 = vmatmul.mubr.bf16.gmra.mrb[0].mxu0 %v3957
      %v4064 = vpop.f32.mrb[0].mxu0
      %v4065 = vadd.f32 0.0, %v4064
      %v4066 = vpop.f32.mrb[0].mxu0
      %v4067 = vpop.f32.mrb[0].mxu0
      %v4068 = vadd.f32 0.0, %v4067
      %v4069 = vpop.f32.mrb[0].mxu0
      %4070 = vmatprep.mubr.bf16.mxu0 0
      %4071 = vmatmul.mubr.bf16.gmra.mrb[0].mxu0 %v3960
      %v4072 = vpop.f32.mrb[0].mxu0
      %v4073 = vadd.f32 0.0, %v4072
      %v4074 = vpop.f32.mrb[0].mxu0
      %v4075 = vpop.f32.mrb[0].mxu0
      %v4076 = vadd.f32 0.0, %v4075
      %v4077 = vpop.f32.mrb[0].mxu0
      %4078 = vmatprep.mubr.bf16.mxu0 0
      %4079 = vmatmul.mubr.bf16.gmra.mrb[0].mxu0 %v3963
      %v4080 = vpop.f32.mrb[0].mxu0
      %v4081 = vadd.f32 0.0, %v4080
      %v4082 = vpop.f32.mrb[0].mxu0
      %v4083 = vpop.f32.mrb[0].mxu0
      %v4084 = vadd.f32 0.0, %v4083
      %v4085 = vpop.f32.mrb[0].mxu0
      %4086 = vmatprep.mubr.bf16.mxu0 0
      %4087 = vmatmul.mubr.bf16.gmra.mrb[0].mxu0 %v3966
      %v4088 = vpop.f32.mrb[0].mxu0
      %v4089 = vadd.f32 0.0, %v4088
      %v4090 = vpop.f32.mrb[0].mxu0
      %v4091 = vpop.f32.mrb[0].mxu0
      %v4092 = vadd.f32 0.0, %v4091
      %v4093 = vpop.f32.mrb[0].mxu0
      %4094 = vmatprep.mubr.bf16.mxu0 0
      %4095 = vmatmul.mubr.bf16.gmra.mrb[0].mxu0 %v3969
      %v4096 = vpop.f32.mrb[0].mxu0
      %v4097 = vadd.f32 0.0, %v4096
      %v4098 = vpop.f32.mrb[0].mxu0
      %v4099 = vpop.f32.mrb[0].mxu0
      %v4100 = vadd.f32 0.0, %v4099
      %v4101 = vpop.f32.mrb[0].mxu0
      %4102 = vmatprep.mubr.bf16.mxu0 0
      %4103 = vmatmul.mubr.bf16.gmra.mrb[0].mxu0 %v3972
      %v4104 = vpop.f32.mrb[0].mxu0
      %v4105 = vadd.f32 0.0, %v4104
      %v4106 = vpop.f32.mrb[0].mxu0
      %v4107 = vpop.f32.mrb[0].mxu0
      %v4108 = vadd.f32 0.0, %v4107
      %v4109 = vpop.f32.mrb[0].mxu0
      %4110 = vmatprep.mubr.bf16.mxu0 0
      %4111 = vmatmul.mubr.bf16.gmra.mrb[0].mxu0 %v3975
      %v4112 = vpop.f32.mrb[0].mxu0
      %v4113 = vadd.f32 0.0, %v4112
      %v4114 = vpop.f32.mrb[0].mxu0
      %v4115 = vpop.f32.mrb[0].mxu0
      %v4116 = vadd.f32 0.0, %v4115
      %v4117 = vpop.f32.mrb[0].mxu0
      %4118 = vmatprep.mubr.bf16.mxu0 0
      %4119 = vmatmul.mubr.bf16.gmra.mrb[0].mxu0 %v3978
      %v4120 = vpop.f32.mrb[0].mxu0
      %v4121 = vadd.f32 0.0, %v4120
      %v4122 = vpop.f32.mrb[0].mxu0
      %v4123 = vpop.f32.mrb[0].mxu0
      %v4124 = vadd.f32 0.0, %v4123
      %v4125 = vpop.f32.mrb[0].mxu0
      %4126 = vmatprep.mubr.bf16.mxu0 0
      %4127 = vmatmul.mubr.bf16.gmra.mrb[0].mxu0 %v3981
      %v4128 = vpop.f32.mrb[0].mxu0
      %v4129 = vadd.f32 0.0, %v4128
      %v4130 = vpop.f32.mrb[0].mxu0
      %v4131 = vpop.f32.mrb[0].mxu0
      %v4132 = vadd.f32 0.0, %v4131
      %v4133 = vpop.f32.mrb[0].mxu0
      %4134 = vmatprep.mubr.bf16.mxu0 0
      %4135 = vmatmul.mubr.bf16.gmra.mrb[0].mxu0 %v3984
      %v4136 = vpop.f32.mrb[0].mxu0
      %v4137 = vadd.f32 0.0, %v4136
      %v4138 = vpop.f32.mrb[0].mxu0
      %v4139 = vpop.f32.mrb[0].mxu0
      %v4140 = vadd.f32 0.0, %v4139
      %v4141 = vpop.f32.mrb[0].mxu0
      %4142 = vmatprep.mubr.bf16.mxu0 0
      %4143 = vmatmul.mubr.bf16.gmra.mrb[0].mxu0 %v3987
      %v4144 = vpop.f32.mrb[0].mxu0
      %v4145 = vadd.f32 0.0, %v4144
      %v4146 = vpop.f32.mrb[0].mxu0
      %v4147 = vpop.f32.mrb[0].mxu0
      %v4148 = vadd.f32 0.0, %v4147
      %v4149 = vpop.f32.mrb[0].mxu0
      %4150 = vmatprep.mubr.bf16.mxu0 0
      %4151 = vmatmul.mubr.bf16.gmra.mrb[0].mxu0 %v3990
      %v4152 = vpop.f32.mrb[0].mxu0
      %v4153 = vadd.f32 0.0, %v4152
      %v4154 = vpop.f32.mrb[0].mxu0
      %v4155 = vpop.f32.mrb[0].mxu0
      %v4156 = vadd.f32 0.0, %v4155
      %v4157 = vpop.f32.mrb[0].mxu0
      %4158 = vmatprep.mubr.bf16.mxu0 0
      %4159 = vmatmul.mubr.bf16.gmra.mrb[0].mxu0 %v3993
      %v4160 = vpop.f32.mrb[0].mxu0
      %v4161 = vadd.f32 0.0, %v4160
      %v4162 = vpop.f32.mrb[0].mxu0
      %v4163 = vpop.f32.mrb[0].mxu0
      %v4164 = vadd.f32 0.0, %v4163
      %v4165 = vpop.f32.mrb[0].mxu0
      %4166 = vmatprep.mubr.bf16.mxu0 0
      %4167 = vmatmul.mubr.bf16.gmra.mrb[0].mxu0 %v3996
      %v4168 = vpop.f32.mrb[0].mxu0
      %v4169 = vadd.f32 0.0, %v4168
      %v4170 = vpop.f32.mrb[0].mxu0
      %v4171 = vpop.f32.mrb[0].mxu0
      %v4172 = vadd.f32 0.0, %v4171
      %v4173 = vpop.f32.mrb[0].mxu0
      %4174 = vdwg.mxu0
      %v4175 = vadd.f32 %v3833, %v4033
      %v4176 = vadd.f32 %v3834, %v4036
      %v4177 = vadd.f32 %v3835, %v4041
      %v4178 = vadd.f32 %v3836, %v4044
      %v4179 = vadd.f32 %v3837, %v4049
      %v4180 = vadd.f32 %v3838, %v4052
      %v4181 = vadd.f32 %v3839, %v4057
      %v4182 = vadd.f32 %v3840, %v4060
      %v4183 = vadd.f32 %v3841, %v4065
      %v4184 = vadd.f32 %v3842, %v4068
      %v4185 = vadd.f32 %v3843, %v4073
      %v4186 = vadd.f32 %v3844, %v4076
      %v4187 = vadd.f32 %v3845, %v4081
      %v4188 = vadd.f32 %v3846, %v4084
      %v4189 = vadd.f32 %v3847, %v4089
      %v4190 = vadd.f32 %v3848, %v4092
      %v4191 = vadd.f32 %v3849, %v4097
      %v4192 = vadd.f32 %v3850, %v4100
      %v4193 = vadd.f32 %v3851, %v4105
      %v4194 = vadd.f32 %v3852, %v4108
      %v4195 = vadd.f32 %v3853, %v4113
      %v4196 = vadd.f32 %v3854, %v4116
      %v4197 = vadd.f32 %v3855, %v4121
      %v4198 = vadd.f32 %v3856, %v4124
      %v4199 = vadd.f32 %v3857, %v4129
      %v4200 = vadd.f32 %v3858, %v4132
      %v4201 = vadd.f32 %v3859, %v4137
      %v4202 = vadd.f32 %v3860, %v4140
      %v4203 = vadd.f32 %v3861, %v4145
      %v4204 = vadd.f32 %v3862, %v4148
      %v4205 = vadd.f32 %v3863, %v4153
      %v4206 = vadd.f32 %v3864, %v4156
      %v4207 = vadd.f32 %v3865, %v4161
      %v4208 = vadd.f32 %v3866, %v4164
      %v4209 = vadd.f32 %v3867, %v4169
      %v4210 = vadd.f32 %v3868, %v4172
      %v4211 = vmax.f32 %v4175, 0.0
      %v4212 = vmax.f32 %v4176, 0.0
      %v4213 = vmax.f32 %v4177, 0.0
      %v4214 = vmax.f32 %v4178, 0.0
      %v4215 = vmax.f32 %v4179, 0.0
      %v4216 = vmax.f32 %v4180, 0.0
      %v4217 = vmax.f32 %v4181, 0.0
      %v4218 = vmax.f32 %v4182, 0.0
      %v4219 = vmax.f32 %v4183, 0.0
      %v4220 = vmax.f32 %v4184, 0.0
      %v4221 = vmax.f32 %v4185, 0.0
      %v4222 = vmax.f32 %v4186, 0.0
      %v4223 = vmax.f32 %v4187, 0.0
      %v4224 = vmax.f32 %v4188, 0.0
      %v4225 = vmax.f32 %v4189, 0.0
      %v4226 = vmax.f32 %v4190, 0.0
      %v4227 = vmax.f32 %v4191, 0.0
      %v4228 = vmax.f32 %v4192, 0.0
      %v4229 = vmax.f32 %v4193, 0.0
      %v4230 = vmax.f32 %v4194, 0.0
      %v4231 = vmax.f32 %v4195, 0.0
      %v4232 = vmax.f32 %v4196, 0.0
      %v4233 = vmax.f32 %v4197, 0.0
      %v4234 = vmax.f32 %v4198, 0.0
      %v4235 = vmax.f32 %v4199, 0.0
      %v4236 = vmax.f32 %v4200, 0.0
      %v4237 = vmax.f32 %v4201, 0.0
      %v4238 = vmax.f32 %v4202, 0.0
      %v4239 = vmax.f32 %v4203, 0.0
      %v4240 = vmax.f32 %v4204, 0.0
      %v4241 = vmax.f32 %v4205, 0.0
      %v4242 = vmax.f32 %v4206, 0.0
      %v4243 = vmax.f32 %v4207, 0.0
      %v4244 = vmax.f32 %v4208, 0.0
      %v4245 = vmax.f32 %v4209, 0.0
      %v4246 = vmax.f32 %v4210, 0.0
      %v4247 = vpack.c.bf16 %v4212, %v4211
      %v4248 = vpack.c.bf16 %v4214, %v4213
      %v4249 = vpack.c.bf16 %v4216, %v4215
      %v4250 = vpack.c.bf16 %v4218, %v4217
      %v4251 = vpack.c.bf16 %v4220, %v4219
      %v4252 = vpack.c.bf16 %v4222, %v4221
      %v4253 = vpack.c.bf16 %v4224, %v4223
      %v4254 = vpack.c.bf16 %v4226, %v4225
      %v4255 = vpack.c.bf16 %v4228, %v4227
      %v4256 = vpack.c.bf16 %v4230, %v4229
      %v4257 = vpack.c.bf16 %v4232, %v4231
      %v4258 = vpack.c.bf16 %v4234, %v4233
      %v4259 = vpack.c.bf16 %v4236, %v4235
      %v4260 = vpack.c.bf16 %v4238, %v4237
      %v4261 = vpack.c.bf16 %v4240, %v4239
      %v4262 = vpack.c.bf16 %v4242, %v4241
      %v4263 = vpack.c.bf16 %v4244, %v4243
      %v4264 = vpack.c.bf16 %v4246, %v4245
      %4266 = vset.pattern.permute.xlu0 0
      %4267 = vperm.xlu0 %4266, %v253
      %v4268 = vpop.permute.xlu0 %4267
      %v4271 = vunpack.c.l.s4 839922192
      %v4272 = vunpack.c.0.s8 %v4271
      %v4273 = vlaneseq
      %v4274 = vshrl.u32 %v4273, 7
      %v4275 = vsub.s32 %v4272, %v4274
      %v4276 = vrot.slane %v4268, %v4275
      %4278 = vset.pattern.permute.xlu0 0
      %4279 = vperm.xlu0 %4278, %v254
      %v4280 = vpop.permute.xlu0 %4279
      %v4283 = vunpack.c.l.s4 839922192
      %v4284 = vunpack.c.0.s8 %v4283
      %v4285 = vlaneseq
      %v4286 = vshrl.u32 %v4285, 7
      %v4287 = vsub.s32 %v4284, %v4286
      %v4288 = vrot.slane %v4280, %v4287
      %4290 = vset.pattern.permute.xlu0 0
      %4291 = vperm.xlu0 %4290, %v255
      %v4292 = vpop.permute.xlu0 %4291
      %v4295 = vunpack.c.l.s4 839922192
      %v4296 = vunpack.c.0.s8 %v4295
      %v4297 = vlaneseq
      %v4298 = vshrl.u32 %v4297, 7
      %v4299 = vsub.s32 %v4296, %v4298
      %v4300 = vrot.slane %v4292, %v4299
      %4302 = vset.pattern.permute.xlu0 0
      %4303 = vperm.xlu0 %4302, %v256
      %v4304 = vpop.permute.xlu0 %4303
      %v4307 = vunpack.c.l.s4 839922192
      %v4308 = vunpack.c.0.s8 %v4307
      %v4309 = vlaneseq
      %v4310 = vshrl.u32 %v4309, 7
      %v4311 = vsub.s32 %v4308, %v4310
      %v4312 = vrot.slane %v4304, %v4311
      %4314 = vset.pattern.permute.xlu0 0
      %4315 = vperm.xlu0 %4314, %v257
      %v4316 = vpop.permute.xlu0 %4315
      %v4319 = vunpack.c.l.s4 839922192
      %v4320 = vunpack.c.0.s8 %v4319
      %v4321 = vlaneseq
      %v4322 = vshrl.u32 %v4321, 7
      %v4323 = vsub.s32 %v4320, %v4322
      %v4324 = vrot.slane %v4316, %v4323
      %4326 = vset.pattern.permute.xlu0 0
      %4327 = vperm.xlu0 %4326, %v258
      %v4328 = vpop.permute.xlu0 %4327
      %v4331 = vunpack.c.l.s4 839922192
      %v4332 = vunpack.c.0.s8 %v4331
      %v4333 = vlaneseq
      %v4334 = vshrl.u32 %v4333, 7
      %v4335 = vsub.s32 %v4332, %v4334
      %v4336 = vrot.slane %v4328, %v4335
      %4338 = vset.pattern.permute.xlu0 0
      %4339 = vperm.xlu0 %4338, %v259
      %v4340 = vpop.permute.xlu0 %4339
      %v4343 = vunpack.c.l.s4 839922192
      %v4344 = vunpack.c.0.s8 %v4343
      %v4345 = vlaneseq
      %v4346 = vshrl.u32 %v4345, 7
      %v4347 = vsub.s32 %v4344, %v4346
      %v4348 = vrot.slane %v4340, %v4347
      %4350 = vset.pattern.permute.xlu0 0
      %4351 = vperm.xlu0 %4350, %v260
      %v4352 = vpop.permute.xlu0 %4351
      %v4355 = vunpack.c.l.s4 839922192
      %v4356 = vunpack.c.0.s8 %v4355
      %v4357 = vlaneseq
      %v4358 = vshrl.u32 %v4357, 7
      %v4359 = vsub.s32 %v4356, %v4358
      %v4360 = vrot.slane %v4352, %v4359
      %4362 = vset.pattern.permute.xlu0 0
      %4363 = vperm.xlu0 %4362, %v261
      %v4364 = vpop.permute.xlu0 %4363
      %v4367 = vunpack.c.l.s4 839922192
      %v4368 = vunpack.c.0.s8 %v4367
      %v4369 = vlaneseq
      %v4370 = vshrl.u32 %v4369, 7
      %v4371 = vsub.s32 %v4368, %v4370
      %v4372 = vrot.slane %v4364, %v4371
      %4374 = vset.pattern.permute.xlu0 0
      %4375 = vperm.xlu0 %4374, %v262
      %v4376 = vpop.permute.xlu0 %4375
      %v4379 = vunpack.c.l.s4 839922192
      %v4380 = vunpack.c.0.s8 %v4379
      %v4381 = vlaneseq
      %v4382 = vshrl.u32 %v4381, 7
      %v4383 = vsub.s32 %v4380, %v4382
      %v4384 = vrot.slane %v4376, %v4383
      %4386 = vset.pattern.permute.xlu0 0
      %4387 = vperm.xlu0 %4386, %v263
      %v4388 = vpop.permute.xlu0 %4387
      %v4391 = vunpack.c.l.s4 839922192
      %v4392 = vunpack.c.0.s8 %v4391
      %v4393 = vlaneseq
      %v4394 = vshrl.u32 %v4393, 7
      %v4395 = vsub.s32 %v4392, %v4394
      %v4396 = vrot.slane %v4388, %v4395
      %4398 = vset.pattern.permute.xlu0 0
      %4399 = vperm.xlu0 %4398, %v264
      %v4400 = vpop.permute.xlu0 %4399
      %v4403 = vunpack.c.l.s4 839922192
      %v4404 = vunpack.c.0.s8 %v4403
      %v4405 = vlaneseq
      %v4406 = vshrl.u32 %v4405, 7
      %v4407 = vsub.s32 %v4404, %v4406
      %v4408 = vrot.slane %v4400, %v4407
      %4410 = vset.pattern.permute.xlu0 0
      %4411 = vperm.xlu0 %4410, %v265
      %v4412 = vpop.permute.xlu0 %4411
      %v4415 = vunpack.c.l.s4 839922192
      %v4416 = vunpack.c.0.s8 %v4415
      %v4417 = vlaneseq
      %v4418 = vshrl.u32 %v4417, 7
      %v4419 = vsub.s32 %v4416, %v4418
      %v4420 = vrot.slane %v4412, %v4419
      %4422 = vset.pattern.permute.xlu0 0
      %4423 = vperm.xlu0 %4422, %v266
      %v4424 = vpop.permute.xlu0 %4423
      %v4427 = vunpack.c.l.s4 839922192
      %v4428 = vunpack.c.0.s8 %v4427
      %v4429 = vlaneseq
      %v4430 = vshrl.u32 %v4429, 7
      %v4431 = vsub.s32 %v4428, %v4430
      %v4432 = vrot.slane %v4424, %v4431
      %4434 = vset.pattern.permute.xlu0 0
      %4435 = vperm.xlu0 %4434, %v267
      %v4436 = vpop.permute.xlu0 %4435
      %v4439 = vunpack.c.l.s4 839922192
      %v4440 = vunpack.c.0.s8 %v4439
      %v4441 = vlaneseq
      %v4442 = vshrl.u32 %v4441, 7
      %v4443 = vsub.s32 %v4440, %v4442
      %v4444 = vrot.slane %v4436, %v4443
      %4446 = vset.pattern.permute.xlu0 0
      %4447 = vperm.xlu0 %4446, %v268
      %v4448 = vpop.permute.xlu0 %4447
      %v4451 = vunpack.c.l.s4 839922192
      %v4452 = vunpack.c.0.s8 %v4451
      %v4453 = vlaneseq
      %v4454 = vshrl.u32 %v4453, 7
      %v4455 = vsub.s32 %v4452, %v4454
      %v4456 = vrot.slane %v4448, %v4455
      %4458 = vset.pattern.permute.xlu0 0
      %4459 = vperm.xlu0 %4458, %v269
      %v4460 = vpop.permute.xlu0 %4459
      %v4463 = vunpack.c.l.s4 839922192
      %v4464 = vunpack.c.0.s8 %v4463
      %v4465 = vlaneseq
      %v4466 = vshrl.u32 %v4465, 7
      %v4467 = vsub.s32 %v4464, %v4466
      %v4468 = vrot.slane %v4460, %v4467
      %4470 = vset.pattern.permute.xlu0 0
      %4471 = vperm.xlu0 %4470, %v270
      %v4472 = vpop.permute.xlu0 %4471
      %v4475 = vunpack.c.l.s4 839922192
      %v4476 = vunpack.c.0.s8 %v4475
      %v4477 = vlaneseq
      %v4478 = vshrl.u32 %v4477, 7
      %v4479 = vsub.s32 %v4476, %v4478
      %v4480 = vrot.slane %v4472, %v4479
      %4482 = vset.pattern.permute.xlu0 0
      %4483 = vperm.xlu0 %4482, %v271
      %v4484 = vpop.permute.xlu0 %4483
      %v4487 = vunpack.c.l.s4 839922192
      %v4488 = vunpack.c.0.s8 %v4487
      %v4489 = vlaneseq
      %v4490 = vshrl.u32 %v4489, 7
      %v4491 = vsub.s32 %v4488, %v4490
      %v4492 = vrot.slane %v4484, %v4491
      %4494 = vset.pattern.permute.xlu0 0
      %4495 = vperm.xlu0 %4494, %v272
      %v4496 = vpop.permute.xlu0 %4495
      %v4499 = vunpack.c.l.s4 839922192
      %v4500 = vunpack.c.0.s8 %v4499
      %v4501 = vlaneseq
      %v4502 = vshrl.u32 %v4501, 7
      %v4503 = vsub.s32 %v4500, %v4502
      %v4504 = vrot.slane %v4496, %v4503
      %4506 = vset.pattern.permute.xlu0 0
      %4507 = vperm.xlu0 %4506, %v273
      %v4508 = vpop.permute.xlu0 %4507
      %v4511 = vunpack.c.l.s4 839922192
      %v4512 = vunpack.c.0.s8 %v4511
      %v4513 = vlaneseq
      %v4514 = vshrl.u32 %v4513, 7
      %v4515 = vsub.s32 %v4512, %v4514
      %v4516 = vrot.slane %v4508, %v4515
      %4518 = vset.pattern.permute.xlu0 0
      %4519 = vperm.xlu0 %4518, %v274
      %v4520 = vpop.permute.xlu0 %4519
      %v4523 = vunpack.c.l.s4 839922192
      %v4524 = vunpack.c.0.s8 %v4523
      %v4525 = vlaneseq
      %v4526 = vshrl.u32 %v4525, 7
      %v4527 = vsub.s32 %v4524, %v4526
      %v4528 = vrot.slane %v4520, %v4527
      %4530 = vset.pattern.permute.xlu0 0
      %4531 = vperm.xlu0 %4530, %v275
      %v4532 = vpop.permute.xlu0 %4531
      %v4535 = vunpack.c.l.s4 839922192
      %v4536 = vunpack.c.0.s8 %v4535
      %v4537 = vlaneseq
      %v4538 = vshrl.u32 %v4537, 7
      %v4539 = vsub.s32 %v4536, %v4538
      %v4540 = vrot.slane %v4532, %v4539
      %4542 = vset.pattern.permute.xlu0 0
      %4543 = vperm.xlu0 %4542, %v276
      %v4544 = vpop.permute.xlu0 %4543
      %v4547 = vunpack.c.l.s4 839922192
      %v4548 = vunpack.c.0.s8 %v4547
      %v4549 = vlaneseq
      %v4550 = vshrl.u32 %v4549, 7
      %v4551 = vsub.s32 %v4548, %v4550
      %v4552 = vrot.slane %v4544, %v4551
      %4554 = vset.pattern.permute.xlu0 0
      %4555 = vperm.xlu0 %4554, %v277
      %v4556 = vpop.permute.xlu0 %4555
      %v4559 = vunpack.c.l.s4 839922192
      %v4560 = vunpack.c.0.s8 %v4559
      %v4561 = vlaneseq
      %v4562 = vshrl.u32 %v4561, 7
      %v4563 = vsub.s32 %v4560, %v4562
      %v4564 = vrot.slane %v4556, %v4563
      %4566 = vset.pattern.permute.xlu0 0
      %4567 = vperm.xlu0 %4566, %v278
      %v4568 = vpop.permute.xlu0 %4567
      %v4571 = vunpack.c.l.s4 839922192
      %v4572 = vunpack.c.0.s8 %v4571
      %v4573 = vlaneseq
      %v4574 = vshrl.u32 %v4573, 7
      %v4575 = vsub.s32 %v4572, %v4574
      %v4576 = vrot.slane %v4568, %v4575
      %4578 = vset.pattern.permute.xlu0 0
      %4579 = vperm.xlu0 %4578, %v279
      %v4580 = vpop.permute.xlu0 %4579
      %v4583 = vunpack.c.l.s4 839922192
      %v4584 = vunpack.c.0.s8 %v4583
      %v4585 = vlaneseq
      %v4586 = vshrl.u32 %v4585, 7
      %v4587 = vsub.s32 %v4584, %v4586
      %v4588 = vrot.slane %v4580, %v4587
      %4590 = vset.pattern.permute.xlu0 0
      %4591 = vperm.xlu0 %4590, %v280
      %v4592 = vpop.permute.xlu0 %4591
      %v4595 = vunpack.c.l.s4 839922192
      %v4596 = vunpack.c.0.s8 %v4595
      %v4597 = vlaneseq
      %v4598 = vshrl.u32 %v4597, 7
      %v4599 = vsub.s32 %v4596, %v4598
      %v4600 = vrot.slane %v4592, %v4599
      %4602 = vset.pattern.permute.xlu0 0
      %4603 = vperm.xlu0 %4602, %v281
      %v4604 = vpop.permute.xlu0 %4603
      %v4607 = vunpack.c.l.s4 839922192
      %v4608 = vunpack.c.0.s8 %v4607
      %v4609 = vlaneseq
      %v4610 = vshrl.u32 %v4609, 7
      %v4611 = vsub.s32 %v4608, %v4610
      %v4612 = vrot.slane %v4604, %v4611
      %4614 = vset.pattern.permute.xlu0 0
      %4615 = vperm.xlu0 %4614, %v282
      %v4616 = vpop.permute.xlu0 %4615
      %v4619 = vunpack.c.l.s4 839922192
      %v4620 = vunpack.c.0.s8 %v4619
      %v4621 = vlaneseq
      %v4622 = vshrl.u32 %v4621, 7
      %v4623 = vsub.s32 %v4620, %v4622
      %v4624 = vrot.slane %v4616, %v4623
      %4626 = vset.pattern.permute.xlu0 0
      %4627 = vperm.xlu0 %4626, %v283
      %v4628 = vpop.permute.xlu0 %4627
      %v4631 = vunpack.c.l.s4 839922192
      %v4632 = vunpack.c.0.s8 %v4631
      %v4633 = vlaneseq
      %v4634 = vshrl.u32 %v4633, 7
      %v4635 = vsub.s32 %v4632, %v4634
      %v4636 = vrot.slane %v4628, %v4635
      %4638 = vset.pattern.permute.xlu0 0
      %4639 = vperm.xlu0 %4638, %v284
      %v4640 = vpop.permute.xlu0 %4639
      %v4643 = vunpack.c.l.s4 839922192
      %v4644 = vunpack.c.0.s8 %v4643
      %v4645 = vlaneseq
      %v4646 = vshrl.u32 %v4645, 7
      %v4647 = vsub.s32 %v4644, %v4646
      %v4648 = vrot.slane %v4640, %v4647
      %4650 = vset.pattern.permute.xlu0 0
      %4651 = vperm.xlu0 %4650, %v285
      %v4652 = vpop.permute.xlu0 %4651
      %v4655 = vunpack.c.l.s4 839922192
      %v4656 = vunpack.c.0.s8 %v4655
      %v4657 = vlaneseq
      %v4658 = vshrl.u32 %v4657, 7
      %v4659 = vsub.s32 %v4656, %v4658
      %v4660 = vrot.slane %v4652, %v4659
      %4662 = vset.pattern.permute.xlu0 0
      %4663 = vperm.xlu0 %4662, %v286
      %v4664 = vpop.permute.xlu0 %4663
      %v4667 = vunpack.c.l.s4 839922192
      %v4668 = vunpack.c.0.s8 %v4667
      %v4669 = vlaneseq
      %v4670 = vshrl.u32 %v4669, 7
      %v4671 = vsub.s32 %v4668, %v4670
      %v4672 = vrot.slane %v4664, %v4671
      %4674 = vset.pattern.permute.xlu0 0
      %4675 = vperm.xlu0 %4674, %v287
      %v4676 = vpop.permute.xlu0 %4675
      %v4679 = vunpack.c.l.s4 839922192
      %v4680 = vunpack.c.0.s8 %v4679
      %v4681 = vlaneseq
      %v4682 = vshrl.u32 %v4681, 7
      %v4683 = vsub.s32 %v4680, %v4682
      %v4684 = vrot.slane %v4676, %v4683
      %4686 = vset.pattern.permute.xlu0 0
      %4687 = vperm.xlu0 %4686, %v288
      %v4688 = vpop.permute.xlu0 %4687
      %v4691 = vunpack.c.l.s4 839922192
      %v4692 = vunpack.c.0.s8 %v4691
      %v4693 = vlaneseq
      %v4694 = vshrl.u32 %v4693, 7
      %v4695 = vsub.s32 %v4692, %v4694
      %v4696 = vrot.slane %v4688, %v4695
      %v4733 = vunpack.c.l.b16 %v4276
      %v4734 = vunpack.c.l.b16 %v4288
      %v4735 = vunpack.c.l.b16 %v4300
      %v4736 = vunpack.c.l.b16 %v4312
      %v4737 = vunpack.c.l.b16 %v4324
      %v4738 = vunpack.c.l.b16 %v4336
      %v4739 = vunpack.c.l.b16 %v4348
      %v4740 = vunpack.c.l.b16 %v4360
      %v4741 = vunpack.c.l.b16 %v4372
      %v4742 = vunpack.c.l.b16 %v4384
      %v4743 = vunpack.c.l.b16 %v4396
      %v4744 = vunpack.c.l.b16 %v4408
      %v4745 = vunpack.c.l.b16 %v4420
      %v4746 = vunpack.c.l.b16 %v4432
      %v4747 = vunpack.c.l.b16 %v4444
      %v4748 = vunpack.c.l.b16 %v4456
      %v4749 = vunpack.c.l.b16 %v4468
      %v4750 = vunpack.c.l.b16 %v4480
      %v4751 = vunpack.c.l.b16 %v4492
      %v4752 = vunpack.c.l.b16 %v4504
      %v4753 = vunpack.c.l.b16 %v4516
      %v4754 = vunpack.c.l.b16 %v4528
      %v4755 = vunpack.c.l.b16 %v4540
      %v4756 = vunpack.c.l.b16 %v4552
      %v4757 = vunpack.c.l.b16 %v4564
      %v4758 = vunpack.c.l.b16 %v4576
      %v4759 = vunpack.c.l.b16 %v4588
      %v4760 = vunpack.c.l.b16 %v4600
      %v4761 = vunpack.c.l.b16 %v4612
      %v4762 = vunpack.c.l.b16 %v4624
      %v4763 = vunpack.c.l.b16 %v4636
      %v4764 = vunpack.c.l.b16 %v4648
      %v4765 = vunpack.c.l.b16 %v4660
      %v4766 = vunpack.c.l.b16 %v4672
      %v4767 = vunpack.c.l.b16 %v4684
      %v4768 = vunpack.c.l.b16 %v4696
      %v4769 = vpack.c.b16 %v4734, %v4733
      %v4770 = vpack.c.b16 %v4736, %v4735
      %v4771 = vpack.c.b16 %v4738, %v4737
      %v4772 = vpack.c.b16 %v4740, %v4739
      %v4773 = vpack.c.b16 %v4742, %v4741
      %v4774 = vpack.c.b16 %v4744, %v4743
      %v4775 = vpack.c.b16 %v4746, %v4745
      %v4776 = vpack.c.b16 %v4748, %v4747
      %v4777 = vpack.c.b16 %v4750, %v4749
      %v4778 = vpack.c.b16 %v4752, %v4751
      %v4779 = vpack.c.b16 %v4754, %v4753
      %v4780 = vpack.c.b16 %v4756, %v4755
      %v4781 = vpack.c.b16 %v4758, %v4757
      %v4782 = vpack.c.b16 %v4760, %v4759
      %v4783 = vpack.c.b16 %v4762, %v4761
      %v4784 = vpack.c.b16 %v4764, %v4763
      %v4785 = vpack.c.b16 %v4766, %v4765
      %v4786 = vpack.c.b16 %v4768, %v4767
      %v4805 = vmul.bf16 %v4247, %v4769
      %v4806 = vmul.bf16 %v4248, %v4770
      %v4807 = vmul.bf16 %v4249, %v4771
      %v4808 = vmul.bf16 %v4250, %v4772
      %v4809 = vmul.bf16 %v4251, %v4773
      %v4810 = vmul.bf16 %v4252, %v4774
      %v4811 = vmul.bf16 %v4253, %v4775
      %v4812 = vmul.bf16 %v4254, %v4776
      %v4813 = vmul.bf16 %v4255, %v4777
      %v4814 = vmul.bf16 %v4256, %v4778
      %v4815 = vmul.bf16 %v4257, %v4779
      %v4816 = vmul.bf16 %v4258, %v4780
      %v4817 = vmul.bf16 %v4259, %v4781
      %v4818 = vmul.bf16 %v4260, %v4782
      %v4819 = vmul.bf16 %v4261, %v4783
      %v4820 = vmul.bf16 %v4262, %v4784
      %v4821 = vmul.bf16 %v4263, %v4785
      %v4822 = vmul.bf16 %v4264, %v4786
      %vm4823 = vcmask 519168
      %4824 = vst.msk [vmem:[#allocation2] sm:$0xf] %vm4823, 0
      %4825 = vst.msk [vmem:[#allocation2 + $0x4] sm:$0xf] %vm4823, 0
      %4826 = vst.msk [vmem:[#allocation2 + $0x8] sm:$0xf] %vm4823, 0
      %4827 = vst.msk [vmem:[#allocation2 + $0xc] sm:$0xf] %vm4823, 0
      %4828 = vst.msk [vmem:[#allocation2 + $0x10] sm:$0xf] %vm4823, 0
      %4829 = vst.msk [vmem:[#allocation2 + $0x14] sm:$0xf] %vm4823, 0
      %4830 = vst.msk [vmem:[#allocation2 + $0x18] sm:$0xf] %vm4823, 0
      %4831 = vst.msk [vmem:[#allocation2 + $0x1c] sm:$0xf] %vm4823, 0
      %4832 = vst.msk [vmem:[#allocation2 + $0x20] sm:$0xf] %vm4823, 0
      %4833 = vst.msk [vmem:[#allocation2 + $0x24] sm:$0xf] %vm4823, 0
      %4834 = vst.msk [vmem:[#allocation2 + $0x28] sm:$0xf] %vm4823, 0
      %4835 = vst.msk [vmem:[#allocation2 + $0x2c] sm:$0xf] %vm4823, 0
      %4836 = vst.msk [vmem:[#allocation2 + $0x30] sm:$0xf] %vm4823, 0
      %4837 = vst.msk [vmem:[#allocation2 + $0x34] sm:$0xf] %vm4823, 0
      %4838 = vst.msk [vmem:[#allocation2 + $0x38] sm:$0xf] %vm4823, 0
      %4839 = vst.msk [vmem:[#allocation2 + $0x3c] sm:$0xf] %vm4823, 0
      %4840 = vst.msk [vmem:[#allocation2 + $0x40] sm:$0xf] %vm4823, 0
      %4841 = vst.msk [vmem:[#allocation2 + $0x44] sm:$0xf] %vm4823, 0
      %4842 = vst.msk [vmem:[#allocation2 + $0x48] sm:$0xf] %vm4823, 0
      %4843 = vst.msk [vmem:[#allocation2 + $0x4c] sm:$0xf] %vm4823, 0
      %4844 = vst.msk [vmem:[#allocation2 + $0x50] sm:$0xf] %vm4823, 0
      %4845 = vst.msk [vmem:[#allocation2 + $0x54] sm:$0xf] %vm4823, 0
      %4846 = vst.msk [vmem:[#allocation2 + $0x58] sm:$0xf] %vm4823, 0
      %4847 = vst.msk [vmem:[#allocation2 + $0x5c] sm:$0xf] %vm4823, 0
      %4848 = vst.msk [vmem:[#allocation2 + $0x60] sm:$0xf] %vm4823, 0
      %4849 = vst.msk [vmem:[#allocation2 + $0x64] sm:$0xf] %vm4823, 0
      %4850 = vst.msk [vmem:[#allocation2 + $0x68] sm:$0xf] %vm4823, 0
      %4851 = vst.msk [vmem:[#allocation2 + $0x6c] sm:$0xf] %vm4823, 0
      %4852 = vst.msk [vmem:[#allocation2 + $0x70] sm:$0xf] %vm4823, 0
      %4853 = vst.msk [vmem:[#allocation2 + $0x74] sm:$0xf] %vm4823, 0
      %4854 = vst.msk [vmem:[#allocation2 + $0x78] sm:$0xf] %vm4823, 0
      %4855 = vst.msk [vmem:[#allocation2 + $0x7c] sm:$0xf] %vm4823, 0
      %4856 = vst.msk [vmem:[#allocation2 + $0x80] sm:$0xf] %vm4823, 0
      %4857 = vst.msk [vmem:[#allocation2 + $0x84] sm:$0xf] %vm4823, 0
      %4858 = vst.msk [vmem:[#allocation2 + $0x88] sm:$0xf] %vm4823, 0
      %4859 = vst.msk [vmem:[#allocation2 + $0x8c] sm:$0xf] %vm4823, 0
      %4860 = vst.msk [vmem:[#allocation2 + $0x90] sm:$0xf] %vm4823, 0
      %4861 = vst.msk [vmem:[#allocation2 + $0x94] sm:$0xf] %vm4823, 0
      %4862 = vst.msk [vmem:[#allocation2 + $0x98] sm:$0xf] %vm4823, 0
      %4863 = vst.msk [vmem:[#allocation2 + $0x9c] sm:$0xf] %vm4823, 0
      %4864 = vst.msk [vmem:[#allocation2 + $0xa0] sm:$0xf] %vm4823, 0
      %4865 = vst.msk [vmem:[#allocation2 + $0xa4] sm:$0xf] %vm4823, 0
      %vm4866 = vcmask 518144
      %4867 = vst.msk [vmem:[#allocation2 + $0xa8] sm:$0x7] %vm4866, 0
      %v4886 = vunpack.c.l.b16 %v4805
      %v4887 = vunpack.c.h.b16 %v4805
      %v4888 = vunpack.c.l.b16 %v4806
      %v4889 = vunpack.c.h.b16 %v4806
      %v4890 = vunpack.c.l.b16 %v4807
      %v4891 = vunpack.c.h.b16 %v4807
      %v4892 = vunpack.c.l.b16 %v4808
      %v4893 = vunpack.c.h.b16 %v4808
      %v4894 = vunpack.c.l.b16 %v4809
      %v4895 = vunpack.c.h.b16 %v4809
      %v4896 = vunpack.c.l.b16 %v4810
      %v4897 = vunpack.c.h.b16 %v4810
      %v4898 = vunpack.c.l.b16 %v4811
      %v4899 = vunpack.c.h.b16 %v4811
      %v4900 = vunpack.c.l.b16 %v4812
      %v4901 = vunpack.c.h.b16 %v4812
      %v4902 = vunpack.c.l.b16 %v4813
      %v4903 = vunpack.c.h.b16 %v4813
      %v4904 = vunpack.c.l.b16 %v4814
      %v4905 = vunpack.c.h.b16 %v4814
      %v4906 = vunpack.c.l.b16 %v4815
      %v4907 = vunpack.c.h.b16 %v4815
      %v4908 = vunpack.c.l.b16 %v4816
      %v4909 = vunpack.c.h.b16 %v4816
      %v4910 = vunpack.c.l.b16 %v4817
      %v4911 = vunpack.c.h.b16 %v4817
      %v4912 = vunpack.c.l.b16 %v4818
      %v4913 = vunpack.c.h.b16 %v4818
      %v4914 = vunpack.c.l.b16 %v4819
      %v4915 = vunpack.c.h.b16 %v4819
      %v4916 = vunpack.c.l.b16 %v4820
      %v4917 = vunpack.c.h.b16 %v4820
      %v4918 = vunpack.c.l.b16 %v4821
      %v4919 = vunpack.c.h.b16 %v4821
      %v4920 = vunpack.c.l.b16 %v4822
      %v4921 = vunpack.c.h.b16 %v4822
      %v4922 = vpack.c.b16 %v4886, %v4886
      %v4923 = vpack.c.b16 %v4887, %v4887
      %v4924 = vpack.c.b16 %v4888, %v4888
      %v4925 = vpack.c.b16 %v4889, %v4889
      %v4926 = vpack.c.b16 %v4890, %v4890
      %v4927 = vpack.c.b16 %v4891, %v4891
      %v4928 = vpack.c.b16 %v4892, %v4892
      %v4929 = vpack.c.b16 %v4893, %v4893
      %v4930 = vpack.c.b16 %v4894, %v4894
      %v4931 = vpack.c.b16 %v4895, %v4895
      %v4932 = vpack.c.b16 %v4896, %v4896
      %v4933 = vpack.c.b16 %v4897, %v4897
      %v4934 = vpack.c.b16 %v4898, %v4898
      %v4935 = vpack.c.b16 %v4899, %v4899
      %v4936 = vpack.c.b16 %v4900, %v4900
      %v4937 = vpack.c.b16 %v4901, %v4901
      %v4938 = vpack.c.b16 %v4902, %v4902
      %v4939 = vpack.c.b16 %v4903, %v4903
      %v4940 = vpack.c.b16 %v4904, %v4904
      %v4941 = vpack.c.b16 %v4905, %v4905
      %v4942 = vpack.c.b16 %v4906, %v4906
      %v4943 = vpack.c.b16 %v4907, %v4907
      %v4944 = vpack.c.b16 %v4908, %v4908
      %v4945 = vpack.c.b16 %v4909, %v4909
      %v4946 = vpack.c.b16 %v4910, %v4910
      %v4947 = vpack.c.b16 %v4911, %v4911
      %v4948 = vpack.c.b16 %v4912, %v4912
      %v4949 = vpack.c.b16 %v4913, %v4913
      %v4950 = vpack.c.b16 %v4914, %v4914
      %v4951 = vpack.c.b16 %v4915, %v4915
      %v4952 = vpack.c.b16 %v4916, %v4916
      %v4953 = vpack.c.b16 %v4917, %v4917
      %v4954 = vpack.c.b16 %v4918, %v4918
      %v4955 = vpack.c.b16 %v4919, %v4919
      %v4956 = vpack.c.b16 %v4920, %v4920
      %v4957 = vpack.c.b16 %v4921, %v4921
      %vm4958 = vsmask.f32 1280
      %vm4959 = vsmask.f32 5392
      %vm4960 = vmor %vm4958, %vm4959
      %v4962 = vshrl.u32 %v4922, 16
      %v4964 = vrot.slane %v4962, 6
      %v4965 = vshll.u32 %v4922, 16
      %v4967 = vrot.slane %v4965, 7
      %v4968 = vor.u32 %v4964, %v4967
      %v4969 = vrot.slane %v4968, 4
      %v4971 = vshrl.u32 %v4923, 16
      %v4973 = vrot.slane %v4971, 6
      %v4974 = vshll.u32 %v4923, 16
      %v4976 = vrot.slane %v4974, 7
      %v4977 = vor.u32 %v4973, %v4976
      %v4978 = vsel %vm4960, %v4969, %v4977
      %v4979 = vrot.slane %v4977, 4
      %v4981 = vshrl.u32 %v4924, 16
      %v4983 = vrot.slane %v4981, 6
      %v4984 = vshll.u32 %v4924, 16
      %v4986 = vrot.slane %v4984, 7
      %v4987 = vor.u32 %v4983, %v4986
      %v4988 = vsel %vm4960, %v4979, %v4987
      %v4989 = vrot.slane %v4987, 4
      %v4991 = vshrl.u32 %v4925, 16
      %v4993 = vrot.slane %v4991, 6
      %v4994 = vshll.u32 %v4925, 16
      %v4996 = vrot.slane %v4994, 7
      %v4997 = vor.u32 %v4993, %v4996
      %v4998 = vsel %vm4960, %v4989, %v4997
      %v4999 = vrot.slane %v4997, 4
      %v5001 = vshrl.u32 %v4926, 16
      %v5003 = vrot.slane %v5001, 6
      %v5004 = vshll.u32 %v4926, 16
      %v5006 = vrot.slane %v5004, 7
      %v5007 = vor.u32 %v5003, %v5006
      %v5008 = vsel %vm4960, %v4999, %v5007
      %v5009 = vrot.slane %v5007, 4
      %v5011 = vshrl.u32 %v4927, 16
      %v5013 = vrot.slane %v5011, 6
      %v5014 = vshll.u32 %v4927, 16
      %v5016 = vrot.slane %v5014, 7
      %v5017 = vor.u32 %v5013, %v5016
      %v5018 = vsel %vm4960, %v5009, %v5017
      %v5019 = vrot.slane %v5017, 4
      %v5021 = vshrl.u32 %v4928, 16
      %v5023 = vrot.slane %v5021, 6
      %v5024 = vshll.u32 %v4928, 16
      %v5026 = vrot.slane %v5024, 7
      %v5027 = vor.u32 %v5023, %v5026
      %v5028 = vsel %vm4960, %v5019, %v5027
      %v5029 = vrot.slane %v5027, 4
      %v5031 = vshrl.u32 %v4929, 16
      %v5033 = vrot.slane %v5031, 6
      %v5034 = vshll.u32 %v4929, 16
      %v5036 = vrot.slane %v5034, 7
      %v5037 = vor.u32 %v5033, %v5036
      %v5038 = vsel %vm4960, %v5029, %v5037
      %v5039 = vrot.slane %v5037, 4
      %v5041 = vshrl.u32 %v4930, 16
      %v5043 = vrot.slane %v5041, 6
      %v5044 = vshll.u32 %v4930, 16
      %v5046 = vrot.slane %v5044, 7
      %v5047 = vor.u32 %v5043, %v5046
      %v5048 = vsel %vm4960, %v5039, %v5047
      %v5049 = vrot.slane %v5047, 4
      %v5051 = vshrl.u32 %v4931, 16
      %v5053 = vrot.slane %v5051, 6
      %v5054 = vshll.u32 %v4931, 16
      %v5056 = vrot.slane %v5054, 7
      %v5057 = vor.u32 %v5053, %v5056
      %v5058 = vsel %vm4960, %v5049, %v5057
      %v5059 = vrot.slane %v5057, 4
      %v5061 = vshrl.u32 %v4932, 16
      %v5063 = vrot.slane %v5061, 6
      %v5064 = vshll.u32 %v4932, 16
      %v5066 = vrot.slane %v5064, 7
      %v5067 = vor.u32 %v5063, %v5066
      %v5068 = vsel %vm4960, %v5059, %v5067
      %v5069 = vrot.slane %v5067, 4
      %v5071 = vshrl.u32 %v4933, 16
      %v5073 = vrot.slane %v5071, 6
      %v5074 = vshll.u32 %v4933, 16
      %v5076 = vrot.slane %v5074, 7
      %v5077 = vor.u32 %v5073, %v5076
      %v5078 = vsel %vm4960, %v5069, %v5077
      %v5079 = vrot.slane %v5077, 4
      %v5081 = vshrl.u32 %v4934, 16
      %v5083 = vrot.slane %v5081, 6
      %v5084 = vshll.u32 %v4934, 16
      %v5086 = vrot.slane %v5084, 7
      %v5087 = vor.u32 %v5083, %v5086
      %v5088 = vsel %vm4960, %v5079, %v5087
      %v5089 = vrot.slane %v5087, 4
      %v5091 = vshrl.u32 %v4935, 16
      %v5093 = vrot.slane %v5091, 6
      %v5094 = vshll.u32 %v4935, 16
      %v5096 = vrot.slane %v5094, 7
      %v5097 = vor.u32 %v5093, %v5096
      %v5098 = vsel %vm4960, %v5089, %v5097
      %v5099 = vrot.slane %v5097, 4
      %v5101 = vshrl.u32 %v4936, 16
      %v5103 = vrot.slane %v5101, 6
      %v5104 = vshll.u32 %v4936, 16
      %v5106 = vrot.slane %v5104, 7
      %v5107 = vor.u32 %v5103, %v5106
      %v5108 = vsel %vm4960, %v5099, %v5107
      %v5109 = vrot.slane %v5107, 4
      %v5111 = vshrl.u32 %v4937, 16
      %v5113 = vrot.slane %v5111, 6
      %v5114 = vshll.u32 %v4937, 16
      %v5116 = vrot.slane %v5114, 7
      %v5117 = vor.u32 %v5113, %v5116
      %v5118 = vsel %vm4960, %v5109, %v5117
      %v5119 = vrot.slane %v5117, 4
      %v5121 = vshrl.u32 %v4938, 16
      %v5123 = vrot.slane %v5121, 6
      %v5124 = vshll.u32 %v4938, 16
      %v5126 = vrot.slane %v5124, 7
      %v5127 = vor.u32 %v5123, %v5126
      %v5128 = vsel %vm4960, %v5119, %v5127
      %v5129 = vrot.slane %v5127, 4
      %v5131 = vshrl.u32 %v4939, 16
      %v5133 = vrot.slane %v5131, 6
      %v5134 = vshll.u32 %v4939, 16
      %v5136 = vrot.slane %v5134, 7
      %v5137 = vor.u32 %v5133, %v5136
      %v5138 = vsel %vm4960, %v5129, %v5137
      %v5139 = vrot.slane %v5137, 4
      %v5141 = vshrl.u32 %v4940, 16
      %v5143 = vrot.slane %v5141, 6
      %v5144 = vshll.u32 %v4940, 16
      %v5146 = vrot.slane %v5144, 7
      %v5147 = vor.u32 %v5143, %v5146
      %v5148 = vsel %vm4960, %v5139, %v5147
      %v5149 = vrot.slane %v5147, 4
      %v5151 = vshrl.u32 %v4941, 16
      %v5153 = vrot.slane %v5151, 6
      %v5154 = vshll.u32 %v4941, 16
      %v5156 = vrot.slane %v5154, 7
      %v5157 = vor.u32 %v5153, %v5156
      %v5158 = vsel %vm4960, %v5149, %v5157
      %v5159 = vrot.slane %v5157, 4
      %v5161 = vshrl.u32 %v4942, 16
      %v5163 = vrot.slane %v5161, 6
      %v5164 = vshll.u32 %v4942, 16
      %v5166 = vrot.slane %v5164, 7
      %v5167 = vor.u32 %v5163, %v5166
      %v5168 = vsel %vm4960, %v5159, %v5167
      %v5169 = vrot.slane %v5167, 4
      %v5171 = vshrl.u32 %v4943, 16
      %v5173 = vrot.slane %v5171, 6
      %v5174 = vshll.u32 %v4943, 16
      %v5176 = vrot.slane %v5174, 7
      %v5177 = vor.u32 %v5173, %v5176
      %v5178 = vsel %vm4960, %v5169, %v5177
      %v5179 = vrot.slane %v5177, 4
      %v5181 = vshrl.u32 %v4944, 16
      %v5183 = vrot.slane %v5181, 6
      %v5184 = vshll.u32 %v4944, 16
      %v5186 = vrot.slane %v5184, 7
      %v5187 = vor.u32 %v5183, %v5186
      %v5188 = vsel %vm4960, %v5179, %v5187
      %v5189 = vrot.slane %v5187, 4
      %v5191 = vshrl.u32 %v4945, 16
      %v5193 = vrot.slane %v5191, 6
      %v5194 = vshll.u32 %v4945, 16
      %v5196 = vrot.slane %v5194, 7
      %v5197 = vor.u32 %v5193, %v5196
      %v5198 = vsel %vm4960, %v5189, %v5197
      %v5199 = vrot.slane %v5197, 4
      %v5201 = vshrl.u32 %v4946, 16
      %v5203 = vrot.slane %v5201, 6
      %v5204 = vshll.u32 %v4946, 16
      %v5206 = vrot.slane %v5204, 7
      %v5207 = vor.u32 %v5203, %v5206
      %v5208 = vsel %vm4960, %v5199, %v5207
      %v5209 = vrot.slane %v5207, 4
      %v5211 = vshrl.u32 %v4947, 16
      %v5213 = vrot.slane %v5211, 6
      %v5214 = vshll.u32 %v4947, 16
      %v5216 = vrot.slane %v5214, 7
      %v5217 = vor.u32 %v5213, %v5216
      %v5218 = vsel %vm4960, %v5209, %v5217
      %v5219 = vrot.slane %v5217, 4
      %v5221 = vshrl.u32 %v4948, 16
      %v5223 = vrot.slane %v5221, 6
      %v5224 = vshll.u32 %v4948, 16
      %v5226 = vrot.slane %v5224, 7
      %v5227 = vor.u32 %v5223, %v5226
      %v5228 = vsel %vm4960, %v5219, %v5227
      %v5229 = vrot.slane %v5227, 4
      %v5231 = vshrl.u32 %v4949, 16
      %v5233 = vrot.slane %v5231, 6
      %v5234 = vshll.u32 %v4949, 16
      %v5236 = vrot.slane %v5234, 7
      %v5237 = vor.u32 %v5233, %v5236
      %v5238 = vsel %vm4960, %v5229, %v5237
      %v5239 = vrot.slane %v5237, 4
      %v5241 = vshrl.u32 %v4950, 16
      %v5243 = vrot.slane %v5241, 6
      %v5244 = vshll.u32 %v4950, 16
      %v5246 = vrot.slane %v5244, 7
      %v5247 = vor.u32 %v5243, %v5246
      %v5248 = vsel %vm4960, %v5239, %v5247
      %v5249 = vrot.slane %v5247, 4
      %v5251 = vshrl.u32 %v4951, 16
      %v5253 = vrot.slane %v5251, 6
      %v5254 = vshll.u32 %v4951, 16
      %v5256 = vrot.slane %v5254, 7
      %v5257 = vor.u32 %v5253, %v5256
      %v5258 = vsel %vm4960, %v5249, %v5257
      %v5259 = vrot.slane %v5257, 4
      %v5261 = vshrl.u32 %v4952, 16
      %v5263 = vrot.slane %v5261, 6
      %v5264 = vshll.u32 %v4952, 16
      %v5266 = vrot.slane %v5264, 7
      %v5267 = vor.u32 %v5263, %v5266
      %v5268 = vsel %vm4960, %v5259, %v5267
      %v5269 = vrot.slane %v5267, 4
      %v5271 = vshrl.u32 %v4953, 16
      %v5273 = vrot.slane %v5271, 6
      %v5274 = vshll.u32 %v4953, 16
      %v5276 = vrot.slane %v5274, 7
      %v5277 = vor.u32 %v5273, %v5276
      %v5278 = vsel %vm4960, %v5269, %v5277
      %v5279 = vrot.slane %v5277, 4
      %v5281 = vshrl.u32 %v4954, 16
      %v5283 = vrot.slane %v5281, 6
      %v5284 = vshll.u32 %v4954, 16
      %v5286 = vrot.slane %v5284, 7
      %v5287 = vor.u32 %v5283, %v5286
      %v5288 = vsel %vm4960, %v5279, %v5287
      %v5289 = vrot.slane %v5287, 4
      %v5291 = vshrl.u32 %v4955, 16
      %v5293 = vrot.slane %v5291, 6
      %v5294 = vshll.u32 %v4955, 16
      %v5296 = vrot.slane %v5294, 7
      %v5297 = vor.u32 %v5293, %v5296
      %v5298 = vsel %vm4960, %v5289, %v5297
      %v5299 = vrot.slane %v5297, 4
      %v5301 = vshrl.u32 %v4956, 16
      %v5303 = vrot.slane %v5301, 6
      %v5304 = vshll.u32 %v4956, 16
      %v5306 = vrot.slane %v5304, 7
      %v5307 = vor.u32 %v5303, %v5306
      %v5308 = vsel %vm4960, %v5299, %v5307
      %v5309 = vrot.slane %v5307, 4
      %v5311 = vshrl.u32 %v4957, 16
      %v5313 = vrot.slane %v5311, 6
      %v5314 = vshll.u32 %v4957, 16
      %v5316 = vrot.slane %v5314, 7
      %v5317 = vor.u32 %v5313, %v5316
      %v5318 = vsel %vm4960, %v5309, %v5317
      %v5319 = vrot.slane %v5317, 4
      %vm5357 = vcmask 519169
      %vm5358 = vsmask.f32 7942
      %vm5359 = vmand %vm5357, %vm5358
      %v5360 = vld [vmem:[#allocation2 + $0x8] sm:$0xe]
      %v5361 = vsel %vm5359, %v4968, %v5360
      %5362 = vst [vmem:[#allocation2 + $0x8] sm:$0xe] %v5361
      %5363 = vst.msk [vmem:[#allocation2 + $0xc] sm:$0xf] %vm4823, %v4978
      %5364 = vst.msk [vmem:[#allocation2 + $0x10] sm:$0xf] %vm4823, %v4988
      %5365 = vst.msk [vmem:[#allocation2 + $0x14] sm:$0xf] %vm4823, %v4998
      %5366 = vst.msk [vmem:[#allocation2 + $0x18] sm:$0xf] %vm4823, %v5008
      %5367 = vst.msk [vmem:[#allocation2 + $0x1c] sm:$0xf] %vm4823, %v5018
      %5368 = vst.msk [vmem:[#allocation2 + $0x20] sm:$0xf] %vm4823, %v5028
      %5369 = vst.msk [vmem:[#allocation2 + $0x24] sm:$0xf] %vm4823, %v5038
      %5370 = vst.msk [vmem:[#allocation2 + $0x28] sm:$0xf] %vm4823, %v5048
      %5371 = vst.msk [vmem:[#allocation2 + $0x2c] sm:$0xf] %vm4823, %v5058
      %5372 = vst.msk [vmem:[#allocation2 + $0x30] sm:$0xf] %vm4823, %v5068
      %5373 = vst.msk [vmem:[#allocation2 + $0x34] sm:$0xf] %vm4823, %v5078
      %5374 = vst.msk [vmem:[#allocation2 + $0x38] sm:$0xf] %vm4823, %v5088
      %5375 = vst.msk [vmem:[#allocation2 + $0x3c] sm:$0xf] %vm4823, %v5098
      %5376 = vst.msk [vmem:[#allocation2 + $0x40] sm:$0xf] %vm4823, %v5108
      %5377 = vst.msk [vmem:[#allocation2 + $0x44] sm:$0xf] %vm4823, %v5118
      %5378 = vst.msk [vmem:[#allocation2 + $0x48] sm:$0xf] %vm4823, %v5128
      %5379 = vst.msk [vmem:[#allocation2 + $0x4c] sm:$0xf] %vm4823, %v5138
      %5380 = vst.msk [vmem:[#allocation2 + $0x50] sm:$0xf] %vm4823, %v5148
      %5381 = vst.msk [vmem:[#allocation2 + $0x54] sm:$0xf] %vm4823, %v5158
      %5382 = vst.msk [vmem:[#allocation2 + $0x58] sm:$0xf] %vm4823, %v5168
      %5383 = vst.msk [vmem:[#allocation2 + $0x5c] sm:$0xf] %vm4823, %v5178
      %5384 = vst.msk [vmem:[#allocation2 + $0x60] sm:$0xf] %vm4823, %v5188
      %5385 = vst.msk [vmem:[#allocation2 + $0x64] sm:$0xf] %vm4823, %v5198
      %5386 = vst.msk [vmem:[#allocation2 + $0x68] sm:$0xf] %vm4823, %v5208
      %5387 = vst.msk [vmem:[#allocation2 + $0x6c] sm:$0xf] %vm4823, %v5218
      %5388 = vst.msk [vmem:[#allocation2 + $0x70] sm:$0xf] %vm4823, %v5228
      %5389 = vst.msk [vmem:[#allocation2 + $0x74] sm:$0xf] %vm4823, %v5238
      %5390 = vst.msk [vmem:[#allocation2 + $0x78] sm:$0xf] %vm4823, %v5248
      %5391 = vst.msk [vmem:[#allocation2 + $0x7c] sm:$0xf] %vm4823, %v5258
      %5392 = vst.msk [vmem:[#allocation2 + $0x80] sm:$0xf] %vm4823, %v5268
      %5393 = vst.msk [vmem:[#allocation2 + $0x84] sm:$0xf] %vm4823, %v5278
      %5394 = vst.msk [vmem:[#allocation2 + $0x88] sm:$0xf] %vm4823, %v5288
      %5395 = vst.msk [vmem:[#allocation2 + $0x8c] sm:$0xf] %vm4823, %v5298
      %5396 = vst.msk [vmem:[#allocation2 + $0x90] sm:$0xf] %vm4823, %v5308
      %5397 = vst.msk [vmem:[#allocation2 + $0x94] sm:$0xf] %vm4823, %v5318
      %vm5398 = vcmask 517120
      %vm5399 = vmand %vm5398, %vm4958
      %v5400 = vld [vmem:[#allocation2 + $0x98] sm:$0x3]
      %v5401 = vsel %vm5399, %v5319, %v5400
      %5402 = vst [vmem:[#allocation2 + $0x98] sm:$0x3] %v5401
      %v5403 = vld [vmem:[%s5] sm:$0x1]
      %v5405 = vlaneseq
      %v5406 = vshrl.u32 %v5405, 7
      %v5407 = vsub.s32 0, %v5406
      %v5408 = vrot.slane %v5403, %v5407
      %v5410 = vld [vmem:[%s246 + $0x8] sm:$0xe]
      %v5411 = vld [vmem:[%s246 + $0xc] sm:$0xf]
      %v5412 = vld [vmem:[%s246 + $0x10] sm:$0xf]
      %v5413 = vld [vmem:[%s246 + $0x14] sm:$0xf]
      %v5414 = vld [vmem:[%s246 + $0x18] sm:$0xf]
      %v5415 = vld [vmem:[%s246 + $0x1c] sm:$0xf]
      %v5416 = vld [vmem:[%s246 + $0x20] sm:$0xf]
      %v5417 = vld [vmem:[%s246 + $0x24] sm:$0xf]
      %v5418 = vld [vmem:[%s246 + $0x28] sm:$0xf]
      %v5419 = vld [vmem:[%s246 + $0x2c] sm:$0xf]
      %v5420 = vld [vmem:[%s246 + $0x30] sm:$0xf]
      %v5421 = vld [vmem:[%s246 + $0x34] sm:$0xf]
      %v5422 = vld [vmem:[%s246 + $0x38] sm:$0xf]
      %v5423 = vld [vmem:[%s246 + $0x3c] sm:$0xf]
      %v5424 = vld [vmem:[%s246 + $0x40] sm:$0xf]
      %v5425 = vld [vmem:[%s246 + $0x44] sm:$0xf]
      %v5426 = vld [vmem:[%s246 + $0x48] sm:$0xf]
      %v5427 = vld [vmem:[%s246 + $0x4c] sm:$0xf]
      %v5428 = vld [vmem:[%s246 + $0x50] sm:$0xf]
      %v5429 = vld [vmem:[%s246 + $0x54] sm:$0xf]
      %v5430 = vld [vmem:[%s246 + $0x58] sm:$0xf]
      %v5431 = vld [vmem:[%s246 + $0x5c] sm:$0xf]
      %v5432 = vld [vmem:[%s246 + $0x60] sm:$0xf]
      %v5433 = vld [vmem:[%s246 + $0x64] sm:$0xf]
      %v5434 = vld [vmem:[%s246 + $0x68] sm:$0xf]
      %v5435 = vld [vmem:[%s246 + $0x6c] sm:$0xf]
      %v5436 = vld [vmem:[%s246 + $0x70] sm:$0xf]
      %v5437 = vld [vmem:[%s246 + $0x74] sm:$0xf]
      %v5438 = vld [vmem:[%s246 + $0x78] sm:$0xf]
      %v5439 = vld [vmem:[%s246 + $0x7c] sm:$0xf]
      %v5440 = vld [vmem:[%s246 + $0x80] sm:$0xf]
      %v5441 = vld [vmem:[%s246 + $0x84] sm:$0xf]
      %v5442 = vld [vmem:[%s246 + $0x88] sm:$0xf]
      %v5443 = vld [vmem:[%s246 + $0x8c] sm:$0xf]
      %v5444 = vld [vmem:[%s246 + $0x90] sm:$0xf]
      %v5445 = vld [vmem:[%s246 + $0x94] sm:$0xf]
      %v5446 = vld [vmem:[%s246 + $0x98] sm:$0x3]
      %v5447 = vunpack.c.l.bf16 %v5410
      %v5448 = vunpack.c.l.bf16 %v5411
      %v5449 = vunpack.c.l.bf16 %v5412
      %v5450 = vunpack.c.l.bf16 %v5413
      %v5451 = vunpack.c.l.bf16 %v5414
      %v5452 = vunpack.c.l.bf16 %v5415
      %v5453 = vunpack.c.l.bf16 %v5416
      %v5454 = vunpack.c.l.bf16 %v5417
      %v5455 = vunpack.c.l.bf16 %v5418
      %v5456 = vunpack.c.l.bf16 %v5419
      %v5457 = vunpack.c.l.bf16 %v5420
      %v5458 = vunpack.c.l.bf16 %v5421
      %v5459 = vunpack.c.l.bf16 %v5422
      %v5460 = vunpack.c.l.bf16 %v5423
      %v5461 = vunpack.c.l.bf16 %v5424
      %v5462 = vunpack.c.l.bf16 %v5425
      %v5463 = vunpack.c.l.bf16 %v5426
      %v5464 = vunpack.c.l.bf16 %v5427
      %v5465 = vunpack.c.l.bf16 %v5428
      %v5466 = vunpack.c.l.bf16 %v5429
      %v5467 = vunpack.c.l.bf16 %v5430
      %v5468 = vunpack.c.l.bf16 %v5431
      %v5469 = vunpack.c.l.bf16 %v5432
      %v5470 = vunpack.c.l.bf16 %v5433
      %v5471 = vunpack.c.l.bf16 %v5434
      %v5472 = vunpack.c.l.bf16 %v5435
      %v5473 = vunpack.c.l.bf16 %v5436
      %v5474 = vunpack.c.l.bf16 %v5437
      %v5475 = vunpack.c.l.bf16 %v5438
      %v5476 = vunpack.c.l.bf16 %v5439
      %v5477 = vunpack.c.l.bf16 %v5440
      %v5478 = vunpack.c.l.bf16 %v5441
      %v5479 = vunpack.c.l.bf16 %v5442
      %v5480 = vunpack.c.l.bf16 %v5443
      %v5481 = vunpack.c.l.bf16 %v5444
      %v5482 = vunpack.c.l.bf16 %v5445
      %v5483 = vunpack.c.l.bf16 %v5446
      %v5484 = vadd.f32 %v5408, %v5447
      %v5485 = vadd.f32 %v5408, %v5448
      %v5486 = vadd.f32 %v5408, %v5449
      %v5487 = vadd.f32 %v5408, %v5450
      %v5488 = vadd.f32 %v5408, %v5451
      %v5489 = vadd.f32 %v5408, %v5452
      %v5490 = vadd.f32 %v5408, %v5453
      %v5491 = vadd.f32 %v5408, %v5454
      %v5492 = vadd.f32 %v5408, %v5455
      %v5493 = vadd.f32 %v5408, %v5456
      %v5494 = vadd.f32 %v5408, %v5457
      %v5495 = vadd.f32 %v5408, %v5458
      %v5496 = vadd.f32 %v5408, %v5459
      %v5497 = vadd.f32 %v5408, %v5460
      %v5498 = vadd.f32 %v5408, %v5461
      %v5499 = vadd.f32 %v5408, %v5462
      %v5500 = vadd.f32 %v5408, %v5463
      %v5501 = vadd.f32 %v5408, %v5464
      %v5502 = vadd.f32 %v5408, %v5465
      %v5503 = vadd.f32 %v5408, %v5466
      %v5504 = vadd.f32 %v5408, %v5467
      %v5505 = vadd.f32 %v5408, %v5468
      %v5506 = vadd.f32 %v5408, %v5469
      %v5507 = vadd.f32 %v5408, %v5470
      %v5508 = vadd.f32 %v5408, %v5471
      %v5509 = vadd.f32 %v5408, %v5472
      %v5510 = vadd.f32 %v5408, %v5473
      %v5511 = vadd.f32 %v5408, %v5474
      %v5512 = vadd.f32 %v5408, %v5475
      %v5513 = vadd.f32 %v5408, %v5476
      %v5514 = vadd.f32 %v5408, %v5477
      %v5515 = vadd.f32 %v5408, %v5478
      %v5516 = vadd.f32 %v5408, %v5479
      %v5517 = vadd.f32 %v5408, %v5480
      %v5518 = vadd.f32 %v5408, %v5481
      %v5519 = vadd.f32 %v5408, %v5482
      %v5520 = vadd.f32 %v5408, %v5483
      %v5521 = vld [vmem:[#allocation2] sm:$0xf]
      %v5522 = vld [vmem:[#allocation2 + $0x4] sm:$0xf]
      %v5523 = vld [vmem:[#allocation2 + $0x8] sm:$0xf]
      %v5524 = vld [vmem:[#allocation2 + $0xc] sm:$0xf]
      %v5525 = vld [vmem:[#allocation2 + $0x10] sm:$0xf]
      %v5526 = vld [vmem:[#allocation2 + $0x14] sm:$0xf]
      %v5527 = vld [vmem:[#allocation2 + $0x18] sm:$0xf]
      %v5528 = vld [vmem:[#allocation2 + $0x1c] sm:$0xf]
      %v5529 = vld [vmem:[#allocation2 + $0x20] sm:$0xf]
      %v5530 = vld [vmem:[#allocation2 + $0x24] sm:$0xf]
      %v5531 = vld [vmem:[#allocation2 + $0x28] sm:$0xf]
      %v5532 = vld [vmem:[#allocation2 + $0x2c] sm:$0xf]
      %v5533 = vld [vmem:[#allocation2 + $0x30] sm:$0xf]
      %v5534 = vld [vmem:[#allocation2 + $0x34] sm:$0xf]
      %v5535 = vld [vmem:[#allocation2 + $0x38] sm:$0xf]
      %v5536 = vld [vmem:[#allocation2 + $0x3c] sm:$0xf]
      %v5537 = vld [vmem:[#allocation2 + $0x40] sm:$0xf]
      %v5538 = vld [vmem:[#allocation2 + $0x44] sm:$0xf]
      %v5539 = vld [vmem:[#allocation2 + $0x48] sm:$0xf]
      %v5540 = vld [vmem:[#allocation2 + $0x4c] sm:$0xf]
      %v5541 = vld [vmem:[#allocation2 + $0x50] sm:$0xf]
      %v5542 = vld [vmem:[#allocation2 + $0x54] sm:$0xf]
      %v5543 = vld [vmem:[#allocation2 + $0x58] sm:$0xf]
      %v5544 = vld [vmem:[#allocation2 + $0x5c] sm:$0xf]
      %v5545 = vld [vmem:[#allocation2 + $0x60] sm:$0xf]
      %v5546 = vld [vmem:[#allocation2 + $0x64] sm:$0xf]
      %v5547 = vld [vmem:[#allocation2 + $0x68] sm:$0xf]
      %v5548 = vld [vmem:[#allocation2 + $0x6c] sm:$0xf]
      %v5549 = vld [vmem:[#allocation2 + $0x70] sm:$0xf]
      %v5550 = vld [vmem:[#allocation2 + $0x74] sm:$0xf]
      %v5551 = vld [vmem:[#allocation2 + $0x78] sm:$0xf]
      %v5552 = vld [vmem:[#allocation2 + $0x7c] sm:$0xf]
      %v5553 = vld [vmem:[#allocation2 + $0x80] sm:$0xf]
      %v5554 = vld [vmem:[#allocation2 + $0x84] sm:$0xf]
      %v5555 = vld [vmem:[#allocation2 + $0x88] sm:$0xf]
      %v5556 = vld [vmem:[#allocation2 + $0x8c] sm:$0xf]
      %v5557 = vld [vmem:[%s4] sm:$0xf]
      %v5558 = vld [vmem:[%s4 + $0x4] sm:$0xf]
      %v5559 = vld [vmem:[%s4 + $0x8] sm:$0xf]
      %v5560 = vld [vmem:[%s4 + $0xc] sm:$0xf]
      %v5561 = vld [vmem:[%s4 + $0x10] sm:$0xf]
      %v5562 = vld [vmem:[%s4 + $0x14] sm:$0xf]
      %v5563 = vld [vmem:[%s4 + $0x18] sm:$0xf]
      %v5564 = vld [vmem:[%s4 + $0x1c] sm:$0xf]
      %v5601 = vunpack.c.l.b16 %v5521
      %v5602 = vunpack.c.l.b16 %v5522
      %v5603 = vunpack.c.l.b16 %v5523
      %v5604 = vunpack.c.l.b16 %v5524
      %v5605 = vunpack.c.l.b16 %v5525
      %v5606 = vunpack.c.l.b16 %v5526
      %v5607 = vunpack.c.l.b16 %v5527
      %v5608 = vunpack.c.l.b16 %v5528
      %v5609 = vunpack.c.l.b16 %v5529
      %v5610 = vunpack.c.l.b16 %v5530
      %v5611 = vunpack.c.l.b16 %v5531
      %v5612 = vunpack.c.l.b16 %v5532
      %v5613 = vunpack.c.l.b16 %v5533
      %v5614 = vunpack.c.l.b16 %v5534
      %v5615 = vunpack.c.l.b16 %v5535
      %v5616 = vunpack.c.l.b16 %v5536
      %v5617 = vunpack.c.l.b16 %v5537
      %v5618 = vunpack.c.l.b16 %v5538
      %v5619 = vunpack.c.l.b16 %v5539
      %v5620 = vunpack.c.l.b16 %v5540
      %v5621 = vunpack.c.l.b16 %v5541
      %v5622 = vunpack.c.l.b16 %v5542
      %v5623 = vunpack.c.l.b16 %v5543
      %v5624 = vunpack.c.l.b16 %v5544
      %v5625 = vunpack.c.l.b16 %v5545
      %v5626 = vunpack.c.l.b16 %v5546
      %v5627 = vunpack.c.l.b16 %v5547
      %v5628 = vunpack.c.l.b16 %v5548
      %v5629 = vunpack.c.l.b16 %v5549
      %v5630 = vunpack.c.l.b16 %v5550
      %v5631 = vunpack.c.l.b16 %v5551
      %v5632 = vunpack.c.l.b16 %v5552
      %v5633 = vunpack.c.l.b16 %v5553
      %v5634 = vunpack.c.l.b16 %v5554
      %v5635 = vunpack.c.l.b16 %v5555
      %v5636 = vunpack.c.l.b16 %v5556
      %v5637 = vpack.c.b16 %v5602, %v5601
      %v5638 = vpack.c.b16 %v5604, %v5603
      %v5639 = vpack.c.b16 %v5606, %v5605
      %v5640 = vpack.c.b16 %v5608, %v5607
      %v5641 = vpack.c.b16 %v5610, %v5609
      %v5642 = vpack.c.b16 %v5612, %v5611
      %v5643 = vpack.c.b16 %v5614, %v5613
      %v5644 = vpack.c.b16 %v5616, %v5615
      %v5645 = vpack.c.b16 %v5618, %v5617
      %v5646 = vpack.c.b16 %v5620, %v5619
      %v5647 = vpack.c.b16 %v5622, %v5621
      %v5648 = vpack.c.b16 %v5624, %v5623
      %v5649 = vpack.c.b16 %v5626, %v5625
      %v5650 = vpack.c.b16 %v5628, %v5627
      %v5651 = vpack.c.b16 %v5630, %v5629
      %v5652 = vpack.c.b16 %v5632, %v5631
      %v5653 = vpack.c.b16 %v5634, %v5633
      %v5654 = vpack.c.b16 %v5636, %v5635
      %v5663 = vunpack.c.l.b16 %v5557
      %v5664 = vunpack.c.l.b16 %v5558
      %v5665 = vunpack.c.l.b16 %v5559
      %v5666 = vunpack.c.l.b16 %v5560
      %v5667 = vunpack.c.l.b16 %v5561
      %v5668 = vunpack.c.l.b16 %v5562
      %v5669 = vunpack.c.l.b16 %v5563
      %v5670 = vunpack.c.l.b16 %v5564
      %v5671 = vpack.c.b16 %v5664, %v5663
      %v5672 = vpack.c.b16 %v5666, %v5665
      %v5673 = vpack.c.b16 %v5668, %v5667
      %v5674 = vpack.c.b16 %v5670, %v5669
      %v5680 = vsel %vm454, %v5637, 0
      %v5683 = vsel %vm454, %v5638, 0
      %v5686 = vsel %vm454, %v5639, 0
      %v5689 = vsel %vm454, %v5640, 0
      %v5692 = vsel %vm454, %v5641, 0
      %v5695 = vsel %vm454, %v5642, 0
      %v5698 = vsel %vm454, %v5643, 0
      %v5701 = vsel %vm454, %v5644, 0
      %v5704 = vsel %vm454, %v5645, 0
      %v5707 = vsel %vm454, %v5646, 0
      %v5710 = vsel %vm454, %v5647, 0
      %v5713 = vsel %vm454, %v5648, 0
      %v5716 = vsel %vm454, %v5649, 0
      %v5719 = vsel %vm454, %v5650, 0
      %v5722 = vsel %vm454, %v5651, 0
      %v5725 = vsel %vm454, %v5652, 0
      %v5728 = vsel %vm454, %v5653, 0
      %v5731 = vsel %vm454, %v5654, 0
      %5733 = vmatprep.subr.bf16.mxu0 0
      %5734 = vmatpush1.bf16.msra.mxu0 %v5671
      %5735 = vmatprep.subr.bf16.mxu0 0
      %5736 = vmatpush1.bf16.msra.mxu0 %v5672
      %5737 = vmatprep.subr.bf16.mxu0 0
      %5738 = vmatpush1.bf16.msra.mxu0 %v5673
      %5739 = vmatprep.subr.bf16.mxu0 0
      %5740 = vmatpush1.bf16.msra.mxu0 %v5674
      %5741 = vmatprep.subr.bf16.mxu0 0
      %5742 = vmatpush1.bf16.msra.mxu0 0
      %5743 = vmatprep.subr.bf16.mxu0 0
      %5744 = vmatpush1.bf16.msra.mxu0 0
      %5745 = vmatprep.subr.bf16.mxu0 0
      %5746 = vmatpush1.bf16.msra.mxu0 0
      %5747 = vmatprep.subr.bf16.mxu0 0
      %5748 = vmatpush1.bf16.msra.mxu0 0
      %5749 = vmatprep.subr.bf16.mxu0 0
      %5750 = vmatpush1.bf16.msra.mxu0 0
      %5751 = vmatprep.subr.bf16.mxu0 0
      %5752 = vmatpush1.bf16.msra.mxu0 0
      %5753 = vmatprep.subr.bf16.mxu0 0
      %5754 = vmatpush1.bf16.msra.mxu0 0
      %5755 = vmatprep.subr.bf16.mxu0 0
      %5756 = vmatpush1.bf16.msra.mxu0 0
      %5757 = vmatprep.subr.bf16.mxu0 0
      %5758 = vmatpush1.bf16.msra.mxu0 0
      %5759 = vmatprep.subr.bf16.mxu0 0
      %5760 = vmatpush1.bf16.msra.mxu0 0
      %5761 = vmatprep.subr.bf16.mxu0 0
      %5762 = vmatpush1.bf16.msra.mxu0 0
      %5763 = vmatprep.subr.bf16.mxu0 0
      %5764 = vmatpush1.bf16.msra.mxu0 0
      %5765 = vmatprep.mubr.bf16.mxu0 0
      %5766 = vmatmul.mubr.bf16.gmra.mrb[0].mxu0 %v5680
      %v5767 = vpop.f32.mrb[0].mxu0
      %v5768 = vadd.f32 0.0, %v5767
      %v5769 = vpop.f32.mrb[0].mxu0
      %v5770 = vpop.f32.mrb[0].mxu0
      %v5771 = vadd.f32 0.0, %v5770
      %v5772 = vpop.f32.mrb[0].mxu0
      %5773 = vmatprep.mubr.bf16.mxu0 0
      %5774 = vmatmul.mubr.bf16.gmra.mrb[0].mxu0 %v5683
      %v5775 = vpop.f32.mrb[0].mxu0
      %v5776 = vadd.f32 0.0, %v5775
      %v5777 = vpop.f32.mrb[0].mxu0
      %v5778 = vpop.f32.mrb[0].mxu0
      %v5779 = vadd.f32 0.0, %v5778
      %v5780 = vpop.f32.mrb[0].mxu0
      %5781 = vmatprep.mubr.bf16.mxu0 0
      %5782 = vmatmul.mubr.bf16.gmra.mrb[0].mxu0 %v5686
      %v5783 = vpop.f32.mrb[0].mxu0
      %v5784 = vadd.f32 0.0, %v5783
      %v5785 = vpop.f32.mrb[0].mxu0
      %v5786 = vpop.f32.mrb[0].mxu0
      %v5787 = vadd.f32 0.0, %v5786
      %v5788 = vpop.f32.mrb[0].mxu0
      %5789 = vmatprep.mubr.bf16.mxu0 0
      %5790 = vmatmul.mubr.bf16.gmra.mrb[0].mxu0 %v5689
      %v5791 = vpop.f32.mrb[0].mxu0
      %v5792 = vadd.f32 0.0, %v5791
      %v5793 = vpop.f32.mrb[0].mxu0
      %v5794 = vpop.f32.mrb[0].mxu0
      %v5795 = vadd.f32 0.0, %v5794
      %v5796 = vpop.f32.mrb[0].mxu0
      %5797 = vmatprep.mubr.bf16.mxu0 0
      %5798 = vmatmul.mubr.bf16.gmra.mrb[0].mxu0 %v5692
      %v5799 = vpop.f32.mrb[0].mxu0
      %v5800 = vadd.f32 0.0, %v5799
      %v5801 = vpop.f32.mrb[0].mxu0
      %v5802 = vpop.f32.mrb[0].mxu0
      %v5803 = vadd.f32 0.0, %v5802
      %v5804 = vpop.f32.mrb[0].mxu0
      %5805 = vmatprep.mubr.bf16.mxu0 0
      %5806 = vmatmul.mubr.bf16.gmra.mrb[0].mxu0 %v5695
      %v5807 = vpop.f32.mrb[0].mxu0
      %v5808 = vadd.f32 0.0, %v5807
      %v5809 = vpop.f32.mrb[0].mxu0
      %v5810 = vpop.f32.mrb[0].mxu0
      %v5811 = vadd.f32 0.0, %v5810
      %v5812 = vpop.f32.mrb[0].mxu0
      %5813 = vmatprep.mubr.bf16.mxu0 0
      %5814 = vmatmul.mubr.bf16.gmra.mrb[0].mxu0 %v5698
      %v5815 = vpop.f32.mrb[0].mxu0
      %v5816 = vadd.f32 0.0, %v5815
      %v5817 = vpop.f32.mrb[0].mxu0
      %v5818 = vpop.f32.mrb[0].mxu0
      %v5819 = vadd.f32 0.0, %v5818
      %v5820 = vpop.f32.mrb[0].mxu0
      %5821 = vmatprep.mubr.bf16.mxu0 0
      %5822 = vmatmul.mubr.bf16.gmra.mrb[0].mxu0 %v5701
      %v5823 = vpop.f32.mrb[0].mxu0
      %v5824 = vadd.f32 0.0, %v5823
      %v5825 = vpop.f32.mrb[0].mxu0
      %v5826 = vpop.f32.mrb[0].mxu0
      %v5827 = vadd.f32 0.0, %v5826
      %v5828 = vpop.f32.mrb[0].mxu0
      %5829 = vmatprep.mubr.bf16.mxu0 0
      %5830 = vmatmul.mubr.bf16.gmra.mrb[0].mxu0 %v5704
      %v5831 = vpop.f32.mrb[0].mxu0
      %v5832 = vadd.f32 0.0, %v5831
      %v5833 = vpop.f32.mrb[0].mxu0
      %v5834 = vpop.f32.mrb[0].mxu0
      %v5835 = vadd.f32 0.0, %v5834
      %v5836 = vpop.f32.mrb[0].mxu0
      %5837 = vmatprep.mubr.bf16.mxu0 0
      %5838 = vmatmul.mubr.bf16.gmra.mrb[0].mxu0 %v5707
      %v5839 = vpop.f32.mrb[0].mxu0
      %v5840 = vadd.f32 0.0, %v5839
      %v5841 = vpop.f32.mrb[0].mxu0
      %v5842 = vpop.f32.mrb[0].mxu0
      %v5843 = vadd.f32 0.0, %v5842
      %v5844 = vpop.f32.mrb[0].mxu0
      %5845 = vmatprep.mubr.bf16.mxu0 0
      %5846 = vmatmul.mubr.bf16.gmra.mrb[0].mxu0 %v5710
      %v5847 = vpop.f32.mrb[0].mxu0
      %v5848 = vadd.f32 0.0, %v5847
      %v5849 = vpop.f32.mrb[0].mxu0
      %v5850 = vpop.f32.mrb[0].mxu0
      %v5851 = vadd.f32 0.0, %v5850
      %v5852 = vpop.f32.mrb[0].mxu0
      %5853 = vmatprep.mubr.bf16.mxu0 0
      %5854 = vmatmul.mubr.bf16.gmra.mrb[0].mxu0 %v5713
      %v5855 = vpop.f32.mrb[0].mxu0
      %v5856 = vadd.f32 0.0, %v5855
      %v5857 = vpop.f32.mrb[0].mxu0
      %v5858 = vpop.f32.mrb[0].mxu0
      %v5859 = vadd.f32 0.0, %v5858
      %v5860 = vpop.f32.mrb[0].mxu0
      %5861 = vmatprep.mubr.bf16.mxu0 0
      %5862 = vmatmul.mubr.bf16.gmra.mrb[0].mxu0 %v5716
      %v5863 = vpop.f32.mrb[0].mxu0
      %v5864 = vadd.f32 0.0, %v5863
      %v5865 = vpop.f32.mrb[0].mxu0
      %v5866 = vpop.f32.mrb[0].mxu0
      %v5867 = vadd.f32 0.0, %v5866
      %v5868 = vpop.f32.mrb[0].mxu0
      %5869 = vmatprep.mubr.bf16.mxu0 0
      %5870 = vmatmul.mubr.bf16.gmra.mrb[0].mxu0 %v5719
      %v5871 = vpop.f32.mrb[0].mxu0
      %v5872 = vadd.f32 0.0, %v5871
      %v5873 = vpop.f32.mrb[0].mxu0
      %v5874 = vpop.f32.mrb[0].mxu0
      %v5875 = vadd.f32 0.0, %v5874
      %v5876 = vpop.f32.mrb[0].mxu0
      %5877 = vmatprep.mubr.bf16.mxu0 0
      %5878 = vmatmul.mubr.bf16.gmra.mrb[0].mxu0 %v5722
      %v5879 = vpop.f32.mrb[0].mxu0
      %v5880 = vadd.f32 0.0, %v5879
      %v5881 = vpop.f32.mrb[0].mxu0
      %v5882 = vpop.f32.mrb[0].mxu0
      %v5883 = vadd.f32 0.0, %v5882
      %v5884 = vpop.f32.mrb[0].mxu0
      %5885 = vmatprep.mubr.bf16.mxu0 0
      %5886 = vmatmul.mubr.bf16.gmra.mrb[0].mxu0 %v5725
      %v5887 = vpop.f32.mrb[0].mxu0
      %v5888 = vadd.f32 0.0, %v5887
      %v5889 = vpop.f32.mrb[0].mxu0
      %v5890 = vpop.f32.mrb[0].mxu0
      %v5891 = vadd.f32 0.0, %v5890
      %v5892 = vpop.f32.mrb[0].mxu0
      %5893 = vmatprep.mubr.bf16.mxu0 0
      %5894 = vmatmul.mubr.bf16.gmra.mrb[0].mxu0 %v5728
      %v5895 = vpop.f32.mrb[0].mxu0
      %v5896 = vadd.f32 0.0, %v5895
      %v5897 = vpop.f32.mrb[0].mxu0
      %v5898 = vpop.f32.mrb[0].mxu0
      %v5899 = vadd.f32 0.0, %v5898
      %v5900 = vpop.f32.mrb[0].mxu0
      %5901 = vmatprep.mubr.bf16.mxu0 0
      %5902 = vmatmul.mubr.bf16.gmra.mrb[0].mxu0 %v5731
      %v5903 = vpop.f32.mrb[0].mxu0
      %v5904 = vadd.f32 0.0, %v5903
      %v5905 = vpop.f32.mrb[0].mxu0
      %v5906 = vpop.f32.mrb[0].mxu0
      %v5907 = vadd.f32 0.0, %v5906
      %v5908 = vpop.f32.mrb[0].mxu0
      %5909 = vdwg.mxu0
      %vm5946 = vcmask 1042432
      %v5947 = vrot.slane %v5768, 5
      %v5948 = vrot.slane %v5771, 5
      %v5949 = vsel %vm5946, %v5947, %v5948
      %v5950 = vrot.slane %v5776, 5
      %v5951 = vsel %vm5946, %v5948, %v5950
      %v5952 = vrot.slane %v5779, 5
      %v5953 = vsel %vm5946, %v5950, %v5952
      %v5954 = vrot.slane %v5784, 5
      %v5955 = vsel %vm5946, %v5952, %v5954
      %v5956 = vrot.slane %v5787, 5
      %v5957 = vsel %vm5946, %v5954, %v5956
      %v5958 = vrot.slane %v5792, 5
      %v5959 = vsel %vm5946, %v5956, %v5958
      %v5960 = vrot.slane %v5795, 5
      %v5961 = vsel %vm5946, %v5958, %v5960
      %v5962 = vrot.slane %v5800, 5
      %v5963 = vsel %vm5946, %v5960, %v5962
      %v5964 = vrot.slane %v5803, 5
      %v5965 = vsel %vm5946, %v5962, %v5964
      %v5966 = vrot.slane %v5808, 5
      %v5967 = vsel %vm5946, %v5964, %v5966
      %v5968 = vrot.slane %v5811, 5
      %v5969 = vsel %vm5946, %v5966, %v5968
      %v5970 = vrot.slane %v5816, 5
      %v5971 = vsel %vm5946, %v5968, %v5970
      %v5972 = vrot.slane %v5819, 5
      %v5973 = vsel %vm5946, %v5970, %v5972
      %v5974 = vrot.slane %v5824, 5
      %v5975 = vsel %vm5946, %v5972, %v5974
      %v5976 = vrot.slane %v5827, 5
      %v5977 = vsel %vm5946, %v5974, %v5976
      %v5978 = vrot.slane %v5832, 5
      %v5979 = vsel %vm5946, %v5976, %v5978
      %v5980 = vrot.slane %v5835, 5
      %v5981 = vsel %vm5946, %v5978, %v5980
      %v5982 = vrot.slane %v5840, 5
      %v5983 = vsel %vm5946, %v5980, %v5982
      %v5984 = vrot.slane %v5843, 5
      %v5985 = vsel %vm5946, %v5982, %v5984
      %v5986 = vrot.slane %v5848, 5
      %v5987 = vsel %vm5946, %v5984, %v5986
      %v5988 = vrot.slane %v5851, 5
      %v5989 = vsel %vm5946, %v5986, %v5988
      %v5990 = vrot.slane %v5856, 5
      %v5991 = vsel %vm5946, %v5988, %v5990
      %v5992 = vrot.slane %v5859, 5
      %v5993 = vsel %vm5946, %v5990, %v5992
      %v5994 = vrot.slane %v5864, 5
      %v5995 = vsel %vm5946, %v5992, %v5994
      %v5996 = vrot.slane %v5867, 5
      %v5997 = vsel %vm5946, %v5994, %v5996
      %v5998 = vrot.slane %v5872, 5
      %v5999 = vsel %vm5946, %v5996, %v5998
      %v6000 = vrot.slane %v5875, 5
      %v6001 = vsel %vm5946, %v5998, %v6000
      %v6002 = vrot.slane %v5880, 5
      %v6003 = vsel %vm5946, %v6000, %v6002
      %v6004 = vrot.slane %v5883, 5
      %v6005 = vsel %vm5946, %v6002, %v6004
      %v6006 = vrot.slane %v5888, 5
      %v6007 = vsel %vm5946, %v6004, %v6006
      %v6008 = vrot.slane %v5891, 5
      %v6009 = vsel %vm5946, %v6006, %v6008
      %v6010 = vrot.slane %v5896, 5
      %v6011 = vsel %vm5946, %v6008, %v6010
      %v6012 = vrot.slane %v5899, 5
      %v6013 = vsel %vm5946, %v6010, %v6012
      %v6014 = vrot.slane %v5904, 5
      %v6015 = vsel %vm5946, %v6012, %v6014
      %v6016 = vrot.slane %v5907, 5
      %v6017 = vsel %vm5946, %v6014, %v6016
      %v6055 = vadd.f32 %v5484, %v5947
      %v6056 = vadd.f32 %v5485, %v5949
      %v6057 = vadd.f32 %v5486, %v5951
      %v6058 = vadd.f32 %v5487, %v5953
      %v6059 = vadd.f32 %v5488, %v5955
      %v6060 = vadd.f32 %v5489, %v5957
      %v6061 = vadd.f32 %v5490, %v5959
      %v6062 = vadd.f32 %v5491, %v5961
      %v6063 = vadd.f32 %v5492, %v5963
      %v6064 = vadd.f32 %v5493, %v5965
      %v6065 = vadd.f32 %v5494, %v5967
      %v6066 = vadd.f32 %v5495, %v5969
      %v6067 = vadd.f32 %v5496, %v5971
      %v6068 = vadd.f32 %v5497, %v5973
      %v6069 = vadd.f32 %v5498, %v5975
      %v6070 = vadd.f32 %v5499, %v5977
      %v6071 = vadd.f32 %v5500, %v5979
      %v6072 = vadd.f32 %v5501, %v5981
      %v6073 = vadd.f32 %v5502, %v5983
      %v6074 = vadd.f32 %v5503, %v5985
      %v6075 = vadd.f32 %v5504, %v5987
      %v6076 = vadd.f32 %v5505, %v5989
      %v6077 = vadd.f32 %v5506, %v5991
      %v6078 = vadd.f32 %v5507, %v5993
      %v6079 = vadd.f32 %v5508, %v5995
      %v6080 = vadd.f32 %v5509, %v5997
      %v6081 = vadd.f32 %v5510, %v5999
      %v6082 = vadd.f32 %v5511, %v6001
      %v6083 = vadd.f32 %v5512, %v6003
      %v6084 = vadd.f32 %v5513, %v6005
      %v6085 = vadd.f32 %v5514, %v6007
      %v6086 = vadd.f32 %v5515, %v6009
      %v6087 = vadd.f32 %v5516, %v6011
      %v6088 = vadd.f32 %v5517, %v6013
      %v6089 = vadd.f32 %v5518, %v6015
      %v6090 = vadd.f32 %v5519, %v6017
      %v6091 = vadd.f32 %v5520, %v6016
      %v6092 = vld [vmem:[#allocation2] sm:$0xf]
      %v6093 = vld [vmem:[#allocation2 + $0x4] sm:$0xf]
      %v6094 = vld [vmem:[#allocation2 + $0x8] sm:$0xf]
      %v6095 = vld [vmem:[#allocation2 + $0xc] sm:$0xf]
      %v6096 = vld [vmem:[#allocation2 + $0x10] sm:$0xf]
      %v6097 = vld [vmem:[#allocation2 + $0x14] sm:$0xf]
      %v6098 = vld [vmem:[#allocation2 + $0x18] sm:$0xf]
      %v6099 = vld [vmem:[#allocation2 + $0x1c] sm:$0xf]
      %v6100 = vld [vmem:[#allocation2 + $0x20] sm:$0xf]
      %v6101 = vld [vmem:[#allocation2 + $0x24] sm:$0xf]
      %v6102 = vld [vmem:[#allocation2 + $0x28] sm:$0xf]
      %v6103 = vld [vmem:[#allocation2 + $0x2c] sm:$0xf]
      %v6104 = vld [vmem:[#allocation2 + $0x30] sm:$0xf]
      %v6105 = vld [vmem:[#allocation2 + $0x34] sm:$0xf]
      %v6106 = vld [vmem:[#allocation2 + $0x38] sm:$0xf]
      %v6107 = vld [vmem:[#allocation2 + $0x3c] sm:$0xf]
      %v6108 = vld [vmem:[#allocation2 + $0x40] sm:$0xf]
      %v6109 = vld [vmem:[#allocation2 + $0x44] sm:$0xf]
      %v6110 = vld [vmem:[#allocation2 + $0x48] sm:$0xf]
      %v6111 = vld [vmem:[#allocation2 + $0x4c] sm:$0xf]
      %v6112 = vld [vmem:[#allocation2 + $0x50] sm:$0xf]
      %v6113 = vld [vmem:[#allocation2 + $0x54] sm:$0xf]
      %v6114 = vld [vmem:[#allocation2 + $0x58] sm:$0xf]
      %v6115 = vld [vmem:[#allocation2 + $0x5c] sm:$0xf]
      %v6116 = vld [vmem:[#allocation2 + $0x60] sm:$0xf]
      %v6117 = vld [vmem:[#allocation2 + $0x64] sm:$0xf]
      %v6118 = vld [vmem:[#allocation2 + $0x68] sm:$0xf]
      %v6119 = vld [vmem:[#allocation2 + $0x6c] sm:$0xf]
      %v6120 = vld [vmem:[#allocation2 + $0x70] sm:$0xf]
      %v6121 = vld [vmem:[#allocation2 + $0x74] sm:$0xf]
      %v6122 = vld [vmem:[#allocation2 + $0x78] sm:$0xf]
      %v6123 = vld [vmem:[#allocation2 + $0x7c] sm:$0xf]
      %v6124 = vld [vmem:[#allocation2 + $0x80] sm:$0xf]
      %v6125 = vld [vmem:[#allocation2 + $0x84] sm:$0xf]
      %v6126 = vld [vmem:[#allocation2 + $0x88] sm:$0xf]
      %v6127 = vld [vmem:[#allocation2 + $0x8c] sm:$0xf]
      %v6128 = vld [vmem:[#allocation2 + $0x90] sm:$0x1]
      %s6129 = scalar_lea.vmem %s4, 32
      %v6130 = vld [vmem:[%s6129] sm:$0xf]
      %v6131 = vld [vmem:[%s6129 + $0x4] sm:$0xf]
      %v6132 = vld [vmem:[%s6129 + $0x8] sm:$0xf]
      %v6133 = vld [vmem:[%s6129 + $0xc] sm:$0xf]
      %v6134 = vld [vmem:[%s6129 + $0x10] sm:$0xf]
      %v6135 = vld [vmem:[%s6129 + $0x14] sm:$0xf]
      %v6136 = vld [vmem:[%s6129 + $0x18] sm:$0xf]
      %v6137 = vld [vmem:[%s6129 + $0x1c] sm:$0xf]
      %v6175 = vunpack.c.l.b16 %v6092
      %v6176 = vunpack.c.l.b16 %v6093
      %v6177 = vunpack.c.l.b16 %v6094
      %v6178 = vunpack.c.l.b16 %v6095
      %v6179 = vunpack.c.l.b16 %v6096
      %v6180 = vunpack.c.l.b16 %v6097
      %v6181 = vunpack.c.l.b16 %v6098
      %v6182 = vunpack.c.l.b16 %v6099
      %v6183 = vunpack.c.l.b16 %v6100
      %v6184 = vunpack.c.l.b16 %v6101
      %v6185 = vunpack.c.l.b16 %v6102
      %v6186 = vunpack.c.l.b16 %v6103
      %v6187 = vunpack.c.l.b16 %v6104
      %v6188 = vunpack.c.l.b16 %v6105
      %v6189 = vunpack.c.l.b16 %v6106
      %v6190 = vunpack.c.l.b16 %v6107
      %v6191 = vunpack.c.l.b16 %v6108
      %v6192 = vunpack.c.l.b16 %v6109
      %v6193 = vunpack.c.l.b16 %v6110
      %v6194 = vunpack.c.l.b16 %v6111
      %v6195 = vunpack.c.l.b16 %v6112
      %v6196 = vunpack.c.l.b16 %v6113
      %v6197 = vunpack.c.l.b16 %v6114
      %v6198 = vunpack.c.l.b16 %v6115
      %v6199 = vunpack.c.l.b16 %v6116
      %v6200 = vunpack.c.l.b16 %v6117
      %v6201 = vunpack.c.l.b16 %v6118
      %v6202 = vunpack.c.l.b16 %v6119
      %v6203 = vunpack.c.l.b16 %v6120
      %v6204 = vunpack.c.l.b16 %v6121
      %v6205 = vunpack.c.l.b16 %v6122
      %v6206 = vunpack.c.l.b16 %v6123
      %v6207 = vunpack.c.l.b16 %v6124
      %v6208 = vunpack.c.l.b16 %v6125
      %v6209 = vunpack.c.l.b16 %v6126
      %v6210 = vunpack.c.l.b16 %v6127
      %v6211 = vunpack.c.l.b16 %v6128
      %v6212 = vpack.c.b16 %v6176, %v6175
      %v6213 = vpack.c.b16 %v6178, %v6177
      %v6214 = vpack.c.b16 %v6180, %v6179
      %v6215 = vpack.c.b16 %v6182, %v6181
      %v6216 = vpack.c.b16 %v6184, %v6183
      %v6217 = vpack.c.b16 %v6186, %v6185
      %v6218 = vpack.c.b16 %v6188, %v6187
      %v6219 = vpack.c.b16 %v6190, %v6189
      %v6220 = vpack.c.b16 %v6192, %v6191
      %v6221 = vpack.c.b16 %v6194, %v6193
      %v6222 = vpack.c.b16 %v6196, %v6195
      %v6223 = vpack.c.b16 %v6198, %v6197
      %v6224 = vpack.c.b16 %v6200, %v6199
      %v6225 = vpack.c.b16 %v6202, %v6201
      %v6226 = vpack.c.b16 %v6204, %v6203
      %v6227 = vpack.c.b16 %v6206, %v6205
      %v6228 = vpack.c.b16 %v6208, %v6207
      %v6229 = vpack.c.b16 %v6210, %v6209
      %v6230 = vpack.c.b16 %v6211, %v6211
      %v6232 = vshrl.u32 %v6212, 16
      %v6234 = vshll.u32 %v6212, 16
      %v6236 = vrot.slane %v6234, 1
      %v6237 = vor.u32 %v6232, %v6236
      %v6239 = vshll.u32 %v6213, 16
      %v6241 = vrot.slane %v6239, 1
      %v6242 = vsel %vm861, %v6237, %v6241
      %v6243 = vshrl.u32 %v6213, 16
      %v6245 = vor.u32 %v6243, %v6241
      %v6247 = vshll.u32 %v6214, 16
      %v6249 = vrot.slane %v6247, 1
      %v6250 = vsel %vm861, %v6245, %v6249
      %v6251 = vshrl.u32 %v6214, 16
      %v6253 = vor.u32 %v6251, %v6249
      %v6255 = vshll.u32 %v6215, 16
      %v6257 = vrot.slane %v6255, 1
      %v6258 = vsel %vm861, %v6253, %v6257
      %v6259 = vshrl.u32 %v6215, 16
      %v6261 = vor.u32 %v6259, %v6257
      %v6263 = vshll.u32 %v6216, 16
      %v6265 = vrot.slane %v6263, 1
      %v6266 = vsel %vm861, %v6261, %v6265
      %v6267 = vshrl.u32 %v6216, 16
      %v6269 = vor.u32 %v6267, %v6265
      %v6271 = vshll.u32 %v6217, 16
      %v6273 = vrot.slane %v6271, 1
      %v6274 = vsel %vm861, %v6269, %v6273
      %v6275 = vshrl.u32 %v6217, 16
      %v6277 = vor.u32 %v6275, %v6273
      %v6279 = vshll.u32 %v6218, 16
      %v6281 = vrot.slane %v6279, 1
      %v6282 = vsel %vm861, %v6277, %v6281
      %v6283 = vshrl.u32 %v6218, 16
      %v6285 = vor.u32 %v6283, %v6281
      %v6287 = vshll.u32 %v6219, 16
      %v6289 = vrot.slane %v6287, 1
      %v6290 = vsel %vm861, %v6285, %v6289
      %v6291 = vshrl.u32 %v6219, 16
      %v6293 = vor.u32 %v6291, %v6289
      %v6295 = vshll.u32 %v6220, 16
      %v6297 = vrot.slane %v6295, 1
      %v6298 = vsel %vm861, %v6293, %v6297
      %v6299 = vshrl.u32 %v6220, 16
      %v6301 = vor.u32 %v6299, %v6297
      %v6303 = vshll.u32 %v6221, 16
      %v6305 = vrot.slane %v6303, 1
      %v6306 = vsel %vm861, %v6301, %v6305
      %v6307 = vshrl.u32 %v6221, 16
      %v6309 = vor.u32 %v6307, %v6305
      %v6311 = vshll.u32 %v6222, 16
      %v6313 = vrot.slane %v6311, 1
      %v6314 = vsel %vm861, %v6309, %v6313
      %v6315 = vshrl.u32 %v6222, 16
      %v6317 = vor.u32 %v6315, %v6313
      %v6319 = vshll.u32 %v6223, 16
      %v6321 = vrot.slane %v6319, 1
      %v6322 = vsel %vm861, %v6317, %v6321
      %v6323 = vshrl.u32 %v6223, 16
      %v6325 = vor.u32 %v6323, %v6321
      %v6327 = vshll.u32 %v6224, 16
      %v6329 = vrot.slane %v6327, 1
      %v6330 = vsel %vm861, %v6325, %v6329
      %v6331 = vshrl.u32 %v6224, 16
      %v6333 = vor.u32 %v6331, %v6329
      %v6335 = vshll.u32 %v6225, 16
      %v6337 = vrot.slane %v6335, 1
      %v6338 = vsel %vm861, %v6333, %v6337
      %v6339 = vshrl.u32 %v6225, 16
      %v6341 = vor.u32 %v6339, %v6337
      %v6343 = vshll.u32 %v6226, 16
      %v6345 = vrot.slane %v6343, 1
      %v6346 = vsel %vm861, %v6341, %v6345
      %v6347 = vshrl.u32 %v6226, 16
      %v6349 = vor.u32 %v6347, %v6345
      %v6351 = vshll.u32 %v6227, 16
      %v6353 = vrot.slane %v6351, 1
      %v6354 = vsel %vm861, %v6349, %v6353
      %v6355 = vshrl.u32 %v6227, 16
      %v6357 = vor.u32 %v6355, %v6353
      %v6359 = vshll.u32 %v6228, 16
      %v6361 = vrot.slane %v6359, 1
      %v6362 = vsel %vm861, %v6357, %v6361
      %v6363 = vshrl.u32 %v6228, 16
      %v6365 = vor.u32 %v6363, %v6361
      %v6367 = vshll.u32 %v6229, 16
      %v6369 = vrot.slane %v6367, 1
      %v6370 = vsel %vm861, %v6365, %v6369
      %v6371 = vshrl.u32 %v6229, 16
      %v6373 = vor.u32 %v6371, %v6369
      %v6375 = vshll.u32 %v6230, 16
      %v6377 = vrot.slane %v6375, 1
      %v6378 = vsel %vm861, %v6373, %v6377
      %v6387 = vunpack.c.l.b16 %v6130
      %v6388 = vunpack.c.l.b16 %v6131
      %v6389 = vunpack.c.l.b16 %v6132
      %v6390 = vunpack.c.l.b16 %v6133
      %v6391 = vunpack.c.l.b16 %v6134
      %v6392 = vunpack.c.l.b16 %v6135
      %v6393 = vunpack.c.l.b16 %v6136
      %v6394 = vunpack.c.l.b16 %v6137
      %v6395 = vpack.c.b16 %v6388, %v6387
      %v6396 = vpack.c.b16 %v6390, %v6389
      %v6397 = vpack.c.b16 %v6392, %v6391
      %v6398 = vpack.c.b16 %v6394, %v6393
      %v6404 = vsel %vm454, %v6242, 0
      %v6407 = vsel %vm454, %v6250, 0
      %v6410 = vsel %vm454, %v6258, 0
      %v6413 = vsel %vm454, %v6266, 0
      %v6416 = vsel %vm454, %v6274, 0
      %v6419 = vsel %vm454, %v6282, 0
      %v6422 = vsel %vm454, %v6290, 0
      %v6425 = vsel %vm454, %v6298, 0
      %v6428 = vsel %vm454, %v6306, 0
      %v6431 = vsel %vm454, %v6314, 0
      %v6434 = vsel %vm454, %v6322, 0
      %v6437 = vsel %vm454, %v6330, 0
      %v6440 = vsel %vm454, %v6338, 0
      %v6443 = vsel %vm454, %v6346, 0
      %v6446 = vsel %vm454, %v6354, 0
      %v6449 = vsel %vm454, %v6362, 0
      %v6452 = vsel %vm454, %v6370, 0
      %v6455 = vsel %vm454, %v6378, 0
      %6457 = vmatprep.subr.bf16.mxu0 0
      %6458 = vmatpush1.bf16.msra.mxu0 %v6395
      %6459 = vmatprep.subr.bf16.mxu0 0
      %6460 = vmatpush1.bf16.msra.mxu0 %v6396
      %6461 = vmatprep.subr.bf16.mxu0 0
      %6462 = vmatpush1.bf16.msra.mxu0 %v6397
      %6463 = vmatprep.subr.bf16.mxu0 0
      %6464 = vmatpush1.bf16.msra.mxu0 %v6398
      %6465 = vmatprep.subr.bf16.mxu0 0
      %6466 = vmatpush1.bf16.msra.mxu0 0
      %6467 = vmatprep.subr.bf16.mxu0 0
      %6468 = vmatpush1.bf16.msra.mxu0 0
      %6469 = vmatprep.subr.bf16.mxu0 0
      %6470 = vmatpush1.bf16.msra.mxu0 0
      %6471 = vmatprep.subr.bf16.mxu0 0
      %6472 = vmatpush1.bf16.msra.mxu0 0
      %6473 = vmatprep.subr.bf16.mxu0 0
      %6474 = vmatpush1.bf16.msra.mxu0 0
      %6475 = vmatprep.subr.bf16.mxu0 0
      %6476 = vmatpush1.bf16.msra.mxu0 0
      %6477 = vmatprep.subr.bf16.mxu0 0
      %6478 = vmatpush1.bf16.msra.mxu0 0
      %6479 = vmatprep.subr.bf16.mxu0 0
      %6480 = vmatpush1.bf16.msra.mxu0 0
      %6481 = vmatprep.subr.bf16.mxu0 0
      %6482 = vmatpush1.bf16.msra.mxu0 0
      %6483 = vmatprep.subr.bf16.mxu0 0
      %6484 = vmatpush1.bf16.msra.mxu0 0
      %6485 = vmatprep.subr.bf16.mxu0 0
      %6486 = vmatpush1.bf16.msra.mxu0 0
      %6487 = vmatprep.subr.bf16.mxu0 0
      %6488 = vmatpush1.bf16.msra.mxu0 0
      %6489 = vmatprep.mubr.bf16.mxu0 0
      %6490 = vmatmul.mubr.bf16.gmra.mrb[0].mxu0 %v6404
      %v6491 = vpop.f32.mrb[0].mxu0
      %v6492 = vadd.f32 0.0, %v6491
      %v6493 = vpop.f32.mrb[0].mxu0
      %v6494 = vpop.f32.mrb[0].mxu0
      %v6495 = vadd.f32 0.0, %v6494
      %v6496 = vpop.f32.mrb[0].mxu0
      %6497 = vmatprep.mubr.bf16.mxu0 0
      %6498 = vmatmul.mubr.bf16.gmra.mrb[0].mxu0 %v6407
      %v6499 = vpop.f32.mrb[0].mxu0
      %v6500 = vadd.f32 0.0, %v6499
      %v6501 = vpop.f32.mrb[0].mxu0
      %v6502 = vpop.f32.mrb[0].mxu0
      %v6503 = vadd.f32 0.0, %v6502
      %v6504 = vpop.f32.mrb[0].mxu0
      %6505 = vmatprep.mubr.bf16.mxu0 0
      %6506 = vmatmul.mubr.bf16.gmra.mrb[0].mxu0 %v6410
      %v6507 = vpop.f32.mrb[0].mxu0
      %v6508 = vadd.f32 0.0, %v6507
      %v6509 = vpop.f32.mrb[0].mxu0
      %v6510 = vpop.f32.mrb[0].mxu0
      %v6511 = vadd.f32 0.0, %v6510
      %v6512 = vpop.f32.mrb[0].mxu0
      %6513 = vmatprep.mubr.bf16.mxu0 0
      %6514 = vmatmul.mubr.bf16.gmra.mrb[0].mxu0 %v6413
      %v6515 = vpop.f32.mrb[0].mxu0
      %v6516 = vadd.f32 0.0, %v6515
      %v6517 = vpop.f32.mrb[0].mxu0
      %v6518 = vpop.f32.mrb[0].mxu0
      %v6519 = vadd.f32 0.0, %v6518
      %v6520 = vpop.f32.mrb[0].mxu0
      %6521 = vmatprep.mubr.bf16.mxu0 0
      %6522 = vmatmul.mubr.bf16.gmra.mrb[0].mxu0 %v6416
      %v6523 = vpop.f32.mrb[0].mxu0
      %v6524 = vadd.f32 0.0, %v6523
      %v6525 = vpop.f32.mrb[0].mxu0
      %v6526 = vpop.f32.mrb[0].mxu0
      %v6527 = vadd.f32 0.0, %v6526
      %v6528 = vpop.f32.mrb[0].mxu0
      %6529 = vmatprep.mubr.bf16.mxu0 0
      %6530 = vmatmul.mubr.bf16.gmra.mrb[0].mxu0 %v6419
      %v6531 = vpop.f32.mrb[0].mxu0
      %v6532 = vadd.f32 0.0, %v6531
      %v6533 = vpop.f32.mrb[0].mxu0
      %v6534 = vpop.f32.mrb[0].mxu0
      %v6535 = vadd.f32 0.0, %v6534
      %v6536 = vpop.f32.mrb[0].mxu0
      %6537 = vmatprep.mubr.bf16.mxu0 0
      %6538 = vmatmul.mubr.bf16.gmra.mrb[0].mxu0 %v6422
      %v6539 = vpop.f32.mrb[0].mxu0
      %v6540 = vadd.f32 0.0, %v6539
      %v6541 = vpop.f32.mrb[0].mxu0
      %v6542 = vpop.f32.mrb[0].mxu0
      %v6543 = vadd.f32 0.0, %v6542
      %v6544 = vpop.f32.mrb[0].mxu0
      %6545 = vmatprep.mubr.bf16.mxu0 0
      %6546 = vmatmul.mubr.bf16.gmra.mrb[0].mxu0 %v6425
      %v6547 = vpop.f32.mrb[0].mxu0
      %v6548 = vadd.f32 0.0, %v6547
      %v6549 = vpop.f32.mrb[0].mxu0
      %v6550 = vpop.f32.mrb[0].mxu0
      %v6551 = vadd.f32 0.0, %v6550
      %v6552 = vpop.f32.mrb[0].mxu0
      %6553 = vmatprep.mubr.bf16.mxu0 0
      %6554 = vmatmul.mubr.bf16.gmra.mrb[0].mxu0 %v6428
      %v6555 = vpop.f32.mrb[0].mxu0
      %v6556 = vadd.f32 0.0, %v6555
      %v6557 = vpop.f32.mrb[0].mxu0
      %v6558 = vpop.f32.mrb[0].mxu0
      %v6559 = vadd.f32 0.0, %v6558
      %v6560 = vpop.f32.mrb[0].mxu0
      %6561 = vmatprep.mubr.bf16.mxu0 0
      %6562 = vmatmul.mubr.bf16.gmra.mrb[0].mxu0 %v6431
      %v6563 = vpop.f32.mrb[0].mxu0
      %v6564 = vadd.f32 0.0, %v6563
      %v6565 = vpop.f32.mrb[0].mxu0
      %v6566 = vpop.f32.mrb[0].mxu0
      %v6567 = vadd.f32 0.0, %v6566
      %v6568 = vpop.f32.mrb[0].mxu0
      %6569 = vmatprep.mubr.bf16.mxu0 0
      %6570 = vmatmul.mubr.bf16.gmra.mrb[0].mxu0 %v6434
      %v6571 = vpop.f32.mrb[0].mxu0
      %v6572 = vadd.f32 0.0, %v6571
      %v6573 = vpop.f32.mrb[0].mxu0
      %v6574 = vpop.f32.mrb[0].mxu0
      %v6575 = vadd.f32 0.0, %v6574
      %v6576 = vpop.f32.mrb[0].mxu0
      %6577 = vmatprep.mubr.bf16.mxu0 0
      %6578 = vmatmul.mubr.bf16.gmra.mrb[0].mxu0 %v6437
      %v6579 = vpop.f32.mrb[0].mxu0
      %v6580 = vadd.f32 0.0, %v6579
      %v6581 = vpop.f32.mrb[0].mxu0
      %v6582 = vpop.f32.mrb[0].mxu0
      %v6583 = vadd.f32 0.0, %v6582
      %v6584 = vpop.f32.mrb[0].mxu0
      %6585 = vmatprep.mubr.bf16.mxu0 0
      %6586 = vmatmul.mubr.bf16.gmra.mrb[0].mxu0 %v6440
      %v6587 = vpop.f32.mrb[0].mxu0
      %v6588 = vadd.f32 0.0, %v6587
      %v6589 = vpop.f32.mrb[0].mxu0
      %v6590 = vpop.f32.mrb[0].mxu0
      %v6591 = vadd.f32 0.0, %v6590
      %v6592 = vpop.f32.mrb[0].mxu0
      %6593 = vmatprep.mubr.bf16.mxu0 0
      %6594 = vmatmul.mubr.bf16.gmra.mrb[0].mxu0 %v6443
      %v6595 = vpop.f32.mrb[0].mxu0
      %v6596 = vadd.f32 0.0, %v6595
      %v6597 = vpop.f32.mrb[0].mxu0
      %v6598 = vpop.f32.mrb[0].mxu0
      %v6599 = vadd.f32 0.0, %v6598
      %v6600 = vpop.f32.mrb[0].mxu0
      %6601 = vmatprep.mubr.bf16.mxu0 0
      %6602 = vmatmul.mubr.bf16.gmra.mrb[0].mxu0 %v6446
      %v6603 = vpop.f32.mrb[0].mxu0
      %v6604 = vadd.f32 0.0, %v6603
      %v6605 = vpop.f32.mrb[0].mxu0
      %v6606 = vpop.f32.mrb[0].mxu0
      %v6607 = vadd.f32 0.0, %v6606
      %v6608 = vpop.f32.mrb[0].mxu0
      %6609 = vmatprep.mubr.bf16.mxu0 0
      %6610 = vmatmul.mubr.bf16.gmra.mrb[0].mxu0 %v6449
      %v6611 = vpop.f32.mrb[0].mxu0
      %v6612 = vadd.f32 0.0, %v6611
      %v6613 = vpop.f32.mrb[0].mxu0
      %v6614 = vpop.f32.mrb[0].mxu0
      %v6615 = vadd.f32 0.0, %v6614
      %v6616 = vpop.f32.mrb[0].mxu0
      %6617 = vmatprep.mubr.bf16.mxu0 0
      %6618 = vmatmul.mubr.bf16.gmra.mrb[0].mxu0 %v6452
      %v6619 = vpop.f32.mrb[0].mxu0
      %v6620 = vadd.f32 0.0, %v6619
      %v6621 = vpop.f32.mrb[0].mxu0
      %v6622 = vpop.f32.mrb[0].mxu0
      %v6623 = vadd.f32 0.0, %v6622
      %v6624 = vpop.f32.mrb[0].mxu0
      %6625 = vmatprep.mubr.bf16.mxu0 0
      %6626 = vmatmul.mubr.bf16.gmra.mrb[0].mxu0 %v6455
      %v6627 = vpop.f32.mrb[0].mxu0
      %v6628 = vadd.f32 0.0, %v6627
      %v6629 = vpop.f32.mrb[0].mxu0
      %v6630 = vpop.f32.mrb[0].mxu0
      %v6631 = vadd.f32 0.0, %v6630
      %v6632 = vpop.f32.mrb[0].mxu0
      %6633 = vdwg.mxu0
      %v6670 = vrot.slane %v6492, 5
      %v6671 = vrot.slane %v6495, 5
      %v6672 = vsel %vm5946, %v6670, %v6671
      %v6673 = vrot.slane %v6500, 5
      %v6674 = vsel %vm5946, %v6671, %v6673
      %v6675 = vrot.slane %v6503, 5
      %v6676 = vsel %vm5946, %v6673, %v6675
      %v6677 = vrot.slane %v6508, 5
      %v6678 = vsel %vm5946, %v6675, %v6677
      %v6679 = vrot.slane %v6511, 5
      %v6680 = vsel %vm5946, %v6677, %v6679
      %v6681 = vrot.slane %v6516, 5
      %v6682 = vsel %vm5946, %v6679, %v6681
      %v6683 = vrot.slane %v6519, 5
      %v6684 = vsel %vm5946, %v6681, %v6683
      %v6685 = vrot.slane %v6524, 5
      %v6686 = vsel %vm5946, %v6683, %v6685
      %v6687 = vrot.slane %v6527, 5
      %v6688 = vsel %vm5946, %v6685, %v6687
      %v6689 = vrot.slane %v6532, 5
      %v6690 = vsel %vm5946, %v6687, %v6689
      %v6691 = vrot.slane %v6535, 5
      %v6692 = vsel %vm5946, %v6689, %v6691
      %v6693 = vrot.slane %v6540, 5
      %v6694 = vsel %vm5946, %v6691, %v6693
      %v6695 = vrot.slane %v6543, 5
      %v6696 = vsel %vm5946, %v6693, %v6695
      %v6697 = vrot.slane %v6548, 5
      %v6698 = vsel %vm5946, %v6695, %v6697
      %v6699 = vrot.slane %v6551, 5
      %v6700 = vsel %vm5946, %v6697, %v6699
      %v6701 = vrot.slane %v6556, 5
      %v6702 = vsel %vm5946, %v6699, %v6701
      %v6703 = vrot.slane %v6559, 5
      %v6704 = vsel %vm5946, %v6701, %v6703
      %v6705 = vrot.slane %v6564, 5
      %v6706 = vsel %vm5946, %v6703, %v6705
      %v6707 = vrot.slane %v6567, 5
      %v6708 = vsel %vm5946, %v6705, %v6707
      %v6709 = vrot.slane %v6572, 5
      %v6710 = vsel %vm5946, %v6707, %v6709
      %v6711 = vrot.slane %v6575, 5
      %v6712 = vsel %vm5946, %v6709, %v6711
      %v6713 = vrot.slane %v6580, 5
      %v6714 = vsel %vm5946, %v6711, %v6713
      %v6715 = vrot.slane %v6583, 5
      %v6716 = vsel %vm5946, %v6713, %v6715
      %v6717 = vrot.slane %v6588, 5
      %v6718 = vsel %vm5946, %v6715, %v6717
      %v6719 = vrot.slane %v6591, 5
      %v6720 = vsel %vm5946, %v6717, %v6719
      %v6721 = vrot.slane %v6596, 5
      %v6722 = vsel %vm5946, %v6719, %v6721
      %v6723 = vrot.slane %v6599, 5
      %v6724 = vsel %vm5946, %v6721, %v6723
      %v6725 = vrot.slane %v6604, 5
      %v6726 = vsel %vm5946, %v6723, %v6725
      %v6727 = vrot.slane %v6607, 5
      %v6728 = vsel %vm5946, %v6725, %v6727
      %v6729 = vrot.slane %v6612, 5
      %v6730 = vsel %vm5946, %v6727, %v6729
      %v6731 = vrot.slane %v6615, 5
      %v6732 = vsel %vm5946, %v6729, %v6731
      %v6733 = vrot.slane %v6620, 5
      %v6734 = vsel %vm5946, %v6731, %v6733
      %v6735 = vrot.slane %v6623, 5
      %v6736 = vsel %vm5946, %v6733, %v6735
      %v6737 = vrot.slane %v6628, 5
      %v6738 = vsel %vm5946, %v6735, %v6737
      %v6739 = vrot.slane %v6631, 5
      %v6740 = vsel %vm5946, %v6737, %v6739
      %v6778 = vadd.f32 %v6055, %v6670
      %v6779 = vadd.f32 %v6056, %v6672
      %v6780 = vadd.f32 %v6057, %v6674
      %v6781 = vadd.f32 %v6058, %v6676
      %v6782 = vadd.f32 %v6059, %v6678
      %v6783 = vadd.f32 %v6060, %v6680
      %v6784 = vadd.f32 %v6061, %v6682
      %v6785 = vadd.f32 %v6062, %v6684
      %v6786 = vadd.f32 %v6063, %v6686
      %v6787 = vadd.f32 %v6064, %v6688
      %v6788 = vadd.f32 %v6065, %v6690
      %v6789 = vadd.f32 %v6066, %v6692
      %v6790 = vadd.f32 %v6067, %v6694
      %v6791 = vadd.f32 %v6068, %v6696
      %v6792 = vadd.f32 %v6069, %v6698
      %v6793 = vadd.f32 %v6070, %v6700
      %v6794 = vadd.f32 %v6071, %v6702
      %v6795 = vadd.f32 %v6072, %v6704
      %v6796 = vadd.f32 %v6073, %v6706
      %v6797 = vadd.f32 %v6074, %v6708
      %v6798 = vadd.f32 %v6075, %v6710
      %v6799 = vadd.f32 %v6076, %v6712
      %v6800 = vadd.f32 %v6077, %v6714
      %v6801 = vadd.f32 %v6078, %v6716
      %v6802 = vadd.f32 %v6079, %v6718
      %v6803 = vadd.f32 %v6080, %v6720
      %v6804 = vadd.f32 %v6081, %v6722
      %v6805 = vadd.f32 %v6082, %v6724
      %v6806 = vadd.f32 %v6083, %v6726
      %v6807 = vadd.f32 %v6084, %v6728
      %v6808 = vadd.f32 %v6085, %v6730
      %v6809 = vadd.f32 %v6086, %v6732
      %v6810 = vadd.f32 %v6087, %v6734
      %v6811 = vadd.f32 %v6088, %v6736
      %v6812 = vadd.f32 %v6089, %v6738
      %v6813 = vadd.f32 %v6090, %v6740
      %v6814 = vadd.f32 %v6091, %v6739
      %v6815 = vld [vmem:[#allocation2] sm:$0xe]
      %s6816 = scalar_lea.vmem %s4, 64
      %v6817 = vld [vmem:[%s6816] sm:$0xf]
      %v6818 = vld [vmem:[%s6816 + $0x4] sm:$0xf]
      %v6819 = vld [vmem:[%s6816 + $0x8] sm:$0xf]
      %v6820 = vld [vmem:[%s6816 + $0xc] sm:$0xf]
      %v6821 = vld [vmem:[%s6816 + $0x10] sm:$0xf]
      %v6822 = vld [vmem:[%s6816 + $0x14] sm:$0xf]
      %v6823 = vld [vmem:[%s6816 + $0x18] sm:$0xf]
      %v6824 = vld [vmem:[%s6816 + $0x1c] sm:$0xf]
      %v6826 = vunpack.c.l.b16 %v6815
      %v6827 = vpack.c.b16 %v6176, %v6826
      %v6828 = vrot.slane %v6827, 1
      %v6829 = vrot.slane %v6213, 1
      %v6830 = vsel %vm1314, %v6828, %v6829
      %v6831 = vrot.slane %v6214, 1
      %v6832 = vsel %vm1314, %v6829, %v6831
      %v6833 = vrot.slane %v6215, 1
      %v6834 = vsel %vm1314, %v6831, %v6833
      %v6835 = vrot.slane %v6216, 1
      %v6836 = vsel %vm1314, %v6833, %v6835
      %v6837 = vrot.slane %v6217, 1
      %v6838 = vsel %vm1314, %v6835, %v6837
      %v6839 = vrot.slane %v6218, 1
      %v6840 = vsel %vm1314, %v6837, %v6839
      %v6841 = vrot.slane %v6219, 1
      %v6842 = vsel %vm1314, %v6839, %v6841
      %v6843 = vrot.slane %v6220, 1
      %v6844 = vsel %vm1314, %v6841, %v6843
      %v6845 = vrot.slane %v6221, 1
      %v6846 = vsel %vm1314, %v6843, %v6845
      %v6847 = vrot.slane %v6222, 1
      %v6848 = vsel %vm1314, %v6845, %v6847
      %v6849 = vrot.slane %v6223, 1
      %v6850 = vsel %vm1314, %v6847, %v6849
      %v6851 = vrot.slane %v6224, 1
      %v6852 = vsel %vm1314, %v6849, %v6851
      %v6853 = vrot.slane %v6225, 1
      %v6854 = vsel %vm1314, %v6851, %v6853
      %v6855 = vrot.slane %v6226, 1
      %v6856 = vsel %vm1314, %v6853, %v6855
      %v6857 = vrot.slane %v6227, 1
      %v6858 = vsel %vm1314, %v6855, %v6857
      %v6859 = vrot.slane %v6228, 1
      %v6860 = vsel %vm1314, %v6857, %v6859
      %v6861 = vrot.slane %v6229, 1
      %v6862 = vsel %vm1314, %v6859, %v6861
      %v6863 = vrot.slane %v6230, 1
      %v6864 = vsel %vm1314, %v6861, %v6863
      %v6873 = vunpack.c.l.b16 %v6817
      %v6874 = vunpack.c.l.b16 %v6818
      %v6875 = vunpack.c.l.b16 %v6819
      %v6876 = vunpack.c.l.b16 %v6820
      %v6877 = vunpack.c.l.b16 %v6821
      %v6878 = vunpack.c.l.b16 %v6822
      %v6879 = vunpack.c.l.b16 %v6823
      %v6880 = vunpack.c.l.b16 %v6824
      %v6881 = vpack.c.b16 %v6874, %v6873
      %v6882 = vpack.c.b16 %v6876, %v6875
      %v6883 = vpack.c.b16 %v6878, %v6877
      %v6884 = vpack.c.b16 %v6880, %v6879
      %v6890 = vsel %vm454, %v6830, 0
      %v6893 = vsel %vm454, %v6832, 0
      %v6896 = vsel %vm454, %v6834, 0
      %v6899 = vsel %vm454, %v6836, 0
      %v6902 = vsel %vm454, %v6838, 0
      %v6905 = vsel %vm454, %v6840, 0
      %v6908 = vsel %vm454, %v6842, 0
      %v6911 = vsel %vm454, %v6844, 0
      %v6914 = vsel %vm454, %v6846, 0
      %v6917 = vsel %vm454, %v6848, 0
      %v6920 = vsel %vm454, %v6850, 0
      %v6923 = vsel %vm454, %v6852, 0
      %v6926 = vsel %vm454, %v6854, 0
      %v6929 = vsel %vm454, %v6856, 0
      %v6932 = vsel %vm454, %v6858, 0
      %v6935 = vsel %vm454, %v6860, 0
      %v6938 = vsel %vm454, %v6862, 0
      %v6941 = vsel %vm454, %v6864, 0
      %6943 = vmatprep.subr.bf16.mxu0 0
      %6944 = vmatpush1.bf16.msra.mxu0 %v6881
      %6945 = vmatprep.subr.bf16.mxu0 0
      %6946 = vmatpush1.bf16.msra.mxu0 %v6882
      %6947 = vmatprep.subr.bf16.mxu0 0
      %6948 = vmatpush1.bf16.msra.mxu0 %v6883
      %6949 = vmatprep.subr.bf16.mxu0 0
      %6950 = vmatpush1.bf16.msra.mxu0 %v6884
      %6951 = vmatprep.subr.bf16.mxu0 0
      %6952 = vmatpush1.bf16.msra.mxu0 0
      %6953 = vmatprep.subr.bf16.mxu0 0
      %6954 = vmatpush1.bf16.msra.mxu0 0
      %6955 = vmatprep.subr.bf16.mxu0 0
      %6956 = vmatpush1.bf16.msra.mxu0 0
      %6957 = vmatprep.subr.bf16.mxu0 0
      %6958 = vmatpush1.bf16.msra.mxu0 0
      %6959 = vmatprep.subr.bf16.mxu0 0
      %6960 = vmatpush1.bf16.msra.mxu0 0
      %6961 = vmatprep.subr.bf16.mxu0 0
      %6962 = vmatpush1.bf16.msra.mxu0 0
      %6963 = vmatprep.subr.bf16.mxu0 0
      %6964 = vmatpush1.bf16.msra.mxu0 0
      %6965 = vmatprep.subr.bf16.mxu0 0
      %6966 = vmatpush1.bf16.msra.mxu0 0
      %6967 = vmatprep.subr.bf16.mxu0 0
      %6968 = vmatpush1.bf16.msra.mxu0 0
      %6969 = vmatprep.subr.bf16.mxu0 0
      %6970 = vmatpush1.bf16.msra.mxu0 0
      %6971 = vmatprep.subr.bf16.mxu0 0
      %6972 = vmatpush1.bf16.msra.mxu0 0
      %6973 = vmatprep.subr.bf16.mxu0 0
      %6974 = vmatpush1.bf16.msra.mxu0 0
      %6975 = vmatprep.mubr.bf16.mxu0 0
      %6976 = vmatmul.mubr.bf16.gmra.mrb[0].mxu0 %v6890
      %v6977 = vpop.f32.mrb[0].mxu0
      %v6978 = vadd.f32 0.0, %v6977
      %v6979 = vpop.f32.mrb[0].mxu0
      %v6980 = vpop.f32.mrb[0].mxu0
      %v6981 = vadd.f32 0.0, %v6980
      %v6982 = vpop.f32.mrb[0].mxu0
      %6983 = vmatprep.mubr.bf16.mxu0 0
      %6984 = vmatmul.mubr.bf16.gmra.mrb[0].mxu0 %v6893
      %v6985 = vpop.f32.mrb[0].mxu0
      %v6986 = vadd.f32 0.0, %v6985
      %v6987 = vpop.f32.mrb[0].mxu0
      %v6988 = vpop.f32.mrb[0].mxu0
      %v6989 = vadd.f32 0.0, %v6988
      %v6990 = vpop.f32.mrb[0].mxu0
      %6991 = vmatprep.mubr.bf16.mxu0 0
      %6992 = vmatmul.mubr.bf16.gmra.mrb[0].mxu0 %v6896
      %v6993 = vpop.f32.mrb[0].mxu0
      %v6994 = vadd.f32 0.0, %v6993
      %v6995 = vpop.f32.mrb[0].mxu0
      %v6996 = vpop.f32.mrb[0].mxu0
      %v6997 = vadd.f32 0.0, %v6996
      %v6998 = vpop.f32.mrb[0].mxu0
      %6999 = vmatprep.mubr.bf16.mxu0 0
      %7000 = vmatmul.mubr.bf16.gmra.mrb[0].mxu0 %v6899
      %v7001 = vpop.f32.mrb[0].mxu0
      %v7002 = vadd.f32 0.0, %v7001
      %v7003 = vpop.f32.mrb[0].mxu0
      %v7004 = vpop.f32.mrb[0].mxu0
      %v7005 = vadd.f32 0.0, %v7004
      %v7006 = vpop.f32.mrb[0].mxu0
      %7007 = vmatprep.mubr.bf16.mxu0 0
      %7008 = vmatmul.mubr.bf16.gmra.mrb[0].mxu0 %v6902
      %v7009 = vpop.f32.mrb[0].mxu0
      %v7010 = vadd.f32 0.0, %v7009
      %v7011 = vpop.f32.mrb[0].mxu0
      %v7012 = vpop.f32.mrb[0].mxu0
      %v7013 = vadd.f32 0.0, %v7012
      %v7014 = vpop.f32.mrb[0].mxu0
      %7015 = vmatprep.mubr.bf16.mxu0 0
      %7016 = vmatmul.mubr.bf16.gmra.mrb[0].mxu0 %v6905
      %v7017 = vpop.f32.mrb[0].mxu0
      %v7018 = vadd.f32 0.0, %v7017
      %v7019 = vpop.f32.mrb[0].mxu0
      %v7020 = vpop.f32.mrb[0].mxu0
      %v7021 = vadd.f32 0.0, %v7020
      %v7022 = vpop.f32.mrb[0].mxu0
      %7023 = vmatprep.mubr.bf16.mxu0 0
      %7024 = vmatmul.mubr.bf16.gmra.mrb[0].mxu0 %v6908
      %v7025 = vpop.f32.mrb[0].mxu0
      %v7026 = vadd.f32 0.0, %v7025
      %v7027 = vpop.f32.mrb[0].mxu0
      %v7028 = vpop.f32.mrb[0].mxu0
      %v7029 = vadd.f32 0.0, %v7028
      %v7030 = vpop.f32.mrb[0].mxu0
      %7031 = vmatprep.mubr.bf16.mxu0 0
      %7032 = vmatmul.mubr.bf16.gmra.mrb[0].mxu0 %v6911
      %v7033 = vpop.f32.mrb[0].mxu0
      %v7034 = vadd.f32 0.0, %v7033
      %v7035 = vpop.f32.mrb[0].mxu0
      %v7036 = vpop.f32.mrb[0].mxu0
      %v7037 = vadd.f32 0.0, %v7036
      %v7038 = vpop.f32.mrb[0].mxu0
      %7039 = vmatprep.mubr.bf16.mxu0 0
      %7040 = vmatmul.mubr.bf16.gmra.mrb[0].mxu0 %v6914
      %v7041 = vpop.f32.mrb[0].mxu0
      %v7042 = vadd.f32 0.0, %v7041
      %v7043 = vpop.f32.mrb[0].mxu0
      %v7044 = vpop.f32.mrb[0].mxu0
      %v7045 = vadd.f32 0.0, %v7044
      %v7046 = vpop.f32.mrb[0].mxu0
      %7047 = vmatprep.mubr.bf16.mxu0 0
      %7048 = vmatmul.mubr.bf16.gmra.mrb[0].mxu0 %v6917
      %v7049 = vpop.f32.mrb[0].mxu0
      %v7050 = vadd.f32 0.0, %v7049
      %v7051 = vpop.f32.mrb[0].mxu0
      %v7052 = vpop.f32.mrb[0].mxu0
      %v7053 = vadd.f32 0.0, %v7052
      %v7054 = vpop.f32.mrb[0].mxu0
      %7055 = vmatprep.mubr.bf16.mxu0 0
      %7056 = vmatmul.mubr.bf16.gmra.mrb[0].mxu0 %v6920
      %v7057 = vpop.f32.mrb[0].mxu0
      %v7058 = vadd.f32 0.0, %v7057
      %v7059 = vpop.f32.mrb[0].mxu0
      %v7060 = vpop.f32.mrb[0].mxu0
      %v7061 = vadd.f32 0.0, %v7060
      %v7062 = vpop.f32.mrb[0].mxu0
      %7063 = vmatprep.mubr.bf16.mxu0 0
      %7064 = vmatmul.mubr.bf16.gmra.mrb[0].mxu0 %v6923
      %v7065 = vpop.f32.mrb[0].mxu0
      %v7066 = vadd.f32 0.0, %v7065
      %v7067 = vpop.f32.mrb[0].mxu0
      %v7068 = vpop.f32.mrb[0].mxu0
      %v7069 = vadd.f32 0.0, %v7068
      %v7070 = vpop.f32.mrb[0].mxu0
      %7071 = vmatprep.mubr.bf16.mxu0 0
      %7072 = vmatmul.mubr.bf16.gmra.mrb[0].mxu0 %v6926
      %v7073 = vpop.f32.mrb[0].mxu0
      %v7074 = vadd.f32 0.0, %v7073
      %v7075 = vpop.f32.mrb[0].mxu0
      %v7076 = vpop.f32.mrb[0].mxu0
      %v7077 = vadd.f32 0.0, %v7076
      %v7078 = vpop.f32.mrb[0].mxu0
      %7079 = vmatprep.mubr.bf16.mxu0 0
      %7080 = vmatmul.mubr.bf16.gmra.mrb[0].mxu0 %v6929
      %v7081 = vpop.f32.mrb[0].mxu0
      %v7082 = vadd.f32 0.0, %v7081
      %v7083 = vpop.f32.mrb[0].mxu0
      %v7084 = vpop.f32.mrb[0].mxu0
      %v7085 = vadd.f32 0.0, %v7084
      %v7086 = vpop.f32.mrb[0].mxu0
      %7087 = vmatprep.mubr.bf16.mxu0 0
      %7088 = vmatmul.mubr.bf16.gmra.mrb[0].mxu0 %v6932
      %v7089 = vpop.f32.mrb[0].mxu0
      %v7090 = vadd.f32 0.0, %v7089
      %v7091 = vpop.f32.mrb[0].mxu0
      %v7092 = vpop.f32.mrb[0].mxu0
      %v7093 = vadd.f32 0.0, %v7092
      %v7094 = vpop.f32.mrb[0].mxu0
      %7095 = vmatprep.mubr.bf16.mxu0 0
      %7096 = vmatmul.mubr.bf16.gmra.mrb[0].mxu0 %v6935
      %v7097 = vpop.f32.mrb[0].mxu0
      %v7098 = vadd.f32 0.0, %v7097
      %v7099 = vpop.f32.mrb[0].mxu0
      %v7100 = vpop.f32.mrb[0].mxu0
      %v7101 = vadd.f32 0.0, %v7100
      %v7102 = vpop.f32.mrb[0].mxu0
      %7103 = vmatprep.mubr.bf16.mxu0 0
      %7104 = vmatmul.mubr.bf16.gmra.mrb[0].mxu0 %v6938
      %v7105 = vpop.f32.mrb[0].mxu0
      %v7106 = vadd.f32 0.0, %v7105
      %v7107 = vpop.f32.mrb[0].mxu0
      %v7108 = vpop.f32.mrb[0].mxu0
      %v7109 = vadd.f32 0.0, %v7108
      %v7110 = vpop.f32.mrb[0].mxu0
      %7111 = vmatprep.mubr.bf16.mxu0 0
      %7112 = vmatmul.mubr.bf16.gmra.mrb[0].mxu0 %v6941
      %v7113 = vpop.f32.mrb[0].mxu0
      %v7114 = vadd.f32 0.0, %v7113
      %v7115 = vpop.f32.mrb[0].mxu0
      %v7116 = vpop.f32.mrb[0].mxu0
      %v7117 = vadd.f32 0.0, %v7116
      %v7118 = vpop.f32.mrb[0].mxu0
      %7119 = vdwg.mxu0
      %v7156 = vrot.slane %v6978, 5
      %v7157 = vrot.slane %v6981, 5
      %v7158 = vsel %vm5946, %v7156, %v7157
      %v7159 = vrot.slane %v6986, 5
      %v7160 = vsel %vm5946, %v7157, %v7159
      %v7161 = vrot.slane %v6989, 5
      %v7162 = vsel %vm5946, %v7159, %v7161
      %v7163 = vrot.slane %v6994, 5
      %v7164 = vsel %vm5946, %v7161, %v7163
      %v7165 = vrot.slane %v6997, 5
      %v7166 = vsel %vm5946, %v7163, %v7165
      %v7167 = vrot.slane %v7002, 5
      %v7168 = vsel %vm5946, %v7165, %v7167
      %v7169 = vrot.slane %v7005, 5
      %v7170 = vsel %vm5946, %v7167, %v7169
      %v7171 = vrot.slane %v7010, 5
      %v7172 = vsel %vm5946, %v7169, %v7171
      %v7173 = vrot.slane %v7013, 5
      %v7174 = vsel %vm5946, %v7171, %v7173
      %v7175 = vrot.slane %v7018, 5
      %v7176 = vsel %vm5946, %v7173, %v7175
      %v7177 = vrot.slane %v7021, 5
      %v7178 = vsel %vm5946, %v7175, %v7177
      %v7179 = vrot.slane %v7026, 5
      %v7180 = vsel %vm5946, %v7177, %v7179
      %v7181 = vrot.slane %v7029, 5
      %v7182 = vsel %vm5946, %v7179, %v7181
      %v7183 = vrot.slane %v7034, 5
      %v7184 = vsel %vm5946, %v7181, %v7183
      %v7185 = vrot.slane %v7037, 5
      %v7186 = vsel %vm5946, %v7183, %v7185
      %v7187 = vrot.slane %v7042, 5
      %v7188 = vsel %vm5946, %v7185, %v7187
      %v7189 = vrot.slane %v7045, 5
      %v7190 = vsel %vm5946, %v7187, %v7189
      %v7191 = vrot.slane %v7050, 5
      %v7192 = vsel %vm5946, %v7189, %v7191
      %v7193 = vrot.slane %v7053, 5
      %v7194 = vsel %vm5946, %v7191, %v7193
      %v7195 = vrot.slane %v7058, 5
      %v7196 = vsel %vm5946, %v7193, %v7195
      %v7197 = vrot.slane %v7061, 5
      %v7198 = vsel %vm5946, %v7195, %v7197
      %v7199 = vrot.slane %v7066, 5
      %v7200 = vsel %vm5946, %v7197, %v7199
      %v7201 = vrot.slane %v7069, 5
      %v7202 = vsel %vm5946, %v7199, %v7201
      %v7203 = vrot.slane %v7074, 5
      %v7204 = vsel %vm5946, %v7201, %v7203
      %v7205 = vrot.slane %v7077, 5
      %v7206 = vsel %vm5946, %v7203, %v7205
      %v7207 = vrot.slane %v7082, 5
      %v7208 = vsel %vm5946, %v7205, %v7207
      %v7209 = vrot.slane %v7085, 5
      %v7210 = vsel %vm5946, %v7207, %v7209
      %v7211 = vrot.slane %v7090, 5
      %v7212 = vsel %vm5946, %v7209, %v7211
      %v7213 = vrot.slane %v7093, 5
      %v7214 = vsel %vm5946, %v7211, %v7213
      %v7215 = vrot.slane %v7098, 5
      %v7216 = vsel %vm5946, %v7213, %v7215
      %v7217 = vrot.slane %v7101, 5
      %v7218 = vsel %vm5946, %v7215, %v7217
      %v7219 = vrot.slane %v7106, 5
      %v7220 = vsel %vm5946, %v7217, %v7219
      %v7221 = vrot.slane %v7109, 5
      %v7222 = vsel %vm5946, %v7219, %v7221
      %v7223 = vrot.slane %v7114, 5
      %v7224 = vsel %vm5946, %v7221, %v7223
      %v7225 = vrot.slane %v7117, 5
      %v7226 = vsel %vm5946, %v7223, %v7225
      %v7264 = vadd.f32 %v6778, %v7156
      %v7265 = vadd.f32 %v6779, %v7158
      %v7266 = vadd.f32 %v6780, %v7160
      %v7267 = vadd.f32 %v6781, %v7162
      %v7268 = vadd.f32 %v6782, %v7164
      %v7269 = vadd.f32 %v6783, %v7166
      %v7270 = vadd.f32 %v6784, %v7168
      %v7271 = vadd.f32 %v6785, %v7170
      %v7272 = vadd.f32 %v6786, %v7172
      %v7273 = vadd.f32 %v6787, %v7174
      %v7274 = vadd.f32 %v6788, %v7176
      %v7275 = vadd.f32 %v6789, %v7178
      %v7276 = vadd.f32 %v6790, %v7180
      %v7277 = vadd.f32 %v6791, %v7182
      %v7278 = vadd.f32 %v6792, %v7184
      %v7279 = vadd.f32 %v6793, %v7186
      %v7280 = vadd.f32 %v6794, %v7188
      %v7281 = vadd.f32 %v6795, %v7190
      %v7282 = vadd.f32 %v6796, %v7192
      %v7283 = vadd.f32 %v6797, %v7194
      %v7284 = vadd.f32 %v6798, %v7196
      %v7285 = vadd.f32 %v6799, %v7198
      %v7286 = vadd.f32 %v6800, %v7200
      %v7287 = vadd.f32 %v6801, %v7202
      %v7288 = vadd.f32 %v6802, %v7204
      %v7289 = vadd.f32 %v6803, %v7206
      %v7290 = vadd.f32 %v6804, %v7208
      %v7291 = vadd.f32 %v6805, %v7210
      %v7292 = vadd.f32 %v6806, %v7212
      %v7293 = vadd.f32 %v6807, %v7214
      %v7294 = vadd.f32 %v6808, %v7216
      %v7295 = vadd.f32 %v6809, %v7218
      %v7296 = vadd.f32 %v6810, %v7220
      %v7297 = vadd.f32 %v6811, %v7222
      %v7298 = vadd.f32 %v6812, %v7224
      %v7299 = vadd.f32 %v6813, %v7226
      %v7300 = vadd.f32 %v6814, %v7225
      %v7301 = vld [vmem:[#allocation2 + $0x8] sm:$0xe]
      %v7302 = vld [vmem:[#allocation2 + $0xc] sm:$0xf]
      %v7303 = vld [vmem:[#allocation2 + $0x10] sm:$0xf]
      %v7304 = vld [vmem:[#allocation2 + $0x14] sm:$0xf]
      %v7305 = vld [vmem:[#allocation2 + $0x18] sm:$0xf]
      %v7306 = vld [vmem:[#allocation2 + $0x1c] sm:$0xf]
      %v7307 = vld [vmem:[#allocation2 + $0x20] sm:$0xf]
      %v7308 = vld [vmem:[#allocation2 + $0x24] sm:$0xf]
      %v7309 = vld [vmem:[#allocation2 + $0x28] sm:$0xf]
      %v7310 = vld [vmem:[#allocation2 + $0x2c] sm:$0xf]
      %v7311 = vld [vmem:[#allocation2 + $0x30] sm:$0xf]
      %v7312 = vld [vmem:[#allocation2 + $0x34] sm:$0xf]
      %v7313 = vld [vmem:[#allocation2 + $0x38] sm:$0xf]
      %v7314 = vld [vmem:[#allocation2 + $0x3c] sm:$0xf]
      %v7315 = vld [vmem:[#allocation2 + $0x40] sm:$0xf]
      %v7316 = vld [vmem:[#allocation2 + $0x44] sm:$0xf]
      %v7317 = vld [vmem:[#allocation2 + $0x48] sm:$0xf]
      %v7318 = vld [vmem:[#allocation2 + $0x4c] sm:$0xf]
      %v7319 = vld [vmem:[#allocation2 + $0x50] sm:$0xf]
      %v7320 = vld [vmem:[#allocation2 + $0x54] sm:$0xf]
      %v7321 = vld [vmem:[#allocation2 + $0x58] sm:$0xf]
      %v7322 = vld [vmem:[#allocation2 + $0x5c] sm:$0xf]
      %v7323 = vld [vmem:[#allocation2 + $0x60] sm:$0xf]
      %v7324 = vld [vmem:[#allocation2 + $0x64] sm:$0xf]
      %v7325 = vld [vmem:[#allocation2 + $0x68] sm:$0xf]
      %v7326 = vld [vmem:[#allocation2 + $0x6c] sm:$0xf]
      %v7327 = vld [vmem:[#allocation2 + $0x70] sm:$0xf]
      %v7328 = vld [vmem:[#allocation2 + $0x74] sm:$0xf]
      %v7329 = vld [vmem:[#allocation2 + $0x78] sm:$0xf]
      %v7330 = vld [vmem:[#allocation2 + $0x7c] sm:$0xf]
      %v7331 = vld [vmem:[#allocation2 + $0x80] sm:$0xf]
      %v7332 = vld [vmem:[#allocation2 + $0x84] sm:$0xf]
      %v7333 = vld [vmem:[#allocation2 + $0x88] sm:$0xf]
      %v7334 = vld [vmem:[#allocation2 + $0x8c] sm:$0xf]
      %v7335 = vld [vmem:[#allocation2 + $0x90] sm:$0xf]
      %v7336 = vld [vmem:[#allocation2 + $0x94] sm:$0xf]
      %v7337 = vld [vmem:[#allocation2 + $0x98] sm:$0x1]
      %s7338 = scalar_lea.vmem %s4, 96
      %v7339 = vld [vmem:[%s7338] sm:$0xf]
      %v7340 = vld [vmem:[%s7338 + $0x4] sm:$0xf]
      %v7341 = vld [vmem:[%s7338 + $0x8] sm:$0xf]
      %v7342 = vld [vmem:[%s7338 + $0xc] sm:$0xf]
      %v7343 = vld [vmem:[%s7338 + $0x10] sm:$0xf]
      %v7344 = vld [vmem:[%s7338 + $0x14] sm:$0xf]
      %v7345 = vld [vmem:[%s7338 + $0x18] sm:$0xf]
      %v7346 = vld [vmem:[%s7338 + $0x1c] sm:$0xf]
      %v7384 = vunpack.c.l.b16 %v7301
      %v7385 = vunpack.c.l.b16 %v7302
      %v7386 = vunpack.c.l.b16 %v7303
      %v7387 = vunpack.c.l.b16 %v7304
      %v7388 = vunpack.c.l.b16 %v7305
      %v7389 = vunpack.c.l.b16 %v7306
      %v7390 = vunpack.c.l.b16 %v7307
      %v7391 = vunpack.c.l.b16 %v7308
      %v7392 = vunpack.c.l.b16 %v7309
      %v7393 = vunpack.c.l.b16 %v7310
      %v7394 = vunpack.c.l.b16 %v7311
      %v7395 = vunpack.c.l.b16 %v7312
      %v7396 = vunpack.c.l.b16 %v7313
      %v7397 = vunpack.c.l.b16 %v7314
      %v7398 = vunpack.c.l.b16 %v7315
      %v7399 = vunpack.c.l.b16 %v7316
      %v7400 = vunpack.c.l.b16 %v7317
      %v7401 = vunpack.c.l.b16 %v7318
      %v7402 = vunpack.c.l.b16 %v7319
      %v7403 = vunpack.c.l.b16 %v7320
      %v7404 = vunpack.c.l.b16 %v7321
      %v7405 = vunpack.c.l.b16 %v7322
      %v7406 = vunpack.c.l.b16 %v7323
      %v7407 = vunpack.c.l.b16 %v7324
      %v7408 = vunpack.c.l.b16 %v7325
      %v7409 = vunpack.c.l.b16 %v7326
      %v7410 = vunpack.c.l.b16 %v7327
      %v7411 = vunpack.c.l.b16 %v7328
      %v7412 = vunpack.c.l.b16 %v7329
      %v7413 = vunpack.c.l.b16 %v7330
      %v7414 = vunpack.c.l.b16 %v7331
      %v7415 = vunpack.c.l.b16 %v7332
      %v7416 = vunpack.c.l.b16 %v7333
      %v7417 = vunpack.c.l.b16 %v7334
      %v7418 = vunpack.c.l.b16 %v7335
      %v7419 = vunpack.c.l.b16 %v7336
      %v7420 = vunpack.c.l.b16 %v7337
      %v7421 = vpack.c.b16 %v7385, %v7384
      %v7422 = vpack.c.b16 %v7387, %v7386
      %v7423 = vpack.c.b16 %v7389, %v7388
      %v7424 = vpack.c.b16 %v7391, %v7390
      %v7425 = vpack.c.b16 %v7393, %v7392
      %v7426 = vpack.c.b16 %v7395, %v7394
      %v7427 = vpack.c.b16 %v7397, %v7396
      %v7428 = vpack.c.b16 %v7399, %v7398
      %v7429 = vpack.c.b16 %v7401, %v7400
      %v7430 = vpack.c.b16 %v7403, %v7402
      %v7431 = vpack.c.b16 %v7405, %v7404
      %v7432 = vpack.c.b16 %v7407, %v7406
      %v7433 = vpack.c.b16 %v7409, %v7408
      %v7434 = vpack.c.b16 %v7411, %v7410
      %v7435 = vpack.c.b16 %v7413, %v7412
      %v7436 = vpack.c.b16 %v7415, %v7414
      %v7437 = vpack.c.b16 %v7417, %v7416
      %v7438 = vpack.c.b16 %v7419, %v7418
      %v7439 = vpack.c.b16 %v7420, %v7420
      %v7440 = vrot.slane %v7421, 1
      %v7441 = vrot.slane %v7422, 1
      %v7442 = vsel %vm1314, %v7440, %v7441
      %v7443 = vrot.slane %v7423, 1
      %v7444 = vsel %vm1314, %v7441, %v7443
      %v7445 = vrot.slane %v7424, 1
      %v7446 = vsel %vm1314, %v7443, %v7445
      %v7447 = vrot.slane %v7425, 1
      %v7448 = vsel %vm1314, %v7445, %v7447
      %v7449 = vrot.slane %v7426, 1
      %v7450 = vsel %vm1314, %v7447, %v7449
      %v7451 = vrot.slane %v7427, 1
      %v7452 = vsel %vm1314, %v7449, %v7451
      %v7453 = vrot.slane %v7428, 1
      %v7454 = vsel %vm1314, %v7451, %v7453
      %v7455 = vrot.slane %v7429, 1
      %v7456 = vsel %vm1314, %v7453, %v7455
      %v7457 = vrot.slane %v7430, 1
      %v7458 = vsel %vm1314, %v7455, %v7457
      %v7459 = vrot.slane %v7431, 1
      %v7460 = vsel %vm1314, %v7457, %v7459
      %v7461 = vrot.slane %v7432, 1
      %v7462 = vsel %vm1314, %v7459, %v7461
      %v7463 = vrot.slane %v7433, 1
      %v7464 = vsel %vm1314, %v7461, %v7463
      %v7465 = vrot.slane %v7434, 1
      %v7466 = vsel %vm1314, %v7463, %v7465
      %v7467 = vrot.slane %v7435, 1
      %v7468 = vsel %vm1314, %v7465, %v7467
      %v7469 = vrot.slane %v7436, 1
      %v7470 = vsel %vm1314, %v7467, %v7469
      %v7471 = vrot.slane %v7437, 1
      %v7472 = vsel %vm1314, %v7469, %v7471
      %v7473 = vrot.slane %v7438, 1
      %v7474 = vsel %vm1314, %v7471, %v7473
      %v7475 = vrot.slane %v7439, 1
      %v7476 = vsel %vm1314, %v7473, %v7475
      %v7485 = vunpack.c.l.b16 %v7339
      %v7486 = vunpack.c.l.b16 %v7340
      %v7487 = vunpack.c.l.b16 %v7341
      %v7488 = vunpack.c.l.b16 %v7342
      %v7489 = vunpack.c.l.b16 %v7343
      %v7490 = vunpack.c.l.b16 %v7344
      %v7491 = vunpack.c.l.b16 %v7345
      %v7492 = vunpack.c.l.b16 %v7346
      %v7493 = vpack.c.b16 %v7486, %v7485
      %v7494 = vpack.c.b16 %v7488, %v7487
      %v7495 = vpack.c.b16 %v7490, %v7489
      %v7496 = vpack.c.b16 %v7492, %v7491
      %v7502 = vsel %vm454, %v7442, 0
      %v7505 = vsel %vm454, %v7444, 0
      %v7508 = vsel %vm454, %v7446, 0
      %v7511 = vsel %vm454, %v7448, 0
      %v7514 = vsel %vm454, %v7450, 0
      %v7517 = vsel %vm454, %v7452, 0
      %v7520 = vsel %vm454, %v7454, 0
      %v7523 = vsel %vm454, %v7456, 0
      %v7526 = vsel %vm454, %v7458, 0
      %v7529 = vsel %vm454, %v7460, 0
      %v7532 = vsel %vm454, %v7462, 0
      %v7535 = vsel %vm454, %v7464, 0
      %v7538 = vsel %vm454, %v7466, 0
      %v7541 = vsel %vm454, %v7468, 0
      %v7544 = vsel %vm454, %v7470, 0
      %v7547 = vsel %vm454, %v7472, 0
      %v7550 = vsel %vm454, %v7474, 0
      %v7553 = vsel %vm454, %v7476, 0
      %7555 = vmatprep.subr.bf16.mxu0 0
      %7556 = vmatpush1.bf16.msra.mxu0 %v7493
      %7557 = vmatprep.subr.bf16.mxu0 0
      %7558 = vmatpush1.bf16.msra.mxu0 %v7494
      %7559 = vmatprep.subr.bf16.mxu0 0
      %7560 = vmatpush1.bf16.msra.mxu0 %v7495
      %7561 = vmatprep.subr.bf16.mxu0 0
      %7562 = vmatpush1.bf16.msra.mxu0 %v7496
      %7563 = vmatprep.subr.bf16.mxu0 0
      %7564 = vmatpush1.bf16.msra.mxu0 0
      %7565 = vmatprep.subr.bf16.mxu0 0
      %7566 = vmatpush1.bf16.msra.mxu0 0
      %7567 = vmatprep.subr.bf16.mxu0 0
      %7568 = vmatpush1.bf16.msra.mxu0 0
      %7569 = vmatprep.subr.bf16.mxu0 0
      %7570 = vmatpush1.bf16.msra.mxu0 0
      %7571 = vmatprep.subr.bf16.mxu0 0
      %7572 = vmatpush1.bf16.msra.mxu0 0
      %7573 = vmatprep.subr.bf16.mxu0 0
      %7574 = vmatpush1.bf16.msra.mxu0 0
      %7575 = vmatprep.subr.bf16.mxu0 0
      %7576 = vmatpush1.bf16.msra.mxu0 0
      %7577 = vmatprep.subr.bf16.mxu0 0
      %7578 = vmatpush1.bf16.msra.mxu0 0
      %7579 = vmatprep.subr.bf16.mxu0 0
      %7580 = vmatpush1.bf16.msra.mxu0 0
      %7581 = vmatprep.subr.bf16.mxu0 0
      %7582 = vmatpush1.bf16.msra.mxu0 0
      %7583 = vmatprep.subr.bf16.mxu0 0
      %7584 = vmatpush1.bf16.msra.mxu0 0
      %7585 = vmatprep.subr.bf16.mxu0 0
      %7586 = vmatpush1.bf16.msra.mxu0 0
      %7587 = vmatprep.mubr.bf16.mxu0 0
      %7588 = vmatmul.mubr.bf16.gmra.mrb[0].mxu0 %v7502
      %v7589 = vpop.f32.mrb[0].mxu0
      %v7590 = vadd.f32 0.0, %v7589
      %v7591 = vpop.f32.mrb[0].mxu0
      %v7592 = vpop.f32.mrb[0].mxu0
      %v7593 = vadd.f32 0.0, %v7592
      %v7594 = vpop.f32.mrb[0].mxu0
      %7595 = vmatprep.mubr.bf16.mxu0 0
      %7596 = vmatmul.mubr.bf16.gmra.mrb[0].mxu0 %v7505
      %v7597 = vpop.f32.mrb[0].mxu0
      %v7598 = vadd.f32 0.0, %v7597
      %v7599 = vpop.f32.mrb[0].mxu0
      %v7600 = vpop.f32.mrb[0].mxu0
      %v7601 = vadd.f32 0.0, %v7600
      %v7602 = vpop.f32.mrb[0].mxu0
      %7603 = vmatprep.mubr.bf16.mxu0 0
      %7604 = vmatmul.mubr.bf16.gmra.mrb[0].mxu0 %v7508
      %v7605 = vpop.f32.mrb[0].mxu0
      %v7606 = vadd.f32 0.0, %v7605
      %v7607 = vpop.f32.mrb[0].mxu0
      %v7608 = vpop.f32.mrb[0].mxu0
      %v7609 = vadd.f32 0.0, %v7608
      %v7610 = vpop.f32.mrb[0].mxu0
      %7611 = vmatprep.mubr.bf16.mxu0 0
      %7612 = vmatmul.mubr.bf16.gmra.mrb[0].mxu0 %v7511
      %v7613 = vpop.f32.mrb[0].mxu0
      %v7614 = vadd.f32 0.0, %v7613
      %v7615 = vpop.f32.mrb[0].mxu0
      %v7616 = vpop.f32.mrb[0].mxu0
      %v7617 = vadd.f32 0.0, %v7616
      %v7618 = vpop.f32.mrb[0].mxu0
      %7619 = vmatprep.mubr.bf16.mxu0 0
      %7620 = vmatmul.mubr.bf16.gmra.mrb[0].mxu0 %v7514
      %v7621 = vpop.f32.mrb[0].mxu0
      %v7622 = vadd.f32 0.0, %v7621
      %v7623 = vpop.f32.mrb[0].mxu0
      %v7624 = vpop.f32.mrb[0].mxu0
      %v7625 = vadd.f32 0.0, %v7624
      %v7626 = vpop.f32.mrb[0].mxu0
      %7627 = vmatprep.mubr.bf16.mxu0 0
      %7628 = vmatmul.mubr.bf16.gmra.mrb[0].mxu0 %v7517
      %v7629 = vpop.f32.mrb[0].mxu0
      %v7630 = vadd.f32 0.0, %v7629
      %v7631 = vpop.f32.mrb[0].mxu0
      %v7632 = vpop.f32.mrb[0].mxu0
      %v7633 = vadd.f32 0.0, %v7632
      %v7634 = vpop.f32.mrb[0].mxu0
      %7635 = vmatprep.mubr.bf16.mxu0 0
      %7636 = vmatmul.mubr.bf16.gmra.mrb[0].mxu0 %v7520
      %v7637 = vpop.f32.mrb[0].mxu0
      %v7638 = vadd.f32 0.0, %v7637
      %v7639 = vpop.f32.mrb[0].mxu0
      %v7640 = vpop.f32.mrb[0].mxu0
      %v7641 = vadd.f32 0.0, %v7640
      %v7642 = vpop.f32.mrb[0].mxu0
      %7643 = vmatprep.mubr.bf16.mxu0 0
      %7644 = vmatmul.mubr.bf16.gmra.mrb[0].mxu0 %v7523
      %v7645 = vpop.f32.mrb[0].mxu0
      %v7646 = vadd.f32 0.0, %v7645
      %v7647 = vpop.f32.mrb[0].mxu0
      %v7648 = vpop.f32.mrb[0].mxu0
      %v7649 = vadd.f32 0.0, %v7648
      %v7650 = vpop.f32.mrb[0].mxu0
      %7651 = vmatprep.mubr.bf16.mxu0 0
      %7652 = vmatmul.mubr.bf16.gmra.mrb[0].mxu0 %v7526
      %v7653 = vpop.f32.mrb[0].mxu0
      %v7654 = vadd.f32 0.0, %v7653
      %v7655 = vpop.f32.mrb[0].mxu0
      %v7656 = vpop.f32.mrb[0].mxu0
      %v7657 = vadd.f32 0.0, %v7656
      %v7658 = vpop.f32.mrb[0].mxu0
      %7659 = vmatprep.mubr.bf16.mxu0 0
      %7660 = vmatmul.mubr.bf16.gmra.mrb[0].mxu0 %v7529
      %v7661 = vpop.f32.mrb[0].mxu0
      %v7662 = vadd.f32 0.0, %v7661
      %v7663 = vpop.f32.mrb[0].mxu0
      %v7664 = vpop.f32.mrb[0].mxu0
      %v7665 = vadd.f32 0.0, %v7664
      %v7666 = vpop.f32.mrb[0].mxu0
      %7667 = vmatprep.mubr.bf16.mxu0 0
      %7668 = vmatmul.mubr.bf16.gmra.mrb[0].mxu0 %v7532
      %v7669 = vpop.f32.mrb[0].mxu0
      %v7670 = vadd.f32 0.0, %v7669
      %v7671 = vpop.f32.mrb[0].mxu0
      %v7672 = vpop.f32.mrb[0].mxu0
      %v7673 = vadd.f32 0.0, %v7672
      %v7674 = vpop.f32.mrb[0].mxu0
      %7675 = vmatprep.mubr.bf16.mxu0 0
      %7676 = vmatmul.mubr.bf16.gmra.mrb[0].mxu0 %v7535
      %v7677 = vpop.f32.mrb[0].mxu0
      %v7678 = vadd.f32 0.0, %v7677
      %v7679 = vpop.f32.mrb[0].mxu0
      %v7680 = vpop.f32.mrb[0].mxu0
      %v7681 = vadd.f32 0.0, %v7680
      %v7682 = vpop.f32.mrb[0].mxu0
      %7683 = vmatprep.mubr.bf16.mxu0 0
      %7684 = vmatmul.mubr.bf16.gmra.mrb[0].mxu0 %v7538
      %v7685 = vpop.f32.mrb[0].mxu0
      %v7686 = vadd.f32 0.0, %v7685
      %v7687 = vpop.f32.mrb[0].mxu0
      %v7688 = vpop.f32.mrb[0].mxu0
      %v7689 = vadd.f32 0.0, %v7688
      %v7690 = vpop.f32.mrb[0].mxu0
      %7691 = vmatprep.mubr.bf16.mxu0 0
      %7692 = vmatmul.mubr.bf16.gmra.mrb[0].mxu0 %v7541
      %v7693 = vpop.f32.mrb[0].mxu0
      %v7694 = vadd.f32 0.0, %v7693
      %v7695 = vpop.f32.mrb[0].mxu0
      %v7696 = vpop.f32.mrb[0].mxu0
      %v7697 = vadd.f32 0.0, %v7696
      %v7698 = vpop.f32.mrb[0].mxu0
      %7699 = vmatprep.mubr.bf16.mxu0 0
      %7700 = vmatmul.mubr.bf16.gmra.mrb[0].mxu0 %v7544
      %v7701 = vpop.f32.mrb[0].mxu0
      %v7702 = vadd.f32 0.0, %v7701
      %v7703 = vpop.f32.mrb[0].mxu0
      %v7704 = vpop.f32.mrb[0].mxu0
      %v7705 = vadd.f32 0.0, %v7704
      %v7706 = vpop.f32.mrb[0].mxu0
      %7707 = vmatprep.mubr.bf16.mxu0 0
      %7708 = vmatmul.mubr.bf16.gmra.mrb[0].mxu0 %v7547
      %v7709 = vpop.f32.mrb[0].mxu0
      %v7710 = vadd.f32 0.0, %v7709
      %v7711 = vpop.f32.mrb[0].mxu0
      %v7712 = vpop.f32.mrb[0].mxu0
      %v7713 = vadd.f32 0.0, %v7712
      %v7714 = vpop.f32.mrb[0].mxu0
      %7715 = vmatprep.mubr.bf16.mxu0 0
      %7716 = vmatmul.mubr.bf16.gmra.mrb[0].mxu0 %v7550
      %v7717 = vpop.f32.mrb[0].mxu0
      %v7718 = vadd.f32 0.0, %v7717
      %v7719 = vpop.f32.mrb[0].mxu0
      %v7720 = vpop.f32.mrb[0].mxu0
      %v7721 = vadd.f32 0.0, %v7720
      %v7722 = vpop.f32.mrb[0].mxu0
      %7723 = vmatprep.mubr.bf16.mxu0 0
      %7724 = vmatmul.mubr.bf16.gmra.mrb[0].mxu0 %v7553
      %v7725 = vpop.f32.mrb[0].mxu0
      %v7726 = vadd.f32 0.0, %v7725
      %v7727 = vpop.f32.mrb[0].mxu0
      %v7728 = vpop.f32.mrb[0].mxu0
      %v7729 = vadd.f32 0.0, %v7728
      %v7730 = vpop.f32.mrb[0].mxu0
      %7731 = vdwg.mxu0
      %v7768 = vrot.slane %v7590, 5
      %v7769 = vrot.slane %v7593, 5
      %v7770 = vsel %vm5946, %v7768, %v7769
      %v7771 = vrot.slane %v7598, 5
      %v7772 = vsel %vm5946, %v7769, %v7771
      %v7773 = vrot.slane %v7601, 5
      %v7774 = vsel %vm5946, %v7771, %v7773
      %v7775 = vrot.slane %v7606, 5
      %v7776 = vsel %vm5946, %v7773, %v7775
      %v7777 = vrot.slane %v7609, 5
      %v7778 = vsel %vm5946, %v7775, %v7777
      %v7779 = vrot.slane %v7614, 5
      %v7780 = vsel %vm5946, %v7777, %v7779
      %v7781 = vrot.slane %v7617, 5
      %v7782 = vsel %vm5946, %v7779, %v7781
      %v7783 = vrot.slane %v7622, 5
      %v7784 = vsel %vm5946, %v7781, %v7783
      %v7785 = vrot.slane %v7625, 5
      %v7786 = vsel %vm5946, %v7783, %v7785
      %v7787 = vrot.slane %v7630, 5
      %v7788 = vsel %vm5946, %v7785, %v7787
      %v7789 = vrot.slane %v7633, 5
      %v7790 = vsel %vm5946, %v7787, %v7789
      %v7791 = vrot.slane %v7638, 5
      %v7792 = vsel %vm5946, %v7789, %v7791
      %v7793 = vrot.slane %v7641, 5
      %v7794 = vsel %vm5946, %v7791, %v7793
      %v7795 = vrot.slane %v7646, 5
      %v7796 = vsel %vm5946, %v7793, %v7795
      %v7797 = vrot.slane %v7649, 5
      %v7798 = vsel %vm5946, %v7795, %v7797
      %v7799 = vrot.slane %v7654, 5
      %v7800 = vsel %vm5946, %v7797, %v7799
      %v7801 = vrot.slane %v7657, 5
      %v7802 = vsel %vm5946, %v7799, %v7801
      %v7803 = vrot.slane %v7662, 5
      %v7804 = vsel %vm5946, %v7801, %v7803
      %v7805 = vrot.slane %v7665, 5
      %v7806 = vsel %vm5946, %v7803, %v7805
      %v7807 = vrot.slane %v7670, 5
      %v7808 = vsel %vm5946, %v7805, %v7807
      %v7809 = vrot.slane %v7673, 5
      %v7810 = vsel %vm5946, %v7807, %v7809
      %v7811 = vrot.slane %v7678, 5
      %v7812 = vsel %vm5946, %v7809, %v7811
      %v7813 = vrot.slane %v7681, 5
      %v7814 = vsel %vm5946, %v7811, %v7813
      %v7815 = vrot.slane %v7686, 5
      %v7816 = vsel %vm5946, %v7813, %v7815
      %v7817 = vrot.slane %v7689, 5
      %v7818 = vsel %vm5946, %v7815, %v7817
      %v7819 = vrot.slane %v7694, 5
      %v7820 = vsel %vm5946, %v7817, %v7819
      %v7821 = vrot.slane %v7697, 5
      %v7822 = vsel %vm5946, %v7819, %v7821
      %v7823 = vrot.slane %v7702, 5
      %v7824 = vsel %vm5946, %v7821, %v7823
      %v7825 = vrot.slane %v7705, 5
      %v7826 = vsel %vm5946, %v7823, %v7825
      %v7827 = vrot.slane %v7710, 5
      %v7828 = vsel %vm5946, %v7825, %v7827
      %v7829 = vrot.slane %v7713, 5
      %v7830 = vsel %vm5946, %v7827, %v7829
      %v7831 = vrot.slane %v7718, 5
      %v7832 = vsel %vm5946, %v7829, %v7831
      %v7833 = vrot.slane %v7721, 5
      %v7834 = vsel %vm5946, %v7831, %v7833
      %v7835 = vrot.slane %v7726, 5
      %v7836 = vsel %vm5946, %v7833, %v7835
      %v7837 = vrot.slane %v7729, 5
      %v7838 = vsel %vm5946, %v7835, %v7837
      %v7876 = vadd.f32 %v7264, %v7768
      %v7877 = vadd.f32 %v7265, %v7770
      %v7878 = vadd.f32 %v7266, %v7772
      %v7879 = vadd.f32 %v7267, %v7774
      %v7880 = vadd.f32 %v7268, %v7776
      %v7881 = vadd.f32 %v7269, %v7778
      %v7882 = vadd.f32 %v7270, %v7780
      %v7883 = vadd.f32 %v7271, %v7782
      %v7884 = vadd.f32 %v7272, %v7784
      %v7885 = vadd.f32 %v7273, %v7786
      %v7886 = vadd.f32 %v7274, %v7788
      %v7887 = vadd.f32 %v7275, %v7790
      %v7888 = vadd.f32 %v7276, %v7792
      %v7889 = vadd.f32 %v7277, %v7794
      %v7890 = vadd.f32 %v7278, %v7796
      %v7891 = vadd.f32 %v7279, %v7798
      %v7892 = vadd.f32 %v7280, %v7800
      %v7893 = vadd.f32 %v7281, %v7802
      %v7894 = vadd.f32 %v7282, %v7804
      %v7895 = vadd.f32 %v7283, %v7806
      %v7896 = vadd.f32 %v7284, %v7808
      %v7897 = vadd.f32 %v7285, %v7810
      %v7898 = vadd.f32 %v7286, %v7812
      %v7899 = vadd.f32 %v7287, %v7814
      %v7900 = vadd.f32 %v7288, %v7816
      %v7901 = vadd.f32 %v7289, %v7818
      %v7902 = vadd.f32 %v7290, %v7820
      %v7903 = vadd.f32 %v7291, %v7822
      %v7904 = vadd.f32 %v7292, %v7824
      %v7905 = vadd.f32 %v7293, %v7826
      %v7906 = vadd.f32 %v7294, %v7828
      %v7907 = vadd.f32 %v7295, %v7830
      %v7908 = vadd.f32 %v7296, %v7832
      %v7909 = vadd.f32 %v7297, %v7834
      %v7910 = vadd.f32 %v7298, %v7836
      %v7911 = vadd.f32 %v7299, %v7838
      %v7912 = vadd.f32 %v7300, %v7837
      %v7913 = vld [vmem:[#allocation2 + $0x98] sm:$0x3]
      %s7914 = scalar_lea.vmem %s4, 128
      %v7915 = vld [vmem:[%s7914] sm:$0xf]
      %v7916 = vld [vmem:[%s7914 + $0x4] sm:$0xf]
      %v7917 = vld [vmem:[%s7914 + $0x8] sm:$0xf]
      %v7918 = vld [vmem:[%s7914 + $0xc] sm:$0xf]
      %v7919 = vld [vmem:[%s7914 + $0x10] sm:$0xf]
      %v7920 = vld [vmem:[%s7914 + $0x14] sm:$0xf]
      %v7921 = vld [vmem:[%s7914 + $0x18] sm:$0xf]
      %v7922 = vld [vmem:[%s7914 + $0x1c] sm:$0xf]
      %v7924 = vunpack.c.l.b16 %v7913
      %v7925 = vpack.c.b16 %v7924, %v7924
      %v7927 = vshrl.u32 %v7421, 16
      %v7929 = vrot.slane %v7927, 1
      %v7930 = vshll.u32 %v7421, 16
      %v7932 = vrot.slane %v7930, 2
      %v7933 = vor.u32 %v7929, %v7932
      %v7935 = vshrl.u32 %v7422, 16
      %v7937 = vrot.slane %v7935, 1
      %v7938 = vshll.u32 %v7422, 16
      %v7940 = vrot.slane %v7938, 2
      %v7941 = vor.u32 %v7937, %v7940
      %v7942 = vsel %vm2123, %v7933, %v7941
      %v7944 = vshrl.u32 %v7423, 16
      %v7946 = vrot.slane %v7944, 1
      %v7947 = vshll.u32 %v7423, 16
      %v7949 = vrot.slane %v7947, 2
      %v7950 = vor.u32 %v7946, %v7949
      %v7951 = vsel %vm2123, %v7941, %v7950
      %v7953 = vshrl.u32 %v7424, 16
      %v7955 = vrot.slane %v7953, 1
      %v7956 = vshll.u32 %v7424, 16
      %v7958 = vrot.slane %v7956, 2
      %v7959 = vor.u32 %v7955, %v7958
      %v7960 = vsel %vm2123, %v7950, %v7959
      %v7962 = vshrl.u32 %v7425, 16
      %v7964 = vrot.slane %v7962, 1
      %v7965 = vshll.u32 %v7425, 16
      %v7967 = vrot.slane %v7965, 2
      %v7968 = vor.u32 %v7964, %v7967
      %v7969 = vsel %vm2123, %v7959, %v7968
      %v7971 = vshrl.u32 %v7426, 16
      %v7973 = vrot.slane %v7971, 1
      %v7974 = vshll.u32 %v7426, 16
      %v7976 = vrot.slane %v7974, 2
      %v7977 = vor.u32 %v7973, %v7976
      %v7978 = vsel %vm2123, %v7968, %v7977
      %v7980 = vshrl.u32 %v7427, 16
      %v7982 = vrot.slane %v7980, 1
      %v7983 = vshll.u32 %v7427, 16
      %v7985 = vrot.slane %v7983, 2
      %v7986 = vor.u32 %v7982, %v7985
      %v7987 = vsel %vm2123, %v7977, %v7986
      %v7989 = vshrl.u32 %v7428, 16
      %v7991 = vrot.slane %v7989, 1
      %v7992 = vshll.u32 %v7428, 16
      %v7994 = vrot.slane %v7992, 2
      %v7995 = vor.u32 %v7991, %v7994
      %v7996 = vsel %vm2123, %v7986, %v7995
      %v7998 = vshrl.u32 %v7429, 16
      %v8000 = vrot.slane %v7998, 1
      %v8001 = vshll.u32 %v7429, 16
      %v8003 = vrot.slane %v8001, 2
      %v8004 = vor.u32 %v8000, %v8003
      %v8005 = vsel %vm2123, %v7995, %v8004
      %v8007 = vshrl.u32 %v7430, 16
      %v8009 = vrot.slane %v8007, 1
      %v8010 = vshll.u32 %v7430, 16
      %v8012 = vrot.slane %v8010, 2
      %v8013 = vor.u32 %v8009, %v8012
      %v8014 = vsel %vm2123, %v8004, %v8013
      %v8016 = vshrl.u32 %v7431, 16
      %v8018 = vrot.slane %v8016, 1
      %v8019 = vshll.u32 %v7431, 16
      %v8021 = vrot.slane %v8019, 2
      %v8022 = vor.u32 %v8018, %v8021
      %v8023 = vsel %vm2123, %v8013, %v8022
      %v8025 = vshrl.u32 %v7432, 16
      %v8027 = vrot.slane %v8025, 1
      %v8028 = vshll.u32 %v7432, 16
      %v8030 = vrot.slane %v8028, 2
      %v8031 = vor.u32 %v8027, %v8030
      %v8032 = vsel %vm2123, %v8022, %v8031
      %v8034 = vshrl.u32 %v7433, 16
      %v8036 = vrot.slane %v8034, 1
      %v8037 = vshll.u32 %v7433, 16
      %v8039 = vrot.slane %v8037, 2
      %v8040 = vor.u32 %v8036, %v8039
      %v8041 = vsel %vm2123, %v8031, %v8040
      %v8043 = vshrl.u32 %v7434, 16
      %v8045 = vrot.slane %v8043, 1
      %v8046 = vshll.u32 %v7434, 16
      %v8048 = vrot.slane %v8046, 2
      %v8049 = vor.u32 %v8045, %v8048
      %v8050 = vsel %vm2123, %v8040, %v8049
      %v8052 = vshrl.u32 %v7435, 16
      %v8054 = vrot.slane %v8052, 1
      %v8055 = vshll.u32 %v7435, 16
      %v8057 = vrot.slane %v8055, 2
      %v8058 = vor.u32 %v8054, %v8057
      %v8059 = vsel %vm2123, %v8049, %v8058
      %v8061 = vshrl.u32 %v7436, 16
      %v8063 = vrot.slane %v8061, 1
      %v8064 = vshll.u32 %v7436, 16
      %v8066 = vrot.slane %v8064, 2
      %v8067 = vor.u32 %v8063, %v8066
      %v8068 = vsel %vm2123, %v8058, %v8067
      %v8070 = vshrl.u32 %v7437, 16
      %v8072 = vrot.slane %v8070, 1
      %v8073 = vshll.u32 %v7437, 16
      %v8075 = vrot.slane %v8073, 2
      %v8076 = vor.u32 %v8072, %v8075
      %v8077 = vsel %vm2123, %v8067, %v8076
      %v8079 = vshrl.u32 %v7438, 16
      %v8081 = vrot.slane %v8079, 1
      %v8082 = vshll.u32 %v7438, 16
      %v8084 = vrot.slane %v8082, 2
      %v8085 = vor.u32 %v8081, %v8084
      %v8086 = vsel %vm2123, %v8076, %v8085
      %v8088 = vshrl.u32 %v7925, 16
      %v8090 = vrot.slane %v8088, 1
      %v8091 = vshll.u32 %v7925, 16
      %v8093 = vrot.slane %v8091, 2
      %v8094 = vor.u32 %v8090, %v8093
      %v8095 = vsel %vm2123, %v8085, %v8094
      %v8104 = vunpack.c.l.b16 %v7915
      %v8105 = vunpack.c.l.b16 %v7916
      %v8106 = vunpack.c.l.b16 %v7917
      %v8107 = vunpack.c.l.b16 %v7918
      %v8108 = vunpack.c.l.b16 %v7919
      %v8109 = vunpack.c.l.b16 %v7920
      %v8110 = vunpack.c.l.b16 %v7921
      %v8111 = vunpack.c.l.b16 %v7922
      %v8112 = vpack.c.b16 %v8105, %v8104
      %v8113 = vpack.c.b16 %v8107, %v8106
      %v8114 = vpack.c.b16 %v8109, %v8108
      %v8115 = vpack.c.b16 %v8111, %v8110
      %v8121 = vsel %vm454, %v7942, 0
      %v8124 = vsel %vm454, %v7951, 0
      %v8127 = vsel %vm454, %v7960, 0
      %v8130 = vsel %vm454, %v7969, 0
      %v8133 = vsel %vm454, %v7978, 0
      %v8136 = vsel %vm454, %v7987, 0
      %v8139 = vsel %vm454, %v7996, 0
      %v8142 = vsel %vm454, %v8005, 0
      %v8145 = vsel %vm454, %v8014, 0
      %v8148 = vsel %vm454, %v8023, 0
      %v8151 = vsel %vm454, %v8032, 0
      %v8154 = vsel %vm454, %v8041, 0
      %v8157 = vsel %vm454, %v8050, 0
      %v8160 = vsel %vm454, %v8059, 0
      %v8163 = vsel %vm454, %v8068, 0
      %v8166 = vsel %vm454, %v8077, 0
      %v8169 = vsel %vm454, %v8086, 0
      %v8172 = vsel %vm454, %v8095, 0
      %8174 = vmatprep.subr.bf16.mxu0 0
      %8175 = vmatpush1.bf16.msra.mxu0 %v8112
      %8176 = vmatprep.subr.bf16.mxu0 0
      %8177 = vmatpush1.bf16.msra.mxu0 %v8113
      %8178 = vmatprep.subr.bf16.mxu0 0
      %8179 = vmatpush1.bf16.msra.mxu0 %v8114
      %8180 = vmatprep.subr.bf16.mxu0 0
      %8181 = vmatpush1.bf16.msra.mxu0 %v8115
      %8182 = vmatprep.subr.bf16.mxu0 0
      %8183 = vmatpush1.bf16.msra.mxu0 0
      %8184 = vmatprep.subr.bf16.mxu0 0
      %8185 = vmatpush1.bf16.msra.mxu0 0
      %8186 = vmatprep.subr.bf16.mxu0 0
      %8187 = vmatpush1.bf16.msra.mxu0 0
      %8188 = vmatprep.subr.bf16.mxu0 0
      %8189 = vmatpush1.bf16.msra.mxu0 0
      %8190 = vmatprep.subr.bf16.mxu0 0
      %8191 = vmatpush1.bf16.msra.mxu0 0
      %8192 = vmatprep.subr.bf16.mxu0 0
      %8193 = vmatpush1.bf16.msra.mxu0 0
      %8194 = vmatprep.subr.bf16.mxu0 0
      %8195 = vmatpush1.bf16.msra.mxu0 0
      %8196 = vmatprep.subr.bf16.mxu0 0
      %8197 = vmatpush1.bf16.msra.mxu0 0
      %8198 = vmatprep.subr.bf16.mxu0 0
      %8199 = vmatpush1.bf16.msra.mxu0 0
      %8200 = vmatprep.subr.bf16.mxu0 0
      %8201 = vmatpush1.bf16.msra.mxu0 0
      %8202 = vmatprep.subr.bf16.mxu0 0
      %8203 = vmatpush1.bf16.msra.mxu0 0
      %8204 = vmatprep.subr.bf16.mxu0 0
      %8205 = vmatpush1.bf16.msra.mxu0 0
      %8206 = vmatprep.mubr.bf16.mxu0 0
      %8207 = vmatmul.mubr.bf16.gmra.mrb[0].mxu0 %v8121
      %v8208 = vpop.f32.mrb[0].mxu0
      %v8209 = vadd.f32 0.0, %v8208
      %v8210 = vpop.f32.mrb[0].mxu0
      %v8211 = vpop.f32.mrb[0].mxu0
      %v8212 = vadd.f32 0.0, %v8211
      %v8213 = vpop.f32.mrb[0].mxu0
      %8214 = vmatprep.mubr.bf16.mxu0 0
      %8215 = vmatmul.mubr.bf16.gmra.mrb[0].mxu0 %v8124
      %v8216 = vpop.f32.mrb[0].mxu0
      %v8217 = vadd.f32 0.0, %v8216
      %v8218 = vpop.f32.mrb[0].mxu0
      %v8219 = vpop.f32.mrb[0].mxu0
      %v8220 = vadd.f32 0.0, %v8219
      %v8221 = vpop.f32.mrb[0].mxu0
      %8222 = vmatprep.mubr.bf16.mxu0 0
      %8223 = vmatmul.mubr.bf16.gmra.mrb[0].mxu0 %v8127
      %v8224 = vpop.f32.mrb[0].mxu0
      %v8225 = vadd.f32 0.0, %v8224
      %v8226 = vpop.f32.mrb[0].mxu0
      %v8227 = vpop.f32.mrb[0].mxu0
      %v8228 = vadd.f32 0.0, %v8227
      %v8229 = vpop.f32.mrb[0].mxu0
      %8230 = vmatprep.mubr.bf16.mxu0 0
      %8231 = vmatmul.mubr.bf16.gmra.mrb[0].mxu0 %v8130
      %v8232 = vpop.f32.mrb[0].mxu0
      %v8233 = vadd.f32 0.0, %v8232
      %v8234 = vpop.f32.mrb[0].mxu0
      %v8235 = vpop.f32.mrb[0].mxu0
      %v8236 = vadd.f32 0.0, %v8235
      %v8237 = vpop.f32.mrb[0].mxu0
      %8238 = vmatprep.mubr.bf16.mxu0 0
      %8239 = vmatmul.mubr.bf16.gmra.mrb[0].mxu0 %v8133
      %v8240 = vpop.f32.mrb[0].mxu0
      %v8241 = vadd.f32 0.0, %v8240
      %v8242 = vpop.f32.mrb[0].mxu0
      %v8243 = vpop.f32.mrb[0].mxu0
      %v8244 = vadd.f32 0.0, %v8243
      %v8245 = vpop.f32.mrb[0].mxu0
      %8246 = vmatprep.mubr.bf16.mxu0 0
      %8247 = vmatmul.mubr.bf16.gmra.mrb[0].mxu0 %v8136
      %v8248 = vpop.f32.mrb[0].mxu0
      %v8249 = vadd.f32 0.0, %v8248
      %v8250 = vpop.f32.mrb[0].mxu0
      %v8251 = vpop.f32.mrb[0].mxu0
      %v8252 = vadd.f32 0.0, %v8251
      %v8253 = vpop.f32.mrb[0].mxu0
      %8254 = vmatprep.mubr.bf16.mxu0 0
      %8255 = vmatmul.mubr.bf16.gmra.mrb[0].mxu0 %v8139
      %v8256 = vpop.f32.mrb[0].mxu0
      %v8257 = vadd.f32 0.0, %v8256
      %v8258 = vpop.f32.mrb[0].mxu0
      %v8259 = vpop.f32.mrb[0].mxu0
      %v8260 = vadd.f32 0.0, %v8259
      %v8261 = vpop.f32.mrb[0].mxu0
      %8262 = vmatprep.mubr.bf16.mxu0 0
      %8263 = vmatmul.mubr.bf16.gmra.mrb[0].mxu0 %v8142
      %v8264 = vpop.f32.mrb[0].mxu0
      %v8265 = vadd.f32 0.0, %v8264
      %v8266 = vpop.f32.mrb[0].mxu0
      %v8267 = vpop.f32.mrb[0].mxu0
      %v8268 = vadd.f32 0.0, %v8267
      %v8269 = vpop.f32.mrb[0].mxu0
      %8270 = vmatprep.mubr.bf16.mxu0 0
      %8271 = vmatmul.mubr.bf16.gmra.mrb[0].mxu0 %v8145
      %v8272 = vpop.f32.mrb[0].mxu0
      %v8273 = vadd.f32 0.0, %v8272
      %v8274 = vpop.f32.mrb[0].mxu0
      %v8275 = vpop.f32.mrb[0].mxu0
      %v8276 = vadd.f32 0.0, %v8275
      %v8277 = vpop.f32.mrb[0].mxu0
      %8278 = vmatprep.mubr.bf16.mxu0 0
      %8279 = vmatmul.mubr.bf16.gmra.mrb[0].mxu0 %v8148
      %v8280 = vpop.f32.mrb[0].mxu0
      %v8281 = vadd.f32 0.0, %v8280
      %v8282 = vpop.f32.mrb[0].mxu0
      %v8283 = vpop.f32.mrb[0].mxu0
      %v8284 = vadd.f32 0.0, %v8283
      %v8285 = vpop.f32.mrb[0].mxu0
      %8286 = vmatprep.mubr.bf16.mxu0 0
      %8287 = vmatmul.mubr.bf16.gmra.mrb[0].mxu0 %v8151
      %v8288 = vpop.f32.mrb[0].mxu0
      %v8289 = vadd.f32 0.0, %v8288
      %v8290 = vpop.f32.mrb[0].mxu0
      %v8291 = vpop.f32.mrb[0].mxu0
      %v8292 = vadd.f32 0.0, %v8291
      %v8293 = vpop.f32.mrb[0].mxu0
      %8294 = vmatprep.mubr.bf16.mxu0 0
      %8295 = vmatmul.mubr.bf16.gmra.mrb[0].mxu0 %v8154
      %v8296 = vpop.f32.mrb[0].mxu0
      %v8297 = vadd.f32 0.0, %v8296
      %v8298 = vpop.f32.mrb[0].mxu0
      %v8299 = vpop.f32.mrb[0].mxu0
      %v8300 = vadd.f32 0.0, %v8299
      %v8301 = vpop.f32.mrb[0].mxu0
      %8302 = vmatprep.mubr.bf16.mxu0 0
      %8303 = vmatmul.mubr.bf16.gmra.mrb[0].mxu0 %v8157
      %v8304 = vpop.f32.mrb[0].mxu0
      %v8305 = vadd.f32 0.0, %v8304
      %v8306 = vpop.f32.mrb[0].mxu0
      %v8307 = vpop.f32.mrb[0].mxu0
      %v8308 = vadd.f32 0.0, %v8307
      %v8309 = vpop.f32.mrb[0].mxu0
      %8310 = vmatprep.mubr.bf16.mxu0 0
      %8311 = vmatmul.mubr.bf16.gmra.mrb[0].mxu0 %v8160
      %v8312 = vpop.f32.mrb[0].mxu0
      %v8313 = vadd.f32 0.0, %v8312
      %v8314 = vpop.f32.mrb[0].mxu0
      %v8315 = vpop.f32.mrb[0].mxu0
      %v8316 = vadd.f32 0.0, %v8315
      %v8317 = vpop.f32.mrb[0].mxu0
      %8318 = vmatprep.mubr.bf16.mxu0 0
      %8319 = vmatmul.mubr.bf16.gmra.mrb[0].mxu0 %v8163
      %v8320 = vpop.f32.mrb[0].mxu0
      %v8321 = vadd.f32 0.0, %v8320
      %v8322 = vpop.f32.mrb[0].mxu0
      %v8323 = vpop.f32.mrb[0].mxu0
      %v8324 = vadd.f32 0.0, %v8323
      %v8325 = vpop.f32.mrb[0].mxu0
      %8326 = vmatprep.mubr.bf16.mxu0 0
      %8327 = vmatmul.mubr.bf16.gmra.mrb[0].mxu0 %v8166
      %v8328 = vpop.f32.mrb[0].mxu0
      %v8329 = vadd.f32 0.0, %v8328
      %v8330 = vpop.f32.mrb[0].mxu0
      %v8331 = vpop.f32.mrb[0].mxu0
      %v8332 = vadd.f32 0.0, %v8331
      %v8333 = vpop.f32.mrb[0].mxu0
      %8334 = vmatprep.mubr.bf16.mxu0 0
      %8335 = vmatmul.mubr.bf16.gmra.mrb[0].mxu0 %v8169
      %v8336 = vpop.f32.mrb[0].mxu0
      %v8337 = vadd.f32 0.0, %v8336
      %v8338 = vpop.f32.mrb[0].mxu0
      %v8339 = vpop.f32.mrb[0].mxu0
      %v8340 = vadd.f32 0.0, %v8339
      %v8341 = vpop.f32.mrb[0].mxu0
      %8342 = vmatprep.mubr.bf16.mxu0 0
      %8343 = vmatmul.mubr.bf16.gmra.mrb[0].mxu0 %v8172
      %v8344 = vpop.f32.mrb[0].mxu0
      %v8345 = vadd.f32 0.0, %v8344
      %v8346 = vpop.f32.mrb[0].mxu0
      %v8347 = vpop.f32.mrb[0].mxu0
      %v8348 = vadd.f32 0.0, %v8347
      %v8349 = vpop.f32.mrb[0].mxu0
      %8350 = vdwg.mxu0
      %v8387 = vrot.slane %v8209, 5
      %v8388 = vrot.slane %v8212, 5
      %v8389 = vsel %vm5946, %v8387, %v8388
      %v8390 = vrot.slane %v8217, 5
      %v8391 = vsel %vm5946, %v8388, %v8390
      %v8392 = vrot.slane %v8220, 5
      %v8393 = vsel %vm5946, %v8390, %v8392
      %v8394 = vrot.slane %v8225, 5
      %v8395 = vsel %vm5946, %v8392, %v8394
      %v8396 = vrot.slane %v8228, 5
      %v8397 = vsel %vm5946, %v8394, %v8396
      %v8398 = vrot.slane %v8233, 5
      %v8399 = vsel %vm5946, %v8396, %v8398
      %v8400 = vrot.slane %v8236, 5
      %v8401 = vsel %vm5946, %v8398, %v8400
      %v8402 = vrot.slane %v8241, 5
      %v8403 = vsel %vm5946, %v8400, %v8402
      %v8404 = vrot.slane %v8244, 5
      %v8405 = vsel %vm5946, %v8402, %v8404
      %v8406 = vrot.slane %v8249, 5
      %v8407 = vsel %vm5946, %v8404, %v8406
      %v8408 = vrot.slane %v8252, 5
      %v8409 = vsel %vm5946, %v8406, %v8408
      %v8410 = vrot.slane %v8257, 5
      %v8411 = vsel %vm5946, %v8408, %v8410
      %v8412 = vrot.slane %v8260, 5
      %v8413 = vsel %vm5946, %v8410, %v8412
      %v8414 = vrot.slane %v8265, 5
      %v8415 = vsel %vm5946, %v8412, %v8414
      %v8416 = vrot.slane %v8268, 5
      %v8417 = vsel %vm5946, %v8414, %v8416
      %v8418 = vrot.slane %v8273, 5
      %v8419 = vsel %vm5946, %v8416, %v8418
      %v8420 = vrot.slane %v8276, 5
      %v8421 = vsel %vm5946, %v8418, %v8420
      %v8422 = vrot.slane %v8281, 5
      %v8423 = vsel %vm5946, %v8420, %v8422
      %v8424 = vrot.slane %v8284, 5
      %v8425 = vsel %vm5946, %v8422, %v8424
      %v8426 = vrot.slane %v8289, 5
      %v8427 = vsel %vm5946, %v8424, %v8426
      %v8428 = vrot.slane %v8292, 5
      %v8429 = vsel %vm5946, %v8426, %v8428
      %v8430 = vrot.slane %v8297, 5
      %v8431 = vsel %vm5946, %v8428, %v8430
      %v8432 = vrot.slane %v8300, 5
      %v8433 = vsel %vm5946, %v8430, %v8432
      %v8434 = vrot.slane %v8305, 5
      %v8435 = vsel %vm5946, %v8432, %v8434
      %v8436 = vrot.slane %v8308, 5
      %v8437 = vsel %vm5946, %v8434, %v8436
      %v8438 = vrot.slane %v8313, 5
      %v8439 = vsel %vm5946, %v8436, %v8438
      %v8440 = vrot.slane %v8316, 5
      %v8441 = vsel %vm5946, %v8438, %v8440
      %v8442 = vrot.slane %v8321, 5
      %v8443 = vsel %vm5946, %v8440, %v8442
      %v8444 = vrot.slane %v8324, 5
      %v8445 = vsel %vm5946, %v8442, %v8444
      %v8446 = vrot.slane %v8329, 5
      %v8447 = vsel %vm5946, %v8444, %v8446
      %v8448 = vrot.slane %v8332, 5
      %v8449 = vsel %vm5946, %v8446, %v8448
      %v8450 = vrot.slane %v8337, 5
      %v8451 = vsel %vm5946, %v8448, %v8450
      %v8452 = vrot.slane %v8340, 5
      %v8453 = vsel %vm5946, %v8450, %v8452
      %v8454 = vrot.slane %v8345, 5
      %v8455 = vsel %vm5946, %v8452, %v8454
      %v8456 = vrot.slane %v8348, 5
      %v8457 = vsel %vm5946, %v8454, %v8456
      %v8495 = vadd.f32 %v7876, %v8387
      %v8496 = vadd.f32 %v7877, %v8389
      %v8497 = vadd.f32 %v7878, %v8391
      %v8498 = vadd.f32 %v7879, %v8393
      %v8499 = vadd.f32 %v7880, %v8395
      %v8500 = vadd.f32 %v7881, %v8397
      %v8501 = vadd.f32 %v7882, %v8399
      %v8502 = vadd.f32 %v7883, %v8401
      %v8503 = vadd.f32 %v7884, %v8403
      %v8504 = vadd.f32 %v7885, %v8405
      %v8505 = vadd.f32 %v7886, %v8407
      %v8506 = vadd.f32 %v7887, %v8409
      %v8507 = vadd.f32 %v7888, %v8411
      %v8508 = vadd.f32 %v7889, %v8413
      %v8509 = vadd.f32 %v7890, %v8415
      %v8510 = vadd.f32 %v7891, %v8417
      %v8511 = vadd.f32 %v7892, %v8419
      %v8512 = vadd.f32 %v7893, %v8421
      %v8513 = vadd.f32 %v7894, %v8423
      %v8514 = vadd.f32 %v7895, %v8425
      %v8515 = vadd.f32 %v7896, %v8427
      %v8516 = vadd.f32 %v7897, %v8429
      %v8517 = vadd.f32 %v7898, %v8431
      %v8518 = vadd.f32 %v7899, %v8433
      %v8519 = vadd.f32 %v7900, %v8435
      %v8520 = vadd.f32 %v7901, %v8437
      %v8521 = vadd.f32 %v7902, %v8439
      %v8522 = vadd.f32 %v7903, %v8441
      %v8523 = vadd.f32 %v7904, %v8443
      %v8524 = vadd.f32 %v7905, %v8445
      %v8525 = vadd.f32 %v7906, %v8447
      %v8526 = vadd.f32 %v7907, %v8449
      %v8527 = vadd.f32 %v7908, %v8451
      %v8528 = vadd.f32 %v7909, %v8453
      %v8529 = vadd.f32 %v7910, %v8455
      %v8530 = vadd.f32 %v7911, %v8457
      %v8531 = vadd.f32 %v7912, %v8456
      %v8532 = vld [vmem:[#allocation2 + $0x8] sm:$0xc]
      %s8533 = scalar_lea.vmem %s4, 160
      %v8534 = vld [vmem:[%s8533] sm:$0xf]
      %v8535 = vld [vmem:[%s8533 + $0x4] sm:$0xf]
      %v8536 = vld [vmem:[%s8533 + $0x8] sm:$0xf]
      %v8537 = vld [vmem:[%s8533 + $0xc] sm:$0xf]
      %v8538 = vld [vmem:[%s8533 + $0x10] sm:$0xf]
      %v8539 = vld [vmem:[%s8533 + $0x14] sm:$0xf]
      %v8540 = vld [vmem:[%s8533 + $0x18] sm:$0xf]
      %v8541 = vld [vmem:[%s8533 + $0x1c] sm:$0xf]
      %v8543 = vunpack.c.l.b16 %v8532
      %v8544 = vpack.c.b16 %v7385, %v8543
      %v8545 = vrot.slane %v8544, 2
      %v8546 = vrot.slane %v7422, 2
      %v8547 = vsel %vm2598, %v8545, %v8546
      %v8548 = vrot.slane %v7423, 2
      %v8549 = vsel %vm2598, %v8546, %v8548
      %v8550 = vrot.slane %v7424, 2
      %v8551 = vsel %vm2598, %v8548, %v8550
      %v8552 = vrot.slane %v7425, 2
      %v8553 = vsel %vm2598, %v8550, %v8552
      %v8554 = vrot.slane %v7426, 2
      %v8555 = vsel %vm2598, %v8552, %v8554
      %v8556 = vrot.slane %v7427, 2
      %v8557 = vsel %vm2598, %v8554, %v8556
      %v8558 = vrot.slane %v7428, 2
      %v8559 = vsel %vm2598, %v8556, %v8558
      %v8560 = vrot.slane %v7429, 2
      %v8561 = vsel %vm2598, %v8558, %v8560
      %v8562 = vrot.slane %v7430, 2
      %v8563 = vsel %vm2598, %v8560, %v8562
      %v8564 = vrot.slane %v7431, 2
      %v8565 = vsel %vm2598, %v8562, %v8564
      %v8566 = vrot.slane %v7432, 2
      %v8567 = vsel %vm2598, %v8564, %v8566
      %v8568 = vrot.slane %v7433, 2
      %v8569 = vsel %vm2598, %v8566, %v8568
      %v8570 = vrot.slane %v7434, 2
      %v8571 = vsel %vm2598, %v8568, %v8570
      %v8572 = vrot.slane %v7435, 2
      %v8573 = vsel %vm2598, %v8570, %v8572
      %v8574 = vrot.slane %v7436, 2
      %v8575 = vsel %vm2598, %v8572, %v8574
      %v8576 = vrot.slane %v7437, 2
      %v8577 = vsel %vm2598, %v8574, %v8576
      %v8578 = vrot.slane %v7438, 2
      %v8579 = vsel %vm2598, %v8576, %v8578
      %v8580 = vrot.slane %v7925, 2
      %v8581 = vsel %vm2598, %v8578, %v8580
      %v8590 = vunpack.c.l.b16 %v8534
      %v8591 = vunpack.c.l.b16 %v8535
      %v8592 = vunpack.c.l.b16 %v8536
      %v8593 = vunpack.c.l.b16 %v8537
      %v8594 = vunpack.c.l.b16 %v8538
      %v8595 = vunpack.c.l.b16 %v8539
      %v8596 = vunpack.c.l.b16 %v8540
      %v8597 = vunpack.c.l.b16 %v8541
      %v8598 = vpack.c.b16 %v8591, %v8590
      %v8599 = vpack.c.b16 %v8593, %v8592
      %v8600 = vpack.c.b16 %v8595, %v8594
      %v8601 = vpack.c.b16 %v8597, %v8596
      %v8607 = vsel %vm454, %v8547, 0
      %v8610 = vsel %vm454, %v8549, 0
      %v8613 = vsel %vm454, %v8551, 0
      %v8616 = vsel %vm454, %v8553, 0
      %v8619 = vsel %vm454, %v8555, 0
      %v8622 = vsel %vm454, %v8557, 0
      %v8625 = vsel %vm454, %v8559, 0
      %v8628 = vsel %vm454, %v8561, 0
      %v8631 = vsel %vm454, %v8563, 0
      %v8634 = vsel %vm454, %v8565, 0
      %v8637 = vsel %vm454, %v8567, 0
      %v8640 = vsel %vm454, %v8569, 0
      %v8643 = vsel %vm454, %v8571, 0
      %v8646 = vsel %vm454, %v8573, 0
      %v8649 = vsel %vm454, %v8575, 0
      %v8652 = vsel %vm454, %v8577, 0
      %v8655 = vsel %vm454, %v8579, 0
      %v8658 = vsel %vm454, %v8581, 0
      %8660 = vmatprep.subr.bf16.mxu0 0
      %8661 = vmatpush1.bf16.msra.mxu0 %v8598
      %8662 = vmatprep.subr.bf16.mxu0 0
      %8663 = vmatpush1.bf16.msra.mxu0 %v8599
      %8664 = vmatprep.subr.bf16.mxu0 0
      %8665 = vmatpush1.bf16.msra.mxu0 %v8600
      %8666 = vmatprep.subr.bf16.mxu0 0
      %8667 = vmatpush1.bf16.msra.mxu0 %v8601
      %8668 = vmatprep.subr.bf16.mxu0 0
      %8669 = vmatpush1.bf16.msra.mxu0 0
      %8670 = vmatprep.subr.bf16.mxu0 0
      %8671 = vmatpush1.bf16.msra.mxu0 0
      %8672 = vmatprep.subr.bf16.mxu0 0
      %8673 = vmatpush1.bf16.msra.mxu0 0
      %8674 = vmatprep.subr.bf16.mxu0 0
      %8675 = vmatpush1.bf16.msra.mxu0 0
      %8676 = vmatprep.subr.bf16.mxu0 0
      %8677 = vmatpush1.bf16.msra.mxu0 0
      %8678 = vmatprep.subr.bf16.mxu0 0
      %8679 = vmatpush1.bf16.msra.mxu0 0
      %8680 = vmatprep.subr.bf16.mxu0 0
      %8681 = vmatpush1.bf16.msra.mxu0 0
      %8682 = vmatprep.subr.bf16.mxu0 0
      %8683 = vmatpush1.bf16.msra.mxu0 0
      %8684 = vmatprep.subr.bf16.mxu0 0
      %8685 = vmatpush1.bf16.msra.mxu0 0
      %8686 = vmatprep.subr.bf16.mxu0 0
      %8687 = vmatpush1.bf16.msra.mxu0 0
      %8688 = vmatprep.subr.bf16.mxu0 0
      %8689 = vmatpush1.bf16.msra.mxu0 0
      %8690 = vmatprep.subr.bf16.mxu0 0
      %8691 = vmatpush1.bf16.msra.mxu0 0
      %8692 = vmatprep.mubr.bf16.mxu0 0
      %8693 = vmatmul.mubr.bf16.gmra.mrb[0].mxu0 %v8607
      %v8694 = vpop.f32.mrb[0].mxu0
      %v8695 = vadd.f32 0.0, %v8694
      %v8696 = vpop.f32.mrb[0].mxu0
      %v8697 = vpop.f32.mrb[0].mxu0
      %v8698 = vadd.f32 0.0, %v8697
      %v8699 = vpop.f32.mrb[0].mxu0
      %8700 = vmatprep.mubr.bf16.mxu0 0
      %8701 = vmatmul.mubr.bf16.gmra.mrb[0].mxu0 %v8610
      %v8702 = vpop.f32.mrb[0].mxu0
      %v8703 = vadd.f32 0.0, %v8702
      %v8704 = vpop.f32.mrb[0].mxu0
      %v8705 = vpop.f32.mrb[0].mxu0
      %v8706 = vadd.f32 0.0, %v8705
      %v8707 = vpop.f32.mrb[0].mxu0
      %8708 = vmatprep.mubr.bf16.mxu0 0
      %8709 = vmatmul.mubr.bf16.gmra.mrb[0].mxu0 %v8613
      %v8710 = vpop.f32.mrb[0].mxu0
      %v8711 = vadd.f32 0.0, %v8710
      %v8712 = vpop.f32.mrb[0].mxu0
      %v8713 = vpop.f32.mrb[0].mxu0
      %v8714 = vadd.f32 0.0, %v8713
      %v8715 = vpop.f32.mrb[0].mxu0
      %8716 = vmatprep.mubr.bf16.mxu0 0
      %8717 = vmatmul.mubr.bf16.gmra.mrb[0].mxu0 %v8616
      %v8718 = vpop.f32.mrb[0].mxu0
      %v8719 = vadd.f32 0.0, %v8718
      %v8720 = vpop.f32.mrb[0].mxu0
      %v8721 = vpop.f32.mrb[0].mxu0
      %v8722 = vadd.f32 0.0, %v8721
      %v8723 = vpop.f32.mrb[0].mxu0
      %8724 = vmatprep.mubr.bf16.mxu0 0
      %8725 = vmatmul.mubr.bf16.gmra.mrb[0].mxu0 %v8619
      %v8726 = vpop.f32.mrb[0].mxu0
      %v8727 = vadd.f32 0.0, %v8726
      %v8728 = vpop.f32.mrb[0].mxu0
      %v8729 = vpop.f32.mrb[0].mxu0
      %v8730 = vadd.f32 0.0, %v8729
      %v8731 = vpop.f32.mrb[0].mxu0
      %8732 = vmatprep.mubr.bf16.mxu0 0
      %8733 = vmatmul.mubr.bf16.gmra.mrb[0].mxu0 %v8622
      %v8734 = vpop.f32.mrb[0].mxu0
      %v8735 = vadd.f32 0.0, %v8734
      %v8736 = vpop.f32.mrb[0].mxu0
      %v8737 = vpop.f32.mrb[0].mxu0
      %v8738 = vadd.f32 0.0, %v8737
      %v8739 = vpop.f32.mrb[0].mxu0
      %8740 = vmatprep.mubr.bf16.mxu0 0
      %8741 = vmatmul.mubr.bf16.gmra.mrb[0].mxu0 %v8625
      %v8742 = vpop.f32.mrb[0].mxu0
      %v8743 = vadd.f32 0.0, %v8742
      %v8744 = vpop.f32.mrb[0].mxu0
      %v8745 = vpop.f32.mrb[0].mxu0
      %v8746 = vadd.f32 0.0, %v8745
      %v8747 = vpop.f32.mrb[0].mxu0
      %8748 = vmatprep.mubr.bf16.mxu0 0
      %8749 = vmatmul.mubr.bf16.gmra.mrb[0].mxu0 %v8628
      %v8750 = vpop.f32.mrb[0].mxu0
      %v8751 = vadd.f32 0.0, %v8750
      %v8752 = vpop.f32.mrb[0].mxu0
      %v8753 = vpop.f32.mrb[0].mxu0
      %v8754 = vadd.f32 0.0, %v8753
      %v8755 = vpop.f32.mrb[0].mxu0
      %8756 = vmatprep.mubr.bf16.mxu0 0
      %8757 = vmatmul.mubr.bf16.gmra.mrb[0].mxu0 %v8631
      %v8758 = vpop.f32.mrb[0].mxu0
      %v8759 = vadd.f32 0.0, %v8758
      %v8760 = vpop.f32.mrb[0].mxu0
      %v8761 = vpop.f32.mrb[0].mxu0
      %v8762 = vadd.f32 0.0, %v8761
      %v8763 = vpop.f32.mrb[0].mxu0
      %8764 = vmatprep.mubr.bf16.mxu0 0
      %8765 = vmatmul.mubr.bf16.gmra.mrb[0].mxu0 %v8634
      %v8766 = vpop.f32.mrb[0].mxu0
      %v8767 = vadd.f32 0.0, %v8766
      %v8768 = vpop.f32.mrb[0].mxu0
      %v8769 = vpop.f32.mrb[0].mxu0
      %v8770 = vadd.f32 0.0, %v8769
      %v8771 = vpop.f32.mrb[0].mxu0
      %8772 = vmatprep.mubr.bf16.mxu0 0
      %8773 = vmatmul.mubr.bf16.gmra.mrb[0].mxu0 %v8637
      %v8774 = vpop.f32.mrb[0].mxu0
      %v8775 = vadd.f32 0.0, %v8774
      %v8776 = vpop.f32.mrb[0].mxu0
      %v8777 = vpop.f32.mrb[0].mxu0
      %v8778 = vadd.f32 0.0, %v8777
      %v8779 = vpop.f32.mrb[0].mxu0
      %8780 = vmatprep.mubr.bf16.mxu0 0
      %8781 = vmatmul.mubr.bf16.gmra.mrb[0].mxu0 %v8640
      %v8782 = vpop.f32.mrb[0].mxu0
      %v8783 = vadd.f32 0.0, %v8782
      %v8784 = vpop.f32.mrb[0].mxu0
      %v8785 = vpop.f32.mrb[0].mxu0
      %v8786 = vadd.f32 0.0, %v8785
      %v8787 = vpop.f32.mrb[0].mxu0
      %8788 = vmatprep.mubr.bf16.mxu0 0
      %8789 = vmatmul.mubr.bf16.gmra.mrb[0].mxu0 %v8643
      %v8790 = vpop.f32.mrb[0].mxu0
      %v8791 = vadd.f32 0.0, %v8790
      %v8792 = vpop.f32.mrb[0].mxu0
      %v8793 = vpop.f32.mrb[0].mxu0
      %v8794 = vadd.f32 0.0, %v8793
      %v8795 = vpop.f32.mrb[0].mxu0
      %8796 = vmatprep.mubr.bf16.mxu0 0
      %8797 = vmatmul.mubr.bf16.gmra.mrb[0].mxu0 %v8646
      %v8798 = vpop.f32.mrb[0].mxu0
      %v8799 = vadd.f32 0.0, %v8798
      %v8800 = vpop.f32.mrb[0].mxu0
      %v8801 = vpop.f32.mrb[0].mxu0
      %v8802 = vadd.f32 0.0, %v8801
      %v8803 = vpop.f32.mrb[0].mxu0
      %8804 = vmatprep.mubr.bf16.mxu0 0
      %8805 = vmatmul.mubr.bf16.gmra.mrb[0].mxu0 %v8649
      %v8806 = vpop.f32.mrb[0].mxu0
      %v8807 = vadd.f32 0.0, %v8806
      %v8808 = vpop.f32.mrb[0].mxu0
      %v8809 = vpop.f32.mrb[0].mxu0
      %v8810 = vadd.f32 0.0, %v8809
      %v8811 = vpop.f32.mrb[0].mxu0
      %8812 = vmatprep.mubr.bf16.mxu0 0
      %8813 = vmatmul.mubr.bf16.gmra.mrb[0].mxu0 %v8652
      %v8814 = vpop.f32.mrb[0].mxu0
      %v8815 = vadd.f32 0.0, %v8814
      %v8816 = vpop.f32.mrb[0].mxu0
      %v8817 = vpop.f32.mrb[0].mxu0
      %v8818 = vadd.f32 0.0, %v8817
      %v8819 = vpop.f32.mrb[0].mxu0
      %8820 = vmatprep.mubr.bf16.mxu0 0
      %8821 = vmatmul.mubr.bf16.gmra.mrb[0].mxu0 %v8655
      %v8822 = vpop.f32.mrb[0].mxu0
      %v8823 = vadd.f32 0.0, %v8822
      %v8824 = vpop.f32.mrb[0].mxu0
      %v8825 = vpop.f32.mrb[0].mxu0
      %v8826 = vadd.f32 0.0, %v8825
      %v8827 = vpop.f32.mrb[0].mxu0
      %8828 = vmatprep.mubr.bf16.mxu0 0
      %8829 = vmatmul.mubr.bf16.gmra.mrb[0].mxu0 %v8658
      %v8830 = vpop.f32.mrb[0].mxu0
      %v8831 = vadd.f32 0.0, %v8830
      %v8832 = vpop.f32.mrb[0].mxu0
      %v8833 = vpop.f32.mrb[0].mxu0
      %v8834 = vadd.f32 0.0, %v8833
      %v8835 = vpop.f32.mrb[0].mxu0
      %8836 = vdwg.mxu0
      %v8873 = vrot.slane %v8695, 5
      %v8874 = vrot.slane %v8698, 5
      %v8875 = vsel %vm5946, %v8873, %v8874
      %v8876 = vrot.slane %v8703, 5
      %v8877 = vsel %vm5946, %v8874, %v8876
      %v8878 = vrot.slane %v8706, 5
      %v8879 = vsel %vm5946, %v8876, %v8878
      %v8880 = vrot.slane %v8711, 5
      %v8881 = vsel %vm5946, %v8878, %v8880
      %v8882 = vrot.slane %v8714, 5
      %v8883 = vsel %vm5946, %v8880, %v8882
      %v8884 = vrot.slane %v8719, 5
      %v8885 = vsel %vm5946, %v8882, %v8884
      %v8886 = vrot.slane %v8722, 5
      %v8887 = vsel %vm5946, %v8884, %v8886
      %v8888 = vrot.slane %v8727, 5
      %v8889 = vsel %vm5946, %v8886, %v8888
      %v8890 = vrot.slane %v8730, 5
      %v8891 = vsel %vm5946, %v8888, %v8890
      %v8892 = vrot.slane %v8735, 5
      %v8893 = vsel %vm5946, %v8890, %v8892
      %v8894 = vrot.slane %v8738, 5
      %v8895 = vsel %vm5946, %v8892, %v8894
      %v8896 = vrot.slane %v8743, 5
      %v8897 = vsel %vm5946, %v8894, %v8896
      %v8898 = vrot.slane %v8746, 5
      %v8899 = vsel %vm5946, %v8896, %v8898
      %v8900 = vrot.slane %v8751, 5
      %v8901 = vsel %vm5946, %v8898, %v8900
      %v8902 = vrot.slane %v8754, 5
      %v8903 = vsel %vm5946, %v8900, %v8902
      %v8904 = vrot.slane %v8759, 5
      %v8905 = vsel %vm5946, %v8902, %v8904
      %v8906 = vrot.slane %v8762, 5
      %v8907 = vsel %vm5946, %v8904, %v8906
      %v8908 = vrot.slane %v8767, 5
      %v8909 = vsel %vm5946, %v8906, %v8908
      %v8910 = vrot.slane %v8770, 5
      %v8911 = vsel %vm5946, %v8908, %v8910
      %v8912 = vrot.slane %v8775, 5
      %v8913 = vsel %vm5946, %v8910, %v8912
      %v8914 = vrot.slane %v8778, 5
      %v8915 = vsel %vm5946, %v8912, %v8914
      %v8916 = vrot.slane %v8783, 5
      %v8917 = vsel %vm5946, %v8914, %v8916
      %v8918 = vrot.slane %v8786, 5
      %v8919 = vsel %vm5946, %v8916, %v8918
      %v8920 = vrot.slane %v8791, 5
      %v8921 = vsel %vm5946, %v8918, %v8920
      %v8922 = vrot.slane %v8794, 5
      %v8923 = vsel %vm5946, %v8920, %v8922
      %v8924 = vrot.slane %v8799, 5
      %v8925 = vsel %vm5946, %v8922, %v8924
      %v8926 = vrot.slane %v8802, 5
      %v8927 = vsel %vm5946, %v8924, %v8926
      %v8928 = vrot.slane %v8807, 5
      %v8929 = vsel %vm5946, %v8926, %v8928
      %v8930 = vrot.slane %v8810, 5
      %v8931 = vsel %vm5946, %v8928, %v8930
      %v8932 = vrot.slane %v8815, 5
      %v8933 = vsel %vm5946, %v8930, %v8932
      %v8934 = vrot.slane %v8818, 5
      %v8935 = vsel %vm5946, %v8932, %v8934
      %v8936 = vrot.slane %v8823, 5
      %v8937 = vsel %vm5946, %v8934, %v8936
      %v8938 = vrot.slane %v8826, 5
      %v8939 = vsel %vm5946, %v8936, %v8938
      %v8940 = vrot.slane %v8831, 5
      %v8941 = vsel %vm5946, %v8938, %v8940
      %v8942 = vrot.slane %v8834, 5
      %v8943 = vsel %vm5946, %v8940, %v8942
      %v8981 = vadd.f32 %v8495, %v8873
      %v8982 = vadd.f32 %v8496, %v8875
      %v8983 = vadd.f32 %v8497, %v8877
      %v8984 = vadd.f32 %v8498, %v8879
      %v8985 = vadd.f32 %v8499, %v8881
      %v8986 = vadd.f32 %v8500, %v8883
      %v8987 = vadd.f32 %v8501, %v8885
      %v8988 = vadd.f32 %v8502, %v8887
      %v8989 = vadd.f32 %v8503, %v8889
      %v8990 = vadd.f32 %v8504, %v8891
      %v8991 = vadd.f32 %v8505, %v8893
      %v8992 = vadd.f32 %v8506, %v8895
      %v8993 = vadd.f32 %v8507, %v8897
      %v8994 = vadd.f32 %v8508, %v8899
      %v8995 = vadd.f32 %v8509, %v8901
      %v8996 = vadd.f32 %v8510, %v8903
      %v8997 = vadd.f32 %v8511, %v8905
      %v8998 = vadd.f32 %v8512, %v8907
      %v8999 = vadd.f32 %v8513, %v8909
      %v9000 = vadd.f32 %v8514, %v8911
      %v9001 = vadd.f32 %v8515, %v8913
      %v9002 = vadd.f32 %v8516, %v8915
      %v9003 = vadd.f32 %v8517, %v8917
      %v9004 = vadd.f32 %v8518, %v8919
      %v9005 = vadd.f32 %v8519, %v8921
      %v9006 = vadd.f32 %v8520, %v8923
      %v9007 = vadd.f32 %v8521, %v8925
      %v9008 = vadd.f32 %v8522, %v8927
      %v9009 = vadd.f32 %v8523, %v8929
      %v9010 = vadd.f32 %v8524, %v8931
      %v9011 = vadd.f32 %v8525, %v8933
      %v9012 = vadd.f32 %v8526, %v8935
      %v9013 = vadd.f32 %v8527, %v8937
      %v9014 = vadd.f32 %v8528, %v8939
      %v9015 = vadd.f32 %v8529, %v8941
      %v9016 = vadd.f32 %v8530, %v8943
      %v9017 = vadd.f32 %v8531, %v8942
      %v9018 = vld [vmem:[#allocation2 + $0x10] sm:$0xc]
      %v9019 = vld [vmem:[#allocation2 + $0x14] sm:$0xf]
      %v9020 = vld [vmem:[#allocation2 + $0x18] sm:$0xf]
      %v9021 = vld [vmem:[#allocation2 + $0x1c] sm:$0xf]
      %v9022 = vld [vmem:[#allocation2 + $0x20] sm:$0xf]
      %v9023 = vld [vmem:[#allocation2 + $0x24] sm:$0xf]
      %v9024 = vld [vmem:[#allocation2 + $0x28] sm:$0xf]
      %v9025 = vld [vmem:[#allocation2 + $0x2c] sm:$0xf]
      %v9026 = vld [vmem:[#allocation2 + $0x30] sm:$0xf]
      %v9027 = vld [vmem:[#allocation2 + $0x34] sm:$0xf]
      %v9028 = vld [vmem:[#allocation2 + $0x38] sm:$0xf]
      %v9029 = vld [vmem:[#allocation2 + $0x3c] sm:$0xf]
      %v9030 = vld [vmem:[#allocation2 + $0x40] sm:$0xf]
      %v9031 = vld [vmem:[#allocation2 + $0x44] sm:$0xf]
      %v9032 = vld [vmem:[#allocation2 + $0x48] sm:$0xf]
      %v9033 = vld [vmem:[#allocation2 + $0x4c] sm:$0xf]
      %v9034 = vld [vmem:[#allocation2 + $0x50] sm:$0xf]
      %v9035 = vld [vmem:[#allocation2 + $0x54] sm:$0xf]
      %v9036 = vld [vmem:[#allocation2 + $0x58] sm:$0xf]
      %v9037 = vld [vmem:[#allocation2 + $0x5c] sm:$0xf]
      %v9038 = vld [vmem:[#allocation2 + $0x60] sm:$0xf]
      %v9039 = vld [vmem:[#allocation2 + $0x64] sm:$0xf]
      %v9040 = vld [vmem:[#allocation2 + $0x68] sm:$0xf]
      %v9041 = vld [vmem:[#allocation2 + $0x6c] sm:$0xf]
      %v9042 = vld [vmem:[#allocation2 + $0x70] sm:$0xf]
      %v9043 = vld [vmem:[#allocation2 + $0x74] sm:$0xf]
      %v9044 = vld [vmem:[#allocation2 + $0x78] sm:$0xf]
      %v9045 = vld [vmem:[#allocation2 + $0x7c] sm:$0xf]
      %v9046 = vld [vmem:[#allocation2 + $0x80] sm:$0xf]
      %v9047 = vld [vmem:[#allocation2 + $0x84] sm:$0xf]
      %v9048 = vld [vmem:[#allocation2 + $0x88] sm:$0xf]
      %v9049 = vld [vmem:[#allocation2 + $0x8c] sm:$0xf]
      %v9050 = vld [vmem:[#allocation2 + $0x90] sm:$0xf]
      %v9051 = vld [vmem:[#allocation2 + $0x94] sm:$0xf]
      %v9052 = vld [vmem:[#allocation2 + $0x98] sm:$0xf]
      %v9053 = vld [vmem:[#allocation2 + $0x9c] sm:$0xf]
      %v9054 = vld [vmem:[#allocation2 + $0xa0] sm:$0x3]
      %s9055 = scalar_lea.vmem %s4, 192
      %v9056 = vld [vmem:[%s9055] sm:$0xf]
      %v9057 = vld [vmem:[%s9055 + $0x4] sm:$0xf]
      %v9058 = vld [vmem:[%s9055 + $0x8] sm:$0xf]
      %v9059 = vld [vmem:[%s9055 + $0xc] sm:$0xf]
      %v9060 = vld [vmem:[%s9055 + $0x10] sm:$0xf]
      %v9061 = vld [vmem:[%s9055 + $0x14] sm:$0xf]
      %v9062 = vld [vmem:[%s9055 + $0x18] sm:$0xf]
      %v9063 = vld [vmem:[%s9055 + $0x1c] sm:$0xf]
      %v9101 = vunpack.c.l.b16 %v9018
      %v9102 = vunpack.c.l.b16 %v9019
      %v9103 = vunpack.c.l.b16 %v9020
      %v9104 = vunpack.c.l.b16 %v9021
      %v9105 = vunpack.c.l.b16 %v9022
      %v9106 = vunpack.c.l.b16 %v9023
      %v9107 = vunpack.c.l.b16 %v9024
      %v9108 = vunpack.c.l.b16 %v9025
      %v9109 = vunpack.c.l.b16 %v9026
      %v9110 = vunpack.c.l.b16 %v9027
      %v9111 = vunpack.c.l.b16 %v9028
      %v9112 = vunpack.c.l.b16 %v9029
      %v9113 = vunpack.c.l.b16 %v9030
      %v9114 = vunpack.c.l.b16 %v9031
      %v9115 = vunpack.c.l.b16 %v9032
      %v9116 = vunpack.c.l.b16 %v9033
      %v9117 = vunpack.c.l.b16 %v9034
      %v9118 = vunpack.c.l.b16 %v9035
      %v9119 = vunpack.c.l.b16 %v9036
      %v9120 = vunpack.c.l.b16 %v9037
      %v9121 = vunpack.c.l.b16 %v9038
      %v9122 = vunpack.c.l.b16 %v9039
      %v9123 = vunpack.c.l.b16 %v9040
      %v9124 = vunpack.c.l.b16 %v9041
      %v9125 = vunpack.c.l.b16 %v9042
      %v9126 = vunpack.c.l.b16 %v9043
      %v9127 = vunpack.c.l.b16 %v9044
      %v9128 = vunpack.c.l.b16 %v9045
      %v9129 = vunpack.c.l.b16 %v9046
      %v9130 = vunpack.c.l.b16 %v9047
      %v9131 = vunpack.c.l.b16 %v9048
      %v9132 = vunpack.c.l.b16 %v9049
      %v9133 = vunpack.c.l.b16 %v9050
      %v9134 = vunpack.c.l.b16 %v9051
      %v9135 = vunpack.c.l.b16 %v9052
      %v9136 = vunpack.c.l.b16 %v9053
      %v9137 = vunpack.c.l.b16 %v9054
      %v9138 = vpack.c.b16 %v9102, %v9101
      %v9139 = vpack.c.b16 %v9104, %v9103
      %v9140 = vpack.c.b16 %v9106, %v9105
      %v9141 = vpack.c.b16 %v9108, %v9107
      %v9142 = vpack.c.b16 %v9110, %v9109
      %v9143 = vpack.c.b16 %v9112, %v9111
      %v9144 = vpack.c.b16 %v9114, %v9113
      %v9145 = vpack.c.b16 %v9116, %v9115
      %v9146 = vpack.c.b16 %v9118, %v9117
      %v9147 = vpack.c.b16 %v9120, %v9119
      %v9148 = vpack.c.b16 %v9122, %v9121
      %v9149 = vpack.c.b16 %v9124, %v9123
      %v9150 = vpack.c.b16 %v9126, %v9125
      %v9151 = vpack.c.b16 %v9128, %v9127
      %v9152 = vpack.c.b16 %v9130, %v9129
      %v9153 = vpack.c.b16 %v9132, %v9131
      %v9154 = vpack.c.b16 %v9134, %v9133
      %v9155 = vpack.c.b16 %v9136, %v9135
      %v9156 = vpack.c.b16 %v9137, %v9137
      %v9157 = vrot.slane %v9138, 2
      %v9158 = vrot.slane %v9139, 2
      %v9159 = vsel %vm2598, %v9157, %v9158
      %v9160 = vrot.slane %v9140, 2
      %v9161 = vsel %vm2598, %v9158, %v9160
      %v9162 = vrot.slane %v9141, 2
      %v9163 = vsel %vm2598, %v9160, %v9162
      %v9164 = vrot.slane %v9142, 2
      %v9165 = vsel %vm2598, %v9162, %v9164
      %v9166 = vrot.slane %v9143, 2
      %v9167 = vsel %vm2598, %v9164, %v9166
      %v9168 = vrot.slane %v9144, 2
      %v9169 = vsel %vm2598, %v9166, %v9168
      %v9170 = vrot.slane %v9145, 2
      %v9171 = vsel %vm2598, %v9168, %v9170
      %v9172 = vrot.slane %v9146, 2
      %v9173 = vsel %vm2598, %v9170, %v9172
      %v9174 = vrot.slane %v9147, 2
      %v9175 = vsel %vm2598, %v9172, %v9174
      %v9176 = vrot.slane %v9148, 2
      %v9177 = vsel %vm2598, %v9174, %v9176
      %v9178 = vrot.slane %v9149, 2
      %v9179 = vsel %vm2598, %v9176, %v9178
      %v9180 = vrot.slane %v9150, 2
      %v9181 = vsel %vm2598, %v9178, %v9180
      %v9182 = vrot.slane %v9151, 2
      %v9183 = vsel %vm2598, %v9180, %v9182
      %v9184 = vrot.slane %v9152, 2
      %v9185 = vsel %vm2598, %v9182, %v9184
      %v9186 = vrot.slane %v9153, 2
      %v9187 = vsel %vm2598, %v9184, %v9186
      %v9188 = vrot.slane %v9154, 2
      %v9189 = vsel %vm2598, %v9186, %v9188
      %v9190 = vrot.slane %v9155, 2
      %v9191 = vsel %vm2598, %v9188, %v9190
      %v9192 = vrot.slane %v9156, 2
      %v9193 = vsel %vm2598, %v9190, %v9192
      %v9202 = vunpack.c.l.b16 %v9056
      %v9203 = vunpack.c.l.b16 %v9057
      %v9204 = vunpack.c.l.b16 %v9058
      %v9205 = vunpack.c.l.b16 %v9059
      %v9206 = vunpack.c.l.b16 %v9060
      %v9207 = vunpack.c.l.b16 %v9061
      %v9208 = vunpack.c.l.b16 %v9062
      %v9209 = vunpack.c.l.b16 %v9063
      %v9210 = vpack.c.b16 %v9203, %v9202
      %v9211 = vpack.c.b16 %v9205, %v9204
      %v9212 = vpack.c.b16 %v9207, %v9206
      %v9213 = vpack.c.b16 %v9209, %v9208
      %v9219 = vsel %vm454, %v9159, 0
      %v9222 = vsel %vm454, %v9161, 0
      %v9225 = vsel %vm454, %v9163, 0
      %v9228 = vsel %vm454, %v9165, 0
      %v9231 = vsel %vm454, %v9167, 0
      %v9234 = vsel %vm454, %v9169, 0
      %v9237 = vsel %vm454, %v9171, 0
      %v9240 = vsel %vm454, %v9173, 0
      %v9243 = vsel %vm454, %v9175, 0
      %v9246 = vsel %vm454, %v9177, 0
      %v9249 = vsel %vm454, %v9179, 0
      %v9252 = vsel %vm454, %v9181, 0
      %v9255 = vsel %vm454, %v9183, 0
      %v9258 = vsel %vm454, %v9185, 0
      %v9261 = vsel %vm454, %v9187, 0
      %v9264 = vsel %vm454, %v9189, 0
      %v9267 = vsel %vm454, %v9191, 0
      %v9270 = vsel %vm454, %v9193, 0
      %9272 = vmatprep.subr.bf16.mxu0 0
      %9273 = vmatpush1.bf16.msra.mxu0 %v9210
      %9274 = vmatprep.subr.bf16.mxu0 0
      %9275 = vmatpush1.bf16.msra.mxu0 %v9211
      %9276 = vmatprep.subr.bf16.mxu0 0
      %9277 = vmatpush1.bf16.msra.mxu0 %v9212
      %9278 = vmatprep.subr.bf16.mxu0 0
      %9279 = vmatpush1.bf16.msra.mxu0 %v9213
      %9280 = vmatprep.subr.bf16.mxu0 0
      %9281 = vmatpush1.bf16.msra.mxu0 0
      %9282 = vmatprep.subr.bf16.mxu0 0
      %9283 = vmatpush1.bf16.msra.mxu0 0
      %9284 = vmatprep.subr.bf16.mxu0 0
      %9285 = vmatpush1.bf16.msra.mxu0 0
      %9286 = vmatprep.subr.bf16.mxu0 0
      %9287 = vmatpush1.bf16.msra.mxu0 0
      %9288 = vmatprep.subr.bf16.mxu0 0
      %9289 = vmatpush1.bf16.msra.mxu0 0
      %9290 = vmatprep.subr.bf16.mxu0 0
      %9291 = vmatpush1.bf16.msra.mxu0 0
      %9292 = vmatprep.subr.bf16.mxu0 0
      %9293 = vmatpush1.bf16.msra.mxu0 0
      %9294 = vmatprep.subr.bf16.mxu0 0
      %9295 = vmatpush1.bf16.msra.mxu0 0
      %9296 = vmatprep.subr.bf16.mxu0 0
      %9297 = vmatpush1.bf16.msra.mxu0 0
      %9298 = vmatprep.subr.bf16.mxu0 0
      %9299 = vmatpush1.bf16.msra.mxu0 0
      %9300 = vmatprep.subr.bf16.mxu0 0
      %9301 = vmatpush1.bf16.msra.mxu0 0
      %9302 = vmatprep.subr.bf16.mxu0 0
      %9303 = vmatpush1.bf16.msra.mxu0 0
      %9304 = vmatprep.mubr.bf16.mxu0 0
      %9305 = vmatmul.mubr.bf16.gmra.mrb[0].mxu0 %v9219
      %v9306 = vpop.f32.mrb[0].mxu0
      %v9307 = vadd.f32 0.0, %v9306
      %v9308 = vpop.f32.mrb[0].mxu0
      %v9309 = vpop.f32.mrb[0].mxu0
      %v9310 = vadd.f32 0.0, %v9309
      %v9311 = vpop.f32.mrb[0].mxu0
      %9312 = vmatprep.mubr.bf16.mxu0 0
      %9313 = vmatmul.mubr.bf16.gmra.mrb[0].mxu0 %v9222
      %v9314 = vpop.f32.mrb[0].mxu0
      %v9315 = vadd.f32 0.0, %v9314
      %v9316 = vpop.f32.mrb[0].mxu0
      %v9317 = vpop.f32.mrb[0].mxu0
      %v9318 = vadd.f32 0.0, %v9317
      %v9319 = vpop.f32.mrb[0].mxu0
      %9320 = vmatprep.mubr.bf16.mxu0 0
      %9321 = vmatmul.mubr.bf16.gmra.mrb[0].mxu0 %v9225
      %v9322 = vpop.f32.mrb[0].mxu0
      %v9323 = vadd.f32 0.0, %v9322
      %v9324 = vpop.f32.mrb[0].mxu0
      %v9325 = vpop.f32.mrb[0].mxu0
      %v9326 = vadd.f32 0.0, %v9325
      %v9327 = vpop.f32.mrb[0].mxu0
      %9328 = vmatprep.mubr.bf16.mxu0 0
      %9329 = vmatmul.mubr.bf16.gmra.mrb[0].mxu0 %v9228
      %v9330 = vpop.f32.mrb[0].mxu0
      %v9331 = vadd.f32 0.0, %v9330
      %v9332 = vpop.f32.mrb[0].mxu0
      %v9333 = vpop.f32.mrb[0].mxu0
      %v9334 = vadd.f32 0.0, %v9333
      %v9335 = vpop.f32.mrb[0].mxu0
      %9336 = vmatprep.mubr.bf16.mxu0 0
      %9337 = vmatmul.mubr.bf16.gmra.mrb[0].mxu0 %v9231
      %v9338 = vpop.f32.mrb[0].mxu0
      %v9339 = vadd.f32 0.0, %v9338
      %v9340 = vpop.f32.mrb[0].mxu0
      %v9341 = vpop.f32.mrb[0].mxu0
      %v9342 = vadd.f32 0.0, %v9341
      %v9343 = vpop.f32.mrb[0].mxu0
      %9344 = vmatprep.mubr.bf16.mxu0 0
      %9345 = vmatmul.mubr.bf16.gmra.mrb[0].mxu0 %v9234
      %v9346 = vpop.f32.mrb[0].mxu0
      %v9347 = vadd.f32 0.0, %v9346
      %v9348 = vpop.f32.mrb[0].mxu0
      %v9349 = vpop.f32.mrb[0].mxu0
      %v9350 = vadd.f32 0.0, %v9349
      %v9351 = vpop.f32.mrb[0].mxu0
      %9352 = vmatprep.mubr.bf16.mxu0 0
      %9353 = vmatmul.mubr.bf16.gmra.mrb[0].mxu0 %v9237
      %v9354 = vpop.f32.mrb[0].mxu0
      %v9355 = vadd.f32 0.0, %v9354
      %v9356 = vpop.f32.mrb[0].mxu0
      %v9357 = vpop.f32.mrb[0].mxu0
      %v9358 = vadd.f32 0.0, %v9357
      %v9359 = vpop.f32.mrb[0].mxu0
      %9360 = vmatprep.mubr.bf16.mxu0 0
      %9361 = vmatmul.mubr.bf16.gmra.mrb[0].mxu0 %v9240
      %v9362 = vpop.f32.mrb[0].mxu0
      %v9363 = vadd.f32 0.0, %v9362
      %v9364 = vpop.f32.mrb[0].mxu0
      %v9365 = vpop.f32.mrb[0].mxu0
      %v9366 = vadd.f32 0.0, %v9365
      %v9367 = vpop.f32.mrb[0].mxu0
      %9368 = vmatprep.mubr.bf16.mxu0 0
      %9369 = vmatmul.mubr.bf16.gmra.mrb[0].mxu0 %v9243
      %v9370 = vpop.f32.mrb[0].mxu0
      %v9371 = vadd.f32 0.0, %v9370
      %v9372 = vpop.f32.mrb[0].mxu0
      %v9373 = vpop.f32.mrb[0].mxu0
      %v9374 = vadd.f32 0.0, %v9373
      %v9375 = vpop.f32.mrb[0].mxu0
      %9376 = vmatprep.mubr.bf16.mxu0 0
      %9377 = vmatmul.mubr.bf16.gmra.mrb[0].mxu0 %v9246
      %v9378 = vpop.f32.mrb[0].mxu0
      %v9379 = vadd.f32 0.0, %v9378
      %v9380 = vpop.f32.mrb[0].mxu0
      %v9381 = vpop.f32.mrb[0].mxu0
      %v9382 = vadd.f32 0.0, %v9381
      %v9383 = vpop.f32.mrb[0].mxu0
      %9384 = vmatprep.mubr.bf16.mxu0 0
      %9385 = vmatmul.mubr.bf16.gmra.mrb[0].mxu0 %v9249
      %v9386 = vpop.f32.mrb[0].mxu0
      %v9387 = vadd.f32 0.0, %v9386
      %v9388 = vpop.f32.mrb[0].mxu0
      %v9389 = vpop.f32.mrb[0].mxu0
      %v9390 = vadd.f32 0.0, %v9389
      %v9391 = vpop.f32.mrb[0].mxu0
      %9392 = vmatprep.mubr.bf16.mxu0 0
      %9393 = vmatmul.mubr.bf16.gmra.mrb[0].mxu0 %v9252
      %v9394 = vpop.f32.mrb[0].mxu0
      %v9395 = vadd.f32 0.0, %v9394
      %v9396 = vpop.f32.mrb[0].mxu0
      %v9397 = vpop.f32.mrb[0].mxu0
      %v9398 = vadd.f32 0.0, %v9397
      %v9399 = vpop.f32.mrb[0].mxu0
      %9400 = vmatprep.mubr.bf16.mxu0 0
      %9401 = vmatmul.mubr.bf16.gmra.mrb[0].mxu0 %v9255
      %v9402 = vpop.f32.mrb[0].mxu0
      %v9403 = vadd.f32 0.0, %v9402
      %v9404 = vpop.f32.mrb[0].mxu0
      %v9405 = vpop.f32.mrb[0].mxu0
      %v9406 = vadd.f32 0.0, %v9405
      %v9407 = vpop.f32.mrb[0].mxu0
      %9408 = vmatprep.mubr.bf16.mxu0 0
      %9409 = vmatmul.mubr.bf16.gmra.mrb[0].mxu0 %v9258
      %v9410 = vpop.f32.mrb[0].mxu0
      %v9411 = vadd.f32 0.0, %v9410
      %v9412 = vpop.f32.mrb[0].mxu0
      %v9413 = vpop.f32.mrb[0].mxu0
      %v9414 = vadd.f32 0.0, %v9413
      %v9415 = vpop.f32.mrb[0].mxu0
      %9416 = vmatprep.mubr.bf16.mxu0 0
      %9417 = vmatmul.mubr.bf16.gmra.mrb[0].mxu0 %v9261
      %v9418 = vpop.f32.mrb[0].mxu0
      %v9419 = vadd.f32 0.0, %v9418
      %v9420 = vpop.f32.mrb[0].mxu0
      %v9421 = vpop.f32.mrb[0].mxu0
      %v9422 = vadd.f32 0.0, %v9421
      %v9423 = vpop.f32.mrb[0].mxu0
      %9424 = vmatprep.mubr.bf16.mxu0 0
      %9425 = vmatmul.mubr.bf16.gmra.mrb[0].mxu0 %v9264
      %v9426 = vpop.f32.mrb[0].mxu0
      %v9427 = vadd.f32 0.0, %v9426
      %v9428 = vpop.f32.mrb[0].mxu0
      %v9429 = vpop.f32.mrb[0].mxu0
      %v9430 = vadd.f32 0.0, %v9429
      %v9431 = vpop.f32.mrb[0].mxu0
      %9432 = vmatprep.mubr.bf16.mxu0 0
      %9433 = vmatmul.mubr.bf16.gmra.mrb[0].mxu0 %v9267
      %v9434 = vpop.f32.mrb[0].mxu0
      %v9435 = vadd.f32 0.0, %v9434
      %v9436 = vpop.f32.mrb[0].mxu0
      %v9437 = vpop.f32.mrb[0].mxu0
      %v9438 = vadd.f32 0.0, %v9437
      %v9439 = vpop.f32.mrb[0].mxu0
      %9440 = vmatprep.mubr.bf16.mxu0 0
      %9441 = vmatmul.mubr.bf16.gmra.mrb[0].mxu0 %v9270
      %v9442 = vpop.f32.mrb[0].mxu0
      %v9443 = vadd.f32 0.0, %v9442
      %v9444 = vpop.f32.mrb[0].mxu0
      %v9445 = vpop.f32.mrb[0].mxu0
      %v9446 = vadd.f32 0.0, %v9445
      %v9447 = vpop.f32.mrb[0].mxu0
      %9448 = vdwg.mxu0
      %v9485 = vrot.slane %v9307, 5
      %v9486 = vrot.slane %v9310, 5
      %v9487 = vsel %vm5946, %v9485, %v9486
      %v9488 = vrot.slane %v9315, 5
      %v9489 = vsel %vm5946, %v9486, %v9488
      %v9490 = vrot.slane %v9318, 5
      %v9491 = vsel %vm5946, %v9488, %v9490
      %v9492 = vrot.slane %v9323, 5
      %v9493 = vsel %vm5946, %v9490, %v9492
      %v9494 = vrot.slane %v9326, 5
      %v9495 = vsel %vm5946, %v9492, %v9494
      %v9496 = vrot.slane %v9331, 5
      %v9497 = vsel %vm5946, %v9494, %v9496
      %v9498 = vrot.slane %v9334, 5
      %v9499 = vsel %vm5946, %v9496, %v9498
      %v9500 = vrot.slane %v9339, 5
      %v9501 = vsel %vm5946, %v9498, %v9500
      %v9502 = vrot.slane %v9342, 5
      %v9503 = vsel %vm5946, %v9500, %v9502
      %v9504 = vrot.slane %v9347, 5
      %v9505 = vsel %vm5946, %v9502, %v9504
      %v9506 = vrot.slane %v9350, 5
      %v9507 = vsel %vm5946, %v9504, %v9506
      %v9508 = vrot.slane %v9355, 5
      %v9509 = vsel %vm5946, %v9506, %v9508
      %v9510 = vrot.slane %v9358, 5
      %v9511 = vsel %vm5946, %v9508, %v9510
      %v9512 = vrot.slane %v9363, 5
      %v9513 = vsel %vm5946, %v9510, %v9512
      %v9514 = vrot.slane %v9366, 5
      %v9515 = vsel %vm5946, %v9512, %v9514
      %v9516 = vrot.slane %v9371, 5
      %v9517 = vsel %vm5946, %v9514, %v9516
      %v9518 = vrot.slane %v9374, 5
      %v9519 = vsel %vm5946, %v9516, %v9518
      %v9520 = vrot.slane %v9379, 5
      %v9521 = vsel %vm5946, %v9518, %v9520
      %v9522 = vrot.slane %v9382, 5
      %v9523 = vsel %vm5946, %v9520, %v9522
      %v9524 = vrot.slane %v9387, 5
      %v9525 = vsel %vm5946, %v9522, %v9524
      %v9526 = vrot.slane %v9390, 5
      %v9527 = vsel %vm5946, %v9524, %v9526
      %v9528 = vrot.slane %v9395, 5
      %v9529 = vsel %vm5946, %v9526, %v9528
      %v9530 = vrot.slane %v9398, 5
      %v9531 = vsel %vm5946, %v9528, %v9530
      %v9532 = vrot.slane %v9403, 5
      %v9533 = vsel %vm5946, %v9530, %v9532
      %v9534 = vrot.slane %v9406, 5
      %v9535 = vsel %vm5946, %v9532, %v9534
      %v9536 = vrot.slane %v9411, 5
      %v9537 = vsel %vm5946, %v9534, %v9536
      %v9538 = vrot.slane %v9414, 5
      %v9539 = vsel %vm5946, %v9536, %v9538
      %v9540 = vrot.slane %v9419, 5
      %v9541 = vsel %vm5946, %v9538, %v9540
      %v9542 = vrot.slane %v9422, 5
      %v9543 = vsel %vm5946, %v9540, %v9542
      %v9544 = vrot.slane %v9427, 5
      %v9545 = vsel %vm5946, %v9542, %v9544
      %v9546 = vrot.slane %v9430, 5
      %v9547 = vsel %vm5946, %v9544, %v9546
      %v9548 = vrot.slane %v9435, 5
      %v9549 = vsel %vm5946, %v9546, %v9548
      %v9550 = vrot.slane %v9438, 5
      %v9551 = vsel %vm5946, %v9548, %v9550
      %v9552 = vrot.slane %v9443, 5
      %v9553 = vsel %vm5946, %v9550, %v9552
      %v9554 = vrot.slane %v9446, 5
      %v9555 = vsel %vm5946, %v9552, %v9554
      %v9593 = vadd.f32 %v8981, %v9485
      %v9594 = vadd.f32 %v8982, %v9487
      %v9595 = vadd.f32 %v8983, %v9489
      %v9596 = vadd.f32 %v8984, %v9491
      %v9597 = vadd.f32 %v8985, %v9493
      %v9598 = vadd.f32 %v8986, %v9495
      %v9599 = vadd.f32 %v8987, %v9497
      %v9600 = vadd.f32 %v8988, %v9499
      %v9601 = vadd.f32 %v8989, %v9501
      %v9602 = vadd.f32 %v8990, %v9503
      %v9603 = vadd.f32 %v8991, %v9505
      %v9604 = vadd.f32 %v8992, %v9507
      %v9605 = vadd.f32 %v8993, %v9509
      %v9606 = vadd.f32 %v8994, %v9511
      %v9607 = vadd.f32 %v8995, %v9513
      %v9608 = vadd.f32 %v8996, %v9515
      %v9609 = vadd.f32 %v8997, %v9517
      %v9610 = vadd.f32 %v8998, %v9519
      %v9611 = vadd.f32 %v8999, %v9521
      %v9612 = vadd.f32 %v9000, %v9523
      %v9613 = vadd.f32 %v9001, %v9525
      %v9614 = vadd.f32 %v9002, %v9527
      %v9615 = vadd.f32 %v9003, %v9529
      %v9616 = vadd.f32 %v9004, %v9531
      %v9617 = vadd.f32 %v9005, %v9533
      %v9618 = vadd.f32 %v9006, %v9535
      %v9619 = vadd.f32 %v9007, %v9537
      %v9620 = vadd.f32 %v9008, %v9539
      %v9621 = vadd.f32 %v9009, %v9541
      %v9622 = vadd.f32 %v9010, %v9543
      %v9623 = vadd.f32 %v9011, %v9545
      %v9624 = vadd.f32 %v9012, %v9547
      %v9625 = vadd.f32 %v9013, %v9549
      %v9626 = vadd.f32 %v9014, %v9551
      %v9627 = vadd.f32 %v9015, %v9553
      %v9628 = vadd.f32 %v9016, %v9555
      %v9629 = vadd.f32 %v9017, %v9554
      %v9630 = vld [vmem:[#allocation2 + $0xa0] sm:$0x7]
      %s9631 = scalar_lea.vmem %s4, 224
      %v9632 = vld [vmem:[%s9631] sm:$0xf]
      %v9633 = vld [vmem:[%s9631 + $0x4] sm:$0xf]
      %v9634 = vld [vmem:[%s9631 + $0x8] sm:$0xf]
      %v9635 = vld [vmem:[%s9631 + $0xc] sm:$0xf]
      %v9636 = vld [vmem:[%s9631 + $0x10] sm:$0xf]
      %v9637 = vld [vmem:[%s9631 + $0x14] sm:$0xf]
      %v9638 = vld [vmem:[%s9631 + $0x18] sm:$0xf]
      %v9639 = vld [vmem:[%s9631 + $0x1c] sm:$0xf]
      %v9641 = vunpack.c.l.b16 %v9630
      %v9642 = vpack.c.b16 %v9641, %v9641
      %v9644 = vshrl.u32 %v9138, 16
      %v9646 = vrot.slane %v9644, 2
      %v9647 = vshll.u32 %v9138, 16
      %v9649 = vrot.slane %v9647, 3
      %v9650 = vor.u32 %v9646, %v9649
      %v9652 = vshrl.u32 %v9139, 16
      %v9654 = vrot.slane %v9652, 2
      %v9655 = vshll.u32 %v9139, 16
      %v9657 = vrot.slane %v9655, 3
      %v9658 = vor.u32 %v9654, %v9657
      %v9659 = vsel %vm3407, %v9650, %v9658
      %v9661 = vshrl.u32 %v9140, 16
      %v9663 = vrot.slane %v9661, 2
      %v9664 = vshll.u32 %v9140, 16
      %v9666 = vrot.slane %v9664, 3
      %v9667 = vor.u32 %v9663, %v9666
      %v9668 = vsel %vm3407, %v9658, %v9667
      %v9670 = vshrl.u32 %v9141, 16
      %v9672 = vrot.slane %v9670, 2
      %v9673 = vshll.u32 %v9141, 16
      %v9675 = vrot.slane %v9673, 3
      %v9676 = vor.u32 %v9672, %v9675
      %v9677 = vsel %vm3407, %v9667, %v9676
      %v9679 = vshrl.u32 %v9142, 16
      %v9681 = vrot.slane %v9679, 2
      %v9682 = vshll.u32 %v9142, 16
      %v9684 = vrot.slane %v9682, 3
      %v9685 = vor.u32 %v9681, %v9684
      %v9686 = vsel %vm3407, %v9676, %v9685
      %v9688 = vshrl.u32 %v9143, 16
      %v9690 = vrot.slane %v9688, 2
      %v9691 = vshll.u32 %v9143, 16
      %v9693 = vrot.slane %v9691, 3
      %v9694 = vor.u32 %v9690, %v9693
      %v9695 = vsel %vm3407, %v9685, %v9694
      %v9697 = vshrl.u32 %v9144, 16
      %v9699 = vrot.slane %v9697, 2
      %v9700 = vshll.u32 %v9144, 16
      %v9702 = vrot.slane %v9700, 3
      %v9703 = vor.u32 %v9699, %v9702
      %v9704 = vsel %vm3407, %v9694, %v9703
      %v9706 = vshrl.u32 %v9145, 16
      %v9708 = vrot.slane %v9706, 2
      %v9709 = vshll.u32 %v9145, 16
      %v9711 = vrot.slane %v9709, 3
      %v9712 = vor.u32 %v9708, %v9711
      %v9713 = vsel %vm3407, %v9703, %v9712
      %v9715 = vshrl.u32 %v9146, 16
      %v9717 = vrot.slane %v9715, 2
      %v9718 = vshll.u32 %v9146, 16
      %v9720 = vrot.slane %v9718, 3
      %v9721 = vor.u32 %v9717, %v9720
      %v9722 = vsel %vm3407, %v9712, %v9721
      %v9724 = vshrl.u32 %v9147, 16
      %v9726 = vrot.slane %v9724, 2
      %v9727 = vshll.u32 %v9147, 16
      %v9729 = vrot.slane %v9727, 3
      %v9730 = vor.u32 %v9726, %v9729
      %v9731 = vsel %vm3407, %v9721, %v9730
      %v9733 = vshrl.u32 %v9148, 16
      %v9735 = vrot.slane %v9733, 2
      %v9736 = vshll.u32 %v9148, 16
      %v9738 = vrot.slane %v9736, 3
      %v9739 = vor.u32 %v9735, %v9738
      %v9740 = vsel %vm3407, %v9730, %v9739
      %v9742 = vshrl.u32 %v9149, 16
      %v9744 = vrot.slane %v9742, 2
      %v9745 = vshll.u32 %v9149, 16
      %v9747 = vrot.slane %v9745, 3
      %v9748 = vor.u32 %v9744, %v9747
      %v9749 = vsel %vm3407, %v9739, %v9748
      %v9751 = vshrl.u32 %v9150, 16
      %v9753 = vrot.slane %v9751, 2
      %v9754 = vshll.u32 %v9150, 16
      %v9756 = vrot.slane %v9754, 3
      %v9757 = vor.u32 %v9753, %v9756
      %v9758 = vsel %vm3407, %v9748, %v9757
      %v9760 = vshrl.u32 %v9151, 16
      %v9762 = vrot.slane %v9760, 2
      %v9763 = vshll.u32 %v9151, 16
      %v9765 = vrot.slane %v9763, 3
      %v9766 = vor.u32 %v9762, %v9765
      %v9767 = vsel %vm3407, %v9757, %v9766
      %v9769 = vshrl.u32 %v9152, 16
      %v9771 = vrot.slane %v9769, 2
      %v9772 = vshll.u32 %v9152, 16
      %v9774 = vrot.slane %v9772, 3
      %v9775 = vor.u32 %v9771, %v9774
      %v9776 = vsel %vm3407, %v9766, %v9775
      %v9778 = vshrl.u32 %v9153, 16
      %v9780 = vrot.slane %v9778, 2
      %v9781 = vshll.u32 %v9153, 16
      %v9783 = vrot.slane %v9781, 3
      %v9784 = vor.u32 %v9780, %v9783
      %v9785 = vsel %vm3407, %v9775, %v9784
      %v9787 = vshrl.u32 %v9154, 16
      %v9789 = vrot.slane %v9787, 2
      %v9790 = vshll.u32 %v9154, 16
      %v9792 = vrot.slane %v9790, 3
      %v9793 = vor.u32 %v9789, %v9792
      %v9794 = vsel %vm3407, %v9784, %v9793
      %v9796 = vshrl.u32 %v9155, 16
      %v9798 = vrot.slane %v9796, 2
      %v9799 = vshll.u32 %v9155, 16
      %v9801 = vrot.slane %v9799, 3
      %v9802 = vor.u32 %v9798, %v9801
      %v9803 = vsel %vm3407, %v9793, %v9802
      %v9805 = vshrl.u32 %v9642, 16
      %v9807 = vrot.slane %v9805, 2
      %v9808 = vshll.u32 %v9642, 16
      %v9810 = vrot.slane %v9808, 3
      %v9811 = vor.u32 %v9807, %v9810
      %v9812 = vsel %vm3407, %v9802, %v9811
      %v9821 = vunpack.c.l.b16 %v9632
      %v9822 = vunpack.c.l.b16 %v9633
      %v9823 = vunpack.c.l.b16 %v9634
      %v9824 = vunpack.c.l.b16 %v9635
      %v9825 = vunpack.c.l.b16 %v9636
      %v9826 = vunpack.c.l.b16 %v9637
      %v9827 = vunpack.c.l.b16 %v9638
      %v9828 = vunpack.c.l.b16 %v9639
      %v9829 = vpack.c.b16 %v9822, %v9821
      %v9830 = vpack.c.b16 %v9824, %v9823
      %v9831 = vpack.c.b16 %v9826, %v9825
      %v9832 = vpack.c.b16 %v9828, %v9827
      %v9838 = vsel %vm454, %v9659, 0
      %v9841 = vsel %vm454, %v9668, 0
      %v9844 = vsel %vm454, %v9677, 0
      %v9847 = vsel %vm454, %v9686, 0
      %v9850 = vsel %vm454, %v9695, 0
      %v9853 = vsel %vm454, %v9704, 0
      %v9856 = vsel %vm454, %v9713, 0
      %v9859 = vsel %vm454, %v9722, 0
      %v9862 = vsel %vm454, %v9731, 0
      %v9865 = vsel %vm454, %v9740, 0
      %v9868 = vsel %vm454, %v9749, 0
      %v9871 = vsel %vm454, %v9758, 0
      %v9874 = vsel %vm454, %v9767, 0
      %v9877 = vsel %vm454, %v9776, 0
      %v9880 = vsel %vm454, %v9785, 0
      %v9883 = vsel %vm454, %v9794, 0
      %v9886 = vsel %vm454, %v9803, 0
      %v9889 = vsel %vm454, %v9812, 0
      %9891 = vmatprep.subr.bf16.mxu0 0
      %9892 = vmatpush1.bf16.msra.mxu0 %v9829
      %9893 = vmatprep.subr.bf16.mxu0 0
      %9894 = vmatpush1.bf16.msra.mxu0 %v9830
      %9895 = vmatprep.subr.bf16.mxu0 0
      %9896 = vmatpush1.bf16.msra.mxu0 %v9831
      %9897 = vmatprep.subr.bf16.mxu0 0
      %9898 = vmatpush1.bf16.msra.mxu0 %v9832
      %9899 = vmatprep.subr.bf16.mxu0 0
      %9900 = vmatpush1.bf16.msra.mxu0 0
      %9901 = vmatprep.subr.bf16.mxu0 0
      %9902 = vmatpush1.bf16.msra.mxu0 0
      %9903 = vmatprep.subr.bf16.mxu0 0
      %9904 = vmatpush1.bf16.msra.mxu0 0
      %9905 = vmatprep.subr.bf16.mxu0 0
      %9906 = vmatpush1.bf16.msra.mxu0 0
      %9907 = vmatprep.subr.bf16.mxu0 0
      %9908 = vmatpush1.bf16.msra.mxu0 0
      %9909 = vmatprep.subr.bf16.mxu0 0
      %9910 = vmatpush1.bf16.msra.mxu0 0
      %9911 = vmatprep.subr.bf16.mxu0 0
      %9912 = vmatpush1.bf16.msra.mxu0 0
      %9913 = vmatprep.subr.bf16.mxu0 0
      %9914 = vmatpush1.bf16.msra.mxu0 0
      %9915 = vmatprep.subr.bf16.mxu0 0
      %9916 = vmatpush1.bf16.msra.mxu0 0
      %9917 = vmatprep.subr.bf16.mxu0 0
      %9918 = vmatpush1.bf16.msra.mxu0 0
      %9919 = vmatprep.subr.bf16.mxu0 0
      %9920 = vmatpush1.bf16.msra.mxu0 0
      %9921 = vmatprep.subr.bf16.mxu0 0
      %9922 = vmatpush1.bf16.msra.mxu0 0
      %9923 = vmatprep.mubr.bf16.mxu0 0
      %9924 = vmatmul.mubr.bf16.gmra.mrb[0].mxu0 %v9838
      %v9925 = vpop.f32.mrb[0].mxu0
      %v9926 = vadd.f32 0.0, %v9925
      %v9927 = vpop.f32.mrb[0].mxu0
      %v9928 = vpop.f32.mrb[0].mxu0
      %v9929 = vadd.f32 0.0, %v9928
      %v9930 = vpop.f32.mrb[0].mxu0
      %9931 = vmatprep.mubr.bf16.mxu0 0
      %9932 = vmatmul.mubr.bf16.gmra.mrb[0].mxu0 %v9841
      %v9933 = vpop.f32.mrb[0].mxu0
      %v9934 = vadd.f32 0.0, %v9933
      %v9935 = vpop.f32.mrb[0].mxu0
      %v9936 = vpop.f32.mrb[0].mxu0
      %v9937 = vadd.f32 0.0, %v9936
      %v9938 = vpop.f32.mrb[0].mxu0
      %9939 = vmatprep.mubr.bf16.mxu0 0
      %9940 = vmatmul.mubr.bf16.gmra.mrb[0].mxu0 %v9844
      %v9941 = vpop.f32.mrb[0].mxu0
      %v9942 = vadd.f32 0.0, %v9941
      %v9943 = vpop.f32.mrb[0].mxu0
      %v9944 = vpop.f32.mrb[0].mxu0
      %v9945 = vadd.f32 0.0, %v9944
      %v9946 = vpop.f32.mrb[0].mxu0
      %9947 = vmatprep.mubr.bf16.mxu0 0
      %9948 = vmatmul.mubr.bf16.gmra.mrb[0].mxu0 %v9847
      %v9949 = vpop.f32.mrb[0].mxu0
      %v9950 = vadd.f32 0.0, %v9949
      %v9951 = vpop.f32.mrb[0].mxu0
      %v9952 = vpop.f32.mrb[0].mxu0
      %v9953 = vadd.f32 0.0, %v9952
      %v9954 = vpop.f32.mrb[0].mxu0
      %9955 = vmatprep.mubr.bf16.mxu0 0
      %9956 = vmatmul.mubr.bf16.gmra.mrb[0].mxu0 %v9850
      %v9957 = vpop.f32.mrb[0].mxu0
      %v9958 = vadd.f32 0.0, %v9957
      %v9959 = vpop.f32.mrb[0].mxu0
      %v9960 = vpop.f32.mrb[0].mxu0
      %v9961 = vadd.f32 0.0, %v9960
      %v9962 = vpop.f32.mrb[0].mxu0
      %9963 = vmatprep.mubr.bf16.mxu0 0
      %9964 = vmatmul.mubr.bf16.gmra.mrb[0].mxu0 %v9853
      %v9965 = vpop.f32.mrb[0].mxu0
      %v9966 = vadd.f32 0.0, %v9965
      %v9967 = vpop.f32.mrb[0].mxu0
      %v9968 = vpop.f32.mrb[0].mxu0
      %v9969 = vadd.f32 0.0, %v9968
      %v9970 = vpop.f32.mrb[0].mxu0
      %9971 = vmatprep.mubr.bf16.mxu0 0
      %9972 = vmatmul.mubr.bf16.gmra.mrb[0].mxu0 %v9856
      %v9973 = vpop.f32.mrb[0].mxu0
      %v9974 = vadd.f32 0.0, %v9973
      %v9975 = vpop.f32.mrb[0].mxu0
      %v9976 = vpop.f32.mrb[0].mxu0
      %v9977 = vadd.f32 0.0, %v9976
      %v9978 = vpop.f32.mrb[0].mxu0
      %9979 = vmatprep.mubr.bf16.mxu0 0
      %9980 = vmatmul.mubr.bf16.gmra.mrb[0].mxu0 %v9859
      %v9981 = vpop.f32.mrb[0].mxu0
      %v9982 = vadd.f32 0.0, %v9981
      %v9983 = vpop.f32.mrb[0].mxu0
      %v9984 = vpop.f32.mrb[0].mxu0
      %v9985 = vadd.f32 0.0, %v9984
      %v9986 = vpop.f32.mrb[0].mxu0
      %9987 = vmatprep.mubr.bf16.mxu0 0
      %9988 = vmatmul.mubr.bf16.gmra.mrb[0].mxu0 %v9862
      %v9989 = vpop.f32.mrb[0].mxu0
      %v9990 = vadd.f32 0.0, %v9989
      %v9991 = vpop.f32.mrb[0].mxu0
      %v9992 = vpop.f32.mrb[0].mxu0
      %v9993 = vadd.f32 0.0, %v9992
      %v9994 = vpop.f32.mrb[0].mxu0
      %9995 = vmatprep.mubr.bf16.mxu0 0
      %9996 = vmatmul.mubr.bf16.gmra.mrb[0].mxu0 %v9865
      %v9997 = vpop.f32.mrb[0].mxu0
      %v9998 = vadd.f32 0.0, %v9997
      %v9999 = vpop.f32.mrb[0].mxu0
      %v10000 = vpop.f32.mrb[0].mxu0
      %v10001 = vadd.f32 0.0, %v10000
      %v10002 = vpop.f32.mrb[0].mxu0
      %10003 = vmatprep.mubr.bf16.mxu0 0
      %10004 = vmatmul.mubr.bf16.gmra.mrb[0].mxu0 %v9868
      %v10005 = vpop.f32.mrb[0].mxu0
      %v10006 = vadd.f32 0.0, %v10005
      %v10007 = vpop.f32.mrb[0].mxu0
      %v10008 = vpop.f32.mrb[0].mxu0
      %v10009 = vadd.f32 0.0, %v10008
      %v10010 = vpop.f32.mrb[0].mxu0
      %10011 = vmatprep.mubr.bf16.mxu0 0
      %10012 = vmatmul.mubr.bf16.gmra.mrb[0].mxu0 %v9871
      %v10013 = vpop.f32.mrb[0].mxu0
      %v10014 = vadd.f32 0.0, %v10013
      %v10015 = vpop.f32.mrb[0].mxu0
      %v10016 = vpop.f32.mrb[0].mxu0
      %v10017 = vadd.f32 0.0, %v10016
      %v10018 = vpop.f32.mrb[0].mxu0
      %10019 = vmatprep.mubr.bf16.mxu0 0
      %10020 = vmatmul.mubr.bf16.gmra.mrb[0].mxu0 %v9874
      %v10021 = vpop.f32.mrb[0].mxu0
      %v10022 = vadd.f32 0.0, %v10021
      %v10023 = vpop.f32.mrb[0].mxu0
      %v10024 = vpop.f32.mrb[0].mxu0
      %v10025 = vadd.f32 0.0, %v10024
      %v10026 = vpop.f32.mrb[0].mxu0
      %10027 = vmatprep.mubr.bf16.mxu0 0
      %10028 = vmatmul.mubr.bf16.gmra.mrb[0].mxu0 %v9877
      %v10029 = vpop.f32.mrb[0].mxu0
      %v10030 = vadd.f32 0.0, %v10029
      %v10031 = vpop.f32.mrb[0].mxu0
      %v10032 = vpop.f32.mrb[0].mxu0
      %v10033 = vadd.f32 0.0, %v10032
      %v10034 = vpop.f32.mrb[0].mxu0
      %10035 = vmatprep.mubr.bf16.mxu0 0
      %10036 = vmatmul.mubr.bf16.gmra.mrb[0].mxu0 %v9880
      %v10037 = vpop.f32.mrb[0].mxu0
      %v10038 = vadd.f32 0.0, %v10037
      %v10039 = vpop.f32.mrb[0].mxu0
      %v10040 = vpop.f32.mrb[0].mxu0
      %v10041 = vadd.f32 0.0, %v10040
      %v10042 = vpop.f32.mrb[0].mxu0
      %10043 = vmatprep.mubr.bf16.mxu0 0
      %10044 = vmatmul.mubr.bf16.gmra.mrb[0].mxu0 %v9883
      %v10045 = vpop.f32.mrb[0].mxu0
      %v10046 = vadd.f32 0.0, %v10045
      %v10047 = vpop.f32.mrb[0].mxu0
      %v10048 = vpop.f32.mrb[0].mxu0
      %v10049 = vadd.f32 0.0, %v10048
      %v10050 = vpop.f32.mrb[0].mxu0
      %10051 = vmatprep.mubr.bf16.mxu0 0
      %10052 = vmatmul.mubr.bf16.gmra.mrb[0].mxu0 %v9886
      %v10053 = vpop.f32.mrb[0].mxu0
      %v10054 = vadd.f32 0.0, %v10053
      %v10055 = vpop.f32.mrb[0].mxu0
      %v10056 = vpop.f32.mrb[0].mxu0
      %v10057 = vadd.f32 0.0, %v10056
      %v10058 = vpop.f32.mrb[0].mxu0
      %10059 = vmatprep.mubr.bf16.mxu0 0
      %10060 = vmatmul.mubr.bf16.gmra.mrb[0].mxu0 %v9889
      %v10061 = vpop.f32.mrb[0].mxu0
      %v10062 = vadd.f32 0.0, %v10061
      %v10063 = vpop.f32.mrb[0].mxu0
      %v10064 = vpop.f32.mrb[0].mxu0
      %v10065 = vadd.f32 0.0, %v10064
      %v10066 = vpop.f32.mrb[0].mxu0
      %10067 = vdwg.mxu0
      %v10104 = vrot.slane %v9926, 5
      %v10105 = vrot.slane %v9929, 5
      %v10106 = vsel %vm5946, %v10104, %v10105
      %v10107 = vrot.slane %v9934, 5
      %v10108 = vsel %vm5946, %v10105, %v10107
      %v10109 = vrot.slane %v9937, 5
      %v10110 = vsel %vm5946, %v10107, %v10109
      %v10111 = vrot.slane %v9942, 5
      %v10112 = vsel %vm5946, %v10109, %v10111
      %v10113 = vrot.slane %v9945, 5
      %v10114 = vsel %vm5946, %v10111, %v10113
      %v10115 = vrot.slane %v9950, 5
      %v10116 = vsel %vm5946, %v10113, %v10115
      %v10117 = vrot.slane %v9953, 5
      %v10118 = vsel %vm5946, %v10115, %v10117
      %v10119 = vrot.slane %v9958, 5
      %v10120 = vsel %vm5946, %v10117, %v10119
      %v10121 = vrot.slane %v9961, 5
      %v10122 = vsel %vm5946, %v10119, %v10121
      %v10123 = vrot.slane %v9966, 5
      %v10124 = vsel %vm5946, %v10121, %v10123
      %v10125 = vrot.slane %v9969, 5
      %v10126 = vsel %vm5946, %v10123, %v10125
      %v10127 = vrot.slane %v9974, 5
      %v10128 = vsel %vm5946, %v10125, %v10127
      %v10129 = vrot.slane %v9977, 5
      %v10130 = vsel %vm5946, %v10127, %v10129
      %v10131 = vrot.slane %v9982, 5
      %v10132 = vsel %vm5946, %v10129, %v10131
      %v10133 = vrot.slane %v9985, 5
      %v10134 = vsel %vm5946, %v10131, %v10133
      %v10135 = vrot.slane %v9990, 5
      %v10136 = vsel %vm5946, %v10133, %v10135
      %v10137 = vrot.slane %v9993, 5
      %v10138 = vsel %vm5946, %v10135, %v10137
      %v10139 = vrot.slane %v9998, 5
      %v10140 = vsel %vm5946, %v10137, %v10139
      %v10141 = vrot.slane %v10001, 5
      %v10142 = vsel %vm5946, %v10139, %v10141
      %v10143 = vrot.slane %v10006, 5
      %v10144 = vsel %vm5946, %v10141, %v10143
      %v10145 = vrot.slane %v10009, 5
      %v10146 = vsel %vm5946, %v10143, %v10145
      %v10147 = vrot.slane %v10014, 5
      %v10148 = vsel %vm5946, %v10145, %v10147
      %v10149 = vrot.slane %v10017, 5
      %v10150 = vsel %vm5946, %v10147, %v10149
      %v10151 = vrot.slane %v10022, 5
      %v10152 = vsel %vm5946, %v10149, %v10151
      %v10153 = vrot.slane %v10025, 5
      %v10154 = vsel %vm5946, %v10151, %v10153
      %v10155 = vrot.slane %v10030, 5
      %v10156 = vsel %vm5946, %v10153, %v10155
      %v10157 = vrot.slane %v10033, 5
      %v10158 = vsel %vm5946, %v10155, %v10157
      %v10159 = vrot.slane %v10038, 5
      %v10160 = vsel %vm5946, %v10157, %v10159
      %v10161 = vrot.slane %v10041, 5
      %v10162 = vsel %vm5946, %v10159, %v10161
      %v10163 = vrot.slane %v10046, 5
      %v10164 = vsel %vm5946, %v10161, %v10163
      %v10165 = vrot.slane %v10049, 5
      %v10166 = vsel %vm5946, %v10163, %v10165
      %v10167 = vrot.slane %v10054, 5
      %v10168 = vsel %vm5946, %v10165, %v10167
      %v10169 = vrot.slane %v10057, 5
      %v10170 = vsel %vm5946, %v10167, %v10169
      %v10171 = vrot.slane %v10062, 5
      %v10172 = vsel %vm5946, %v10169, %v10171
      %v10173 = vrot.slane %v10065, 5
      %v10174 = vsel %vm5946, %v10171, %v10173
      %v10212 = vadd.f32 %v9593, %v10104
      %v10213 = vadd.f32 %v9594, %v10106
      %v10214 = vadd.f32 %v9595, %v10108
      %v10215 = vadd.f32 %v9596, %v10110
      %v10216 = vadd.f32 %v9597, %v10112
      %v10217 = vadd.f32 %v9598, %v10114
      %v10218 = vadd.f32 %v9599, %v10116
      %v10219 = vadd.f32 %v9600, %v10118
      %v10220 = vadd.f32 %v9601, %v10120
      %v10221 = vadd.f32 %v9602, %v10122
      %v10222 = vadd.f32 %v9603, %v10124
      %v10223 = vadd.f32 %v9604, %v10126
      %v10224 = vadd.f32 %v9605, %v10128
      %v10225 = vadd.f32 %v9606, %v10130
      %v10226 = vadd.f32 %v9607, %v10132
      %v10227 = vadd.f32 %v9608, %v10134
      %v10228 = vadd.f32 %v9609, %v10136
      %v10229 = vadd.f32 %v9610, %v10138
      %v10230 = vadd.f32 %v9611, %v10140
      %v10231 = vadd.f32 %v9612, %v10142
      %v10232 = vadd.f32 %v9613, %v10144
      %v10233 = vadd.f32 %v9614, %v10146
      %v10234 = vadd.f32 %v9615, %v10148
      %v10235 = vadd.f32 %v9616, %v10150
      %v10236 = vadd.f32 %v9617, %v10152
      %v10237 = vadd.f32 %v9618, %v10154
      %v10238 = vadd.f32 %v9619, %v10156
      %v10239 = vadd.f32 %v9620, %v10158
      %v10240 = vadd.f32 %v9621, %v10160
      %v10241 = vadd.f32 %v9622, %v10162
      %v10242 = vadd.f32 %v9623, %v10164
      %v10243 = vadd.f32 %v9624, %v10166
      %v10244 = vadd.f32 %v9625, %v10168
      %v10245 = vadd.f32 %v9626, %v10170
      %v10246 = vadd.f32 %v9627, %v10172
      %v10247 = vadd.f32 %v9628, %v10174
      %v10248 = vadd.f32 %v9629, %v10173
      %v10249 = vld [vmem:[#allocation2 + $0x10] sm:$0x8]
      %s10250 = scalar_lea.vmem %s4, 256
      %v10251 = vld [vmem:[%s10250] sm:$0xf]
      %v10252 = vld [vmem:[%s10250 + $0x4] sm:$0xf]
      %v10253 = vld [vmem:[%s10250 + $0x8] sm:$0xf]
      %v10254 = vld [vmem:[%s10250 + $0xc] sm:$0xf]
      %v10255 = vld [vmem:[%s10250 + $0x10] sm:$0xf]
      %v10256 = vld [vmem:[%s10250 + $0x14] sm:$0xf]
      %v10257 = vld [vmem:[%s10250 + $0x18] sm:$0xf]
      %v10258 = vld [vmem:[%s10250 + $0x1c] sm:$0xf]
      %v10260 = vunpack.c.l.b16 %v10249
      %v10261 = vpack.c.b16 %v9102, %v10260
      %v10262 = vrot.slane %v10261, 3
      %v10263 = vrot.slane %v9139, 3
      %v10264 = vsel %vm3882, %v10262, %v10263
      %v10265 = vrot.slane %v9140, 3
      %v10266 = vsel %vm3882, %v10263, %v10265
      %v10267 = vrot.slane %v9141, 3
      %v10268 = vsel %vm3882, %v10265, %v10267
      %v10269 = vrot.slane %v9142, 3
      %v10270 = vsel %vm3882, %v10267, %v10269
      %v10271 = vrot.slane %v9143, 3
      %v10272 = vsel %vm3882, %v10269, %v10271
      %v10273 = vrot.slane %v9144, 3
      %v10274 = vsel %vm3882, %v10271, %v10273
      %v10275 = vrot.slane %v9145, 3
      %v10276 = vsel %vm3882, %v10273, %v10275
      %v10277 = vrot.slane %v9146, 3
      %v10278 = vsel %vm3882, %v10275, %v10277
      %v10279 = vrot.slane %v9147, 3
      %v10280 = vsel %vm3882, %v10277, %v10279
      %v10281 = vrot.slane %v9148, 3
      %v10282 = vsel %vm3882, %v10279, %v10281
      %v10283 = vrot.slane %v9149, 3
      %v10284 = vsel %vm3882, %v10281, %v10283
      %v10285 = vrot.slane %v9150, 3
      %v10286 = vsel %vm3882, %v10283, %v10285
      %v10287 = vrot.slane %v9151, 3
      %v10288 = vsel %vm3882, %v10285, %v10287
      %v10289 = vrot.slane %v9152, 3
      %v10290 = vsel %vm3882, %v10287, %v10289
      %v10291 = vrot.slane %v9153, 3
      %v10292 = vsel %vm3882, %v10289, %v10291
      %v10293 = vrot.slane %v9154, 3
      %v10294 = vsel %vm3882, %v10291, %v10293
      %v10295 = vrot.slane %v9155, 3
      %v10296 = vsel %vm3882, %v10293, %v10295
      %v10297 = vrot.slane %v9642, 3
      %v10298 = vsel %vm3882, %v10295, %v10297
      %v10307 = vunpack.c.l.b16 %v10251
      %v10308 = vunpack.c.l.b16 %v10252
      %v10309 = vunpack.c.l.b16 %v10253
      %v10310 = vunpack.c.l.b16 %v10254
      %v10311 = vunpack.c.l.b16 %v10255
      %v10312 = vunpack.c.l.b16 %v10256
      %v10313 = vunpack.c.l.b16 %v10257
      %v10314 = vunpack.c.l.b16 %v10258
      %v10315 = vpack.c.b16 %v10308, %v10307
      %v10316 = vpack.c.b16 %v10310, %v10309
      %v10317 = vpack.c.b16 %v10312, %v10311
      %v10318 = vpack.c.b16 %v10314, %v10313
      %v10324 = vsel %vm454, %v10264, 0
      %v10327 = vsel %vm454, %v10266, 0
      %v10330 = vsel %vm454, %v10268, 0
      %v10333 = vsel %vm454, %v10270, 0
      %v10336 = vsel %vm454, %v10272, 0
      %v10339 = vsel %vm454, %v10274, 0
      %v10342 = vsel %vm454, %v10276, 0
      %v10345 = vsel %vm454, %v10278, 0
      %v10348 = vsel %vm454, %v10280, 0
      %v10351 = vsel %vm454, %v10282, 0
      %v10354 = vsel %vm454, %v10284, 0
      %v10357 = vsel %vm454, %v10286, 0
      %v10360 = vsel %vm454, %v10288, 0
      %v10363 = vsel %vm454, %v10290, 0
      %v10366 = vsel %vm454, %v10292, 0
      %v10369 = vsel %vm454, %v10294, 0
      %v10372 = vsel %vm454, %v10296, 0
      %v10375 = vsel %vm454, %v10298, 0
      %10377 = vmatprep.subr.bf16.mxu0 0
      %10378 = vmatpush1.bf16.msra.mxu0 %v10315
      %10379 = vmatprep.subr.bf16.mxu0 0
      %10380 = vmatpush1.bf16.msra.mxu0 %v10316
      %10381 = vmatprep.subr.bf16.mxu0 0
      %10382 = vmatpush1.bf16.msra.mxu0 %v10317
      %10383 = vmatprep.subr.bf16.mxu0 0
      %10384 = vmatpush1.bf16.msra.mxu0 %v10318
      %10385 = vmatprep.subr.bf16.mxu0 0
      %10386 = vmatpush1.bf16.msra.mxu0 0
      %10387 = vmatprep.subr.bf16.mxu0 0
      %10388 = vmatpush1.bf16.msra.mxu0 0
      %10389 = vmatprep.subr.bf16.mxu0 0
      %10390 = vmatpush1.bf16.msra.mxu0 0
      %10391 = vmatprep.subr.bf16.mxu0 0
      %10392 = vmatpush1.bf16.msra.mxu0 0
      %10393 = vmatprep.subr.bf16.mxu0 0
      %10394 = vmatpush1.bf16.msra.mxu0 0
      %10395 = vmatprep.subr.bf16.mxu0 0
      %10396 = vmatpush1.bf16.msra.mxu0 0
      %10397 = vmatprep.subr.bf16.mxu0 0
      %10398 = vmatpush1.bf16.msra.mxu0 0
      %10399 = vmatprep.subr.bf16.mxu0 0
      %10400 = vmatpush1.bf16.msra.mxu0 0
      %10401 = vmatprep.subr.bf16.mxu0 0
      %10402 = vmatpush1.bf16.msra.mxu0 0
      %10403 = vmatprep.subr.bf16.mxu0 0
      %10404 = vmatpush1.bf16.msra.mxu0 0
      %10405 = vmatprep.subr.bf16.mxu0 0
      %10406 = vmatpush1.bf16.msra.mxu0 0
      %10407 = vmatprep.subr.bf16.mxu0 0
      %10408 = vmatpush1.bf16.msra.mxu0 0
      %10409 = vmatprep.mubr.bf16.mxu0 0
      %10410 = vmatmul.mubr.bf16.gmra.mrb[0].mxu0 %v10324
      %v10411 = vpop.f32.mrb[0].mxu0
      %v10412 = vadd.f32 0.0, %v10411
      %v10413 = vpop.f32.mrb[0].mxu0
      %v10414 = vpop.f32.mrb[0].mxu0
      %v10415 = vadd.f32 0.0, %v10414
      %v10416 = vpop.f32.mrb[0].mxu0
      %10417 = vmatprep.mubr.bf16.mxu0 0
      %10418 = vmatmul.mubr.bf16.gmra.mrb[0].mxu0 %v10327
      %v10419 = vpop.f32.mrb[0].mxu0
      %v10420 = vadd.f32 0.0, %v10419
      %v10421 = vpop.f32.mrb[0].mxu0
      %v10422 = vpop.f32.mrb[0].mxu0
      %v10423 = vadd.f32 0.0, %v10422
      %v10424 = vpop.f32.mrb[0].mxu0
      %10425 = vmatprep.mubr.bf16.mxu0 0
      %10426 = vmatmul.mubr.bf16.gmra.mrb[0].mxu0 %v10330
      %v10427 = vpop.f32.mrb[0].mxu0
      %v10428 = vadd.f32 0.0, %v10427
      %v10429 = vpop.f32.mrb[0].mxu0
      %v10430 = vpop.f32.mrb[0].mxu0
      %v10431 = vadd.f32 0.0, %v10430
      %v10432 = vpop.f32.mrb[0].mxu0
      %10433 = vmatprep.mubr.bf16.mxu0 0
      %10434 = vmatmul.mubr.bf16.gmra.mrb[0].mxu0 %v10333
      %v10435 = vpop.f32.mrb[0].mxu0
      %v10436 = vadd.f32 0.0, %v10435
      %v10437 = vpop.f32.mrb[0].mxu0
      %v10438 = vpop.f32.mrb[0].mxu0
      %v10439 = vadd.f32 0.0, %v10438
      %v10440 = vpop.f32.mrb[0].mxu0
      %10441 = vmatprep.mubr.bf16.mxu0 0
      %10442 = vmatmul.mubr.bf16.gmra.mrb[0].mxu0 %v10336
      %v10443 = vpop.f32.mrb[0].mxu0
      %v10444 = vadd.f32 0.0, %v10443
      %v10445 = vpop.f32.mrb[0].mxu0
      %v10446 = vpop.f32.mrb[0].mxu0
      %v10447 = vadd.f32 0.0, %v10446
      %v10448 = vpop.f32.mrb[0].mxu0
      %10449 = vmatprep.mubr.bf16.mxu0 0
      %10450 = vmatmul.mubr.bf16.gmra.mrb[0].mxu0 %v10339
      %v10451 = vpop.f32.mrb[0].mxu0
      %v10452 = vadd.f32 0.0, %v10451
      %v10453 = vpop.f32.mrb[0].mxu0
      %v10454 = vpop.f32.mrb[0].mxu0
      %v10455 = vadd.f32 0.0, %v10454
      %v10456 = vpop.f32.mrb[0].mxu0
      %10457 = vmatprep.mubr.bf16.mxu0 0
      %10458 = vmatmul.mubr.bf16.gmra.mrb[0].mxu0 %v10342
      %v10459 = vpop.f32.mrb[0].mxu0
      %v10460 = vadd.f32 0.0, %v10459
      %v10461 = vpop.f32.mrb[0].mxu0
      %v10462 = vpop.f32.mrb[0].mxu0
      %v10463 = vadd.f32 0.0, %v10462
      %v10464 = vpop.f32.mrb[0].mxu0
      %10465 = vmatprep.mubr.bf16.mxu0 0
      %10466 = vmatmul.mubr.bf16.gmra.mrb[0].mxu0 %v10345
      %v10467 = vpop.f32.mrb[0].mxu0
      %v10468 = vadd.f32 0.0, %v10467
      %v10469 = vpop.f32.mrb[0].mxu0
      %v10470 = vpop.f32.mrb[0].mxu0
      %v10471 = vadd.f32 0.0, %v10470
      %v10472 = vpop.f32.mrb[0].mxu0
      %10473 = vmatprep.mubr.bf16.mxu0 0
      %10474 = vmatmul.mubr.bf16.gmra.mrb[0].mxu0 %v10348
      %v10475 = vpop.f32.mrb[0].mxu0
      %v10476 = vadd.f32 0.0, %v10475
      %v10477 = vpop.f32.mrb[0].mxu0
      %v10478 = vpop.f32.mrb[0].mxu0
      %v10479 = vadd.f32 0.0, %v10478
      %v10480 = vpop.f32.mrb[0].mxu0
      %10481 = vmatprep.mubr.bf16.mxu0 0
      %10482 = vmatmul.mubr.bf16.gmra.mrb[0].mxu0 %v10351
      %v10483 = vpop.f32.mrb[0].mxu0
      %v10484 = vadd.f32 0.0, %v10483
      %v10485 = vpop.f32.mrb[0].mxu0
      %v10486 = vpop.f32.mrb[0].mxu0
      %v10487 = vadd.f32 0.0, %v10486
      %v10488 = vpop.f32.mrb[0].mxu0
      %10489 = vmatprep.mubr.bf16.mxu0 0
      %10490 = vmatmul.mubr.bf16.gmra.mrb[0].mxu0 %v10354
      %v10491 = vpop.f32.mrb[0].mxu0
      %v10492 = vadd.f32 0.0, %v10491
      %v10493 = vpop.f32.mrb[0].mxu0
      %v10494 = vpop.f32.mrb[0].mxu0
      %v10495 = vadd.f32 0.0, %v10494
      %v10496 = vpop.f32.mrb[0].mxu0
      %10497 = vmatprep.mubr.bf16.mxu0 0
      %10498 = vmatmul.mubr.bf16.gmra.mrb[0].mxu0 %v10357
      %v10499 = vpop.f32.mrb[0].mxu0
      %v10500 = vadd.f32 0.0, %v10499
      %v10501 = vpop.f32.mrb[0].mxu0
      %v10502 = vpop.f32.mrb[0].mxu0
      %v10503 = vadd.f32 0.0, %v10502
      %v10504 = vpop.f32.mrb[0].mxu0
      %10505 = vmatprep.mubr.bf16.mxu0 0
      %10506 = vmatmul.mubr.bf16.gmra.mrb[0].mxu0 %v10360
      %v10507 = vpop.f32.mrb[0].mxu0
      %v10508 = vadd.f32 0.0, %v10507
      %v10509 = vpop.f32.mrb[0].mxu0
      %v10510 = vpop.f32.mrb[0].mxu0
      %v10511 = vadd.f32 0.0, %v10510
      %v10512 = vpop.f32.mrb[0].mxu0
      %10513 = vmatprep.mubr.bf16.mxu0 0
      %10514 = vmatmul.mubr.bf16.gmra.mrb[0].mxu0 %v10363
      %v10515 = vpop.f32.mrb[0].mxu0
      %v10516 = vadd.f32 0.0, %v10515
      %v10517 = vpop.f32.mrb[0].mxu0
      %v10518 = vpop.f32.mrb[0].mxu0
      %v10519 = vadd.f32 0.0, %v10518
      %v10520 = vpop.f32.mrb[0].mxu0
      %10521 = vmatprep.mubr.bf16.mxu0 0
      %10522 = vmatmul.mubr.bf16.gmra.mrb[0].mxu0 %v10366
      %v10523 = vpop.f32.mrb[0].mxu0
      %v10524 = vadd.f32 0.0, %v10523
      %v10525 = vpop.f32.mrb[0].mxu0
      %v10526 = vpop.f32.mrb[0].mxu0
      %v10527 = vadd.f32 0.0, %v10526
      %v10528 = vpop.f32.mrb[0].mxu0
      %10529 = vmatprep.mubr.bf16.mxu0 0
      %10530 = vmatmul.mubr.bf16.gmra.mrb[0].mxu0 %v10369
      %v10531 = vpop.f32.mrb[0].mxu0
      %v10532 = vadd.f32 0.0, %v10531
      %v10533 = vpop.f32.mrb[0].mxu0
      %v10534 = vpop.f32.mrb[0].mxu0
      %v10535 = vadd.f32 0.0, %v10534
      %v10536 = vpop.f32.mrb[0].mxu0
      %10537 = vmatprep.mubr.bf16.mxu0 0
      %10538 = vmatmul.mubr.bf16.gmra.mrb[0].mxu0 %v10372
      %v10539 = vpop.f32.mrb[0].mxu0
      %v10540 = vadd.f32 0.0, %v10539
      %v10541 = vpop.f32.mrb[0].mxu0
      %v10542 = vpop.f32.mrb[0].mxu0
      %v10543 = vadd.f32 0.0, %v10542
      %v10544 = vpop.f32.mrb[0].mxu0
      %10545 = vmatprep.mubr.bf16.mxu0 0
      %10546 = vmatmul.mubr.bf16.gmra.mrb[0].mxu0 %v10375
      %v10547 = vpop.f32.mrb[0].mxu0
      %v10548 = vadd.f32 0.0, %v10547
      %v10549 = vpop.f32.mrb[0].mxu0
      %v10550 = vpop.f32.mrb[0].mxu0
      %v10551 = vadd.f32 0.0, %v10550
      %v10552 = vpop.f32.mrb[0].mxu0
      %10553 = vdwg.mxu0
      %v10590 = vrot.slane %v10412, 5
      %v10591 = vrot.slane %v10415, 5
      %v10592 = vsel %vm5946, %v10590, %v10591
      %v10593 = vrot.slane %v10420, 5
      %v10594 = vsel %vm5946, %v10591, %v10593
      %v10595 = vrot.slane %v10423, 5
      %v10596 = vsel %vm5946, %v10593, %v10595
      %v10597 = vrot.slane %v10428, 5
      %v10598 = vsel %vm5946, %v10595, %v10597
      %v10599 = vrot.slane %v10431, 5
      %v10600 = vsel %vm5946, %v10597, %v10599
      %v10601 = vrot.slane %v10436, 5
      %v10602 = vsel %vm5946, %v10599, %v10601
      %v10603 = vrot.slane %v10439, 5
      %v10604 = vsel %vm5946, %v10601, %v10603
      %v10605 = vrot.slane %v10444, 5
      %v10606 = vsel %vm5946, %v10603, %v10605
      %v10607 = vrot.slane %v10447, 5
      %v10608 = vsel %vm5946, %v10605, %v10607
      %v10609 = vrot.slane %v10452, 5
      %v10610 = vsel %vm5946, %v10607, %v10609
      %v10611 = vrot.slane %v10455, 5
      %v10612 = vsel %vm5946, %v10609, %v10611
      %v10613 = vrot.slane %v10460, 5
      %v10614 = vsel %vm5946, %v10611, %v10613
      %v10615 = vrot.slane %v10463, 5
      %v10616 = vsel %vm5946, %v10613, %v10615
      %v10617 = vrot.slane %v10468, 5
      %v10618 = vsel %vm5946, %v10615, %v10617
      %v10619 = vrot.slane %v10471, 5
      %v10620 = vsel %vm5946, %v10617, %v10619
      %v10621 = vrot.slane %v10476, 5
      %v10622 = vsel %vm5946, %v10619, %v10621
      %v10623 = vrot.slane %v10479, 5
      %v10624 = vsel %vm5946, %v10621, %v10623
      %v10625 = vrot.slane %v10484, 5
      %v10626 = vsel %vm5946, %v10623, %v10625
      %v10627 = vrot.slane %v10487, 5
      %v10628 = vsel %vm5946, %v10625, %v10627
      %v10629 = vrot.slane %v10492, 5
      %v10630 = vsel %vm5946, %v10627, %v10629
      %v10631 = vrot.slane %v10495, 5
      %v10632 = vsel %vm5946, %v10629, %v10631
      %v10633 = vrot.slane %v10500, 5
      %v10634 = vsel %vm5946, %v10631, %v10633
      %v10635 = vrot.slane %v10503, 5
      %v10636 = vsel %vm5946, %v10633, %v10635
      %v10637 = vrot.slane %v10508, 5
      %v10638 = vsel %vm5946, %v10635, %v10637
      %v10639 = vrot.slane %v10511, 5
      %v10640 = vsel %vm5946, %v10637, %v10639
      %v10641 = vrot.slane %v10516, 5
      %v10642 = vsel %vm5946, %v10639, %v10641
      %v10643 = vrot.slane %v10519, 5
      %v10644 = vsel %vm5946, %v10641, %v10643
      %v10645 = vrot.slane %v10524, 5
      %v10646 = vsel %vm5946, %v10643, %v10645
      %v10647 = vrot.slane %v10527, 5
      %v10648 = vsel %vm5946, %v10645, %v10647
      %v10649 = vrot.slane %v10532, 5
      %v10650 = vsel %vm5946, %v10647, %v10649
      %v10651 = vrot.slane %v10535, 5
      %v10652 = vsel %vm5946, %v10649, %v10651
      %v10653 = vrot.slane %v10540, 5
      %v10654 = vsel %vm5946, %v10651, %v10653
      %v10655 = vrot.slane %v10543, 5
      %v10656 = vsel %vm5946, %v10653, %v10655
      %v10657 = vrot.slane %v10548, 5
      %v10658 = vsel %vm5946, %v10655, %v10657
      %v10659 = vrot.slane %v10551, 5
      %v10660 = vsel %vm5946, %v10657, %v10659
      %v10698 = vadd.f32 %v10212, %v10590
      %v10699 = vadd.f32 %v10213, %v10592
      %v10700 = vadd.f32 %v10214, %v10594
      %v10701 = vadd.f32 %v10215, %v10596
      %v10702 = vadd.f32 %v10216, %v10598
      %v10703 = vadd.f32 %v10217, %v10600
      %v10704 = vadd.f32 %v10218, %v10602
      %v10705 = vadd.f32 %v10219, %v10604
      %v10706 = vadd.f32 %v10220, %v10606
      %v10707 = vadd.f32 %v10221, %v10608
      %v10708 = vadd.f32 %v10222, %v10610
      %v10709 = vadd.f32 %v10223, %v10612
      %v10710 = vadd.f32 %v10224, %v10614
      %v10711 = vadd.f32 %v10225, %v10616
      %v10712 = vadd.f32 %v10226, %v10618
      %v10713 = vadd.f32 %v10227, %v10620
      %v10714 = vadd.f32 %v10228, %v10622
      %v10715 = vadd.f32 %v10229, %v10624
      %v10716 = vadd.f32 %v10230, %v10626
      %v10717 = vadd.f32 %v10231, %v10628
      %v10718 = vadd.f32 %v10232, %v10630
      %v10719 = vadd.f32 %v10233, %v10632
      %v10720 = vadd.f32 %v10234, %v10634
      %v10721 = vadd.f32 %v10235, %v10636
      %v10722 = vadd.f32 %v10236, %v10638
      %v10723 = vadd.f32 %v10237, %v10640
      %v10724 = vadd.f32 %v10238, %v10642
      %v10725 = vadd.f32 %v10239, %v10644
      %v10726 = vadd.f32 %v10240, %v10646
      %v10727 = vadd.f32 %v10241, %v10648
      %v10728 = vadd.f32 %v10242, %v10650
      %v10729 = vadd.f32 %v10243, %v10652
      %v10730 = vadd.f32 %v10244, %v10654
      %v10731 = vadd.f32 %v10245, %v10656
      %v10732 = vadd.f32 %v10246, %v10658
      %v10733 = vadd.f32 %v10247, %v10660
      %v10734 = vadd.f32 %v10248, %v10659
      %v10735 = vmax.f32 %v10698, 0.0
      %v10736 = vmax.f32 %v10699, 0.0
      %v10737 = vmax.f32 %v10700, 0.0
      %v10738 = vmax.f32 %v10701, 0.0
      %v10739 = vmax.f32 %v10702, 0.0
      %v10740 = vmax.f32 %v10703, 0.0
      %v10741 = vmax.f32 %v10704, 0.0
      %v10742 = vmax.f32 %v10705, 0.0
      %v10743 = vmax.f32 %v10706, 0.0
      %v10744 = vmax.f32 %v10707, 0.0
      %v10745 = vmax.f32 %v10708, 0.0
      %v10746 = vmax.f32 %v10709, 0.0
      %v10747 = vmax.f32 %v10710, 0.0
      %v10748 = vmax.f32 %v10711, 0.0
      %v10749 = vmax.f32 %v10712, 0.0
      %v10750 = vmax.f32 %v10713, 0.0
      %v10751 = vmax.f32 %v10714, 0.0
      %v10752 = vmax.f32 %v10715, 0.0
      %v10753 = vmax.f32 %v10716, 0.0
      %v10754 = vmax.f32 %v10717, 0.0
      %v10755 = vmax.f32 %v10718, 0.0
      %v10756 = vmax.f32 %v10719, 0.0
      %v10757 = vmax.f32 %v10720, 0.0
      %v10758 = vmax.f32 %v10721, 0.0
      %v10759 = vmax.f32 %v10722, 0.0
      %v10760 = vmax.f32 %v10723, 0.0
      %v10761 = vmax.f32 %v10724, 0.0
      %v10762 = vmax.f32 %v10725, 0.0
      %v10763 = vmax.f32 %v10726, 0.0
      %v10764 = vmax.f32 %v10727, 0.0
      %v10765 = vmax.f32 %v10728, 0.0
      %v10766 = vmax.f32 %v10729, 0.0
      %v10767 = vmax.f32 %v10730, 0.0
      %v10768 = vmax.f32 %v10731, 0.0
      %v10769 = vmax.f32 %v10732, 0.0
      %v10770 = vmax.f32 %v10733, 0.0
      %v10771 = vmax.f32 %v10734, 0.0
      %v10772 = vpack.c.bf16 %v10736, %v10735
      %v10773 = vpack.c.bf16 %v10738, %v10737
      %v10774 = vpack.c.bf16 %v10740, %v10739
      %v10775 = vpack.c.bf16 %v10742, %v10741
      %v10776 = vpack.c.bf16 %v10744, %v10743
      %v10777 = vpack.c.bf16 %v10746, %v10745
      %v10778 = vpack.c.bf16 %v10748, %v10747
      %v10779 = vpack.c.bf16 %v10750, %v10749
      %v10780 = vpack.c.bf16 %v10752, %v10751
      %v10781 = vpack.c.bf16 %v10754, %v10753
      %v10782 = vpack.c.bf16 %v10756, %v10755
      %v10783 = vpack.c.bf16 %v10758, %v10757
      %v10784 = vpack.c.bf16 %v10760, %v10759
      %v10785 = vpack.c.bf16 %v10762, %v10761
      %v10786 = vpack.c.bf16 %v10764, %v10763
      %v10787 = vpack.c.bf16 %v10766, %v10765
      %v10788 = vpack.c.bf16 %v10768, %v10767
      %v10789 = vpack.c.bf16 %v10770, %v10769
      %v10790 = vpack.c.bf16 %v10771, %v10771
      %v10810 = vunpack.c.l.b16 %v10772
      %v10811 = vunpack.c.h.b16 %v10772
      %v10812 = vunpack.c.l.b16 %v10773
      %v10813 = vunpack.c.h.b16 %v10773
      %v10814 = vunpack.c.l.b16 %v10774
      %v10815 = vunpack.c.h.b16 %v10774
      %v10816 = vunpack.c.l.b16 %v10775
      %v10817 = vunpack.c.h.b16 %v10775
      %v10818 = vunpack.c.l.b16 %v10776
      %v10819 = vunpack.c.h.b16 %v10776
      %v10820 = vunpack.c.l.b16 %v10777
      %v10821 = vunpack.c.h.b16 %v10777
      %v10822 = vunpack.c.l.b16 %v10778
      %v10823 = vunpack.c.h.b16 %v10778
      %v10824 = vunpack.c.l.b16 %v10779
      %v10825 = vunpack.c.h.b16 %v10779
      %v10826 = vunpack.c.l.b16 %v10780
      %v10827 = vunpack.c.h.b16 %v10780
      %v10828 = vunpack.c.l.b16 %v10781
      %v10829 = vunpack.c.h.b16 %v10781
      %v10830 = vunpack.c.l.b16 %v10782
      %v10831 = vunpack.c.h.b16 %v10782
      %v10832 = vunpack.c.l.b16 %v10783
      %v10833 = vunpack.c.h.b16 %v10783
      %v10834 = vunpack.c.l.b16 %v10784
      %v10835 = vunpack.c.h.b16 %v10784
      %v10836 = vunpack.c.l.b16 %v10785
      %v10837 = vunpack.c.h.b16 %v10785
      %v10838 = vunpack.c.l.b16 %v10786
      %v10839 = vunpack.c.h.b16 %v10786
      %v10840 = vunpack.c.l.b16 %v10787
      %v10841 = vunpack.c.h.b16 %v10787
      %v10842 = vunpack.c.l.b16 %v10788
      %v10843 = vunpack.c.h.b16 %v10788
      %v10844 = vunpack.c.l.b16 %v10789
      %v10845 = vunpack.c.h.b16 %v10789
      %v10846 = vunpack.c.l.b16 %v10790
      %v10847 = vpack.c.b16 %v10810, %v10810
      %v10848 = vpack.c.b16 %v10811, %v10811
      %v10849 = vpack.c.b16 %v10812, %v10812
      %v10850 = vpack.c.b16 %v10813, %v10813
      %v10851 = vpack.c.b16 %v10814, %v10814
      %v10852 = vpack.c.b16 %v10815, %v10815
      %v10853 = vpack.c.b16 %v10816, %v10816
      %v10854 = vpack.c.b16 %v10817, %v10817
      %v10855 = vpack.c.b16 %v10818, %v10818
      %v10856 = vpack.c.b16 %v10819, %v10819
      %v10857 = vpack.c.b16 %v10820, %v10820
      %v10858 = vpack.c.b16 %v10821, %v10821
      %v10859 = vpack.c.b16 %v10822, %v10822
      %v10860 = vpack.c.b16 %v10823, %v10823
      %v10861 = vpack.c.b16 %v10824, %v10824
      %v10862 = vpack.c.b16 %v10825, %v10825
      %v10863 = vpack.c.b16 %v10826, %v10826
      %v10864 = vpack.c.b16 %v10827, %v10827
      %v10865 = vpack.c.b16 %v10828, %v10828
      %v10866 = vpack.c.b16 %v10829, %v10829
      %v10867 = vpack.c.b16 %v10830, %v10830
      %v10868 = vpack.c.b16 %v10831, %v10831
      %v10869 = vpack.c.b16 %v10832, %v10832
      %v10870 = vpack.c.b16 %v10833, %v10833
      %v10871 = vpack.c.b16 %v10834, %v10834
      %v10872 = vpack.c.b16 %v10835, %v10835
      %v10873 = vpack.c.b16 %v10836, %v10836
      %v10874 = vpack.c.b16 %v10837, %v10837
      %v10875 = vpack.c.b16 %v10838, %v10838
      %v10876 = vpack.c.b16 %v10839, %v10839
      %v10877 = vpack.c.b16 %v10840, %v10840
      %v10878 = vpack.c.b16 %v10841, %v10841
      %v10879 = vpack.c.b16 %v10842, %v10842
      %v10880 = vpack.c.b16 %v10843, %v10843
      %v10881 = vpack.c.b16 %v10844, %v10844
      %v10882 = vpack.c.b16 %v10845, %v10845
      %v10883 = vpack.c.b16 %v10846, %v10846
      %vm10884 = vsmask.f32 2304
      %vm10885 = vsmask.f32 6416
      %vm10886 = vmor %vm10884, %vm10885
      %v10888 = vshrl.u32 %v10847, 16
      %v10890 = vrot.slane %v10888, 5
      %v10891 = vshll.u32 %v10847, 16
      %v10893 = vrot.slane %v10891, 6
      %v10894 = vor.u32 %v10890, %v10893
      %v10895 = vrot.slane %v10894, 4
      %v10897 = vshrl.u32 %v10848, 16
      %v10899 = vrot.slane %v10897, 5
      %v10900 = vshll.u32 %v10848, 16
      %v10902 = vrot.slane %v10900, 6
      %v10903 = vor.u32 %v10899, %v10902
      %v10904 = vsel %vm10886, %v10895, %v10903
      %v10905 = vrot.slane %v10903, 4
      %v10907 = vshrl.u32 %v10849, 16
      %v10909 = vrot.slane %v10907, 5
      %v10910 = vshll.u32 %v10849, 16
      %v10912 = vrot.slane %v10910, 6
      %v10913 = vor.u32 %v10909, %v10912
      %v10914 = vsel %vm10886, %v10905, %v10913
      %v10915 = vrot.slane %v10913, 4
      %v10917 = vshrl.u32 %v10850, 16
      %v10919 = vrot.slane %v10917, 5
      %v10920 = vshll.u32 %v10850, 16
      %v10922 = vrot.slane %v10920, 6
      %v10923 = vor.u32 %v10919, %v10922
      %v10924 = vsel %vm10886, %v10915, %v10923
      %v10925 = vrot.slane %v10923, 4
      %v10927 = vshrl.u32 %v10851, 16
      %v10929 = vrot.slane %v10927, 5
      %v10930 = vshll.u32 %v10851, 16
      %v10932 = vrot.slane %v10930, 6
      %v10933 = vor.u32 %v10929, %v10932
      %v10934 = vsel %vm10886, %v10925, %v10933
      %v10935 = vrot.slane %v10933, 4
      %v10937 = vshrl.u32 %v10852, 16
      %v10939 = vrot.slane %v10937, 5
      %v10940 = vshll.u32 %v10852, 16
      %v10942 = vrot.slane %v10940, 6
      %v10943 = vor.u32 %v10939, %v10942
      %v10944 = vsel %vm10886, %v10935, %v10943
      %v10945 = vrot.slane %v10943, 4
      %v10947 = vshrl.u32 %v10853, 16
      %v10949 = vrot.slane %v10947, 5
      %v10950 = vshll.u32 %v10853, 16
      %v10952 = vrot.slane %v10950, 6
      %v10953 = vor.u32 %v10949, %v10952
      %v10954 = vsel %vm10886, %v10945, %v10953
      %v10955 = vrot.slane %v10953, 4
      %v10957 = vshrl.u32 %v10854, 16
      %v10959 = vrot.slane %v10957, 5
      %v10960 = vshll.u32 %v10854, 16
      %v10962 = vrot.slane %v10960, 6
      %v10963 = vor.u32 %v10959, %v10962
      %v10964 = vsel %vm10886, %v10955, %v10963
      %v10965 = vrot.slane %v10963, 4
      %v10967 = vshrl.u32 %v10855, 16
      %v10969 = vrot.slane %v10967, 5
      %v10970 = vshll.u32 %v10855, 16
      %v10972 = vrot.slane %v10970, 6
      %v10973 = vor.u32 %v10969, %v10972
      %v10974 = vsel %vm10886, %v10965, %v10973
      %v10975 = vrot.slane %v10973, 4
      %v10977 = vshrl.u32 %v10856, 16
      %v10979 = vrot.slane %v10977, 5
      %v10980 = vshll.u32 %v10856, 16
      %v10982 = vrot.slane %v10980, 6
      %v10983 = vor.u32 %v10979, %v10982
      %v10984 = vsel %vm10886, %v10975, %v10983
      %v10985 = vrot.slane %v10983, 4
      %v10987 = vshrl.u32 %v10857, 16
      %v10989 = vrot.slane %v10987, 5
      %v10990 = vshll.u32 %v10857, 16
      %v10992 = vrot.slane %v10990, 6
      %v10993 = vor.u32 %v10989, %v10992
      %v10994 = vsel %vm10886, %v10985, %v10993
      %v10995 = vrot.slane %v10993, 4
      %v10997 = vshrl.u32 %v10858, 16
      %v10999 = vrot.slane %v10997, 5
      %v11000 = vshll.u32 %v10858, 16
      %v11002 = vrot.slane %v11000, 6
      %v11003 = vor.u32 %v10999, %v11002
      %v11004 = vsel %vm10886, %v10995, %v11003
      %v11005 = vrot.slane %v11003, 4
      %v11007 = vshrl.u32 %v10859, 16
      %v11009 = vrot.slane %v11007, 5
      %v11010 = vshll.u32 %v10859, 16
      %v11012 = vrot.slane %v11010, 6
      %v11013 = vor.u32 %v11009, %v11012
      %v11014 = vsel %vm10886, %v11005, %v11013
      %v11015 = vrot.slane %v11013, 4
      %v11017 = vshrl.u32 %v10860, 16
      %v11019 = vrot.slane %v11017, 5
      %v11020 = vshll.u32 %v10860, 16
      %v11022 = vrot.slane %v11020, 6
      %v11023 = vor.u32 %v11019, %v11022
      %v11024 = vsel %vm10886, %v11015, %v11023
      %v11025 = vrot.slane %v11023, 4
      %v11027 = vshrl.u32 %v10861, 16
      %v11029 = vrot.slane %v11027, 5
      %v11030 = vshll.u32 %v10861, 16
      %v11032 = vrot.slane %v11030, 6
      %v11033 = vor.u32 %v11029, %v11032
      %v11034 = vsel %vm10886, %v11025, %v11033
      %v11035 = vrot.slane %v11033, 4
      %v11037 = vshrl.u32 %v10862, 16
      %v11039 = vrot.slane %v11037, 5
      %v11040 = vshll.u32 %v10862, 16
      %v11042 = vrot.slane %v11040, 6
      %v11043 = vor.u32 %v11039, %v11042
      %v11044 = vsel %vm10886, %v11035, %v11043
      %v11045 = vrot.slane %v11043, 4
      %v11047 = vshrl.u32 %v10863, 16
      %v11049 = vrot.slane %v11047, 5
      %v11050 = vshll.u32 %v10863, 16
      %v11052 = vrot.slane %v11050, 6
      %v11053 = vor.u32 %v11049, %v11052
      %v11054 = vsel %vm10886, %v11045, %v11053
      %v11055 = vrot.slane %v11053, 4
      %v11057 = vshrl.u32 %v10864, 16
      %v11059 = vrot.slane %v11057, 5
      %v11060 = vshll.u32 %v10864, 16
      %v11062 = vrot.slane %v11060, 6
      %v11063 = vor.u32 %v11059, %v11062
      %v11064 = vsel %vm10886, %v11055, %v11063
      %v11065 = vrot.slane %v11063, 4
      %v11067 = vshrl.u32 %v10865, 16
      %v11069 = vrot.slane %v11067, 5
      %v11070 = vshll.u32 %v10865, 16
      %v11072 = vrot.slane %v11070, 6
      %v11073 = vor.u32 %v11069, %v11072
      %v11074 = vsel %vm10886, %v11065, %v11073
      %v11075 = vrot.slane %v11073, 4
      %v11077 = vshrl.u32 %v10866, 16
      %v11079 = vrot.slane %v11077, 5
      %v11080 = vshll.u32 %v10866, 16
      %v11082 = vrot.slane %v11080, 6
      %v11083 = vor.u32 %v11079, %v11082
      %v11084 = vsel %vm10886, %v11075, %v11083
      %v11085 = vrot.slane %v11083, 4
      %v11087 = vshrl.u32 %v10867, 16
      %v11089 = vrot.slane %v11087, 5
      %v11090 = vshll.u32 %v10867, 16
      %v11092 = vrot.slane %v11090, 6
      %v11093 = vor.u32 %v11089, %v11092
      %v11094 = vsel %vm10886, %v11085, %v11093
      %v11095 = vrot.slane %v11093, 4
      %v11097 = vshrl.u32 %v10868, 16
      %v11099 = vrot.slane %v11097, 5
      %v11100 = vshll.u32 %v10868, 16
      %v11102 = vrot.slane %v11100, 6
      %v11103 = vor.u32 %v11099, %v11102
      %v11104 = vsel %vm10886, %v11095, %v11103
      %v11105 = vrot.slane %v11103, 4
      %v11107 = vshrl.u32 %v10869, 16
      %v11109 = vrot.slane %v11107, 5
      %v11110 = vshll.u32 %v10869, 16
      %v11112 = vrot.slane %v11110, 6
      %v11113 = vor.u32 %v11109, %v11112
      %v11114 = vsel %vm10886, %v11105, %v11113
      %v11115 = vrot.slane %v11113, 4
      %v11117 = vshrl.u32 %v10870, 16
      %v11119 = vrot.slane %v11117, 5
      %v11120 = vshll.u32 %v10870, 16
      %v11122 = vrot.slane %v11120, 6
      %v11123 = vor.u32 %v11119, %v11122
      %v11124 = vsel %vm10886, %v11115, %v11123
      %v11125 = vrot.slane %v11123, 4
      %v11127 = vshrl.u32 %v10871, 16
      %v11129 = vrot.slane %v11127, 5
      %v11130 = vshll.u32 %v10871, 16
      %v11132 = vrot.slane %v11130, 6
      %v11133 = vor.u32 %v11129, %v11132
      %v11134 = vsel %vm10886, %v11125, %v11133
      %v11135 = vrot.slane %v11133, 4
      %v11137 = vshrl.u32 %v10872, 16
      %v11139 = vrot.slane %v11137, 5
      %v11140 = vshll.u32 %v10872, 16
      %v11142 = vrot.slane %v11140, 6
      %v11143 = vor.u32 %v11139, %v11142
      %v11144 = vsel %vm10886, %v11135, %v11143
      %v11145 = vrot.slane %v11143, 4
      %v11147 = vshrl.u32 %v10873, 16
      %v11149 = vrot.slane %v11147, 5
      %v11150 = vshll.u32 %v10873, 16
      %v11152 = vrot.slane %v11150, 6
      %v11153 = vor.u32 %v11149, %v11152
      %v11154 = vsel %vm10886, %v11145, %v11153
      %v11155 = vrot.slane %v11153, 4
      %v11157 = vshrl.u32 %v10874, 16
      %v11159 = vrot.slane %v11157, 5
      %v11160 = vshll.u32 %v10874, 16
      %v11162 = vrot.slane %v11160, 6
      %v11163 = vor.u32 %v11159, %v11162
      %v11164 = vsel %vm10886, %v11155, %v11163
      %v11165 = vrot.slane %v11163, 4
      %v11167 = vshrl.u32 %v10875, 16
      %v11169 = vrot.slane %v11167, 5
      %v11170 = vshll.u32 %v10875, 16
      %v11172 = vrot.slane %v11170, 6
      %v11173 = vor.u32 %v11169, %v11172
      %v11174 = vsel %vm10886, %v11165, %v11173
      %v11175 = vrot.slane %v11173, 4
      %v11177 = vshrl.u32 %v10876, 16
      %v11179 = vrot.slane %v11177, 5
      %v11180 = vshll.u32 %v10876, 16
      %v11182 = vrot.slane %v11180, 6
      %v11183 = vor.u32 %v11179, %v11182
      %v11184 = vsel %vm10886, %v11175, %v11183
      %v11185 = vrot.slane %v11183, 4
      %v11187 = vshrl.u32 %v10877, 16
      %v11189 = vrot.slane %v11187, 5
      %v11190 = vshll.u32 %v10877, 16
      %v11192 = vrot.slane %v11190, 6
      %v11193 = vor.u32 %v11189, %v11192
      %v11194 = vsel %vm10886, %v11185, %v11193
      %v11195 = vrot.slane %v11193, 4
      %v11197 = vshrl.u32 %v10878, 16
      %v11199 = vrot.slane %v11197, 5
      %v11200 = vshll.u32 %v10878, 16
      %v11202 = vrot.slane %v11200, 6
      %v11203 = vor.u32 %v11199, %v11202
      %v11204 = vsel %vm10886, %v11195, %v11203
      %v11205 = vrot.slane %v11203, 4
      %v11207 = vshrl.u32 %v10879, 16
      %v11209 = vrot.slane %v11207, 5
      %v11210 = vshll.u32 %v10879, 16
      %v11212 = vrot.slane %v11210, 6
      %v11213 = vor.u32 %v11209, %v11212
      %v11214 = vsel %vm10886, %v11205, %v11213
      %v11215 = vrot.slane %v11213, 4
      %v11217 = vshrl.u32 %v10880, 16
      %v11219 = vrot.slane %v11217, 5
      %v11220 = vshll.u32 %v10880, 16
      %v11222 = vrot.slane %v11220, 6
      %v11223 = vor.u32 %v11219, %v11222
      %v11224 = vsel %vm10886, %v11215, %v11223
      %v11225 = vrot.slane %v11223, 4
      %v11227 = vshrl.u32 %v10881, 16
      %v11229 = vrot.slane %v11227, 5
      %v11230 = vshll.u32 %v10881, 16
      %v11232 = vrot.slane %v11230, 6
      %v11233 = vor.u32 %v11229, %v11232
      %v11234 = vsel %vm10886, %v11225, %v11233
      %v11235 = vrot.slane %v11233, 4
      %v11237 = vshrl.u32 %v10882, 16
      %v11239 = vrot.slane %v11237, 5
      %v11240 = vshll.u32 %v10882, 16
      %v11242 = vrot.slane %v11240, 6
      %v11243 = vor.u32 %v11239, %v11242
      %v11244 = vsel %vm10886, %v11235, %v11243
      %v11245 = vrot.slane %v11243, 4
      %v11247 = vshrl.u32 %v10883, 16
      %v11249 = vrot.slane %v11247, 5
      %v11250 = vshll.u32 %v10883, 16
      %v11252 = vrot.slane %v11250, 6
      %v11253 = vor.u32 %v11249, %v11252
      %v11254 = vsel %vm10886, %v11245, %v11253
      %11291 = vst.msk [vmem:[%s251] sm:$0xf] %vm4823, %v10904
      %11292 = vst.msk [vmem:[%s251 + $0x4] sm:$0xf] %vm4823, %v10914
      %11293 = vst.msk [vmem:[%s251 + $0x8] sm:$0xf] %vm4823, %v10924
      %11294 = vst.msk [vmem:[%s251 + $0xc] sm:$0xf] %vm4823, %v10934
      %11295 = vst.msk [vmem:[%s251 + $0x10] sm:$0xf] %vm4823, %v10944
      %11296 = vst.msk [vmem:[%s251 + $0x14] sm:$0xf] %vm4823, %v10954
      %11297 = vst.msk [vmem:[%s251 + $0x18] sm:$0xf] %vm4823, %v10964
      %11298 = vst.msk [vmem:[%s251 + $0x1c] sm:$0xf] %vm4823, %v10974
      %11299 = vst.msk [vmem:[%s251 + $0x20] sm:$0xf] %vm4823, %v10984
      %11300 = vst.msk [vmem:[%s251 + $0x24] sm:$0xf] %vm4823, %v10994
      %11301 = vst.msk [vmem:[%s251 + $0x28] sm:$0xf] %vm4823, %v11004
      %11302 = vst.msk [vmem:[%s251 + $0x2c] sm:$0xf] %vm4823, %v11014
      %11303 = vst.msk [vmem:[%s251 + $0x30] sm:$0xf] %vm4823, %v11024
      %11304 = vst.msk [vmem:[%s251 + $0x34] sm:$0xf] %vm4823, %v11034
      %11305 = vst.msk [vmem:[%s251 + $0x38] sm:$0xf] %vm4823, %v11044
      %11306 = vst.msk [vmem:[%s251 + $0x3c] sm:$0xf] %vm4823, %v11054
      %11307 = vst.msk [vmem:[%s251 + $0x40] sm:$0xf] %vm4823, %v11064
      %11308 = vst.msk [vmem:[%s251 + $0x44] sm:$0xf] %vm4823, %v11074
      %11309 = vst.msk [vmem:[%s251 + $0x48] sm:$0xf] %vm4823, %v11084
      %11310 = vst.msk [vmem:[%s251 + $0x4c] sm:$0xf] %vm4823, %v11094
      %11311 = vst.msk [vmem:[%s251 + $0x50] sm:$0xf] %vm4823, %v11104
      %11312 = vst.msk [vmem:[%s251 + $0x54] sm:$0xf] %vm4823, %v11114
      %11313 = vst.msk [vmem:[%s251 + $0x58] sm:$0xf] %vm4823, %v11124
      %11314 = vst.msk [vmem:[%s251 + $0x5c] sm:$0xf] %vm4823, %v11134
      %11315 = vst.msk [vmem:[%s251 + $0x60] sm:$0xf] %vm4823, %v11144
      %11316 = vst.msk [vmem:[%s251 + $0x64] sm:$0xf] %vm4823, %v11154
      %11317 = vst.msk [vmem:[%s251 + $0x68] sm:$0xf] %vm4823, %v11164
      %11318 = vst.msk [vmem:[%s251 + $0x6c] sm:$0xf] %vm4823, %v11174
      %11319 = vst.msk [vmem:[%s251 + $0x70] sm:$0xf] %vm4823, %v11184
      %11320 = vst.msk [vmem:[%s251 + $0x74] sm:$0xf] %vm4823, %v11194
      %11321 = vst.msk [vmem:[%s251 + $0x78] sm:$0xf] %vm4823, %v11204
      %11322 = vst.msk [vmem:[%s251 + $0x7c] sm:$0xf] %vm4823, %v11214
      %11323 = vst.msk [vmem:[%s251 + $0x80] sm:$0xf] %vm4823, %v11224
      %11324 = vst.msk [vmem:[%s251 + $0x84] sm:$0xf] %vm4823, %v11234
      %11325 = vst.msk [vmem:[%s251 + $0x88] sm:$0xf] %vm4823, %v11244
      %11326 = vst.msk [vmem:[%s251 + $0x8c] sm:$0xf] %vm4823, %v11254
      %p11327 = scmp.lt.s32.totalorder %s17, 1
      %s11328 = scalar_select %p11327, %s17, 1
      %s11329 = smul.addr %s11328, 36
      %s11330 = smul.addr %s11329, 4
      %s11331 = scalar_lea.vmem %s6, %s11330
      // Predicated region
      $region45: #{tpu_custom_call.1} parent=43 // pred_check
        %p11332 = pneg %p166
      $region46: #{tpu_custom_call.1} parent=43 // pred_check_branch
        %11334 = sbr.rel (%p11332) target = $region48
      $region47: #{tpu_custom_call.1} parent=43 // pred_region
        _
      $region48: #{tpu_custom_call.1} parent=43 // pred_fallthru
        _
    $region44: #{tpu_custom_call.1} parent=5 // pred_fallthru
      _
    %p11335 = scmp.le.s32.totalorder 2, %s12
    // Predicated region
    $region49: #{tpu_custom_call.1} parent=5 // pred_check
      %p11336 = pneg %p11335
    $region50: #{tpu_custom_call.1} parent=5 // pred_check_branch
      %11338 = sbr.rel (%p11336) target = $region52
    $region51: #{tpu_custom_call.1} parent=5 // pred_region
      %s11339 = ssub.s32 %s12, 2
      // Predicated region
      $region53: #{tpu_custom_call.1} parent=51 // pred_check
        %p11340 = pneg %p172
      $region54: #{tpu_custom_call.1} parent=51 // pred_check_branch
        %11342 = sbr.rel (%p11340) target = $region56
      $region55: #{tpu_custom_call.1} parent=51 // pred_region
        %p11343 = scmp.lt.s32.totalorder %s18, 1
        %s11344 = scalar_select %p11343, %s18, 1
        %s11345 = smul.addr %s11344, 36
        %s11346 = smul.addr %s11345, 4
        %s11347 = scalar_lea.vmem %s6, %s11346
      $region56: #{tpu_custom_call.1} parent=51 // pred_fallthru
        _
    $region52: #{tpu_custom_call.1} parent=5 // pred_fallthru
      _
  $region6: #{tpu_custom_call.1} parent=0 // loop_footer
    %s16 = sadd.s32 1, %s12
  $region7: #{tpu_custom_call.1} parent=0 // loop_footer_branch
    %11 = sbr.rel target = $region3
  $region8: #{tpu_custom_call.1} parent=0 // loop_exit
    _

</llo_original>
